<compile_context>
chip_gen: v6e
topology: v6e:2x2x1
jax: 0.10.0
libtpu: 0.0.40
codegen_flags: <defaults>
</compile_context>

<pallas_src>
import numpy as np
import jax
import jax.numpy as jnp
from jax import lax
from jax.experimental import pallas as pl
from jax.experimental.pallas import tpu as pltpu

_BN_EPS = 1e-5
_LEAKY_SLOPE = 0.2


# ---------------------------------------------------------------------------
# Host-side (numpy) constant builders.  Square spatial maps assumed (true for
# every stage of this autoencoder).
# ---------------------------------------------------------------------------
def _interp_matrix(n_in):
  """(2*n_in, n_in) bilinear x2 interpolation matrix, align_corners=True."""
  n_out = 2 * n_in
  a = np.zeros((n_out, n_in), np.float64)
  if n_in == 1:
    a[:, 0] = 1.0
    return a
  scale = (n_in - 1) / (n_out - 1)
  for o in range(n_out):
    f = o * scale
    lo = int(np.floor(f))
    hi = min(lo + 1, n_in - 1)
    w = f - lo
    a[o, lo] += 1.0 - w
    a[o, hi] += w
  return a


def _sel_conv(k, stride, pad, n_in):
  """Conv2d row selection: R[t, o, i] = 1 iff i == t + stride*o - pad."""
  n_out = (n_in + 2 * pad - k) // stride + 1
  r = np.zeros((k, n_out, n_in), np.float64)
  for t in range(k):
    for o in range(n_out):
      i = t + stride * o - pad
      if 0 <= i < n_in:
        r[t, o, i] = 1.0
  return r


def _sel_upconv(k, pad, n_in):
  """bilinear x2 upsample followed by a stride-1 conv, folded together."""
  a = _interp_matrix(n_in)                     # (2*n_in, n_in)
  n_up = 2 * n_in
  n_out = n_up + 2 * pad - k + 1
  r = np.zeros((k, n_out, n_in), np.float64)
  for t in range(k):
    for o in range(n_out):
      u = t + o - pad
      if 0 <= u < n_up:
        r[t, o, :] = a[u, :]
  return r


def _sel_tconv(k, stride, pad, n_in):
  """ConvTranspose2d scatter: output o receives input i through tap t iff
  o == stride*i + t - pad."""
  n_out = (n_in - 1) * stride - 2 * pad + k
  r = np.zeros((k, n_out, n_in), np.float64)
  for t in range(k):
    for i in range(n_in):
      o = stride * i + t - pad
      if 0 <= o < n_out:
        r[t, o, i] = 1.0
  return r


def _layer_consts(w, b, sel, n_batch, gamma=None, beta=None):
  """Fold one layer into (Lcat, C3, vec, B) constants.

  w   : (Cout, Cin, k, k) forward-conv-oriented weights
  sel : (k, Ho, Hin) per-tap row-selection / interpolation matrix; the same
        structure (transposed) is used for columns (square maps).
  """
  w = np.asarray(w, np.float64)
  b = np.asarray(b, np.float64)
  cout, cin, k, _ = w.shape
  ho, hin = sel.shape[1], sel.shape[2]
  # L_{kj}[(co,n,i), (c,n',h)] = [n==n'] * sum_ki w[co,c,ki,kj] * sel[ki,i,h]
  t = np.einsum('ocqk,qih->koich', w, sel)                 # (k,Cout,Ho,Cin,Hin)
  l6 = np.einsum('koich,nm->konicmh', t, np.eye(n_batch))
  lcat = l6.reshape(k * cout * n_batch * ho, cin * n_batch * hin)
  c3 = np.ascontiguousarray(np.transpose(sel, (0, 2, 1)))  # (k, Win, Wout)
  s_out = cout * n_batch * ho
  bias_col = np.repeat(b, n_batch * ho).reshape(s_out, 1)
  if gamma is None:
    return lcat, c3, bias_col, None
  gcol = np.repeat(np.asarray(gamma, np.float64), n_batch * ho).reshape(s_out, 1)
  bcol = np.repeat(np.asarray(beta, np.float64), n_batch * ho).reshape(s_out, 1)
  vec = np.concatenate([bias_col, gcol, bcol], axis=0)      # (3*S_out, 1)
  bmat = np.kron(np.eye(cout), np.ones((n_batch * ho, n_batch * ho)))
  return lcat, c3, vec, bmat


def build_autoencoder_program(params, batch, spatial):
  """Lower the full Autoencoder into per-layer constants for ONE Pallas call.

  Returns (const_arrays, static_layer_meta, out_spatial)."""
  consts, meta = [], []

  def add(w, bias, sel, act, bn):
    gamma, beta = bn if bn is not None else (None, None)
    lcat, c3, vec, bmat = _layer_consts(w, bias, sel, batch, gamma, beta)
    k, ho, hin = sel.shape
    meta.append(dict(
        first=len(consts), taps=int(k), s_out=lcat.shape[0] // k,
        w_in=int(hin), w_out=int(ho), act=act, has_bn=bmat is not None,
        inv_count=1.0 / float(batch * ho * ho)))
    consts.extend([lcat, c3, vec] + ([bmat] if bmat is not None else []))
    return ho

  h = spatial
  # -------------------------------- encoder --------------------------------
  h = add(*params['l1'], _sel_conv(4, 2, 1, h), 'none', None)
  h = add(*params['l2'], _sel_conv(4, 2, 1, h), 'leaky', params['bn2'])
  h = add(*params['l3'], _sel_conv(4, 2, 1, h), 'leaky', params['bn3'])
  h = add(*params['l4'], _sel_conv(4, 2, 1, h), 'leaky', params['bn4'])
  h = add(*params['l5'], _sel_conv(2, 2, 0, h), 'leaky', params['bn5'])
  # ------------- decoder: ReLU -> bilinear x2 -> conv -> BN ----------------
  h = add(*params['d5'], _sel_upconv(1, 0, h), 'relu', params['bnd5'])
  h = add(*params['d4'], _sel_upconv(3, 1, h), 'relu', params['bnd4'])
  h = add(*params['d3'], _sel_upconv(3, 1, h), 'relu', params['bnd3'])
  h = add(*params['d2'], _sel_upconv(3, 1, h), 'relu', params['bnd2'])
  # -------- dlayer1: ReLU -> ConvTranspose2d(4, 2, 4, stride=2, pad=1) -----
  wt, bt = params['d1']
  w_eq = np.transpose(np.asarray(wt, np.float64), (1, 0, 2, 3))  # (Cout,Cin,4,4)
  h = add(w_eq, bt, _sel_tconv(4, 2, 1, h), 'relu', None)

  consts = [np.asarray(a, np.float32) for a in consts]
  return consts, meta, h


# ---------------------------------------------------------------------------
# The fused Pallas kernel: the whole network in one invocation.
# ---------------------------------------------------------------------------
def _fused_forward_kernel(meta):

  def kernel(*refs):
    x_ref, out_ref = refs[0], refs[-1]
    cref = refs[1:-1]
    h = x_ref[...]                      # (C*N*H, W) activation, stays on-chip
    for lm in meta:
      i0, s = lm['first'], lm['s_out']
      # -- activation this block applies to its input (identity for layer1) --
      if lm['act'] == 'leaky':
        h = jnp.where(h >= 0.0, h, _LEAKY_SLOPE * h)
      elif lm['act'] == 'relu':
        h = jnp.maximum(h, 0.0)
      # -- conv / upsample+conv / tconv:  acc = sum_j L_j @ h @ C_j + bias ----
      t = jnp.dot(cref[i0][...], h, preferred_element_type=jnp.float32)
      vec = cref[i0 + 2][...]
      acc = vec[0:s, :]                 # bias column, broadcasts over lanes
      for j in range(lm['taps']):
        tj = t[j * s:(j + 1) * s, :]    # sublane-aligned static slice
        cj = cref[i0 + 1][j]            # (W_in, W_out) tap matrix
        if lm['w_in'] == 1:
          acc = acc + tj * cj           # outer product (contraction dim == 1)
        else:
          acc = acc + jnp.dot(tj, cj, preferred_element_type=jnp.float32)
      # -- training-mode BatchNorm2d fused in the epilogue --------------------
      if lm['has_bn']:
        bmat = cref[i0 + 3][...]        # per-channel block-sum matrix
        rs = jnp.sum(acc, axis=1, keepdims=True)
        mean = jnp.dot(bmat, rs, preferred_element_type=jnp.float32) * lm['inv_count']
        d = acc - mean
        rq = jnp.sum(d * d, axis=1, keepdims=True)
        var = jnp.dot(bmat, rq, preferred_element_type=jnp.float32) * lm['inv_count']
        inv = lax.rsqrt(var + _BN_EPS)
        h = d * (inv * vec[s:2 * s, :]) + vec[2 * s:3 * s, :]
      else:
        h = acc
    out_ref[...] = h

  return kernel


def make_autoencoder_forward(meta):
  kernel = _fused_forward_kernel(meta)
  out_rows = meta[-1]['s_out']
  out_cols = meta[-1]['w_out']
  vspec = pl.BlockSpec(memory_space=pltpu.MemorySpace.VMEM)

  def forward(x_nchw, consts):
    n, c, hh, ww = x_nchw.shape
    x2d = jnp.transpose(x_nchw, (1, 0, 2, 3)).reshape(c * n * hh, ww)
    x2d = x2d.astype(jnp.float32)
    y2d = pl.pallas_call(
        kernel,
        out_shape=jax.ShapeDtypeStruct((out_rows, out_cols), jnp.float32),
        in_specs=[vspec] * (1 + len(consts)),
        out_specs=vspec,
        compiler_params=pltpu.CompilerParams(
            vmem_limit_bytes=16 * 1024 * 1024),
    )(x2d, *consts)
    cout = out_rows // (n * out_cols)
    y = y2d.reshape(cout, n, out_cols, out_cols)
    return jnp.transpose(y, (1, 0, 2, 3))   # back to NCHW

  return jax.jit(forward)


# ---------------------------------------------------------------------------
# Parameters (deterministic torch-like uniform init; BN gamma=1, beta=0).
# ---------------------------------------------------------------------------
def init_params(key, channel_array=(2, 4, 4, 8, 8, 16)):
  ca = channel_array

  def conv_p(k, cout, cin, ksz):
    k1, k2 = jax.random.split(k)
    bound = 1.0 / float(cin * ksz * ksz) ** 0.5
    w = jax.random.uniform(k1, (cout, cin, ksz, ksz), jnp.float32, -bound, bound)
    b = jax.random.uniform(k2, (cout,), jnp.float32, -bound, bound)
    return w, b

  def tconv_p(k, cin, cout, ksz):
    k1, k2 = jax.random.split(k)
    bound = 1.0 / float(cout * ksz * ksz) ** 0.5
    w = jax.random.uniform(k1, (cin, cout, ksz, ksz), jnp.float32, -bound, bound)
    b = jax.random.uniform(k2, (cout,), jnp.float32, -bound, bound)
    return w, b

  def bn_p(c):
    return jnp.ones((c,), jnp.float32), jnp.zeros((c,), jnp.float32)

  keys = jax.random.split(key, 10)
  return {
      "l1": conv_p(keys[0], ca[1], ca[0], 4),
      "l2": conv_p(keys[1], ca[2], ca[1], 4), "bn2": bn_p(ca[2]),
      "l3": conv_p(keys[2], ca[3], ca[2], 4), "bn3": bn_p(ca[3]),
      "l4": conv_p(keys[3], ca[4], ca[3], 4), "bn4": bn_p(ca[4]),
      "l5": conv_p(keys[4], ca[5], ca[4], 2), "bn5": bn_p(ca[5]),
      "d5": conv_p(keys[5], ca[4], ca[5], 1), "bnd5": bn_p(ca[4]),
      "d4": conv_p(keys[6], ca[3], ca[4], 3), "bnd4": bn_p(ca[3]),
      "d3": conv_p(keys[7], ca[2], ca[3], 3), "bnd3": bn_p(ca[2]),
      "d2": conv_p(keys[8], ca[1], ca[2], 3), "bnd2": bn_p(ca[1]),
      "d1": tconv_p(keys[9], ca[1], ca[0], 4),
  }


if __name__ == "__main__":
  key = jax.random.PRNGKey(0)
  kp, kx = jax.random.split(key)
  params = init_params(kp)
  # Input must be >= 32x32 spatially so layer5 (k=2, s=2, p=0) stays valid.
  N, C, H, W = 2, 2, 32, 32
  x = jax.random.normal(kx, (N, C, H, W), jnp.float32)  # NCHW like torch

  consts, meta, _ = build_autoencoder_program(params, N, H)
  fwd = make_autoencoder_forward(meta)
  out = fwd(x, consts)
  jax.block_until_ready(out)
  assert out.shape == (N, C, H, W), out.shape
  assert out.dtype == jnp.float32
  print("KERNEL_OK")
</pallas_src>

<mosaic_0001>
module attributes {stable_mosaic.version = 11 : i64} {
  func.func @kernel(%arg0: memref<128x32xf32, #tpu.memory_space<vmem>>, %arg1: memref<512x128xf32, #tpu.memory_space<vmem>>, %arg2: memref<4x32x16xf32, #tpu.memory_space<vmem>>, %arg3: memref<128x1xf32, #tpu.memory_space<vmem>>, %arg4: memref<256x128xf32, #tpu.memory_space<vmem>>, %arg5: memref<4x16x8xf32, #tpu.memory_space<vmem>>, %arg6: memref<192x1xf32, #tpu.memory_space<vmem>>, %arg7: memref<64x64xf32, #tpu.memory_space<vmem>>, %arg8: memref<256x64xf32, #tpu.memory_space<vmem>>, %arg9: memref<4x8x4xf32, #tpu.memory_space<vmem>>, %arg10: memref<192x1xf32, #tpu.memory_space<vmem>>, %arg11: memref<64x64xf32, #tpu.memory_space<vmem>>, %arg12: memref<128x64xf32, #tpu.memory_space<vmem>>, %arg13: memref<4x4x2xf32, #tpu.memory_space<vmem>>, %arg14: memref<96x1xf32, #tpu.memory_space<vmem>>, %arg15: memref<32x32xf32, #tpu.memory_space<vmem>>, %arg16: memref<64x32xf32, #tpu.memory_space<vmem>>, %arg17: memref<2x2x1xf32, #tpu.memory_space<vmem>>, %arg18: memref<96x1xf32, #tpu.memory_space<vmem>>, %arg19: memref<32x32xf32, #tpu.memory_space<vmem>>, %arg20: memref<32x32xf32, #tpu.memory_space<vmem>>, %arg21: memref<1x1x2xf32, #tpu.memory_space<vmem>>, %arg22: memref<96x1xf32, #tpu.memory_space<vmem>>, %arg23: memref<32x32xf32, #tpu.memory_space<vmem>>, %arg24: memref<192x32xf32, #tpu.memory_space<vmem>>, %arg25: memref<3x2x4xf32, #tpu.memory_space<vmem>>, %arg26: memref<192x1xf32, #tpu.memory_space<vmem>>, %arg27: memref<64x64xf32, #tpu.memory_space<vmem>>, %arg28: memref<192x64xf32, #tpu.memory_space<vmem>>, %arg29: memref<3x4x8xf32, #tpu.memory_space<vmem>>, %arg30: memref<192x1xf32, #tpu.memory_space<vmem>>, %arg31: memref<64x64xf32, #tpu.memory_space<vmem>>, %arg32: memref<384x64xf32, #tpu.memory_space<vmem>>, %arg33: memref<3x8x16xf32, #tpu.memory_space<vmem>>, %arg34: memref<384x1xf32, #tpu.memory_space<vmem>>, %arg35: memref<128x128xf32, #tpu.memory_space<vmem>>, %arg36: memref<512x128xf32, #tpu.memory_space<vmem>>, %arg37: memref<4x16x32xf32, #tpu.memory_space<vmem>>, %arg38: memref<128x1xf32, #tpu.memory_space<vmem>>, %arg39: memref<128x32xf32, #tpu.memory_space<vmem>>) attributes {dimension_semantics = [], scalar_prefetch = 0 : i64, scratch_operands = 0 : i64, tpu.core_type = #tpu.core_type<tc>} {
    %c0 = arith.constant 0 : index
    %c0_0 = arith.constant 0 : index
    %0 = vector.load %arg0[%c0, %c0_0] : memref<128x32xf32, #tpu.memory_space<vmem>>, vector<128x32xf32>
    %c0_1 = arith.constant 0 : index
    %c0_2 = arith.constant 0 : index
    %1 = vector.load %arg1[%c0_1, %c0_2] : memref<512x128xf32, #tpu.memory_space<vmem>>, vector<512x128xf32>
    %cst = arith.constant dense<0.000000e+00> : vector<512x32xf32>
    %2 = tpu.matmul %1, %0, %cst {dimension_numbers = #tpu.dot_dimension_numbers<[1], [0], [0], [1], [0, 0, 1, 1], [], []>} : vector<512x128xf32>, vector<128x32xf32>, vector<512x32xf32> -> vector<512x32xf32>
    %c0_3 = arith.constant 0 : index
    %c0_4 = arith.constant 0 : index
    %3 = vector.load %arg3[%c0_3, %c0_4] : memref<128x1xf32, #tpu.memory_space<vmem>>, vector<128x1xf32>
    %4 = vector.extract_strided_slice %2 {offsets = [0, 0], sizes = [128, 32], strides = [1, 1]} : vector<512x32xf32> to vector<128x32xf32>
    %c0_5 = arith.constant 0 : index
    %c0_6 = arith.constant 0 : index
    %c0_7 = arith.constant 0 : index
    %5 = vector.load %arg2[%c0_5, %c0_6, %c0_7] : memref<4x32x16xf32, #tpu.memory_space<vmem>>, vector<1x32x16xf32>
    %6 = vector.shape_cast %5 : vector<1x32x16xf32> to vector<32x16xf32>
    %cst_8 = arith.constant dense<0.000000e+00> : vector<128x16xf32>
    %7 = tpu.matmul %4, %6, %cst_8 {dimension_numbers = #tpu.dot_dimension_numbers<[1], [0], [0], [1], [0, 0, 1, 1], [], []>} : vector<128x32xf32>, vector<32x16xf32>, vector<128x16xf32> -> vector<128x16xf32>
    %8 = vector.broadcast %3 : vector<128x1xf32> to vector<128x16xf32>
    %9 = arith.addf %8, %7 : vector<128x16xf32>
    %10 = vector.extract_strided_slice %2 {offsets = [128, 0], sizes = [128, 32], strides = [1, 1]} : vector<512x32xf32> to vector<128x32xf32>
    %c1 = arith.constant 1 : index
    %c0_9 = arith.constant 0 : index
    %c0_10 = arith.constant 0 : index
    %11 = vector.load %arg2[%c1, %c0_9, %c0_10] : memref<4x32x16xf32, #tpu.memory_space<vmem>>, vector<1x32x16xf32>
    %12 = vector.shape_cast %11 : vector<1x32x16xf32> to vector<32x16xf32>
    %cst_11 = arith.constant dense<0.000000e+00> : vector<128x16xf32>
    %13 = tpu.matmul %10, %12, %cst_11 {dimension_numbers = #tpu.dot_dimension_numbers<[1], [0], [0], [1], [0, 0, 1, 1], [], []>} : vector<128x32xf32>, vector<32x16xf32>, vector<128x16xf32> -> vector<128x16xf32>
    %14 = arith.addf %9, %13 : vector<128x16xf32>
    %15 = vector.extract_strided_slice %2 {offsets = [256, 0], sizes = [128, 32], strides = [1, 1]} : vector<512x32xf32> to vector<128x32xf32>
    %c2 = arith.constant 2 : index
    %c0_12 = arith.constant 0 : index
    %c0_13 = arith.constant 0 : index
    %16 = vector.load %arg2[%c2, %c0_12, %c0_13] : memref<4x32x16xf32, #tpu.memory_space<vmem>>, vector<1x32x16xf32>
    %17 = vector.shape_cast %16 : vector<1x32x16xf32> to vector<32x16xf32>
    %cst_14 = arith.constant dense<0.000000e+00> : vector<128x16xf32>
    %18 = tpu.matmul %15, %17, %cst_14 {dimension_numbers = #tpu.dot_dimension_numbers<[1], [0], [0], [1], [0, 0, 1, 1], [], []>} : vector<128x32xf32>, vector<32x16xf32>, vector<128x16xf32> -> vector<128x16xf32>
    %19 = arith.addf %14, %18 : vector<128x16xf32>
    %20 = vector.extract_strided_slice %2 {offsets = [384, 0], sizes = [128, 32], strides = [1, 1]} : vector<512x32xf32> to vector<128x32xf32>
    %c3 = arith.constant 3 : index
    %c0_15 = arith.constant 0 : index
    %c0_16 = arith.constant 0 : index
    %21 = vector.load %arg2[%c3, %c0_15, %c0_16] : memref<4x32x16xf32, #tpu.memory_space<vmem>>, vector<1x32x16xf32>
    %22 = vector.shape_cast %21 : vector<1x32x16xf32> to vector<32x16xf32>
    %cst_17 = arith.constant dense<0.000000e+00> : vector<128x16xf32>
    %23 = tpu.matmul %20, %22, %cst_17 {dimension_numbers = #tpu.dot_dimension_numbers<[1], [0], [0], [1], [0, 0, 1, 1], [], []>} : vector<128x32xf32>, vector<32x16xf32>, vector<128x16xf32> -> vector<128x16xf32>
    %24 = arith.addf %19, %23 : vector<128x16xf32>
    %cst_18 = arith.constant 0.000000e+00 : f32
    %25 = vector.broadcast %cst_18 : f32 to vector<128x16xf32>
    %26 = arith.cmpf oge, %24, %25 : vector<128x16xf32>
    %cst_19 = arith.constant 2.000000e-01 : f32
    %27 = vector.broadcast %cst_19 : f32 to vector<128x16xf32>
    %28 = arith.mulf %27, %24 : vector<128x16xf32>
    %29 = arith.select %26, %24, %28 : vector<128x16xi1>, vector<128x16xf32>
    %c0_20 = arith.constant 0 : index
    %c0_21 = arith.constant 0 : index
    %30 = vector.load %arg4[%c0_20, %c0_21] : memref<256x128xf32, #tpu.memory_space<vmem>>, vector<256x128xf32>
    %cst_22 = arith.constant dense<0.000000e+00> : vector<256x16xf32>
    %31 = tpu.matmul %30, %29, %cst_22 {dimension_numbers = #tpu.dot_dimension_numbers<[1], [0], [0], [1], [0, 0, 1, 1], [], []>} : vector<256x128xf32>, vector<128x16xf32>, vector<256x16xf32> -> vector<256x16xf32>
    %c0_23 = arith.constant 0 : index
    %c0_24 = arith.constant 0 : index
    %32 = vector.load %arg6[%c0_23, %c0_24] : memref<192x1xf32, #tpu.memory_space<vmem>>, vector<192x1xf32>
    %33 = vector.extract_strided_slice %32 {offsets = [0, 0], sizes = [64, 1], strides = [1, 1]} : vector<192x1xf32> to vector<64x1xf32>
    %34 = vector.extract_strided_slice %31 {offsets = [0, 0], sizes = [64, 16], strides = [1, 1]} : vector<256x16xf32> to vector<64x16xf32>
    %c0_25 = arith.constant 0 : index
    %c0_26 = arith.constant 0 : index
    %c0_27 = arith.constant 0 : index
    %35 = vector.load %arg5[%c0_25, %c0_26, %c0_27] : memref<4x16x8xf32, #tpu.memory_space<vmem>>, vector<1x16x8xf32>
    %36 = vector.shape_cast %35 : vector<1x16x8xf32> to vector<16x8xf32>
    %cst_28 = arith.constant dense<0.000000e+00> : vector<64x8xf32>
    %37 = tpu.matmul %34, %36, %cst_28 {dimension_numbers = #tpu.dot_dimension_numbers<[1], [0], [0], [1], [0, 0, 1, 1], [], []>} : vector<64x16xf32>, vector<16x8xf32>, vector<64x8xf32> -> vector<64x8xf32>
    %38 = vector.broadcast %33 : vector<64x1xf32> to vector<64x8xf32>
    %39 = arith.addf %38, %37 : vector<64x8xf32>
    %40 = vector.extract_strided_slice %31 {offsets = [64, 0], sizes = [64, 16], strides = [1, 1]} : vector<256x16xf32> to vector<64x16xf32>
    %c1_29 = arith.constant 1 : index
    %c0_30 = arith.constant 0 : index
    %c0_31 = arith.constant 0 : index
    %41 = vector.load %arg5[%c1_29, %c0_30, %c0_31] : memref<4x16x8xf32, #tpu.memory_space<vmem>>, vector<1x16x8xf32>
    %42 = vector.shape_cast %41 : vector<1x16x8xf32> to vector<16x8xf32>
    %cst_32 = arith.constant dense<0.000000e+00> : vector<64x8xf32>
    %43 = tpu.matmul %40, %42, %cst_32 {dimension_numbers = #tpu.dot_dimension_numbers<[1], [0], [0], [1], [0, 0, 1, 1], [], []>} : vector<64x16xf32>, vector<16x8xf32>, vector<64x8xf32> -> vector<64x8xf32>
    %44 = arith.addf %39, %43 : vector<64x8xf32>
    %45 = vector.extract_strided_slice %31 {offsets = [128, 0], sizes = [64, 16], strides = [1, 1]} : vector<256x16xf32> to vector<64x16xf32>
    %c2_33 = arith.constant 2 : index
    %c0_34 = arith.constant 0 : index
    %c0_35 = arith.constant 0 : index
    %46 = vector.load %arg5[%c2_33, %c0_34, %c0_35] : memref<4x16x8xf32, #tpu.memory_space<vmem>>, vector<1x16x8xf32>
    %47 = vector.shape_cast %46 : vector<1x16x8xf32> to vector<16x8xf32>
    %cst_36 = arith.constant dense<0.000000e+00> : vector<64x8xf32>
    %48 = tpu.matmul %45, %47, %cst_36 {dimension_numbers = #tpu.dot_dimension_numbers<[1], [0], [0], [1], [0, 0, 1, 1], [], []>} : vector<64x16xf32>, vector<16x8xf32>, vector<64x8xf32> -> vector<64x8xf32>
    %49 = arith.addf %44, %48 : vector<64x8xf32>
    %50 = vector.extract_strided_slice %31 {offsets = [192, 0], sizes = [64, 16], strides = [1, 1]} : vector<256x16xf32> to vector<64x16xf32>
    %c3_37 = arith.constant 3 : index
    %c0_38 = arith.constant 0 : index
    %c0_39 = arith.constant 0 : index
    %51 = vector.load %arg5[%c3_37, %c0_38, %c0_39] : memref<4x16x8xf32, #tpu.memory_space<vmem>>, vector<1x16x8xf32>
    %52 = vector.shape_cast %51 : vector<1x16x8xf32> to vector<16x8xf32>
    %cst_40 = arith.constant dense<0.000000e+00> : vector<64x8xf32>
    %53 = tpu.matmul %50, %52, %cst_40 {dimension_numbers = #tpu.dot_dimension_numbers<[1], [0], [0], [1], [0, 0, 1, 1], [], []>} : vector<64x16xf32>, vector<16x8xf32>, vector<64x8xf32> -> vector<64x8xf32>
    %54 = arith.addf %49, %53 : vector<64x8xf32>
    %c0_41 = arith.constant 0 : index
    %c0_42 = arith.constant 0 : index
    %55 = vector.load %arg7[%c0_41, %c0_42] : memref<64x64xf32, #tpu.memory_space<vmem>>, vector<64x64xf32>
    %cst_43 = arith.constant dense<0.000000e+00> : vector<64xf32>
    %56 = vector.multi_reduction <add>, %54, %cst_43 [1] : vector<64x8xf32> to vector<64xf32>
    %57 = vector.shape_cast %56 : vector<64xf32> to vector<64x1xf32>
    %cst_44 = arith.constant dense<0.000000e+00> : vector<64x1xf32>
    %58 = tpu.matmul %55, %57, %cst_44 {dimension_numbers = #tpu.dot_dimension_numbers<[1], [0], [0], [1], [0, 0, 1, 1], [], []>} : vector<64x64xf32>, vector<64x1xf32>, vector<64x1xf32> -> vector<64x1xf32>
    %cst_45 = arith.constant 7.812500e-03 : f32
    %59 = vector.broadcast %cst_45 : f32 to vector<64x1xf32>
    %60 = arith.mulf %58, %59 : vector<64x1xf32>
    %61 = vector.broadcast %60 : vector<64x1xf32> to vector<64x8xf32>
    %62 = arith.subf %54, %61 : vector<64x8xf32>
    %63 = arith.mulf %62, %62 : vector<64x8xf32>
    %cst_46 = arith.constant dense<0.000000e+00> : vector<64xf32>
    %64 = vector.multi_reduction <add>, %63, %cst_46 [1] : vector<64x8xf32> to vector<64xf32>
    %65 = vector.shape_cast %64 : vector<64xf32> to vector<64x1xf32>
    %cst_47 = arith.constant dense<0.000000e+00> : vector<64x1xf32>
    %66 = tpu.matmul %55, %65, %cst_47 {dimension_numbers = #tpu.dot_dimension_numbers<[1], [0], [0], [1], [0, 0, 1, 1], [], []>} : vector<64x64xf32>, vector<64x1xf32>, vector<64x1xf32> -> vector<64x1xf32>
    %cst_48 = arith.constant 7.812500e-03 : f32
    %67 = vector.broadcast %cst_48 : f32 to vector<64x1xf32>
    %68 = arith.mulf %66, %67 : vector<64x1xf32>
    %cst_49 = arith.constant 9.99999974E-6 : f32
    %69 = vector.broadcast %cst_49 : f32 to vector<64x1xf32>
    %70 = arith.addf %68, %69 : vector<64x1xf32>
    %71 = math.rsqrt %70 : vector<64x1xf32>
    %72 = vector.extract_strided_slice %32 {offsets = [64, 0], sizes = [64, 1], strides = [1, 1]} : vector<192x1xf32> to vector<64x1xf32>
    %73 = arith.mulf %71, %72 : vector<64x1xf32>
    %74 = vector.broadcast %73 : vector<64x1xf32> to vector<64x8xf32>
    %75 = arith.mulf %62, %74 : vector<64x8xf32>
    %76 = vector.extract_strided_slice %32 {offsets = [128, 0], sizes = [64, 1], strides = [1, 1]} : vector<192x1xf32> to vector<64x1xf32>
    %77 = vector.broadcast %76 : vector<64x1xf32> to vector<64x8xf32>
    %78 = arith.addf %75, %77 : vector<64x8xf32>
    %cst_50 = arith.constant 0.000000e+00 : f32
    %79 = vector.broadcast %cst_50 : f32 to vector<64x8xf32>
    %80 = arith.cmpf oge, %78, %79 : vector<64x8xf32>
    %cst_51 = arith.constant 2.000000e-01 : f32
    %81 = vector.broadcast %cst_51 : f32 to vector<64x8xf32>
    %82 = arith.mulf %81, %78 : vector<64x8xf32>
    %83 = arith.select %80, %78, %82 : vector<64x8xi1>, vector<64x8xf32>
    %c0_52 = arith.constant 0 : index
    %c0_53 = arith.constant 0 : index
    %84 = vector.load %arg8[%c0_52, %c0_53] : memref<256x64xf32, #tpu.memory_space<vmem>>, vector<256x64xf32>
    %cst_54 = arith.constant dense<0.000000e+00> : vector<256x8xf32>
    %85 = tpu.matmul %84, %83, %cst_54 {dimension_numbers = #tpu.dot_dimension_numbers<[1], [0], [0], [1], [0, 0, 1, 1], [], []>} : vector<256x64xf32>, vector<64x8xf32>, vector<256x8xf32> -> vector<256x8xf32>
    %c0_55 = arith.constant 0 : index
    %c0_56 = arith.constant 0 : index
    %86 = vector.load %arg10[%c0_55, %c0_56] : memref<192x1xf32, #tpu.memory_space<vmem>>, vector<192x1xf32>
    %87 = vector.extract_strided_slice %86 {offsets = [0, 0], sizes = [64, 1], strides = [1, 1]} : vector<192x1xf32> to vector<64x1xf32>
    %88 = vector.extract_strided_slice %85 {offsets = [0, 0], sizes = [64, 8], strides = [1, 1]} : vector<256x8xf32> to vector<64x8xf32>
    %c0_57 = arith.constant 0 : index
    %c0_58 = arith.constant 0 : index
    %c0_59 = arith.constant 0 : index
    %89 = vector.load %arg9[%c0_57, %c0_58, %c0_59] : memref<4x8x4xf32, #tpu.memory_space<vmem>>, vector<1x8x4xf32>
    %90 = vector.shape_cast %89 : vector<1x8x4xf32> to vector<8x4xf32>
    %cst_60 = arith.constant dense<0.000000e+00> : vector<64x4xf32>
    %91 = tpu.matmul %88, %90, %cst_60 {dimension_numbers = #tpu.dot_dimension_numbers<[1], [0], [0], [1], [0, 0, 1, 1], [], []>} : vector<64x8xf32>, vector<8x4xf32>, vector<64x4xf32> -> vector<64x4xf32>
    %92 = vector.broadcast %87 : vector<64x1xf32> to vector<64x4xf32>
    %93 = arith.addf %92, %91 : vector<64x4xf32>
    %94 = vector.extract_strided_slice %85 {offsets = [64, 0], sizes = [64, 8], strides = [1, 1]} : vector<256x8xf32> to vector<64x8xf32>
    %c1_61 = arith.constant 1 : index
    %c0_62 = arith.constant 0 : index
    %c0_63 = arith.constant 0 : index
    %95 = vector.load %arg9[%c1_61, %c0_62, %c0_63] : memref<4x8x4xf32, #tpu.memory_space<vmem>>, vector<1x8x4xf32>
    %96 = vector.shape_cast %95 : vector<1x8x4xf32> to vector<8x4xf32>
    %cst_64 = arith.constant dense<0.000000e+00> : vector<64x4xf32>
    %97 = tpu.matmul %94, %96, %cst_64 {dimension_numbers = #tpu.dot_dimension_numbers<[1], [0], [0], [1], [0, 0, 1, 1], [], []>} : vector<64x8xf32>, vector<8x4xf32>, vector<64x4xf32> -> vector<64x4xf32>
    %98 = arith.addf %93, %97 : vector<64x4xf32>
    %99 = vector.extract_strided_slice %85 {offsets = [128, 0], sizes = [64, 8], strides = [1, 1]} : vector<256x8xf32> to vector<64x8xf32>
    %c2_65 = arith.constant 2 : index
    %c0_66 = arith.constant 0 : index
    %c0_67 = arith.constant 0 : index
    %100 = vector.load %arg9[%c2_65, %c0_66, %c0_67] : memref<4x8x4xf32, #tpu.memory_space<vmem>>, vector<1x8x4xf32>
    %101 = vector.shape_cast %100 : vector<1x8x4xf32> to vector<8x4xf32>
    %cst_68 = arith.constant dense<0.000000e+00> : vector<64x4xf32>
    %102 = tpu.matmul %99, %101, %cst_68 {dimension_numbers = #tpu.dot_dimension_numbers<[1], [0], [0], [1], [0, 0, 1, 1], [], []>} : vector<64x8xf32>, vector<8x4xf32>, vector<64x4xf32> -> vector<64x4xf32>
    %103 = arith.addf %98, %102 : vector<64x4xf32>
    %104 = vector.extract_strided_slice %85 {offsets = [192, 0], sizes = [64, 8], strides = [1, 1]} : vector<256x8xf32> to vector<64x8xf32>
    %c3_69 = arith.constant 3 : index
    %c0_70 = arith.constant 0 : index
    %c0_71 = arith.constant 0 : index
    %105 = vector.load %arg9[%c3_69, %c0_70, %c0_71] : memref<4x8x4xf32, #tpu.memory_space<vmem>>, vector<1x8x4xf32>
    %106 = vector.shape_cast %105 : vector<1x8x4xf32> to vector<8x4xf32>
    %cst_72 = arith.constant dense<0.000000e+00> : vector<64x4xf32>
    %107 = tpu.matmul %104, %106, %cst_72 {dimension_numbers = #tpu.dot_dimension_numbers<[1], [0], [0], [1], [0, 0, 1, 1], [], []>} : vector<64x8xf32>, vector<8x4xf32>, vector<64x4xf32> -> vector<64x4xf32>
    %108 = arith.addf %103, %107 : vector<64x4xf32>
    %c0_73 = arith.constant 0 : index
    %c0_74 = arith.constant 0 : index
    %109 = vector.load %arg11[%c0_73, %c0_74] : memref<64x64xf32, #tpu.memory_space<vmem>>, vector<64x64xf32>
    %cst_75 = arith.constant dense<0.000000e+00> : vector<64xf32>
    %110 = vector.multi_reduction <add>, %108, %cst_75 [1] : vector<64x4xf32> to vector<64xf32>
    %111 = vector.shape_cast %110 : vector<64xf32> to vector<64x1xf32>
    %cst_76 = arith.constant dense<0.000000e+00> : vector<64x1xf32>
    %112 = tpu.matmul %109, %111, %cst_76 {dimension_numbers = #tpu.dot_dimension_numbers<[1], [0], [0], [1], [0, 0, 1, 1], [], []>} : vector<64x64xf32>, vector<64x1xf32>, vector<64x1xf32> -> vector<64x1xf32>
    %cst_77 = arith.constant 3.125000e-02 : f32
    %113 = vector.broadcast %cst_77 : f32 to vector<64x1xf32>
    %114 = arith.mulf %112, %113 : vector<64x1xf32>
    %115 = vector.broadcast %114 : vector<64x1xf32> to vector<64x4xf32>
    %116 = arith.subf %108, %115 : vector<64x4xf32>
    %117 = arith.mulf %116, %116 : vector<64x4xf32>
    %cst_78 = arith.constant dense<0.000000e+00> : vector<64xf32>
    %118 = vector.multi_reduction <add>, %117, %cst_78 [1] : vector<64x4xf32> to vector<64xf32>
    %119 = vector.shape_cast %118 : vector<64xf32> to vector<64x1xf32>
    %cst_79 = arith.constant dense<0.000000e+00> : vector<64x1xf32>
    %120 = tpu.matmul %109, %119, %cst_79 {dimension_numbers = #tpu.dot_dimension_numbers<[1], [0], [0], [1], [0, 0, 1, 1], [], []>} : vector<64x64xf32>, vector<64x1xf32>, vector<64x1xf32> -> vector<64x1xf32>
    %cst_80 = arith.constant 3.125000e-02 : f32
    %121 = vector.broadcast %cst_80 : f32 to vector<64x1xf32>
    %122 = arith.mulf %120, %121 : vector<64x1xf32>
    %cst_81 = arith.constant 9.99999974E-6 : f32
    %123 = vector.broadcast %cst_81 : f32 to vector<64x1xf32>
    %124 = arith.addf %122, %123 : vector<64x1xf32>
    %125 = math.rsqrt %124 : vector<64x1xf32>
    %126 = vector.extract_strided_slice %86 {offsets = [64, 0], sizes = [64, 1], strides = [1, 1]} : vector<192x1xf32> to vector<64x1xf32>
    %127 = arith.mulf %125, %126 : vector<64x1xf32>
    %128 = vector.broadcast %127 : vector<64x1xf32> to vector<64x4xf32>
    %129 = arith.mulf %116, %128 : vector<64x4xf32>
    %130 = vector.extract_strided_slice %86 {offsets = [128, 0], sizes = [64, 1], strides = [1, 1]} : vector<192x1xf32> to vector<64x1xf32>
    %131 = vector.broadcast %130 : vector<64x1xf32> to vector<64x4xf32>
    %132 = arith.addf %129, %131 : vector<64x4xf32>
    %cst_82 = arith.constant 0.000000e+00 : f32
    %133 = vector.broadcast %cst_82 : f32 to vector<64x4xf32>
    %134 = arith.cmpf oge, %132, %133 : vector<64x4xf32>
    %cst_83 = arith.constant 2.000000e-01 : f32
    %135 = vector.broadcast %cst_83 : f32 to vector<64x4xf32>
    %136 = arith.mulf %135, %132 : vector<64x4xf32>
    %137 = arith.select %134, %132, %136 : vector<64x4xi1>, vector<64x4xf32>
    %c0_84 = arith.constant 0 : index
    %c0_85 = arith.constant 0 : index
    %138 = vector.load %arg12[%c0_84, %c0_85] : memref<128x64xf32, #tpu.memory_space<vmem>>, vector<128x64xf32>
    %cst_86 = arith.constant dense<0.000000e+00> : vector<128x4xf32>
    %139 = tpu.matmul %138, %137, %cst_86 {dimension_numbers = #tpu.dot_dimension_numbers<[1], [0], [0], [1], [0, 0, 1, 1], [], []>} : vector<128x64xf32>, vector<64x4xf32>, vector<128x4xf32> -> vector<128x4xf32>
    %c0_87 = arith.constant 0 : index
    %c0_88 = arith.constant 0 : index
    %140 = vector.load %arg14[%c0_87, %c0_88] : memref<96x1xf32, #tpu.memory_space<vmem>>, vector<96x1xf32>
    %141 = vector.extract_strided_slice %140 {offsets = [0, 0], sizes = [32, 1], strides = [1, 1]} : vector<96x1xf32> to vector<32x1xf32>
    %142 = vector.extract_strided_slice %139 {offsets = [0, 0], sizes = [32, 4], strides = [1, 1]} : vector<128x4xf32> to vector<32x4xf32>
    %c0_89 = arith.constant 0 : index
    %c0_90 = arith.constant 0 : index
    %c0_91 = arith.constant 0 : index
    %143 = vector.load %arg13[%c0_89, %c0_90, %c0_91] : memref<4x4x2xf32, #tpu.memory_space<vmem>>, vector<1x4x2xf32>
    %144 = vector.shape_cast %143 : vector<1x4x2xf32> to vector<4x2xf32>
    %cst_92 = arith.constant dense<0.000000e+00> : vector<32x2xf32>
    %145 = tpu.matmul %142, %144, %cst_92 {dimension_numbers = #tpu.dot_dimension_numbers<[1], [0], [0], [1], [0, 0, 1, 1], [], []>} : vector<32x4xf32>, vector<4x2xf32>, vector<32x2xf32> -> vector<32x2xf32>
    %146 = vector.broadcast %141 : vector<32x1xf32> to vector<32x2xf32>
    %147 = arith.addf %146, %145 : vector<32x2xf32>
    %148 = vector.extract_strided_slice %139 {offsets = [32, 0], sizes = [32, 4], strides = [1, 1]} : vector<128x4xf32> to vector<32x4xf32>
    %c1_93 = arith.constant 1 : index
    %c0_94 = arith.constant 0 : index
    %c0_95 = arith.constant 0 : index
    %149 = vector.load %arg13[%c1_93, %c0_94, %c0_95] : memref<4x4x2xf32, #tpu.memory_space<vmem>>, vector<1x4x2xf32>
    %150 = vector.shape_cast %149 : vector<1x4x2xf32> to vector<4x2xf32>
    %cst_96 = arith.constant dense<0.000000e+00> : vector<32x2xf32>
    %151 = tpu.matmul %148, %150, %cst_96 {dimension_numbers = #tpu.dot_dimension_numbers<[1], [0], [0], [1], [0, 0, 1, 1], [], []>} : vector<32x4xf32>, vector<4x2xf32>, vector<32x2xf32> -> vector<32x2xf32>
    %152 = arith.addf %147, %151 : vector<32x2xf32>
    %153 = vector.extract_strided_slice %139 {offsets = [64, 0], sizes = [32, 4], strides = [1, 1]} : vector<128x4xf32> to vector<32x4xf32>
    %c2_97 = arith.constant 2 : index
    %c0_98 = arith.constant 0 : index
    %c0_99 = arith.constant 0 : index
    %154 = vector.load %arg13[%c2_97, %c0_98, %c0_99] : memref<4x4x2xf32, #tpu.memory_space<vmem>>, vector<1x4x2xf32>
    %155 = vector.shape_cast %154 : vector<1x4x2xf32> to vector<4x2xf32>
    %cst_100 = arith.constant dense<0.000000e+00> : vector<32x2xf32>
    %156 = tpu.matmul %153, %155, %cst_100 {dimension_numbers = #tpu.dot_dimension_numbers<[1], [0], [0], [1], [0, 0, 1, 1], [], []>} : vector<32x4xf32>, vector<4x2xf32>, vector<32x2xf32> -> vector<32x2xf32>
    %157 = arith.addf %152, %156 : vector<32x2xf32>
    %158 = vector.extract_strided_slice %139 {offsets = [96, 0], sizes = [32, 4], strides = [1, 1]} : vector<128x4xf32> to vector<32x4xf32>
    %c3_101 = arith.constant 3 : index
    %c0_102 = arith.constant 0 : index
    %c0_103 = arith.constant 0 : index
    %159 = vector.load %arg13[%c3_101, %c0_102, %c0_103] : memref<4x4x2xf32, #tpu.memory_space<vmem>>, vector<1x4x2xf32>
    %160 = vector.shape_cast %159 : vector<1x4x2xf32> to vector<4x2xf32>
    %cst_104 = arith.constant dense<0.000000e+00> : vector<32x2xf32>
    %161 = tpu.matmul %158, %160, %cst_104 {dimension_numbers = #tpu.dot_dimension_numbers<[1], [0], [0], [1], [0, 0, 1, 1], [], []>} : vector<32x4xf32>, vector<4x2xf32>, vector<32x2xf32> -> vector<32x2xf32>
    %162 = arith.addf %157, %161 : vector<32x2xf32>
    %c0_105 = arith.constant 0 : index
    %c0_106 = arith.constant 0 : index
    %163 = vector.load %arg15[%c0_105, %c0_106] : memref<32x32xf32, #tpu.memory_space<vmem>>, vector<32x32xf32>
    %cst_107 = arith.constant dense<0.000000e+00> : vector<32xf32>
    %164 = vector.multi_reduction <add>, %162, %cst_107 [1] : vector<32x2xf32> to vector<32xf32>
    %165 = vector.shape_cast %164 : vector<32xf32> to vector<32x1xf32>
    %cst_108 = arith.constant dense<0.000000e+00> : vector<32x1xf32>
    %166 = tpu.matmul %163, %165, %cst_108 {dimension_numbers = #tpu.dot_dimension_numbers<[1], [0], [0], [1], [0, 0, 1, 1], [], []>} : vector<32x32xf32>, vector<32x1xf32>, vector<32x1xf32> -> vector<32x1xf32>
    %cst_109 = arith.constant 1.250000e-01 : f32
    %167 = vector.broadcast %cst_109 : f32 to vector<32x1xf32>
    %168 = arith.mulf %166, %167 : vector<32x1xf32>
    %169 = vector.broadcast %168 : vector<32x1xf32> to vector<32x2xf32>
    %170 = arith.subf %162, %169 : vector<32x2xf32>
    %171 = arith.mulf %170, %170 : vector<32x2xf32>
    %cst_110 = arith.constant dense<0.000000e+00> : vector<32xf32>
    %172 = vector.multi_reduction <add>, %171, %cst_110 [1] : vector<32x2xf32> to vector<32xf32>
    %173 = vector.shape_cast %172 : vector<32xf32> to vector<32x1xf32>
    %cst_111 = arith.constant dense<0.000000e+00> : vector<32x1xf32>
    %174 = tpu.matmul %163, %173, %cst_111 {dimension_numbers = #tpu.dot_dimension_numbers<[1], [0], [0], [1], [0, 0, 1, 1], [], []>} : vector<32x32xf32>, vector<32x1xf32>, vector<32x1xf32> -> vector<32x1xf32>
    %cst_112 = arith.constant 1.250000e-01 : f32
    %175 = vector.broadcast %cst_112 : f32 to vector<32x1xf32>
    %176 = arith.mulf %174, %175 : vector<32x1xf32>
    %cst_113 = arith.constant 9.99999974E-6 : f32
    %177 = vector.broadcast %cst_113 : f32 to vector<32x1xf32>
    %178 = arith.addf %176, %177 : vector<32x1xf32>
    %179 = math.rsqrt %178 : vector<32x1xf32>
    %180 = vector.extract_strided_slice %140 {offsets = [32, 0], sizes = [32, 1], strides = [1, 1]} : vector<96x1xf32> to vector<32x1xf32>
    %181 = arith.mulf %179, %180 : vector<32x1xf32>
    %182 = vector.broadcast %181 : vector<32x1xf32> to vector<32x2xf32>
    %183 = arith.mulf %170, %182 : vector<32x2xf32>
    %184 = vector.extract_strided_slice %140 {offsets = [64, 0], sizes = [32, 1], strides = [1, 1]} : vector<96x1xf32> to vector<32x1xf32>
    %185 = vector.broadcast %184 : vector<32x1xf32> to vector<32x2xf32>
    %186 = arith.addf %183, %185 : vector<32x2xf32>
    %cst_114 = arith.constant 0.000000e+00 : f32
    %187 = vector.broadcast %cst_114 : f32 to vector<32x2xf32>
    %188 = arith.cmpf oge, %186, %187 : vector<32x2xf32>
    %cst_115 = arith.constant 2.000000e-01 : f32
    %189 = vector.broadcast %cst_115 : f32 to vector<32x2xf32>
    %190 = arith.mulf %189, %186 : vector<32x2xf32>
    %191 = arith.select %188, %186, %190 : vector<32x2xi1>, vector<32x2xf32>
    %c0_116 = arith.constant 0 : index
    %c0_117 = arith.constant 0 : index
    %192 = vector.load %arg16[%c0_116, %c0_117] : memref<64x32xf32, #tpu.memory_space<vmem>>, vector<64x32xf32>
    %cst_118 = arith.constant dense<0.000000e+00> : vector<64x2xf32>
    %193 = tpu.matmul %192, %191, %cst_118 {dimension_numbers = #tpu.dot_dimension_numbers<[1], [0], [0], [1], [0, 0, 1, 1], [], []>} : vector<64x32xf32>, vector<32x2xf32>, vector<64x2xf32> -> vector<64x2xf32>
    %c0_119 = arith.constant 0 : index
    %c0_120 = arith.constant 0 : index
    %194 = vector.load %arg18[%c0_119, %c0_120] : memref<96x1xf32, #tpu.memory_space<vmem>>, vector<96x1xf32>
    %195 = vector.extract_strided_slice %194 {offsets = [0, 0], sizes = [32, 1], strides = [1, 1]} : vector<96x1xf32> to vector<32x1xf32>
    %196 = vector.extract_strided_slice %193 {offsets = [0, 0], sizes = [32, 2], strides = [1, 1]} : vector<64x2xf32> to vector<32x2xf32>
    %c0_121 = arith.constant 0 : index
    %c0_122 = arith.constant 0 : index
    %c0_123 = arith.constant 0 : index
    %197 = vector.load %arg17[%c0_121, %c0_122, %c0_123] : memref<2x2x1xf32, #tpu.memory_space<vmem>>, vector<1x2x1xf32>
    %198 = vector.shape_cast %197 : vector<1x2x1xf32> to vector<2x1xf32>
    %cst_124 = arith.constant dense<0.000000e+00> : vector<32x1xf32>
    %199 = tpu.matmul %196, %198, %cst_124 {dimension_numbers = #tpu.dot_dimension_numbers<[1], [0], [0], [1], [0, 0, 1, 1], [], []>} : vector<32x2xf32>, vector<2x1xf32>, vector<32x1xf32> -> vector<32x1xf32>
    %200 = arith.addf %195, %199 : vector<32x1xf32>
    %201 = vector.extract_strided_slice %193 {offsets = [32, 0], sizes = [32, 2], strides = [1, 1]} : vector<64x2xf32> to vector<32x2xf32>
    %c1_125 = arith.constant 1 : index
    %c0_126 = arith.constant 0 : index
    %c0_127 = arith.constant 0 : index
    %202 = vector.load %arg17[%c1_125, %c0_126, %c0_127] : memref<2x2x1xf32, #tpu.memory_space<vmem>>, vector<1x2x1xf32>
    %203 = vector.shape_cast %202 : vector<1x2x1xf32> to vector<2x1xf32>
    %cst_128 = arith.constant dense<0.000000e+00> : vector<32x1xf32>
    %204 = tpu.matmul %201, %203, %cst_128 {dimension_numbers = #tpu.dot_dimension_numbers<[1], [0], [0], [1], [0, 0, 1, 1], [], []>} : vector<32x2xf32>, vector<2x1xf32>, vector<32x1xf32> -> vector<32x1xf32>
    %205 = arith.addf %200, %204 : vector<32x1xf32>
    %c0_129 = arith.constant 0 : index
    %c0_130 = arith.constant 0 : index
    %206 = vector.load %arg19[%c0_129, %c0_130] : memref<32x32xf32, #tpu.memory_space<vmem>>, vector<32x32xf32>
    %cst_131 = arith.constant dense<0.000000e+00> : vector<32xf32>
    %207 = vector.multi_reduction <add>, %205, %cst_131 [1] : vector<32x1xf32> to vector<32xf32>
    %208 = vector.shape_cast %207 : vector<32xf32> to vector<32x1xf32>
    %cst_132 = arith.constant dense<0.000000e+00> : vector<32x1xf32>
    %209 = tpu.matmul %206, %208, %cst_132 {dimension_numbers = #tpu.dot_dimension_numbers<[1], [0], [0], [1], [0, 0, 1, 1], [], []>} : vector<32x32xf32>, vector<32x1xf32>, vector<32x1xf32> -> vector<32x1xf32>
    %cst_133 = arith.constant 5.000000e-01 : f32
    %210 = vector.broadcast %cst_133 : f32 to vector<32x1xf32>
    %211 = arith.mulf %209, %210 : vector<32x1xf32>
    %212 = arith.subf %205, %211 : vector<32x1xf32>
    %213 = arith.mulf %212, %212 : vector<32x1xf32>
    %cst_134 = arith.constant dense<0.000000e+00> : vector<32xf32>
    %214 = vector.multi_reduction <add>, %213, %cst_134 [1] : vector<32x1xf32> to vector<32xf32>
    %215 = vector.shape_cast %214 : vector<32xf32> to vector<32x1xf32>
    %cst_135 = arith.constant dense<0.000000e+00> : vector<32x1xf32>
    %216 = tpu.matmul %206, %215, %cst_135 {dimension_numbers = #tpu.dot_dimension_numbers<[1], [0], [0], [1], [0, 0, 1, 1], [], []>} : vector<32x32xf32>, vector<32x1xf32>, vector<32x1xf32> -> vector<32x1xf32>
    %cst_136 = arith.constant 5.000000e-01 : f32
    %217 = vector.broadcast %cst_136 : f32 to vector<32x1xf32>
    %218 = arith.mulf %216, %217 : vector<32x1xf32>
    %cst_137 = arith.constant 9.99999974E-6 : f32
    %219 = vector.broadcast %cst_137 : f32 to vector<32x1xf32>
    %220 = arith.addf %218, %219 : vector<32x1xf32>
    %221 = math.rsqrt %220 : vector<32x1xf32>
    %222 = vector.extract_strided_slice %194 {offsets = [32, 0], sizes = [32, 1], strides = [1, 1]} : vector<96x1xf32> to vector<32x1xf32>
    %223 = arith.mulf %221, %222 : vector<32x1xf32>
    %224 = arith.mulf %212, %223 : vector<32x1xf32>
    %225 = vector.extract_strided_slice %194 {offsets = [64, 0], sizes = [32, 1], strides = [1, 1]} : vector<96x1xf32> to vector<32x1xf32>
    %226 = arith.addf %224, %225 : vector<32x1xf32>
    %cst_138 = arith.constant 0.000000e+00 : f32
    %227 = vector.broadcast %cst_138 : f32 to vector<32x1xf32>
    %228 = arith.maximumf %226, %227 : vector<32x1xf32>
    %c0_139 = arith.constant 0 : index
    %c0_140 = arith.constant 0 : index
    %229 = vector.load %arg20[%c0_139, %c0_140] : memref<32x32xf32, #tpu.memory_space<vmem>>, vector<32x32xf32>
    %cst_141 = arith.constant dense<0.000000e+00> : vector<32x1xf32>
    %230 = tpu.matmul %229, %228, %cst_141 {dimension_numbers = #tpu.dot_dimension_numbers<[1], [0], [0], [1], [0, 0, 1, 1], [], []>} : vector<32x32xf32>, vector<32x1xf32>, vector<32x1xf32> -> vector<32x1xf32>
    %c0_142 = arith.constant 0 : index
    %c0_143 = arith.constant 0 : index
    %231 = vector.load %arg22[%c0_142, %c0_143] : memref<96x1xf32, #tpu.memory_space<vmem>>, vector<96x1xf32>
    %232 = vector.extract_strided_slice %231 {offsets = [0, 0], sizes = [32, 1], strides = [1, 1]} : vector<96x1xf32> to vector<32x1xf32>
    %c0_144 = arith.constant 0 : index
    %c0_145 = arith.constant 0 : index
    %c0_146 = arith.constant 0 : index
    %233 = vector.load %arg21[%c0_144, %c0_145, %c0_146] : memref<1x1x2xf32, #tpu.memory_space<vmem>>, vector<1x1x2xf32>
    %234 = vector.shape_cast %233 : vector<1x1x2xf32> to vector<1x2xf32>
    %235 = vector.broadcast %230 : vector<32x1xf32> to vector<32x2xf32>
    %236 = vector.broadcast %234 : vector<1x2xf32> to vector<32x2xf32>
    %237 = arith.mulf %235, %236 : vector<32x2xf32>
    %238 = vector.broadcast %232 : vector<32x1xf32> to vector<32x2xf32>
    %239 = arith.addf %238, %237 : vector<32x2xf32>
    %c0_147 = arith.constant 0 : index
    %c0_148 = arith.constant 0 : index
    %240 = vector.load %arg23[%c0_147, %c0_148] : memref<32x32xf32, #tpu.memory_space<vmem>>, vector<32x32xf32>
    %cst_149 = arith.constant dense<0.000000e+00> : vector<32xf32>
    %241 = vector.multi_reduction <add>, %239, %cst_149 [1] : vector<32x2xf32> to vector<32xf32>
    %242 = vector.shape_cast %241 : vector<32xf32> to vector<32x1xf32>
    %cst_150 = arith.constant dense<0.000000e+00> : vector<32x1xf32>
    %243 = tpu.matmul %240, %242, %cst_150 {dimension_numbers = #tpu.dot_dimension_numbers<[1], [0], [0], [1], [0, 0, 1, 1], [], []>} : vector<32x32xf32>, vector<32x1xf32>, vector<32x1xf32> -> vector<32x1xf32>
    %cst_151 = arith.constant 1.250000e-01 : f32
    %244 = vector.broadcast %cst_151 : f32 to vector<32x1xf32>
    %245 = arith.mulf %243, %244 : vector<32x1xf32>
    %246 = vector.broadcast %245 : vector<32x1xf32> to vector<32x2xf32>
    %247 = arith.subf %239, %246 : vector<32x2xf32>
    %248 = arith.mulf %247, %247 : vector<32x2xf32>
    %cst_152 = arith.constant dense<0.000000e+00> : vector<32xf32>
    %249 = vector.multi_reduction <add>, %248, %cst_152 [1] : vector<32x2xf32> to vector<32xf32>
    %250 = vector.shape_cast %249 : vector<32xf32> to vector<32x1xf32>
    %cst_153 = arith.constant dense<0.000000e+00> : vector<32x1xf32>
    %251 = tpu.matmul %240, %250, %cst_153 {dimension_numbers = #tpu.dot_dimension_numbers<[1], [0], [0], [1], [0, 0, 1, 1], [], []>} : vector<32x32xf32>, vector<32x1xf32>, vector<32x1xf32> -> vector<32x1xf32>
    %cst_154 = arith.constant 1.250000e-01 : f32
    %252 = vector.broadcast %cst_154 : f32 to vector<32x1xf32>
    %253 = arith.mulf %251, %252 : vector<32x1xf32>
    %cst_155 = arith.constant 9.99999974E-6 : f32
    %254 = vector.broadcast %cst_155 : f32 to vector<32x1xf32>
    %255 = arith.addf %253, %254 : vector<32x1xf32>
    %256 = math.rsqrt %255 : vector<32x1xf32>
    %257 = vector.extract_strided_slice %231 {offsets = [32, 0], sizes = [32, 1], strides = [1, 1]} : vector<96x1xf32> to vector<32x1xf32>
    %258 = arith.mulf %256, %257 : vector<32x1xf32>
    %259 = vector.broadcast %258 : vector<32x1xf32> to vector<32x2xf32>
    %260 = arith.mulf %247, %259 : vector<32x2xf32>
    %261 = vector.extract_strided_slice %231 {offsets = [64, 0], sizes = [32, 1], strides = [1, 1]} : vector<96x1xf32> to vector<32x1xf32>
    %262 = vector.broadcast %261 : vector<32x1xf32> to vector<32x2xf32>
    %263 = arith.addf %260, %262 : vector<32x2xf32>
    %cst_156 = arith.constant 0.000000e+00 : f32
    %264 = vector.broadcast %cst_156 : f32 to vector<32x2xf32>
    %265 = arith.maximumf %263, %264 : vector<32x2xf32>
    %c0_157 = arith.constant 0 : index
    %c0_158 = arith.constant 0 : index
    %266 = vector.load %arg24[%c0_157, %c0_158] : memref<192x32xf32, #tpu.memory_space<vmem>>, vector<192x32xf32>
    %cst_159 = arith.constant dense<0.000000e+00> : vector<192x2xf32>
    %267 = tpu.matmul %266, %265, %cst_159 {dimension_numbers = #tpu.dot_dimension_numbers<[1], [0], [0], [1], [0, 0, 1, 1], [], []>} : vector<192x32xf32>, vector<32x2xf32>, vector<192x2xf32> -> vector<192x2xf32>
    %c0_160 = arith.constant 0 : index
    %c0_161 = arith.constant 0 : index
    %268 = vector.load %arg26[%c0_160, %c0_161] : memref<192x1xf32, #tpu.memory_space<vmem>>, vector<192x1xf32>
    %269 = vector.extract_strided_slice %268 {offsets = [0, 0], sizes = [64, 1], strides = [1, 1]} : vector<192x1xf32> to vector<64x1xf32>
    %270 = vector.extract_strided_slice %267 {offsets = [0, 0], sizes = [64, 2], strides = [1, 1]} : vector<192x2xf32> to vector<64x2xf32>
    %c0_162 = arith.constant 0 : index
    %c0_163 = arith.constant 0 : index
    %c0_164 = arith.constant 0 : index
    %271 = vector.load %arg25[%c0_162, %c0_163, %c0_164] : memref<3x2x4xf32, #tpu.memory_space<vmem>>, vector<1x2x4xf32>
    %272 = vector.shape_cast %271 : vector<1x2x4xf32> to vector<2x4xf32>
    %cst_165 = arith.constant dense<0.000000e+00> : vector<64x4xf32>
    %273 = tpu.matmul %270, %272, %cst_165 {dimension_numbers = #tpu.dot_dimension_numbers<[1], [0], [0], [1], [0, 0, 1, 1], [], []>} : vector<64x2xf32>, vector<2x4xf32>, vector<64x4xf32> -> vector<64x4xf32>
    %274 = vector.broadcast %269 : vector<64x1xf32> to vector<64x4xf32>
    %275 = arith.addf %274, %273 : vector<64x4xf32>
    %276 = vector.extract_strided_slice %267 {offsets = [64, 0], sizes = [64, 2], strides = [1, 1]} : vector<192x2xf32> to vector<64x2xf32>
    %c1_166 = arith.constant 1 : index
    %c0_167 = arith.constant 0 : index
    %c0_168 = arith.constant 0 : index
    %277 = vector.load %arg25[%c1_166, %c0_167, %c0_168] : memref<3x2x4xf32, #tpu.memory_space<vmem>>, vector<1x2x4xf32>
    %278 = vector.shape_cast %277 : vector<1x2x4xf32> to vector<2x4xf32>
    %cst_169 = arith.constant dense<0.000000e+00> : vector<64x4xf32>
    %279 = tpu.matmul %276, %278, %cst_169 {dimension_numbers = #tpu.dot_dimension_numbers<[1], [0], [0], [1], [0, 0, 1, 1], [], []>} : vector<64x2xf32>, vector<2x4xf32>, vector<64x4xf32> -> vector<64x4xf32>
    %280 = arith.addf %275, %279 : vector<64x4xf32>
    %281 = vector.extract_strided_slice %267 {offsets = [128, 0], sizes = [64, 2], strides = [1, 1]} : vector<192x2xf32> to vector<64x2xf32>
    %c2_170 = arith.constant 2 : index
    %c0_171 = arith.constant 0 : index
    %c0_172 = arith.constant 0 : index
    %282 = vector.load %arg25[%c2_170, %c0_171, %c0_172] : memref<3x2x4xf32, #tpu.memory_space<vmem>>, vector<1x2x4xf32>
    %283 = vector.shape_cast %282 : vector<1x2x4xf32> to vector<2x4xf32>
    %cst_173 = arith.constant dense<0.000000e+00> : vector<64x4xf32>
    %284 = tpu.matmul %281, %283, %cst_173 {dimension_numbers = #tpu.dot_dimension_numbers<[1], [0], [0], [1], [0, 0, 1, 1], [], []>} : vector<64x2xf32>, vector<2x4xf32>, vector<64x4xf32> -> vector<64x4xf32>
    %285 = arith.addf %280, %284 : vector<64x4xf32>
    %c0_174 = arith.constant 0 : index
    %c0_175 = arith.constant 0 : index
    %286 = vector.load %arg27[%c0_174, %c0_175] : memref<64x64xf32, #tpu.memory_space<vmem>>, vector<64x64xf32>
    %cst_176 = arith.constant dense<0.000000e+00> : vector<64xf32>
    %287 = vector.multi_reduction <add>, %285, %cst_176 [1] : vector<64x4xf32> to vector<64xf32>
    %288 = vector.shape_cast %287 : vector<64xf32> to vector<64x1xf32>
    %cst_177 = arith.constant dense<0.000000e+00> : vector<64x1xf32>
    %289 = tpu.matmul %286, %288, %cst_177 {dimension_numbers = #tpu.dot_dimension_numbers<[1], [0], [0], [1], [0, 0, 1, 1], [], []>} : vector<64x64xf32>, vector<64x1xf32>, vector<64x1xf32> -> vector<64x1xf32>
    %cst_178 = arith.constant 3.125000e-02 : f32
    %290 = vector.broadcast %cst_178 : f32 to vector<64x1xf32>
    %291 = arith.mulf %289, %290 : vector<64x1xf32>
    %292 = vector.broadcast %291 : vector<64x1xf32> to vector<64x4xf32>
    %293 = arith.subf %285, %292 : vector<64x4xf32>
    %294 = arith.mulf %293, %293 : vector<64x4xf32>
    %cst_179 = arith.constant dense<0.000000e+00> : vector<64xf32>
    %295 = vector.multi_reduction <add>, %294, %cst_179 [1] : vector<64x4xf32> to vector<64xf32>
    %296 = vector.shape_cast %295 : vector<64xf32> to vector<64x1xf32>
    %cst_180 = arith.constant dense<0.000000e+00> : vector<64x1xf32>
    %297 = tpu.matmul %286, %296, %cst_180 {dimension_numbers = #tpu.dot_dimension_numbers<[1], [0], [0], [1], [0, 0, 1, 1], [], []>} : vector<64x64xf32>, vector<64x1xf32>, vector<64x1xf32> -> vector<64x1xf32>
    %cst_181 = arith.constant 3.125000e-02 : f32
    %298 = vector.broadcast %cst_181 : f32 to vector<64x1xf32>
    %299 = arith.mulf %297, %298 : vector<64x1xf32>
    %cst_182 = arith.constant 9.99999974E-6 : f32
    %300 = vector.broadcast %cst_182 : f32 to vector<64x1xf32>
    %301 = arith.addf %299, %300 : vector<64x1xf32>
    %302 = math.rsqrt %301 : vector<64x1xf32>
    %303 = vector.extract_strided_slice %268 {offsets = [64, 0], sizes = [64, 1], strides = [1, 1]} : vector<192x1xf32> to vector<64x1xf32>
    %304 = arith.mulf %302, %303 : vector<64x1xf32>
    %305 = vector.broadcast %304 : vector<64x1xf32> to vector<64x4xf32>
    %306 = arith.mulf %293, %305 : vector<64x4xf32>
    %307 = vector.extract_strided_slice %268 {offsets = [128, 0], sizes = [64, 1], strides = [1, 1]} : vector<192x1xf32> to vector<64x1xf32>
    %308 = vector.broadcast %307 : vector<64x1xf32> to vector<64x4xf32>
    %309 = arith.addf %306, %308 : vector<64x4xf32>
    %cst_183 = arith.constant 0.000000e+00 : f32
    %310 = vector.broadcast %cst_183 : f32 to vector<64x4xf32>
    %311 = arith.maximumf %309, %310 : vector<64x4xf32>
    %c0_184 = arith.constant 0 : index
    %c0_185 = arith.constant 0 : index
    %312 = vector.load %arg28[%c0_184, %c0_185] : memref<192x64xf32, #tpu.memory_space<vmem>>, vector<192x64xf32>
    %cst_186 = arith.constant dense<0.000000e+00> : vector<192x4xf32>
    %313 = tpu.matmul %312, %311, %cst_186 {dimension_numbers = #tpu.dot_dimension_numbers<[1], [0], [0], [1], [0, 0, 1, 1], [], []>} : vector<192x64xf32>, vector<64x4xf32>, vector<192x4xf32> -> vector<192x4xf32>
    %c0_187 = arith.constant 0 : index
    %c0_188 = arith.constant 0 : index
    %314 = vector.load %arg30[%c0_187, %c0_188] : memref<192x1xf32, #tpu.memory_space<vmem>>, vector<192x1xf32>
    %315 = vector.extract_strided_slice %314 {offsets = [0, 0], sizes = [64, 1], strides = [1, 1]} : vector<192x1xf32> to vector<64x1xf32>
    %316 = vector.extract_strided_slice %313 {offsets = [0, 0], sizes = [64, 4], strides = [1, 1]} : vector<192x4xf32> to vector<64x4xf32>
    %c0_189 = arith.constant 0 : index
    %c0_190 = arith.constant 0 : index
    %c0_191 = arith.constant 0 : index
    %317 = vector.load %arg29[%c0_189, %c0_190, %c0_191] : memref<3x4x8xf32, #tpu.memory_space<vmem>>, vector<1x4x8xf32>
    %318 = vector.shape_cast %317 : vector<1x4x8xf32> to vector<4x8xf32>
    %cst_192 = arith.constant dense<0.000000e+00> : vector<64x8xf32>
    %319 = tpu.matmul %316, %318, %cst_192 {dimension_numbers = #tpu.dot_dimension_numbers<[1], [0], [0], [1], [0, 0, 1, 1], [], []>} : vector<64x4xf32>, vector<4x8xf32>, vector<64x8xf32> -> vector<64x8xf32>
    %320 = vector.broadcast %315 : vector<64x1xf32> to vector<64x8xf32>
    %321 = arith.addf %320, %319 : vector<64x8xf32>
    %322 = vector.extract_strided_slice %313 {offsets = [64, 0], sizes = [64, 4], strides = [1, 1]} : vector<192x4xf32> to vector<64x4xf32>
    %c1_193 = arith.constant 1 : index
    %c0_194 = arith.constant 0 : index
    %c0_195 = arith.constant 0 : index
    %323 = vector.load %arg29[%c1_193, %c0_194, %c0_195] : memref<3x4x8xf32, #tpu.memory_space<vmem>>, vector<1x4x8xf32>
    %324 = vector.shape_cast %323 : vector<1x4x8xf32> to vector<4x8xf32>
    %cst_196 = arith.constant dense<0.000000e+00> : vector<64x8xf32>
    %325 = tpu.matmul %322, %324, %cst_196 {dimension_numbers = #tpu.dot_dimension_numbers<[1], [0], [0], [1], [0, 0, 1, 1], [], []>} : vector<64x4xf32>, vector<4x8xf32>, vector<64x8xf32> -> vector<64x8xf32>
    %326 = arith.addf %321, %325 : vector<64x8xf32>
    %327 = vector.extract_strided_slice %313 {offsets = [128, 0], sizes = [64, 4], strides = [1, 1]} : vector<192x4xf32> to vector<64x4xf32>
    %c2_197 = arith.constant 2 : index
    %c0_198 = arith.constant 0 : index
    %c0_199 = arith.constant 0 : index
    %328 = vector.load %arg29[%c2_197, %c0_198, %c0_199] : memref<3x4x8xf32, #tpu.memory_space<vmem>>, vector<1x4x8xf32>
    %329 = vector.shape_cast %328 : vector<1x4x8xf32> to vector<4x8xf32>
    %cst_200 = arith.constant dense<0.000000e+00> : vector<64x8xf32>
    %330 = tpu.matmul %327, %329, %cst_200 {dimension_numbers = #tpu.dot_dimension_numbers<[1], [0], [0], [1], [0, 0, 1, 1], [], []>} : vector<64x4xf32>, vector<4x8xf32>, vector<64x8xf32> -> vector<64x8xf32>
    %331 = arith.addf %326, %330 : vector<64x8xf32>
    %c0_201 = arith.constant 0 : index
    %c0_202 = arith.constant 0 : index
    %332 = vector.load %arg31[%c0_201, %c0_202] : memref<64x64xf32, #tpu.memory_space<vmem>>, vector<64x64xf32>
    %cst_203 = arith.constant dense<0.000000e+00> : vector<64xf32>
    %333 = vector.multi_reduction <add>, %331, %cst_203 [1] : vector<64x8xf32> to vector<64xf32>
    %334 = vector.shape_cast %333 : vector<64xf32> to vector<64x1xf32>
    %cst_204 = arith.constant dense<0.000000e+00> : vector<64x1xf32>
    %335 = tpu.matmul %332, %334, %cst_204 {dimension_numbers = #tpu.dot_dimension_numbers<[1], [0], [0], [1], [0, 0, 1, 1], [], []>} : vector<64x64xf32>, vector<64x1xf32>, vector<64x1xf32> -> vector<64x1xf32>
    %cst_205 = arith.constant 7.812500e-03 : f32
    %336 = vector.broadcast %cst_205 : f32 to vector<64x1xf32>
    %337 = arith.mulf %335, %336 : vector<64x1xf32>
    %338 = vector.broadcast %337 : vector<64x1xf32> to vector<64x8xf32>
    %339 = arith.subf %331, %338 : vector<64x8xf32>
    %340 = arith.mulf %339, %339 : vector<64x8xf32>
    %cst_206 = arith.constant dense<0.000000e+00> : vector<64xf32>
    %341 = vector.multi_reduction <add>, %340, %cst_206 [1] : vector<64x8xf32> to vector<64xf32>
    %342 = vector.shape_cast %341 : vector<64xf32> to vector<64x1xf32>
    %cst_207 = arith.constant dense<0.000000e+00> : vector<64x1xf32>
    %343 = tpu.matmul %332, %342, %cst_207 {dimension_numbers = #tpu.dot_dimension_numbers<[1], [0], [0], [1], [0, 0, 1, 1], [], []>} : vector<64x64xf32>, vector<64x1xf32>, vector<64x1xf32> -> vector<64x1xf32>
    %cst_208 = arith.constant 7.812500e-03 : f32
    %344 = vector.broadcast %cst_208 : f32 to vector<64x1xf32>
    %345 = arith.mulf %343, %344 : vector<64x1xf32>
    %cst_209 = arith.constant 9.99999974E-6 : f32
    %346 = vector.broadcast %cst_209 : f32 to vector<64x1xf32>
    %347 = arith.addf %345, %346 : vector<64x1xf32>
    %348 = math.rsqrt %347 : vector<64x1xf32>
    %349 = vector.extract_strided_slice %314 {offsets = [64, 0], sizes = [64, 1], strides = [1, 1]} : vector<192x1xf32> to vector<64x1xf32>
    %350 = arith.mulf %348, %349 : vector<64x1xf32>
    %351 = vector.broadcast %350 : vector<64x1xf32> to vector<64x8xf32>
    %352 = arith.mulf %339, %351 : vector<64x8xf32>
    %353 = vector.extract_strided_slice %314 {offsets = [128, 0], sizes = [64, 1], strides = [1, 1]} : vector<192x1xf32> to vector<64x1xf32>
    %354 = vector.broadcast %353 : vector<64x1xf32> to vector<64x8xf32>
    %355 = arith.addf %352, %354 : vector<64x8xf32>
    %cst_210 = arith.constant 0.000000e+00 : f32
    %356 = vector.broadcast %cst_210 : f32 to vector<64x8xf32>
    %357 = arith.maximumf %355, %356 : vector<64x8xf32>
    %c0_211 = arith.constant 0 : index
    %c0_212 = arith.constant 0 : index
    %358 = vector.load %arg32[%c0_211, %c0_212] : memref<384x64xf32, #tpu.memory_space<vmem>>, vector<384x64xf32>
    %cst_213 = arith.constant dense<0.000000e+00> : vector<384x8xf32>
    %359 = tpu.matmul %358, %357, %cst_213 {dimension_numbers = #tpu.dot_dimension_numbers<[1], [0], [0], [1], [0, 0, 1, 1], [], []>} : vector<384x64xf32>, vector<64x8xf32>, vector<384x8xf32> -> vector<384x8xf32>
    %c0_214 = arith.constant 0 : index
    %c0_215 = arith.constant 0 : index
    %360 = vector.load %arg34[%c0_214, %c0_215] : memref<384x1xf32, #tpu.memory_space<vmem>>, vector<384x1xf32>
    %361 = vector.extract_strided_slice %360 {offsets = [0, 0], sizes = [128, 1], strides = [1, 1]} : vector<384x1xf32> to vector<128x1xf32>
    %362 = vector.extract_strided_slice %359 {offsets = [0, 0], sizes = [128, 8], strides = [1, 1]} : vector<384x8xf32> to vector<128x8xf32>
    %c0_216 = arith.constant 0 : index
    %c0_217 = arith.constant 0 : index
    %c0_218 = arith.constant 0 : index
    %363 = vector.load %arg33[%c0_216, %c0_217, %c0_218] : memref<3x8x16xf32, #tpu.memory_space<vmem>>, vector<1x8x16xf32>
    %364 = vector.shape_cast %363 : vector<1x8x16xf32> to vector<8x16xf32>
    %cst_219 = arith.constant dense<0.000000e+00> : vector<128x16xf32>
    %365 = tpu.matmul %362, %364, %cst_219 {dimension_numbers = #tpu.dot_dimension_numbers<[1], [0], [0], [1], [0, 0, 1, 1], [], []>} : vector<128x8xf32>, vector<8x16xf32>, vector<128x16xf32> -> vector<128x16xf32>
    %366 = vector.broadcast %361 : vector<128x1xf32> to vector<128x16xf32>
    %367 = arith.addf %366, %365 : vector<128x16xf32>
    %368 = vector.extract_strided_slice %359 {offsets = [128, 0], sizes = [128, 8], strides = [1, 1]} : vector<384x8xf32> to vector<128x8xf32>
    %c1_220 = arith.constant 1 : index
    %c0_221 = arith.constant 0 : index
    %c0_222 = arith.constant 0 : index
    %369 = vector.load %arg33[%c1_220, %c0_221, %c0_222] : memref<3x8x16xf32, #tpu.memory_space<vmem>>, vector<1x8x16xf32>
    %370 = vector.shape_cast %369 : vector<1x8x16xf32> to vector<8x16xf32>
    %cst_223 = arith.constant dense<0.000000e+00> : vector<128x16xf32>
    %371 = tpu.matmul %368, %370, %cst_223 {dimension_numbers = #tpu.dot_dimension_numbers<[1], [0], [0], [1], [0, 0, 1, 1], [], []>} : vector<128x8xf32>, vector<8x16xf32>, vector<128x16xf32> -> vector<128x16xf32>
    %372 = arith.addf %367, %371 : vector<128x16xf32>
    %373 = vector.extract_strided_slice %359 {offsets = [256, 0], sizes = [128, 8], strides = [1, 1]} : vector<384x8xf32> to vector<128x8xf32>
    %c2_224 = arith.constant 2 : index
    %c0_225 = arith.constant 0 : index
    %c0_226 = arith.constant 0 : index
    %374 = vector.load %arg33[%c2_224, %c0_225, %c0_226] : memref<3x8x16xf32, #tpu.memory_space<vmem>>, vector<1x8x16xf32>
    %375 = vector.shape_cast %374 : vector<1x8x16xf32> to vector<8x16xf32>
    %cst_227 = arith.constant dense<0.000000e+00> : vector<128x16xf32>
    %376 = tpu.matmul %373, %375, %cst_227 {dimension_numbers = #tpu.dot_dimension_numbers<[1], [0], [0], [1], [0, 0, 1, 1], [], []>} : vector<128x8xf32>, vector<8x16xf32>, vector<128x16xf32> -> vector<128x16xf32>
    %377 = arith.addf %372, %376 : vector<128x16xf32>
    %c0_228 = arith.constant 0 : index
    %c0_229 = arith.constant 0 : index
    %378 = vector.load %arg35[%c0_228, %c0_229] : memref<128x128xf32, #tpu.memory_space<vmem>>, vector<128x128xf32>
    %cst_230 = arith.constant dense<0.000000e+00> : vector<128xf32>
    %379 = vector.multi_reduction <add>, %377, %cst_230 [1] : vector<128x16xf32> to vector<128xf32>
    %380 = vector.shape_cast %379 : vector<128xf32> to vector<128x1xf32>
    %cst_231 = arith.constant dense<0.000000e+00> : vector<128x1xf32>
    %381 = tpu.matmul %378, %380, %cst_231 {dimension_numbers = #tpu.dot_dimension_numbers<[1], [0], [0], [1], [0, 0, 1, 1], [], []>} : vector<128x128xf32>, vector<128x1xf32>, vector<128x1xf32> -> vector<128x1xf32>
    %cst_232 = arith.constant 0.001953125 : f32
    %382 = vector.broadcast %cst_232 : f32 to vector<128x1xf32>
    %383 = arith.mulf %381, %382 : vector<128x1xf32>
    %384 = vector.broadcast %383 : vector<128x1xf32> to vector<128x16xf32>
    %385 = arith.subf %377, %384 : vector<128x16xf32>
    %386 = arith.mulf %385, %385 : vector<128x16xf32>
    %cst_233 = arith.constant dense<0.000000e+00> : vector<128xf32>
    %387 = vector.multi_reduction <add>, %386, %cst_233 [1] : vector<128x16xf32> to vector<128xf32>
    %388 = vector.shape_cast %387 : vector<128xf32> to vector<128x1xf32>
    %cst_234 = arith.constant dense<0.000000e+00> : vector<128x1xf32>
    %389 = tpu.matmul %378, %388, %cst_234 {dimension_numbers = #tpu.dot_dimension_numbers<[1], [0], [0], [1], [0, 0, 1, 1], [], []>} : vector<128x128xf32>, vector<128x1xf32>, vector<128x1xf32> -> vector<128x1xf32>
    %cst_235 = arith.constant 0.001953125 : f32
    %390 = vector.broadcast %cst_235 : f32 to vector<128x1xf32>
    %391 = arith.mulf %389, %390 : vector<128x1xf32>
    %cst_236 = arith.constant 9.99999974E-6 : f32
    %392 = vector.broadcast %cst_236 : f32 to vector<128x1xf32>
    %393 = arith.addf %391, %392 : vector<128x1xf32>
    %394 = math.rsqrt %393 : vector<128x1xf32>
    %395 = vector.extract_strided_slice %360 {offsets = [128, 0], sizes = [128, 1], strides = [1, 1]} : vector<384x1xf32> to vector<128x1xf32>
    %396 = arith.mulf %394, %395 : vector<128x1xf32>
    %397 = vector.broadcast %396 : vector<128x1xf32> to vector<128x16xf32>
    %398 = arith.mulf %385, %397 : vector<128x16xf32>
    %399 = vector.extract_strided_slice %360 {offsets = [256, 0], sizes = [128, 1], strides = [1, 1]} : vector<384x1xf32> to vector<128x1xf32>
    %400 = vector.broadcast %399 : vector<128x1xf32> to vector<128x16xf32>
    %401 = arith.addf %398, %400 : vector<128x16xf32>
    %cst_237 = arith.constant 0.000000e+00 : f32
    %402 = vector.broadcast %cst_237 : f32 to vector<128x16xf32>
    %403 = arith.maximumf %401, %402 : vector<128x16xf32>
    %c0_238 = arith.constant 0 : index
    %c0_239 = arith.constant 0 : index
    %404 = vector.load %arg36[%c0_238, %c0_239] : memref<512x128xf32, #tpu.memory_space<vmem>>, vector<512x128xf32>
    %cst_240 = arith.constant dense<0.000000e+00> : vector<512x16xf32>
    %405 = tpu.matmul %404, %403, %cst_240 {dimension_numbers = #tpu.dot_dimension_numbers<[1], [0], [0], [1], [0, 0, 1, 1], [], []>} : vector<512x128xf32>, vector<128x16xf32>, vector<512x16xf32> -> vector<512x16xf32>
    %c0_241 = arith.constant 0 : index
    %c0_242 = arith.constant 0 : index
    %406 = vector.load %arg38[%c0_241, %c0_242] : memref<128x1xf32, #tpu.memory_space<vmem>>, vector<128x1xf32>
    %407 = vector.extract_strided_slice %405 {offsets = [0, 0], sizes = [128, 16], strides = [1, 1]} : vector<512x16xf32> to vector<128x16xf32>
    %c0_243 = arith.constant 0 : index
    %c0_244 = arith.constant 0 : index
    %c0_245 = arith.constant 0 : index
    %408 = vector.load %arg37[%c0_243, %c0_244, %c0_245] : memref<4x16x32xf32, #tpu.memory_space<vmem>>, vector<1x16x32xf32>
    %409 = vector.shape_cast %408 : vector<1x16x32xf32> to vector<16x32xf32>
    %cst_246 = arith.constant dense<0.000000e+00> : vector<128x32xf32>
    %410 = tpu.matmul %407, %409, %cst_246 {dimension_numbers = #tpu.dot_dimension_numbers<[1], [0], [0], [1], [0, 0, 1, 1], [], []>} : vector<128x16xf32>, vector<16x32xf32>, vector<128x32xf32> -> vector<128x32xf32>
    %411 = vector.broadcast %406 : vector<128x1xf32> to vector<128x32xf32>
    %412 = arith.addf %411, %410 : vector<128x32xf32>
    %413 = vector.extract_strided_slice %405 {offsets = [128, 0], sizes = [128, 16], strides = [1, 1]} : vector<512x16xf32> to vector<128x16xf32>
    %c1_247 = arith.constant 1 : index
    %c0_248 = arith.constant 0 : index
    %c0_249 = arith.constant 0 : index
    %414 = vector.load %arg37[%c1_247, %c0_248, %c0_249] : memref<4x16x32xf32, #tpu.memory_space<vmem>>, vector<1x16x32xf32>
    %415 = vector.shape_cast %414 : vector<1x16x32xf32> to vector<16x32xf32>
    %cst_250 = arith.constant dense<0.000000e+00> : vector<128x32xf32>
    %416 = tpu.matmul %413, %415, %cst_250 {dimension_numbers = #tpu.dot_dimension_numbers<[1], [0], [0], [1], [0, 0, 1, 1], [], []>} : vector<128x16xf32>, vector<16x32xf32>, vector<128x32xf32> -> vector<128x32xf32>
    %417 = arith.addf %412, %416 : vector<128x32xf32>
    %418 = vector.extract_strided_slice %405 {offsets = [256, 0], sizes = [128, 16], strides = [1, 1]} : vector<512x16xf32> to vector<128x16xf32>
    %c2_251 = arith.constant 2 : index
    %c0_252 = arith.constant 0 : index
    %c0_253 = arith.constant 0 : index
    %419 = vector.load %arg37[%c2_251, %c0_252, %c0_253] : memref<4x16x32xf32, #tpu.memory_space<vmem>>, vector<1x16x32xf32>
    %420 = vector.shape_cast %419 : vector<1x16x32xf32> to vector<16x32xf32>
    %cst_254 = arith.constant dense<0.000000e+00> : vector<128x32xf32>
    %421 = tpu.matmul %418, %420, %cst_254 {dimension_numbers = #tpu.dot_dimension_numbers<[1], [0], [0], [1], [0, 0, 1, 1], [], []>} : vector<128x16xf32>, vector<16x32xf32>, vector<128x32xf32> -> vector<128x32xf32>
    %422 = arith.addf %417, %421 : vector<128x32xf32>
    %423 = vector.extract_strided_slice %405 {offsets = [384, 0], sizes = [128, 16], strides = [1, 1]} : vector<512x16xf32> to vector<128x16xf32>
    %c3_255 = arith.constant 3 : index
    %c0_256 = arith.constant 0 : index
    %c0_257 = arith.constant 0 : index
    %424 = vector.load %arg37[%c3_255, %c0_256, %c0_257] : memref<4x16x32xf32, #tpu.memory_space<vmem>>, vector<1x16x32xf32>
    %425 = vector.shape_cast %424 : vector<1x16x32xf32> to vector<16x32xf32>
    %cst_258 = arith.constant dense<0.000000e+00> : vector<128x32xf32>
    %426 = tpu.matmul %423, %425, %cst_258 {dimension_numbers = #tpu.dot_dimension_numbers<[1], [0], [0], [1], [0, 0, 1, 1], [], []>} : vector<128x16xf32>, vector<16x32xf32>, vector<128x32xf32> -> vector<128x32xf32>
    %427 = arith.addf %422, %426 : vector<128x32xf32>
    %c0_259 = arith.constant 0 : index
    %c0_260 = arith.constant 0 : index
    %428 = vector.load %arg39[%c0_259, %c0_260] : memref<128x32xf32, #tpu.memory_space<vmem>>, vector<128x32xf32>
    tpu.vector_store %arg39[%c0_259, %c0_260], %427 {strides = array<i32>} : memref<128x32xf32, #tpu.memory_space<vmem>>, vector<128x32xf32>,
    return
  }
}

</mosaic_0001>

<llo_original>
// kernel: forward.1
$region0: #{forward.1}
  #allocation0 [shape = 'u32[]', space=smem, size = 0x4, offset = 0x4, fixed_abs, tag = 'smem constant byte address 0x4 - core index']
  #allocation1 [shape = 'u32[144,128]{1,0:T(1,128)}', space=vmem, size = 0x12000, scoped, tag = 'internal scratch']
  %s0 = inlined_call_operand.smem [shape: u32[40], index: -1, kind: input, shape index: {}]
  %s1 = sld [smem:[%s0]]
  %s2 = scalar_lea.smem %s0, 1
  %s3 = sld [smem:[%s2]]
  %s4 = scalar_lea.smem %s0, 2
  %s5 = sld [smem:[%s4]]
  %s6 = scalar_lea.smem %s0, 3
  %s7 = sld [smem:[%s6]]
  %s8 = scalar_lea.smem %s0, 4
  %s9 = sld [smem:[%s8]]
  %s10 = scalar_lea.smem %s0, 5
  %s11 = sld [smem:[%s10]]
  %s12 = scalar_lea.smem %s0, 6
  %s13 = sld [smem:[%s12]]
  %s14 = scalar_lea.smem %s0, 7
  %s15 = sld [smem:[%s14]]
  %s16 = scalar_lea.smem %s0, 8
  %s17 = sld [smem:[%s16]]
  %s18 = scalar_lea.smem %s0, 9
  %s19 = sld [smem:[%s18]]
  %s20 = scalar_lea.smem %s0, 10
  %s21 = sld [smem:[%s20]]
  %s22 = scalar_lea.smem %s0, 11
  %s23 = sld [smem:[%s22]]
  %s24 = scalar_lea.smem %s0, 12
  %s25 = sld [smem:[%s24]]
  %s26 = scalar_lea.smem %s0, 13
  %s27 = sld [smem:[%s26]]
  %s28 = scalar_lea.smem %s0, 14
  %s29 = sld [smem:[%s28]]
  %s30 = scalar_lea.smem %s0, 15
  %s31 = sld [smem:[%s30]]
  %s32 = scalar_lea.smem %s0, 16
  %s33 = sld [smem:[%s32]]
  %s34 = scalar_lea.smem %s0, 17
  %s35 = sld [smem:[%s34]]
  %s36 = scalar_lea.smem %s0, 18
  %s37 = sld [smem:[%s36]]
  %s38 = scalar_lea.smem %s0, 19
  %s39 = sld [smem:[%s38]]
  %s40 = scalar_lea.smem %s0, 20
  %s41 = sld [smem:[%s40]]
  %s42 = scalar_lea.smem %s0, 21
  %s43 = sld [smem:[%s42]]
  %s44 = scalar_lea.smem %s0, 22
  %s45 = sld [smem:[%s44]]
  %s46 = scalar_lea.smem %s0, 23
  %s47 = sld [smem:[%s46]]
  %s48 = scalar_lea.smem %s0, 24
  %s49 = sld [smem:[%s48]]
  %s50 = scalar_lea.smem %s0, 25
  %s51 = sld [smem:[%s50]]
  %s52 = scalar_lea.smem %s0, 26
  %s53 = sld [smem:[%s52]]
  %s54 = scalar_lea.smem %s0, 27
  %s55 = sld [smem:[%s54]]
  %s56 = scalar_lea.smem %s0, 28
  %s57 = sld [smem:[%s56]]
  %s58 = scalar_lea.smem %s0, 29
  %s59 = sld [smem:[%s58]]
  %s60 = scalar_lea.smem %s0, 30
  %s61 = sld [smem:[%s60]]
  %s62 = scalar_lea.smem %s0, 31
  %s63 = sld [smem:[%s62]]
  %s64 = scalar_lea.smem %s0, 32
  %s65 = sld [smem:[%s64]]
  %s66 = scalar_lea.smem %s0, 33
  %s67 = sld [smem:[%s66]]
  %s68 = scalar_lea.smem %s0, 34
  %s69 = sld [smem:[%s68]]
  %s70 = scalar_lea.smem %s0, 35
  %s71 = sld [smem:[%s70]]
  %s72 = scalar_lea.smem %s0, 36
  %s73 = sld [smem:[%s72]]
  %s74 = scalar_lea.smem %s0, 37
  %s75 = sld [smem:[%s74]]
  %s76 = scalar_lea.smem %s0, 38
  %s77 = sld [smem:[%s76]]
  %s78 = scalar_lea.smem %s0, 39
  %s79 = sld [smem:[%s78]]
  %s80 = sld [smem:[#allocation0]]
  $region166: #{forward.1} parent=0
    _
  %s82 = ssub.s32 1, %s80
  %s83 = scalar_select 0, %s82, %s80
  // Predicated region
  $region2: #{forward.1} parent=0 // pred_check
    _
  $region3: #{forward.1} parent=0 // pred_check_branch
    %85 = sbr.rel (0) target = $region5
  $region4: #{forward.1} parent=0 // pred_region
    _
  $region5: #{forward.1} parent=0 // pred_fallthru
    _
  // Predicated region
  $region6: #{forward.1} parent=0 // pred_check
    _
  $region7: #{forward.1} parent=0 // pred_check_branch
    %87 = sbr.rel (0) target = $region9
  $region8: #{forward.1} parent=0 // pred_region
    _
  $region9: #{forward.1} parent=0 // pred_fallthru
    _
  // Predicated region
  $region10: #{forward.1} parent=0 // pred_check
    _
  $region11: #{forward.1} parent=0 // pred_check_branch
    %89 = sbr.rel (0) target = $region13
  $region12: #{forward.1} parent=0 // pred_region
    _
  $region13: #{forward.1} parent=0 // pred_fallthru
    _
  // Predicated region
  $region14: #{forward.1} parent=0 // pred_check
    _
  $region15: #{forward.1} parent=0 // pred_check_branch
    %91 = sbr.rel (0) target = $region17
  $region16: #{forward.1} parent=0 // pred_region
    _
  $region17: #{forward.1} parent=0 // pred_fallthru
    _
  // Predicated region
  $region18: #{forward.1} parent=0 // pred_check
    _
  $region19: #{forward.1} parent=0 // pred_check_branch
    %93 = sbr.rel (0) target = $region21
  $region20: #{forward.1} parent=0 // pred_region
    _
  $region21: #{forward.1} parent=0 // pred_fallthru
    _
  // Predicated region
  $region22: #{forward.1} parent=0 // pred_check
    _
  $region23: #{forward.1} parent=0 // pred_check_branch
    %95 = sbr.rel (0) target = $region25
  $region24: #{forward.1} parent=0 // pred_region
    _
  $region25: #{forward.1} parent=0 // pred_fallthru
    _
  // Predicated region
  $region26: #{forward.1} parent=0 // pred_check
    _
  $region27: #{forward.1} parent=0 // pred_check_branch
    %97 = sbr.rel (0) target = $region29
  $region28: #{forward.1} parent=0 // pred_region
    _
  $region29: #{forward.1} parent=0 // pred_fallthru
    _
  // Predicated region
  $region30: #{forward.1} parent=0 // pred_check
    _
  $region31: #{forward.1} parent=0 // pred_check_branch
    %99 = sbr.rel (0) target = $region33
  $region32: #{forward.1} parent=0 // pred_region
    _
  $region33: #{forward.1} parent=0 // pred_fallthru
    _
  // Predicated region
  $region34: #{forward.1} parent=0 // pred_check
    _
  $region35: #{forward.1} parent=0 // pred_check_branch
    %101 = sbr.rel (0) target = $region37
  $region36: #{forward.1} parent=0 // pred_region
    _
  $region37: #{forward.1} parent=0 // pred_fallthru
    _
  // Predicated region
  $region38: #{forward.1} parent=0 // pred_check
    _
  $region39: #{forward.1} parent=0 // pred_check_branch
    %103 = sbr.rel (0) target = $region41
  $region40: #{forward.1} parent=0 // pred_region
    _
  $region41: #{forward.1} parent=0 // pred_fallthru
    _
  // Predicated region
  $region42: #{forward.1} parent=0 // pred_check
    _
  $region43: #{forward.1} parent=0 // pred_check_branch
    %105 = sbr.rel (0) target = $region45
  $region44: #{forward.1} parent=0 // pred_region
    _
  $region45: #{forward.1} parent=0 // pred_fallthru
    _
  // Predicated region
  $region46: #{forward.1} parent=0 // pred_check
    _
  $region47: #{forward.1} parent=0 // pred_check_branch
    %107 = sbr.rel (0) target = $region49
  $region48: #{forward.1} parent=0 // pred_region
    _
  $region49: #{forward.1} parent=0 // pred_fallthru
    _
  // Predicated region
  $region50: #{forward.1} parent=0 // pred_check
    _
  $region51: #{forward.1} parent=0 // pred_check_branch
    %109 = sbr.rel (0) target = $region53
  $region52: #{forward.1} parent=0 // pred_region
    _
  $region53: #{forward.1} parent=0 // pred_fallthru
    _
  // Predicated region
  $region54: #{forward.1} parent=0 // pred_check
    _
  $region55: #{forward.1} parent=0 // pred_check_branch
    %111 = sbr.rel (0) target = $region57
  $region56: #{forward.1} parent=0 // pred_region
    _
  $region57: #{forward.1} parent=0 // pred_fallthru
    _
  // Predicated region
  $region58: #{forward.1} parent=0 // pred_check
    _
  $region59: #{forward.1} parent=0 // pred_check_branch
    %113 = sbr.rel (0) target = $region61
  $region60: #{forward.1} parent=0 // pred_region
    _
  $region61: #{forward.1} parent=0 // pred_fallthru
    _
  // Predicated region
  $region62: #{forward.1} parent=0 // pred_check
    _
  $region63: #{forward.1} parent=0 // pred_check_branch
    %115 = sbr.rel (0) target = $region65
  $region64: #{forward.1} parent=0 // pred_region
    _
  $region65: #{forward.1} parent=0 // pred_fallthru
    _
  // Predicated region
  $region66: #{forward.1} parent=0 // pred_check
    _
  $region67: #{forward.1} parent=0 // pred_check_branch
    %117 = sbr.rel (0) target = $region69
  $region68: #{forward.1} parent=0 // pred_region
    _
  $region69: #{forward.1} parent=0 // pred_fallthru
    _
  // Predicated region
  $region70: #{forward.1} parent=0 // pred_check
    _
  $region71: #{forward.1} parent=0 // pred_check_branch
    %119 = sbr.rel (0) target = $region73
  $region72: #{forward.1} parent=0 // pred_region
    _
  $region73: #{forward.1} parent=0 // pred_fallthru
    _
  // Predicated region
  $region74: #{forward.1} parent=0 // pred_check
    _
  $region75: #{forward.1} parent=0 // pred_check_branch
    %121 = sbr.rel (0) target = $region77
  $region76: #{forward.1} parent=0 // pred_region
    _
  $region77: #{forward.1} parent=0 // pred_fallthru
    _
  // Predicated region
  $region78: #{forward.1} parent=0 // pred_check
    _
  $region79: #{forward.1} parent=0 // pred_check_branch
    %123 = sbr.rel (0) target = $region81
  $region80: #{forward.1} parent=0 // pred_region
    _
  $region81: #{forward.1} parent=0 // pred_fallthru
    _
  // Predicated region
  $region82: #{forward.1} parent=0 // pred_check
    _
  $region83: #{forward.1} parent=0 // pred_check_branch
    %125 = sbr.rel (0) target = $region85
  $region84: #{forward.1} parent=0 // pred_region
    _
  $region85: #{forward.1} parent=0 // pred_fallthru
    _
  // Predicated region
  $region86: #{forward.1} parent=0 // pred_check
    _
  $region87: #{forward.1} parent=0 // pred_check_branch
    %127 = sbr.rel (0) target = $region89
  $region88: #{forward.1} parent=0 // pred_region
    _
  $region89: #{forward.1} parent=0 // pred_fallthru
    _
  // Predicated region
  $region90: #{forward.1} parent=0 // pred_check
    _
  $region91: #{forward.1} parent=0 // pred_check_branch
    %129 = sbr.rel (0) target = $region93
  $region92: #{forward.1} parent=0 // pred_region
    _
  $region93: #{forward.1} parent=0 // pred_fallthru
    _
  // Predicated region
  $region94: #{forward.1} parent=0 // pred_check
    _
  $region95: #{forward.1} parent=0 // pred_check_branch
    %131 = sbr.rel (0) target = $region97
  $region96: #{forward.1} parent=0 // pred_region
    _
  $region97: #{forward.1} parent=0 // pred_fallthru
    _
  // Predicated region
  $region98: #{forward.1} parent=0 // pred_check
    _
  $region99: #{forward.1} parent=0 // pred_check_branch
    %133 = sbr.rel (0) target = $region101
  $region100: #{forward.1} parent=0 // pred_region
    _
  $region101: #{forward.1} parent=0 // pred_fallthru
    _
  // Predicated region
  $region102: #{forward.1} parent=0 // pred_check
    _
  $region103: #{forward.1} parent=0 // pred_check_branch
    %135 = sbr.rel (0) target = $region105
  $region104: #{forward.1} parent=0 // pred_region
    _
  $region105: #{forward.1} parent=0 // pred_fallthru
    _
  // Predicated region
  $region106: #{forward.1} parent=0 // pred_check
    _
  $region107: #{forward.1} parent=0 // pred_check_branch
    %137 = sbr.rel (0) target = $region109
  $region108: #{forward.1} parent=0 // pred_region
    _
  $region109: #{forward.1} parent=0 // pred_fallthru
    _
  // Predicated region
  $region110: #{forward.1} parent=0 // pred_check
    _
  $region111: #{forward.1} parent=0 // pred_check_branch
    %139 = sbr.rel (0) target = $region113
  $region112: #{forward.1} parent=0 // pred_region
    _
  $region113: #{forward.1} parent=0 // pred_fallthru
    _
  // Predicated region
  $region114: #{forward.1} parent=0 // pred_check
    _
  $region115: #{forward.1} parent=0 // pred_check_branch
    %141 = sbr.rel (0) target = $region117
  $region116: #{forward.1} parent=0 // pred_region
    _
  $region117: #{forward.1} parent=0 // pred_fallthru
    _
  // Predicated region
  $region118: #{forward.1} parent=0 // pred_check
    _
  $region119: #{forward.1} parent=0 // pred_check_branch
    %143 = sbr.rel (0) target = $region121
  $region120: #{forward.1} parent=0 // pred_region
    _
  $region121: #{forward.1} parent=0 // pred_fallthru
    _
  // Predicated region
  $region122: #{forward.1} parent=0 // pred_check
    _
  $region123: #{forward.1} parent=0 // pred_check_branch
    %145 = sbr.rel (0) target = $region125
  $region124: #{forward.1} parent=0 // pred_region
    _
  $region125: #{forward.1} parent=0 // pred_fallthru
    _
  // Predicated region
  $region126: #{forward.1} parent=0 // pred_check
    _
  $region127: #{forward.1} parent=0 // pred_check_branch
    %147 = sbr.rel (0) target = $region129
  $region128: #{forward.1} parent=0 // pred_region
    _
  $region129: #{forward.1} parent=0 // pred_fallthru
    _
  // Predicated region
  $region130: #{forward.1} parent=0 // pred_check
    _
  $region131: #{forward.1} parent=0 // pred_check_branch
    %149 = sbr.rel (0) target = $region133
  $region132: #{forward.1} parent=0 // pred_region
    _
  $region133: #{forward.1} parent=0 // pred_fallthru
    _
  // Predicated region
  $region134: #{forward.1} parent=0 // pred_check
    _
  $region135: #{forward.1} parent=0 // pred_check_branch
    %151 = sbr.rel (0) target = $region137
  $region136: #{forward.1} parent=0 // pred_region
    _
  $region137: #{forward.1} parent=0 // pred_fallthru
    _
  // Predicated region
  $region138: #{forward.1} parent=0 // pred_check
    _
  $region139: #{forward.1} parent=0 // pred_check_branch
    %153 = sbr.rel (0) target = $region141
  $region140: #{forward.1} parent=0 // pred_region
    _
  $region141: #{forward.1} parent=0 // pred_fallthru
    _
  // Predicated region
  $region142: #{forward.1} parent=0 // pred_check
    _
  $region143: #{forward.1} parent=0 // pred_check_branch
    %155 = sbr.rel (0) target = $region145
  $region144: #{forward.1} parent=0 // pred_region
    _
  $region145: #{forward.1} parent=0 // pred_fallthru
    _
  // Predicated region
  $region146: #{forward.1} parent=0 // pred_check
    _
  $region147: #{forward.1} parent=0 // pred_check_branch
    %157 = sbr.rel (0) target = $region149
  $region148: #{forward.1} parent=0 // pred_region
    _
  $region149: #{forward.1} parent=0 // pred_fallthru
    _
  // Predicated region
  $region150: #{forward.1} parent=0 // pred_check
    _
  $region151: #{forward.1} parent=0 // pred_check_branch
    %159 = sbr.rel (0) target = $region153
  $region152: #{forward.1} parent=0 // pred_region
    _
  $region153: #{forward.1} parent=0 // pred_fallthru
    _
  // Predicated region
  $region154: #{forward.1} parent=0 // pred_check
    _
  $region155: #{forward.1} parent=0 // pred_check_branch
    %161 = sbr.rel (0) target = $region157
  $region156: #{forward.1} parent=0 // pred_region
    _
  $region157: #{forward.1} parent=0 // pred_fallthru
    _
  %v162 = vld [vmem:[%s1] sm:$0xff]
  %v163 = vld [vmem:[%s1 + $0x8] sm:$0xff]
  %v164 = vld [vmem:[%s1 + $0x10] sm:$0xff]
  %v165 = vld [vmem:[%s1 + $0x18] sm:$0xff]
  %v166 = vld [vmem:[%s1 + $0x20] sm:$0xff]
  %v167 = vld [vmem:[%s1 + $0x28] sm:$0xff]
  %v168 = vld [vmem:[%s1 + $0x30] sm:$0xff]
  %v169 = vld [vmem:[%s1 + $0x38] sm:$0xff]
  %v170 = vld [vmem:[%s1 + $0x40] sm:$0xff]
  %v171 = vld [vmem:[%s1 + $0x48] sm:$0xff]
  %v172 = vld [vmem:[%s1 + $0x50] sm:$0xff]
  %v173 = vld [vmem:[%s1 + $0x58] sm:$0xff]
  %v174 = vld [vmem:[%s1 + $0x60] sm:$0xff]
  %v175 = vld [vmem:[%s1 + $0x68] sm:$0xff]
  %v176 = vld [vmem:[%s1 + $0x70] sm:$0xff]
  %v177 = vld [vmem:[%s1 + $0x78] sm:$0xff]
  %v178 = vld [vmem:[%s3] sm:$0xff]
  %v179 = vld [vmem:[%s3 + $0x8] sm:$0xff]
  %v180 = vld [vmem:[%s3 + $0x10] sm:$0xff]
  %v181 = vld [vmem:[%s3 + $0x18] sm:$0xff]
  %v182 = vld [vmem:[%s3 + $0x20] sm:$0xff]
  %v183 = vld [vmem:[%s3 + $0x28] sm:$0xff]
  %v184 = vld [vmem:[%s3 + $0x30] sm:$0xff]
  %v185 = vld [vmem:[%s3 + $0x38] sm:$0xff]
  %v186 = vld [vmem:[%s3 + $0x40] sm:$0xff]
  %v187 = vld [vmem:[%s3 + $0x48] sm:$0xff]
  %v188 = vld [vmem:[%s3 + $0x50] sm:$0xff]
  %v189 = vld [vmem:[%s3 + $0x58] sm:$0xff]
  %v190 = vld [vmem:[%s3 + $0x60] sm:$0xff]
  %v191 = vld [vmem:[%s3 + $0x68] sm:$0xff]
  %v192 = vld [vmem:[%s3 + $0x70] sm:$0xff]
  %v193 = vld [vmem:[%s3 + $0x78] sm:$0xff]
  %v194 = vld [vmem:[%s3 + $0x80] sm:$0xff]
  %v195 = vld [vmem:[%s3 + $0x88] sm:$0xff]
  %v196 = vld [vmem:[%s3 + $0x90] sm:$0xff]
  %v197 = vld [vmem:[%s3 + $0x98] sm:$0xff]
  %v198 = vld [vmem:[%s3 + $0xa0] sm:$0xff]
  %v199 = vld [vmem:[%s3 + $0xa8] sm:$0xff]
  %v200 = vld [vmem:[%s3 + $0xb0] sm:$0xff]
  %v201 = vld [vmem:[%s3 + $0xb8] sm:$0xff]
  %v202 = vld [vmem:[%s3 + $0xc0] sm:$0xff]
  %v203 = vld [vmem:[%s3 + $0xc8] sm:$0xff]
  %v204 = vld [vmem:[%s3 + $0xd0] sm:$0xff]
  %v205 = vld [vmem:[%s3 + $0xd8] sm:$0xff]
  %v206 = vld [vmem:[%s3 + $0xe0] sm:$0xff]
  %v207 = vld [vmem:[%s3 + $0xe8] sm:$0xff]
  %v208 = vld [vmem:[%s3 + $0xf0] sm:$0xff]
  %v209 = vld [vmem:[%s3 + $0xf8] sm:$0xff]
  %v210 = vld [vmem:[%s3 + $0x100] sm:$0xff]
  %v211 = vld [vmem:[%s3 + $0x108] sm:$0xff]
  %v212 = vld [vmem:[%s3 + $0x110] sm:$0xff]
  %v213 = vld [vmem:[%s3 + $0x118] sm:$0xff]
  %v214 = vld [vmem:[%s3 + $0x120] sm:$0xff]
  %v215 = vld [vmem:[%s3 + $0x128] sm:$0xff]
  %v216 = vld [vmem:[%s3 + $0x130] sm:$0xff]
  %v217 = vld [vmem:[%s3 + $0x138] sm:$0xff]
  %v218 = vld [vmem:[%s3 + $0x140] sm:$0xff]
  %v219 = vld [vmem:[%s3 + $0x148] sm:$0xff]
  %v220 = vld [vmem:[%s3 + $0x150] sm:$0xff]
  %v221 = vld [vmem:[%s3 + $0x158] sm:$0xff]
  %v222 = vld [vmem:[%s3 + $0x160] sm:$0xff]
  %v223 = vld [vmem:[%s3 + $0x168] sm:$0xff]
  %v224 = vld [vmem:[%s3 + $0x170] sm:$0xff]
  %v225 = vld [vmem:[%s3 + $0x178] sm:$0xff]
  %v226 = vld [vmem:[%s3 + $0x180] sm:$0xff]
  %v227 = vld [vmem:[%s3 + $0x188] sm:$0xff]
  %v228 = vld [vmem:[%s3 + $0x190] sm:$0xff]
  %v229 = vld [vmem:[%s3 + $0x198] sm:$0xff]
  %v230 = vld [vmem:[%s3 + $0x1a0] sm:$0xff]
  %v231 = vld [vmem:[%s3 + $0x1a8] sm:$0xff]
  %v232 = vld [vmem:[%s3 + $0x1b0] sm:$0xff]
  %v233 = vld [vmem:[%s3 + $0x1b8] sm:$0xff]
  %v234 = vld [vmem:[%s3 + $0x1c0] sm:$0xff]
  %v235 = vld [vmem:[%s3 + $0x1c8] sm:$0xff]
  %v236 = vld [vmem:[%s3 + $0x1d0] sm:$0xff]
  %v237 = vld [vmem:[%s3 + $0x1d8] sm:$0xff]
  %v238 = vld [vmem:[%s3 + $0x1e0] sm:$0xff]
  %v239 = vld [vmem:[%s3 + $0x1e8] sm:$0xff]
  %v240 = vld [vmem:[%s3 + $0x1f0] sm:$0xff]
  %v241 = vld [vmem:[%s3 + $0x1f8] sm:$0xff]
  %242 = vmatprep.subr.mxu0 0.0
  %243 = vmatpush1.msra.mxu0 %v177
  %244 = vmatprep.subr.mxu0 0.0
  %245 = vmatpush1.msra.mxu0 %v176
  %246 = vmatprep.subr.mxu0 0.0
  %247 = vmatpush1.msra.mxu0 %v175
  %248 = vmatprep.subr.mxu0 0.0
  %249 = vmatpush1.msra.mxu0 %v174
  %250 = vmatprep.subr.mxu0 0.0
  %251 = vmatpush1.msra.mxu0 %v173
  %252 = vmatprep.subr.mxu0 0.0
  %253 = vmatpush1.msra.mxu0 %v172
  %254 = vmatprep.subr.mxu0 0.0
  %255 = vmatpush1.msra.mxu0 %v171
  %256 = vmatprep.subr.mxu0 0.0
  %257 = vmatpush1.msra.mxu0 %v170
  %258 = vmatprep.subr.mxu0 0.0
  %259 = vmatpush1.msra.mxu0 %v169
  %260 = vmatprep.subr.mxu0 0.0
  %261 = vmatpush1.msra.mxu0 %v168
  %262 = vmatprep.subr.mxu0 0.0
  %263 = vmatpush1.msra.mxu0 %v167
  %264 = vmatprep.subr.mxu0 0.0
  %265 = vmatpush1.msra.mxu0 %v166
  %266 = vmatprep.subr.mxu0 0.0
  %267 = vmatpush1.msra.mxu0 %v165
  %268 = vmatprep.subr.mxu0 0.0
  %269 = vmatpush1.msra.mxu0 %v164
  %270 = vmatprep.subr.mxu0 0.0
  %271 = vmatpush1.msra.mxu0 %v163
  %272 = vmatprep.subr.mxu0 0.0
  %273 = vmatpush1.msra.mxu0 %v162
  %274 = vmatprep.subr.mxu0 0.0
  %275 = vmatpush2.msra.mxu0 0.0
  %276 = vmatprep.subr.mxu0 0.0
  %277 = vmatpush2.msra.mxu0 0.0
  %278 = vmatprep.subr.mxu0 0.0
  %279 = vmatpush2.msra.mxu0 0.0
  %280 = vmatprep.subr.mxu0 0.0
  %281 = vmatpush2.msra.mxu0 0.0
  %282 = vmatprep.subr.mxu0 0.0
  %283 = vmatpush2.msra.mxu0 0.0
  %284 = vmatprep.subr.mxu0 0.0
  %285 = vmatpush2.msra.mxu0 0.0
  %286 = vmatprep.subr.mxu0 0.0
  %287 = vmatpush2.msra.mxu0 0.0
  %288 = vmatprep.subr.mxu0 0.0
  %289 = vmatpush2.msra.mxu0 0.0
  %290 = vmatprep.subr.mxu0 0.0
  %291 = vmatpush2.msra.mxu0 0.0
  %292 = vmatprep.subr.mxu0 0.0
  %293 = vmatpush2.msra.mxu0 0.0
  %294 = vmatprep.subr.mxu0 0.0
  %295 = vmatpush2.msra.mxu0 0.0
  %296 = vmatprep.subr.mxu0 0.0
  %297 = vmatpush2.msra.mxu0 0.0
  %298 = vmatprep.subr.mxu0 0.0
  %299 = vmatpush2.msra.mxu0 0.0
  %300 = vmatprep.subr.mxu0 0.0
  %301 = vmatpush2.msra.mxu0 0.0
  %302 = vmatprep.subr.mxu0 0.0
  %303 = vmatpush2.msra.mxu0 0.0
  %304 = vmatprep.subr.mxu0 0.0
  %305 = vmatpush2.msra.mxu0 0.0
  %306 = vmatprep.mubr.f32.mxu0 0.0
  %307 = vmatmul.mubr.f32.gmra.mxu0 %v178
  %v308 = vpop.f32.mrf.mxu0
  %v309 = vadd.f32 0.0, %v308
  %v310 = vpop.f32.mrf.mxu0
  %311 = vmatprep.mubr.f32.mxu0 0.0
  %312 = vmatmul.mubr.f32.gmra.mxu0 %v179
  %v313 = vpop.f32.mrf.mxu0
  %v314 = vadd.f32 0.0, %v313
  %v315 = vpop.f32.mrf.mxu0
  %316 = vmatprep.mubr.f32.mxu0 0.0
  %317 = vmatmul.mubr.f32.gmra.mxu0 %v180
  %v318 = vpop.f32.mrf.mxu0
  %v319 = vadd.f32 0.0, %v318
  %v320 = vpop.f32.mrf.mxu0
  %321 = vmatprep.mubr.f32.mxu0 0.0
  %322 = vmatmul.mubr.f32.gmra.mxu0 %v181
  %v323 = vpop.f32.mrf.mxu0
  %v324 = vadd.f32 0.0, %v323
  %v325 = vpop.f32.mrf.mxu0
  %326 = vmatprep.mubr.f32.mxu0 0.0
  %327 = vmatmul.mubr.f32.gmra.mxu0 %v182
  %v328 = vpop.f32.mrf.mxu0
  %v329 = vadd.f32 0.0, %v328
  %v330 = vpop.f32.mrf.mxu0
  %331 = vmatprep.mubr.f32.mxu0 0.0
  %332 = vmatmul.mubr.f32.gmra.mxu0 %v183
  %v333 = vpop.f32.mrf.mxu0
  %v334 = vadd.f32 0.0, %v333
  %v335 = vpop.f32.mrf.mxu0
  %336 = vmatprep.mubr.f32.mxu0 0.0
  %337 = vmatmul.mubr.f32.gmra.mxu0 %v184
  %v338 = vpop.f32.mrf.mxu0
  %v339 = vadd.f32 0.0, %v338
  %v340 = vpop.f32.mrf.mxu0
  %341 = vmatprep.mubr.f32.mxu0 0.0
  %342 = vmatmul.mubr.f32.gmra.mxu0 %v185
  %v343 = vpop.f32.mrf.mxu0
  %v344 = vadd.f32 0.0, %v343
  %v345 = vpop.f32.mrf.mxu0
  %346 = vmatprep.mubr.f32.mxu0 0.0
  %347 = vmatmul.mubr.f32.gmra.mxu0 %v186
  %v348 = vpop.f32.mrf.mxu0
  %v349 = vadd.f32 0.0, %v348
  %v350 = vpop.f32.mrf.mxu0
  %351 = vmatprep.mubr.f32.mxu0 0.0
  %352 = vmatmul.mubr.f32.gmra.mxu0 %v187
  %v353 = vpop.f32.mrf.mxu0
  %v354 = vadd.f32 0.0, %v353
  %v355 = vpop.f32.mrf.mxu0
  %356 = vmatprep.mubr.f32.mxu0 0.0
  %357 = vmatmul.mubr.f32.gmra.mxu0 %v188
  %v358 = vpop.f32.mrf.mxu0
  %v359 = vadd.f32 0.0, %v358
  %v360 = vpop.f32.mrf.mxu0
  %361 = vmatprep.mubr.f32.mxu0 0.0
  %362 = vmatmul.mubr.f32.gmra.mxu0 %v189
  %v363 = vpop.f32.mrf.mxu0
  %v364 = vadd.f32 0.0, %v363
  %v365 = vpop.f32.mrf.mxu0
  %366 = vmatprep.mubr.f32.mxu0 0.0
  %367 = vmatmul.mubr.f32.gmra.mxu0 %v190
  %v368 = vpop.f32.mrf.mxu0
  %v369 = vadd.f32 0.0, %v368
  %v370 = vpop.f32.mrf.mxu0
  %371 = vmatprep.mubr.f32.mxu0 0.0
  %372 = vmatmul.mubr.f32.gmra.mxu0 %v191
  %v373 = vpop.f32.mrf.mxu0
  %v374 = vadd.f32 0.0, %v373
  %v375 = vpop.f32.mrf.mxu0
  %376 = vmatprep.mubr.f32.mxu0 0.0
  %377 = vmatmul.mubr.f32.gmra.mxu0 %v192
  %v378 = vpop.f32.mrf.mxu0
  %v379 = vadd.f32 0.0, %v378
  %v380 = vpop.f32.mrf.mxu0
  %381 = vmatprep.mubr.f32.mxu0 0.0
  %382 = vmatmul.mubr.f32.gmra.mxu0 %v193
  %v383 = vpop.f32.mrf.mxu0
  %v384 = vadd.f32 0.0, %v383
  %v385 = vpop.f32.mrf.mxu0
  %386 = vmatprep.mubr.f32.mxu0 0.0
  %387 = vmatmul.mubr.f32.gmra.mxu0 %v194
  %v388 = vpop.f32.mrf.mxu0
  %v389 = vadd.f32 0.0, %v388
  %v390 = vpop.f32.mrf.mxu0
  %391 = vmatprep.mubr.f32.mxu0 0.0
  %392 = vmatmul.mubr.f32.gmra.mxu0 %v195
  %v393 = vpop.f32.mrf.mxu0
  %v394 = vadd.f32 0.0, %v393
  %v395 = vpop.f32.mrf.mxu0
  %396 = vmatprep.mubr.f32.mxu0 0.0
  %397 = vmatmul.mubr.f32.gmra.mxu0 %v196
  %v398 = vpop.f32.mrf.mxu0
  %v399 = vadd.f32 0.0, %v398
  %v400 = vpop.f32.mrf.mxu0
  %401 = vmatprep.mubr.f32.mxu0 0.0
  %402 = vmatmul.mubr.f32.gmra.mxu0 %v197
  %v403 = vpop.f32.mrf.mxu0
  %v404 = vadd.f32 0.0, %v403
  %v405 = vpop.f32.mrf.mxu0
  %406 = vmatprep.mubr.f32.mxu0 0.0
  %407 = vmatmul.mubr.f32.gmra.mxu0 %v198
  %v408 = vpop.f32.mrf.mxu0
  %v409 = vadd.f32 0.0, %v408
  %v410 = vpop.f32.mrf.mxu0
  %411 = vmatprep.mubr.f32.mxu0 0.0
  %412 = vmatmul.mubr.f32.gmra.mxu0 %v199
  %v413 = vpop.f32.mrf.mxu0
  %v414 = vadd.f32 0.0, %v413
  %v415 = vpop.f32.mrf.mxu0
  %416 = vmatprep.mubr.f32.mxu0 0.0
  %417 = vmatmul.mubr.f32.gmra.mxu0 %v200
  %v418 = vpop.f32.mrf.mxu0
  %v419 = vadd.f32 0.0, %v418
  %v420 = vpop.f32.mrf.mxu0
  %421 = vmatprep.mubr.f32.mxu0 0.0
  %422 = vmatmul.mubr.f32.gmra.mxu0 %v201
  %v423 = vpop.f32.mrf.mxu0
  %v424 = vadd.f32 0.0, %v423
  %v425 = vpop.f32.mrf.mxu0
  %426 = vmatprep.mubr.f32.mxu0 0.0
  %427 = vmatmul.mubr.f32.gmra.mxu0 %v202
  %v428 = vpop.f32.mrf.mxu0
  %v429 = vadd.f32 0.0, %v428
  %v430 = vpop.f32.mrf.mxu0
  %431 = vmatprep.mubr.f32.mxu0 0.0
  %432 = vmatmul.mubr.f32.gmra.mxu0 %v203
  %v433 = vpop.f32.mrf.mxu0
  %v434 = vadd.f32 0.0, %v433
  %v435 = vpop.f32.mrf.mxu0
  %436 = vmatprep.mubr.f32.mxu0 0.0
  %437 = vmatmul.mubr.f32.gmra.mxu0 %v204
  %v438 = vpop.f32.mrf.mxu0
  %v439 = vadd.f32 0.0, %v438
  %v440 = vpop.f32.mrf.mxu0
  %441 = vmatprep.mubr.f32.mxu0 0.0
  %442 = vmatmul.mubr.f32.gmra.mxu0 %v205
  %v443 = vpop.f32.mrf.mxu0
  %v444 = vadd.f32 0.0, %v443
  %v445 = vpop.f32.mrf.mxu0
  %446 = vmatprep.mubr.f32.mxu0 0.0
  %447 = vmatmul.mubr.f32.gmra.mxu0 %v206
  %v448 = vpop.f32.mrf.mxu0
  %v449 = vadd.f32 0.0, %v448
  %v450 = vpop.f32.mrf.mxu0
  %451 = vmatprep.mubr.f32.mxu0 0.0
  %452 = vmatmul.mubr.f32.gmra.mxu0 %v207
  %v453 = vpop.f32.mrf.mxu0
  %v454 = vadd.f32 0.0, %v453
  %v455 = vpop.f32.mrf.mxu0
  %456 = vmatprep.mubr.f32.mxu0 0.0
  %457 = vmatmul.mubr.f32.gmra.mxu0 %v208
  %v458 = vpop.f32.mrf.mxu0
  %v459 = vadd.f32 0.0, %v458
  %v460 = vpop.f32.mrf.mxu0
  %461 = vmatprep.mubr.f32.mxu0 0.0
  %462 = vmatmul.mubr.f32.gmra.mxu0 %v209
  %v463 = vpop.f32.mrf.mxu0
  %v464 = vadd.f32 0.0, %v463
  %v465 = vpop.f32.mrf.mxu0
  %466 = vmatprep.mubr.f32.mxu0 0.0
  %467 = vmatmul.mubr.f32.gmra.mxu0 %v210
  %v468 = vpop.f32.mrf.mxu0
  %v469 = vadd.f32 0.0, %v468
  %v470 = vpop.f32.mrf.mxu0
  %471 = vmatprep.mubr.f32.mxu0 0.0
  %472 = vmatmul.mubr.f32.gmra.mxu0 %v211
  %v473 = vpop.f32.mrf.mxu0
  %v474 = vadd.f32 0.0, %v473
  %v475 = vpop.f32.mrf.mxu0
  %476 = vmatprep.mubr.f32.mxu0 0.0
  %477 = vmatmul.mubr.f32.gmra.mxu0 %v212
  %v478 = vpop.f32.mrf.mxu0
  %v479 = vadd.f32 0.0, %v478
  %v480 = vpop.f32.mrf.mxu0
  %481 = vmatprep.mubr.f32.mxu0 0.0
  %482 = vmatmul.mubr.f32.gmra.mxu0 %v213
  %v483 = vpop.f32.mrf.mxu0
  %v484 = vadd.f32 0.0, %v483
  %v485 = vpop.f32.mrf.mxu0
  %486 = vmatprep.mubr.f32.mxu0 0.0
  %487 = vmatmul.mubr.f32.gmra.mxu0 %v214
  %v488 = vpop.f32.mrf.mxu0
  %v489 = vadd.f32 0.0, %v488
  %v490 = vpop.f32.mrf.mxu0
  %491 = vmatprep.mubr.f32.mxu0 0.0
  %492 = vmatmul.mubr.f32.gmra.mxu0 %v215
  %v493 = vpop.f32.mrf.mxu0
  %v494 = vadd.f32 0.0, %v493
  %v495 = vpop.f32.mrf.mxu0
  %496 = vmatprep.mubr.f32.mxu0 0.0
  %497 = vmatmul.mubr.f32.gmra.mxu0 %v216
  %v498 = vpop.f32.mrf.mxu0
  %v499 = vadd.f32 0.0, %v498
  %v500 = vpop.f32.mrf.mxu0
  %501 = vmatprep.mubr.f32.mxu0 0.0
  %502 = vmatmul.mubr.f32.gmra.mxu0 %v217
  %v503 = vpop.f32.mrf.mxu0
  %v504 = vadd.f32 0.0, %v503
  %v505 = vpop.f32.mrf.mxu0
  %506 = vmatprep.mubr.f32.mxu0 0.0
  %507 = vmatmul.mubr.f32.gmra.mxu0 %v218
  %v508 = vpop.f32.mrf.mxu0
  %v509 = vadd.f32 0.0, %v508
  %v510 = vpop.f32.mrf.mxu0
  %511 = vmatprep.mubr.f32.mxu0 0.0
  %512 = vmatmul.mubr.f32.gmra.mxu0 %v219
  %v513 = vpop.f32.mrf.mxu0
  %v514 = vadd.f32 0.0, %v513
  %v515 = vpop.f32.mrf.mxu0
  %516 = vmatprep.mubr.f32.mxu0 0.0
  %517 = vmatmul.mubr.f32.gmra.mxu0 %v220
  %v518 = vpop.f32.mrf.mxu0
  %v519 = vadd.f32 0.0, %v518
  %v520 = vpop.f32.mrf.mxu0
  %521 = vmatprep.mubr.f32.mxu0 0.0
  %522 = vmatmul.mubr.f32.gmra.mxu0 %v221
  %v523 = vpop.f32.mrf.mxu0
  %v524 = vadd.f32 0.0, %v523
  %v525 = vpop.f32.mrf.mxu0
  %526 = vmatprep.mubr.f32.mxu0 0.0
  %527 = vmatmul.mubr.f32.gmra.mxu0 %v222
  %v528 = vpop.f32.mrf.mxu0
  %v529 = vadd.f32 0.0, %v528
  %v530 = vpop.f32.mrf.mxu0
  %531 = vmatprep.mubr.f32.mxu0 0.0
  %532 = vmatmul.mubr.f32.gmra.mxu0 %v223
  %v533 = vpop.f32.mrf.mxu0
  %v534 = vadd.f32 0.0, %v533
  %v535 = vpop.f32.mrf.mxu0
  %536 = vmatprep.mubr.f32.mxu0 0.0
  %537 = vmatmul.mubr.f32.gmra.mxu0 %v224
  %v538 = vpop.f32.mrf.mxu0
  %v539 = vadd.f32 0.0, %v538
  %v540 = vpop.f32.mrf.mxu0
  %541 = vmatprep.mubr.f32.mxu0 0.0
  %542 = vmatmul.mubr.f32.gmra.mxu0 %v225
  %v543 = vpop.f32.mrf.mxu0
  %v544 = vadd.f32 0.0, %v543
  %v545 = vpop.f32.mrf.mxu0
  %546 = vmatprep.mubr.f32.mxu0 0.0
  %547 = vmatmul.mubr.f32.gmra.mxu0 %v226
  %v548 = vpop.f32.mrf.mxu0
  %v549 = vadd.f32 0.0, %v548
  %v550 = vpop.f32.mrf.mxu0
  %551 = vmatprep.mubr.f32.mxu0 0.0
  %552 = vmatmul.mubr.f32.gmra.mxu0 %v227
  %v553 = vpop.f32.mrf.mxu0
  %v554 = vadd.f32 0.0, %v553
  %v555 = vpop.f32.mrf.mxu0
  %556 = vmatprep.mubr.f32.mxu0 0.0
  %557 = vmatmul.mubr.f32.gmra.mxu0 %v228
  %v558 = vpop.f32.mrf.mxu0
  %v559 = vadd.f32 0.0, %v558
  %v560 = vpop.f32.mrf.mxu0
  %561 = vmatprep.mubr.f32.mxu0 0.0
  %562 = vmatmul.mubr.f32.gmra.mxu0 %v229
  %v563 = vpop.f32.mrf.mxu0
  %v564 = vadd.f32 0.0, %v563
  %v565 = vpop.f32.mrf.mxu0
  %566 = vmatprep.mubr.f32.mxu0 0.0
  %567 = vmatmul.mubr.f32.gmra.mxu0 %v230
  %v568 = vpop.f32.mrf.mxu0
  %v569 = vadd.f32 0.0, %v568
  %v570 = vpop.f32.mrf.mxu0
  %571 = vmatprep.mubr.f32.mxu0 0.0
  %572 = vmatmul.mubr.f32.gmra.mxu0 %v231
  %v573 = vpop.f32.mrf.mxu0
  %v574 = vadd.f32 0.0, %v573
  %v575 = vpop.f32.mrf.mxu0
  %576 = vmatprep.mubr.f32.mxu0 0.0
  %577 = vmatmul.mubr.f32.gmra.mxu0 %v232
  %v578 = vpop.f32.mrf.mxu0
  %v579 = vadd.f32 0.0, %v578
  %v580 = vpop.f32.mrf.mxu0
  %581 = vmatprep.mubr.f32.mxu0 0.0
  %582 = vmatmul.mubr.f32.gmra.mxu0 %v233
  %v583 = vpop.f32.mrf.mxu0
  %v584 = vadd.f32 0.0, %v583
  %v585 = vpop.f32.mrf.mxu0
  %586 = vmatprep.mubr.f32.mxu0 0.0
  %587 = vmatmul.mubr.f32.gmra.mxu0 %v234
  %v588 = vpop.f32.mrf.mxu0
  %v589 = vadd.f32 0.0, %v588
  %v590 = vpop.f32.mrf.mxu0
  %591 = vmatprep.mubr.f32.mxu0 0.0
  %592 = vmatmul.mubr.f32.gmra.mxu0 %v235
  %v593 = vpop.f32.mrf.mxu0
  %v594 = vadd.f32 0.0, %v593
  %v595 = vpop.f32.mrf.mxu0
  %596 = vmatprep.mubr.f32.mxu0 0.0
  %597 = vmatmul.mubr.f32.gmra.mxu0 %v236
  %v598 = vpop.f32.mrf.mxu0
  %v599 = vadd.f32 0.0, %v598
  %v600 = vpop.f32.mrf.mxu0
  %601 = vmatprep.mubr.f32.mxu0 0.0
  %602 = vmatmul.mubr.f32.gmra.mxu0 %v237
  %v603 = vpop.f32.mrf.mxu0
  %v604 = vadd.f32 0.0, %v603
  %v605 = vpop.f32.mrf.mxu0
  %606 = vmatprep.mubr.f32.mxu0 0.0
  %607 = vmatmul.mubr.f32.gmra.mxu0 %v238
  %v608 = vpop.f32.mrf.mxu0
  %v609 = vadd.f32 0.0, %v608
  %v610 = vpop.f32.mrf.mxu0
  %611 = vmatprep.mubr.f32.mxu0 0.0
  %612 = vmatmul.mubr.f32.gmra.mxu0 %v239
  %v613 = vpop.f32.mrf.mxu0
  %v614 = vadd.f32 0.0, %v613
  %v615 = vpop.f32.mrf.mxu0
  %616 = vmatprep.mubr.f32.mxu0 0.0
  %617 = vmatmul.mubr.f32.gmra.mxu0 %v240
  %v618 = vpop.f32.mrf.mxu0
  %v619 = vadd.f32 0.0, %v618
  %v620 = vpop.f32.mrf.mxu0
  %621 = vmatprep.mubr.f32.mxu0 0.0
  %622 = vmatmul.mubr.f32.gmra.mxu0 %v241
  %v623 = vpop.f32.mrf.mxu0
  %v624 = vadd.f32 0.0, %v623
  %v625 = vpop.f32.mrf.mxu0
  %626 = vdwg.mxu0
  %v627 = vld [vmem:[%s7] sm:$0xff]
  %v628 = vld [vmem:[%s7 + $0x8] sm:$0xff]
  %v629 = vld [vmem:[%s7 + $0x10] sm:$0xff]
  %v630 = vld [vmem:[%s7 + $0x18] sm:$0xff]
  %v631 = vld [vmem:[%s7 + $0x20] sm:$0xff]
  %v632 = vld [vmem:[%s7 + $0x28] sm:$0xff]
  %v633 = vld [vmem:[%s7 + $0x30] sm:$0xff]
  %v634 = vld [vmem:[%s7 + $0x38] sm:$0xff]
  %v635 = vld [vmem:[%s7 + $0x40] sm:$0xff]
  %v636 = vld [vmem:[%s7 + $0x48] sm:$0xff]
  %v637 = vld [vmem:[%s7 + $0x50] sm:$0xff]
  %v638 = vld [vmem:[%s7 + $0x58] sm:$0xff]
  %v639 = vld [vmem:[%s7 + $0x60] sm:$0xff]
  %v640 = vld [vmem:[%s7 + $0x68] sm:$0xff]
  %v641 = vld [vmem:[%s7 + $0x70] sm:$0xff]
  %v642 = vld [vmem:[%s7 + $0x78] sm:$0xff]
  %v643 = vld [vmem:[%s5] sm:$0xff]
  %v644 = vld [vmem:[%s5 + $0x8] sm:$0xff]
  %v645 = vld [vmem:[%s5 + $0x10] sm:$0xff]
  %v646 = vld [vmem:[%s5 + $0x18] sm:$0xff]
  %vm647 = vcmask 261120
  %v649 = vsel %vm647, %v309, 0
  %v652 = vsel %vm647, %v314, 0
  %v655 = vsel %vm647, %v319, 0
  %v658 = vsel %vm647, %v324, 0
  %v661 = vsel %vm647, %v329, 0
  %v664 = vsel %vm647, %v334, 0
  %v667 = vsel %vm647, %v339, 0
  %v670 = vsel %vm647, %v344, 0
  %v673 = vsel %vm647, %v349, 0
  %v676 = vsel %vm647, %v354, 0
  %v679 = vsel %vm647, %v359, 0
  %v682 = vsel %vm647, %v364, 0
  %v685 = vsel %vm647, %v369, 0
  %v688 = vsel %vm647, %v374, 0
  %v691 = vsel %vm647, %v379, 0
  %v694 = vsel %vm647, %v384, 0
  %696 = vmatprep.subr.mxu0 0.0
  %697 = vmatpush1.msra.mxu0 0.0
  %698 = vmatprep.subr.mxu0 0.0
  %699 = vmatpush1.msra.mxu0 0.0
  %700 = vmatprep.subr.mxu0 0.0
  %701 = vmatpush1.msra.mxu0 0.0
  %702 = vmatprep.subr.mxu0 0.0
  %703 = vmatpush1.msra.mxu0 0.0
  %704 = vmatprep.subr.mxu0 0.0
  %705 = vmatpush1.msra.mxu0 0.0
  %706 = vmatprep.subr.mxu0 0.0
  %707 = vmatpush1.msra.mxu0 0.0
  %708 = vmatprep.subr.mxu0 0.0
  %709 = vmatpush1.msra.mxu0 0.0
  %710 = vmatprep.subr.mxu0 0.0
  %711 = vmatpush1.msra.mxu0 0.0
  %712 = vmatprep.subr.mxu0 0.0
  %713 = vmatpush1.msra.mxu0 0.0
  %714 = vmatprep.subr.mxu0 0.0
  %715 = vmatpush1.msra.mxu0 0.0
  %716 = vmatprep.subr.mxu0 0.0
  %717 = vmatpush1.msra.mxu0 0.0
  %718 = vmatprep.subr.mxu0 0.0
  %719 = vmatpush1.msra.mxu0 0.0
  %720 = vmatprep.subr.mxu0 0.0
  %721 = vmatpush1.msra.mxu0 %v646
  %722 = vmatprep.subr.mxu0 0.0
  %723 = vmatpush1.msra.mxu0 %v645
  %724 = vmatprep.subr.mxu0 0.0
  %725 = vmatpush1.msra.mxu0 %v644
  %726 = vmatprep.subr.mxu0 0.0
  %727 = vmatpush1.msra.mxu0 %v643
  %728 = vmatprep.subr.mxu0 0.0
  %729 = vmatpush2.msra.mxu0 0.0
  %730 = vmatprep.subr.mxu0 0.0
  %731 = vmatpush2.msra.mxu0 0.0
  %732 = vmatprep.subr.mxu0 0.0
  %733 = vmatpush2.msra.mxu0 0.0
  %734 = vmatprep.subr.mxu0 0.0
  %735 = vmatpush2.msra.mxu0 0.0
  %736 = vmatprep.subr.mxu0 0.0
  %737 = vmatpush2.msra.mxu0 0.0
  %738 = vmatprep.subr.mxu0 0.0
  %739 = vmatpush2.msra.mxu0 0.0
  %740 = vmatprep.subr.mxu0 0.0
  %741 = vmatpush2.msra.mxu0 0.0
  %742 = vmatprep.subr.mxu0 0.0
  %743 = vmatpush2.msra.mxu0 0.0
  %744 = vmatprep.subr.mxu0 0.0
  %745 = vmatpush2.msra.mxu0 0.0
  %746 = vmatprep.subr.mxu0 0.0
  %747 = vmatpush2.msra.mxu0 0.0
  %748 = vmatprep.subr.mxu0 0.0
  %749 = vmatpush2.msra.mxu0 0.0
  %750 = vmatprep.subr.mxu0 0.0
  %751 = vmatpush2.msra.mxu0 0.0
  %752 = vmatprep.subr.mxu0 0.0
  %753 = vmatpush2.msra.mxu0 0.0
  %754 = vmatprep.subr.mxu0 0.0
  %755 = vmatpush2.msra.mxu0 0.0
  %756 = vmatprep.subr.mxu0 0.0
  %757 = vmatpush2.msra.mxu0 0.0
  %758 = vmatprep.subr.mxu0 0.0
  %759 = vmatpush2.msra.mxu0 0.0
  %760 = vmatprep.mubr.f32.mxu0 0.0
  %761 = vmatmul.mubr.f32.gmra.mxu0 %v649
  %v762 = vpop.f32.mrf.mxu0
  %v763 = vadd.f32 0.0, %v762
  %v764 = vpop.f32.mrf.mxu0
  %765 = vmatprep.mubr.f32.mxu0 0.0
  %766 = vmatmul.mubr.f32.gmra.mxu0 %v652
  %v767 = vpop.f32.mrf.mxu0
  %v768 = vadd.f32 0.0, %v767
  %v769 = vpop.f32.mrf.mxu0
  %770 = vmatprep.mubr.f32.mxu0 0.0
  %771 = vmatmul.mubr.f32.gmra.mxu0 %v655
  %v772 = vpop.f32.mrf.mxu0
  %v773 = vadd.f32 0.0, %v772
  %v774 = vpop.f32.mrf.mxu0
  %775 = vmatprep.mubr.f32.mxu0 0.0
  %776 = vmatmul.mubr.f32.gmra.mxu0 %v658
  %v777 = vpop.f32.mrf.mxu0
  %v778 = vadd.f32 0.0, %v777
  %v779 = vpop.f32.mrf.mxu0
  %780 = vmatprep.mubr.f32.mxu0 0.0
  %781 = vmatmul.mubr.f32.gmra.mxu0 %v661
  %v782 = vpop.f32.mrf.mxu0
  %v783 = vadd.f32 0.0, %v782
  %v784 = vpop.f32.mrf.mxu0
  %785 = vmatprep.mubr.f32.mxu0 0.0
  %786 = vmatmul.mubr.f32.gmra.mxu0 %v664
  %v787 = vpop.f32.mrf.mxu0
  %v788 = vadd.f32 0.0, %v787
  %v789 = vpop.f32.mrf.mxu0
  %790 = vmatprep.mubr.f32.mxu0 0.0
  %791 = vmatmul.mubr.f32.gmra.mxu0 %v667
  %v792 = vpop.f32.mrf.mxu0
  %v793 = vadd.f32 0.0, %v792
  %v794 = vpop.f32.mrf.mxu0
  %795 = vmatprep.mubr.f32.mxu0 0.0
  %796 = vmatmul.mubr.f32.gmra.mxu0 %v670
  %v797 = vpop.f32.mrf.mxu0
  %v798 = vadd.f32 0.0, %v797
  %v799 = vpop.f32.mrf.mxu0
  %800 = vmatprep.mubr.f32.mxu0 0.0
  %801 = vmatmul.mubr.f32.gmra.mxu0 %v673
  %v802 = vpop.f32.mrf.mxu0
  %v803 = vadd.f32 0.0, %v802
  %v804 = vpop.f32.mrf.mxu0
  %805 = vmatprep.mubr.f32.mxu0 0.0
  %806 = vmatmul.mubr.f32.gmra.mxu0 %v676
  %v807 = vpop.f32.mrf.mxu0
  %v808 = vadd.f32 0.0, %v807
  %v809 = vpop.f32.mrf.mxu0
  %810 = vmatprep.mubr.f32.mxu0 0.0
  %811 = vmatmul.mubr.f32.gmra.mxu0 %v679
  %v812 = vpop.f32.mrf.mxu0
  %v813 = vadd.f32 0.0, %v812
  %v814 = vpop.f32.mrf.mxu0
  %815 = vmatprep.mubr.f32.mxu0 0.0
  %816 = vmatmul.mubr.f32.gmra.mxu0 %v682
  %v817 = vpop.f32.mrf.mxu0
  %v818 = vadd.f32 0.0, %v817
  %v819 = vpop.f32.mrf.mxu0
  %820 = vmatprep.mubr.f32.mxu0 0.0
  %821 = vmatmul.mubr.f32.gmra.mxu0 %v685
  %v822 = vpop.f32.mrf.mxu0
  %v823 = vadd.f32 0.0, %v822
  %v824 = vpop.f32.mrf.mxu0
  %825 = vmatprep.mubr.f32.mxu0 0.0
  %826 = vmatmul.mubr.f32.gmra.mxu0 %v688
  %v827 = vpop.f32.mrf.mxu0
  %v828 = vadd.f32 0.0, %v827
  %v829 = vpop.f32.mrf.mxu0
  %830 = vmatprep.mubr.f32.mxu0 0.0
  %831 = vmatmul.mubr.f32.gmra.mxu0 %v691
  %v832 = vpop.f32.mrf.mxu0
  %v833 = vadd.f32 0.0, %v832
  %v834 = vpop.f32.mrf.mxu0
  %835 = vmatprep.mubr.f32.mxu0 0.0
  %836 = vmatmul.mubr.f32.gmra.mxu0 %v694
  %v837 = vpop.f32.mrf.mxu0
  %v838 = vadd.f32 0.0, %v837
  %v839 = vpop.f32.mrf.mxu0
  %840 = vdwg.mxu0
  %842 = vset.pattern.permute.xlu0 0
  %843 = vperm.xlu0 %842, %v627
  %v844 = vpop.permute.xlu0 %843
  %847 = vset.pattern.permute.xlu0 0
  %848 = vperm.xlu0 %847, %v628
  %v849 = vpop.permute.xlu0 %848
  %852 = vset.pattern.permute.xlu0 0
  %853 = vperm.xlu0 %852, %v629
  %v854 = vpop.permute.xlu0 %853
  %857 = vset.pattern.permute.xlu0 0
  %858 = vperm.xlu0 %857, %v630
  %v859 = vpop.permute.xlu0 %858
  %862 = vset.pattern.permute.xlu0 0
  %863 = vperm.xlu0 %862, %v631
  %v864 = vpop.permute.xlu0 %863
  %867 = vset.pattern.permute.xlu0 0
  %868 = vperm.xlu0 %867, %v632
  %v869 = vpop.permute.xlu0 %868
  %872 = vset.pattern.permute.xlu0 0
  %873 = vperm.xlu0 %872, %v633
  %v874 = vpop.permute.xlu0 %873
  %877 = vset.pattern.permute.xlu0 0
  %878 = vperm.xlu0 %877, %v634
  %v879 = vpop.permute.xlu0 %878
  %882 = vset.pattern.permute.xlu0 0
  %883 = vperm.xlu0 %882, %v635
  %v884 = vpop.permute.xlu0 %883
  %887 = vset.pattern.permute.xlu0 0
  %888 = vperm.xlu0 %887, %v636
  %v889 = vpop.permute.xlu0 %888
  %892 = vset.pattern.permute.xlu0 0
  %893 = vperm.xlu0 %892, %v637
  %v894 = vpop.permute.xlu0 %893
  %897 = vset.pattern.permute.xlu0 0
  %898 = vperm.xlu0 %897, %v638
  %v899 = vpop.permute.xlu0 %898
  %902 = vset.pattern.permute.xlu0 0
  %903 = vperm.xlu0 %902, %v639
  %v904 = vpop.permute.xlu0 %903
  %907 = vset.pattern.permute.xlu0 0
  %908 = vperm.xlu0 %907, %v640
  %v909 = vpop.permute.xlu0 %908
  %912 = vset.pattern.permute.xlu0 0
  %913 = vperm.xlu0 %912, %v641
  %v914 = vpop.permute.xlu0 %913
  %917 = vset.pattern.permute.xlu0 0
  %918 = vperm.xlu0 %917, %v642
  %v919 = vpop.permute.xlu0 %918
  %v921 = vadd.f32 %v844, %v763
  %v922 = vadd.f32 %v849, %v768
  %v923 = vadd.f32 %v854, %v773
  %v924 = vadd.f32 %v859, %v778
  %v925 = vadd.f32 %v864, %v783
  %v926 = vadd.f32 %v869, %v788
  %v927 = vadd.f32 %v874, %v793
  %v928 = vadd.f32 %v879, %v798
  %v929 = vadd.f32 %v884, %v803
  %v930 = vadd.f32 %v889, %v808
  %v931 = vadd.f32 %v894, %v813
  %v932 = vadd.f32 %v899, %v818
  %v933 = vadd.f32 %v904, %v823
  %v934 = vadd.f32 %v909, %v828
  %v935 = vadd.f32 %v914, %v833
  %v936 = vadd.f32 %v919, %v838
  %s937 = scalar_lea.vmem %s5, 32
  %v938 = vld [vmem:[%s937] sm:$0xff]
  %v939 = vld [vmem:[%s937 + $0x8] sm:$0xff]
  %v940 = vld [vmem:[%s937 + $0x10] sm:$0xff]
  %v941 = vld [vmem:[%s937 + $0x18] sm:$0xff]
  %v943 = vsel %vm647, %v389, 0
  %v946 = vsel %vm647, %v394, 0
  %v949 = vsel %vm647, %v399, 0
  %v952 = vsel %vm647, %v404, 0
  %v955 = vsel %vm647, %v409, 0
  %v958 = vsel %vm647, %v414, 0
  %v961 = vsel %vm647, %v419, 0
  %v964 = vsel %vm647, %v424, 0
  %v967 = vsel %vm647, %v429, 0
  %v970 = vsel %vm647, %v434, 0
  %v973 = vsel %vm647, %v439, 0
  %v976 = vsel %vm647, %v444, 0
  %v979 = vsel %vm647, %v449, 0
  %v982 = vsel %vm647, %v454, 0
  %v985 = vsel %vm647, %v459, 0
  %v988 = vsel %vm647, %v464, 0
  %990 = vmatprep.subr.mxu0 0.0
  %991 = vmatpush1.msra.mxu0 0.0
  %992 = vmatprep.subr.mxu0 0.0
  %993 = vmatpush1.msra.mxu0 0.0
  %994 = vmatprep.subr.mxu0 0.0
  %995 = vmatpush1.msra.mxu0 0.0
  %996 = vmatprep.subr.mxu0 0.0
  %997 = vmatpush1.msra.mxu0 0.0
  %998 = vmatprep.subr.mxu0 0.0
  %999 = vmatpush1.msra.mxu0 0.0
  %1000 = vmatprep.subr.mxu0 0.0
  %1001 = vmatpush1.msra.mxu0 0.0
  %1002 = vmatprep.subr.mxu0 0.0
  %1003 = vmatpush1.msra.mxu0 0.0
  %1004 = vmatprep.subr.mxu0 0.0
  %1005 = vmatpush1.msra.mxu0 0.0
  %1006 = vmatprep.subr.mxu0 0.0
  %1007 = vmatpush1.msra.mxu0 0.0
  %1008 = vmatprep.subr.mxu0 0.0
  %1009 = vmatpush1.msra.mxu0 0.0
  %1010 = vmatprep.subr.mxu0 0.0
  %1011 = vmatpush1.msra.mxu0 0.0
  %1012 = vmatprep.subr.mxu0 0.0
  %1013 = vmatpush1.msra.mxu0 0.0
  %1014 = vmatprep.subr.mxu0 0.0
  %1015 = vmatpush1.msra.mxu0 %v941
  %1016 = vmatprep.subr.mxu0 0.0
  %1017 = vmatpush1.msra.mxu0 %v940
  %1018 = vmatprep.subr.mxu0 0.0
  %1019 = vmatpush1.msra.mxu0 %v939
  %1020 = vmatprep.subr.mxu0 0.0
  %1021 = vmatpush1.msra.mxu0 %v938
  %1022 = vmatprep.subr.mxu0 0.0
  %1023 = vmatpush2.msra.mxu0 0.0
  %1024 = vmatprep.subr.mxu0 0.0
  %1025 = vmatpush2.msra.mxu0 0.0
  %1026 = vmatprep.subr.mxu0 0.0
  %1027 = vmatpush2.msra.mxu0 0.0
  %1028 = vmatprep.subr.mxu0 0.0
  %1029 = vmatpush2.msra.mxu0 0.0
  %1030 = vmatprep.subr.mxu0 0.0
  %1031 = vmatpush2.msra.mxu0 0.0
  %1032 = vmatprep.subr.mxu0 0.0
  %1033 = vmatpush2.msra.mxu0 0.0
  %1034 = vmatprep.subr.mxu0 0.0
  %1035 = vmatpush2.msra.mxu0 0.0
  %1036 = vmatprep.subr.mxu0 0.0
  %1037 = vmatpush2.msra.mxu0 0.0
  %1038 = vmatprep.subr.mxu0 0.0
  %1039 = vmatpush2.msra.mxu0 0.0
  %1040 = vmatprep.subr.mxu0 0.0
  %1041 = vmatpush2.msra.mxu0 0.0
  %1042 = vmatprep.subr.mxu0 0.0
  %1043 = vmatpush2.msra.mxu0 0.0
  %1044 = vmatprep.subr.mxu0 0.0
  %1045 = vmatpush2.msra.mxu0 0.0
  %1046 = vmatprep.subr.mxu0 0.0
  %1047 = vmatpush2.msra.mxu0 0.0
  %1048 = vmatprep.subr.mxu0 0.0
  %1049 = vmatpush2.msra.mxu0 0.0
  %1050 = vmatprep.subr.mxu0 0.0
  %1051 = vmatpush2.msra.mxu0 0.0
  %1052 = vmatprep.subr.mxu0 0.0
  %1053 = vmatpush2.msra.mxu0 0.0
  %1054 = vmatprep.mubr.f32.mxu0 0.0
  %1055 = vmatmul.mubr.f32.gmra.mxu0 %v943
  %v1056 = vpop.f32.mrf.mxu0
  %v1057 = vadd.f32 0.0, %v1056
  %v1058 = vpop.f32.mrf.mxu0
  %1059 = vmatprep.mubr.f32.mxu0 0.0
  %1060 = vmatmul.mubr.f32.gmra.mxu0 %v946
  %v1061 = vpop.f32.mrf.mxu0
  %v1062 = vadd.f32 0.0, %v1061
  %v1063 = vpop.f32.mrf.mxu0
  %1064 = vmatprep.mubr.f32.mxu0 0.0
  %1065 = vmatmul.mubr.f32.gmra.mxu0 %v949
  %v1066 = vpop.f32.mrf.mxu0
  %v1067 = vadd.f32 0.0, %v1066
  %v1068 = vpop.f32.mrf.mxu0
  %1069 = vmatprep.mubr.f32.mxu0 0.0
  %1070 = vmatmul.mubr.f32.gmra.mxu0 %v952
  %v1071 = vpop.f32.mrf.mxu0
  %v1072 = vadd.f32 0.0, %v1071
  %v1073 = vpop.f32.mrf.mxu0
  %1074 = vmatprep.mubr.f32.mxu0 0.0
  %1075 = vmatmul.mubr.f32.gmra.mxu0 %v955
  %v1076 = vpop.f32.mrf.mxu0
  %v1077 = vadd.f32 0.0, %v1076
  %v1078 = vpop.f32.mrf.mxu0
  %1079 = vmatprep.mubr.f32.mxu0 0.0
  %1080 = vmatmul.mubr.f32.gmra.mxu0 %v958
  %v1081 = vpop.f32.mrf.mxu0
  %v1082 = vadd.f32 0.0, %v1081
  %v1083 = vpop.f32.mrf.mxu0
  %1084 = vmatprep.mubr.f32.mxu0 0.0
  %1085 = vmatmul.mubr.f32.gmra.mxu0 %v961
  %v1086 = vpop.f32.mrf.mxu0
  %v1087 = vadd.f32 0.0, %v1086
  %v1088 = vpop.f32.mrf.mxu0
  %1089 = vmatprep.mubr.f32.mxu0 0.0
  %1090 = vmatmul.mubr.f32.gmra.mxu0 %v964
  %v1091 = vpop.f32.mrf.mxu0
  %v1092 = vadd.f32 0.0, %v1091
  %v1093 = vpop.f32.mrf.mxu0
  %1094 = vmatprep.mubr.f32.mxu0 0.0
  %1095 = vmatmul.mubr.f32.gmra.mxu0 %v967
  %v1096 = vpop.f32.mrf.mxu0
  %v1097 = vadd.f32 0.0, %v1096
  %v1098 = vpop.f32.mrf.mxu0
  %1099 = vmatprep.mubr.f32.mxu0 0.0
  %1100 = vmatmul.mubr.f32.gmra.mxu0 %v970
  %v1101 = vpop.f32.mrf.mxu0
  %v1102 = vadd.f32 0.0, %v1101
  %v1103 = vpop.f32.mrf.mxu0
  %1104 = vmatprep.mubr.f32.mxu0 0.0
  %1105 = vmatmul.mubr.f32.gmra.mxu0 %v973
  %v1106 = vpop.f32.mrf.mxu0
  %v1107 = vadd.f32 0.0, %v1106
  %v1108 = vpop.f32.mrf.mxu0
  %1109 = vmatprep.mubr.f32.mxu0 0.0
  %1110 = vmatmul.mubr.f32.gmra.mxu0 %v976
  %v1111 = vpop.f32.mrf.mxu0
  %v1112 = vadd.f32 0.0, %v1111
  %v1113 = vpop.f32.mrf.mxu0
  %1114 = vmatprep.mubr.f32.mxu0 0.0
  %1115 = vmatmul.mubr.f32.gmra.mxu0 %v979
  %v1116 = vpop.f32.mrf.mxu0
  %v1117 = vadd.f32 0.0, %v1116
  %v1118 = vpop.f32.mrf.mxu0
  %1119 = vmatprep.mubr.f32.mxu0 0.0
  %1120 = vmatmul.mubr.f32.gmra.mxu0 %v982
  %v1121 = vpop.f32.mrf.mxu0
  %v1122 = vadd.f32 0.0, %v1121
  %v1123 = vpop.f32.mrf.mxu0
  %1124 = vmatprep.mubr.f32.mxu0 0.0
  %1125 = vmatmul.mubr.f32.gmra.mxu0 %v985
  %v1126 = vpop.f32.mrf.mxu0
  %v1127 = vadd.f32 0.0, %v1126
  %v1128 = vpop.f32.mrf.mxu0
  %1129 = vmatprep.mubr.f32.mxu0 0.0
  %1130 = vmatmul.mubr.f32.gmra.mxu0 %v988
  %v1131 = vpop.f32.mrf.mxu0
  %v1132 = vadd.f32 0.0, %v1131
  %v1133 = vpop.f32.mrf.mxu0
  %1134 = vdwg.mxu0
  %v1135 = vadd.f32 %v921, %v1057
  %v1136 = vadd.f32 %v922, %v1062
  %v1137 = vadd.f32 %v923, %v1067
  %v1138 = vadd.f32 %v924, %v1072
  %v1139 = vadd.f32 %v925, %v1077
  %v1140 = vadd.f32 %v926, %v1082
  %v1141 = vadd.f32 %v927, %v1087
  %v1142 = vadd.f32 %v928, %v1092
  %v1143 = vadd.f32 %v929, %v1097
  %v1144 = vadd.f32 %v930, %v1102
  %v1145 = vadd.f32 %v931, %v1107
  %v1146 = vadd.f32 %v932, %v1112
  %v1147 = vadd.f32 %v933, %v1117
  %v1148 = vadd.f32 %v934, %v1122
  %v1149 = vadd.f32 %v935, %v1127
  %v1150 = vadd.f32 %v936, %v1132
  %s1151 = scalar_lea.vmem %s5, 64
  %v1152 = vld [vmem:[%s1151] sm:$0xff]
  %v1153 = vld [vmem:[%s1151 + $0x8] sm:$0xff]
  %v1154 = vld [vmem:[%s1151 + $0x10] sm:$0xff]
  %v1155 = vld [vmem:[%s1151 + $0x18] sm:$0xff]
  %v1157 = vsel %vm647, %v469, 0
  %v1160 = vsel %vm647, %v474, 0
  %v1163 = vsel %vm647, %v479, 0
  %v1166 = vsel %vm647, %v484, 0
  %v1169 = vsel %vm647, %v489, 0
  %v1172 = vsel %vm647, %v494, 0
  %v1175 = vsel %vm647, %v499, 0
  %v1178 = vsel %vm647, %v504, 0
  %v1181 = vsel %vm647, %v509, 0
  %v1184 = vsel %vm647, %v514, 0
  %v1187 = vsel %vm647, %v519, 0
  %v1190 = vsel %vm647, %v524, 0
  %v1193 = vsel %vm647, %v529, 0
  %v1196 = vsel %vm647, %v534, 0
  %v1199 = vsel %vm647, %v539, 0
  %v1202 = vsel %vm647, %v544, 0
  %1204 = vmatprep.subr.mxu0 0.0
  %1205 = vmatpush1.msra.mxu0 0.0
  %1206 = vmatprep.subr.mxu0 0.0
  %1207 = vmatpush1.msra.mxu0 0.0
  %1208 = vmatprep.subr.mxu0 0.0
  %1209 = vmatpush1.msra.mxu0 0.0
  %1210 = vmatprep.subr.mxu0 0.0
  %1211 = vmatpush1.msra.mxu0 0.0
  %1212 = vmatprep.subr.mxu0 0.0
  %1213 = vmatpush1.msra.mxu0 0.0
  %1214 = vmatprep.subr.mxu0 0.0
  %1215 = vmatpush1.msra.mxu0 0.0
  %1216 = vmatprep.subr.mxu0 0.0
  %1217 = vmatpush1.msra.mxu0 0.0
  %1218 = vmatprep.subr.mxu0 0.0
  %1219 = vmatpush1.msra.mxu0 0.0
  %1220 = vmatprep.subr.mxu0 0.0
  %1221 = vmatpush1.msra.mxu0 0.0
  %1222 = vmatprep.subr.mxu0 0.0
  %1223 = vmatpush1.msra.mxu0 0.0
  %1224 = vmatprep.subr.mxu0 0.0
  %1225 = vmatpush1.msra.mxu0 0.0
  %1226 = vmatprep.subr.mxu0 0.0
  %1227 = vmatpush1.msra.mxu0 0.0
  %1228 = vmatprep.subr.mxu0 0.0
  %1229 = vmatpush1.msra.mxu0 %v1155
  %1230 = vmatprep.subr.mxu0 0.0
  %1231 = vmatpush1.msra.mxu0 %v1154
  %1232 = vmatprep.subr.mxu0 0.0
  %1233 = vmatpush1.msra.mxu0 %v1153
  %1234 = vmatprep.subr.mxu0 0.0
  %1235 = vmatpush1.msra.mxu0 %v1152
  %1236 = vmatprep.subr.mxu0 0.0
  %1237 = vmatpush2.msra.mxu0 0.0
  %1238 = vmatprep.subr.mxu0 0.0
  %1239 = vmatpush2.msra.mxu0 0.0
  %1240 = vmatprep.subr.mxu0 0.0
  %1241 = vmatpush2.msra.mxu0 0.0
  %1242 = vmatprep.subr.mxu0 0.0
  %1243 = vmatpush2.msra.mxu0 0.0
  %1244 = vmatprep.subr.mxu0 0.0
  %1245 = vmatpush2.msra.mxu0 0.0
  %1246 = vmatprep.subr.mxu0 0.0
  %1247 = vmatpush2.msra.mxu0 0.0
  %1248 = vmatprep.subr.mxu0 0.0
  %1249 = vmatpush2.msra.mxu0 0.0
  %1250 = vmatprep.subr.mxu0 0.0
  %1251 = vmatpush2.msra.mxu0 0.0
  %1252 = vmatprep.subr.mxu0 0.0
  %1253 = vmatpush2.msra.mxu0 0.0
  %1254 = vmatprep.subr.mxu0 0.0
  %1255 = vmatpush2.msra.mxu0 0.0
  %1256 = vmatprep.subr.mxu0 0.0
  %1257 = vmatpush2.msra.mxu0 0.0
  %1258 = vmatprep.subr.mxu0 0.0
  %1259 = vmatpush2.msra.mxu0 0.0
  %1260 = vmatprep.subr.mxu0 0.0
  %1261 = vmatpush2.msra.mxu0 0.0
  %1262 = vmatprep.subr.mxu0 0.0
  %1263 = vmatpush2.msra.mxu0 0.0
  %1264 = vmatprep.subr.mxu0 0.0
  %1265 = vmatpush2.msra.mxu0 0.0
  %1266 = vmatprep.subr.mxu0 0.0
  %1267 = vmatpush2.msra.mxu0 0.0
  %1268 = vmatprep.mubr.f32.mxu0 0.0
  %1269 = vmatmul.mubr.f32.gmra.mxu0 %v1157
  %v1270 = vpop.f32.mrf.mxu0
  %v1271 = vadd.f32 0.0, %v1270
  %v1272 = vpop.f32.mrf.mxu0
  %1273 = vmatprep.mubr.f32.mxu0 0.0
  %1274 = vmatmul.mubr.f32.gmra.mxu0 %v1160
  %v1275 = vpop.f32.mrf.mxu0
  %v1276 = vadd.f32 0.0, %v1275
  %v1277 = vpop.f32.mrf.mxu0
  %1278 = vmatprep.mubr.f32.mxu0 0.0
  %1279 = vmatmul.mubr.f32.gmra.mxu0 %v1163
  %v1280 = vpop.f32.mrf.mxu0
  %v1281 = vadd.f32 0.0, %v1280
  %v1282 = vpop.f32.mrf.mxu0
  %1283 = vmatprep.mubr.f32.mxu0 0.0
  %1284 = vmatmul.mubr.f32.gmra.mxu0 %v1166
  %v1285 = vpop.f32.mrf.mxu0
  %v1286 = vadd.f32 0.0, %v1285
  %v1287 = vpop.f32.mrf.mxu0
  %1288 = vmatprep.mubr.f32.mxu0 0.0
  %1289 = vmatmul.mubr.f32.gmra.mxu0 %v1169
  %v1290 = vpop.f32.mrf.mxu0
  %v1291 = vadd.f32 0.0, %v1290
  %v1292 = vpop.f32.mrf.mxu0
  %1293 = vmatprep.mubr.f32.mxu0 0.0
  %1294 = vmatmul.mubr.f32.gmra.mxu0 %v1172
  %v1295 = vpop.f32.mrf.mxu0
  %v1296 = vadd.f32 0.0, %v1295
  %v1297 = vpop.f32.mrf.mxu0
  %1298 = vmatprep.mubr.f32.mxu0 0.0
  %1299 = vmatmul.mubr.f32.gmra.mxu0 %v1175
  %v1300 = vpop.f32.mrf.mxu0
  %v1301 = vadd.f32 0.0, %v1300
  %v1302 = vpop.f32.mrf.mxu0
  %1303 = vmatprep.mubr.f32.mxu0 0.0
  %1304 = vmatmul.mubr.f32.gmra.mxu0 %v1178
  %v1305 = vpop.f32.mrf.mxu0
  %v1306 = vadd.f32 0.0, %v1305
  %v1307 = vpop.f32.mrf.mxu0
  %1308 = vmatprep.mubr.f32.mxu0 0.0
  %1309 = vmatmul.mubr.f32.gmra.mxu0 %v1181
  %v1310 = vpop.f32.mrf.mxu0
  %v1311 = vadd.f32 0.0, %v1310
  %v1312 = vpop.f32.mrf.mxu0
  %1313 = vmatprep.mubr.f32.mxu0 0.0
  %1314 = vmatmul.mubr.f32.gmra.mxu0 %v1184
  %v1315 = vpop.f32.mrf.mxu0
  %v1316 = vadd.f32 0.0, %v1315
  %v1317 = vpop.f32.mrf.mxu0
  %1318 = vmatprep.mubr.f32.mxu0 0.0
  %1319 = vmatmul.mubr.f32.gmra.mxu0 %v1187
  %v1320 = vpop.f32.mrf.mxu0
  %v1321 = vadd.f32 0.0, %v1320
  %v1322 = vpop.f32.mrf.mxu0
  %1323 = vmatprep.mubr.f32.mxu0 0.0
  %1324 = vmatmul.mubr.f32.gmra.mxu0 %v1190
  %v1325 = vpop.f32.mrf.mxu0
  %v1326 = vadd.f32 0.0, %v1325
  %v1327 = vpop.f32.mrf.mxu0
  %1328 = vmatprep.mubr.f32.mxu0 0.0
  %1329 = vmatmul.mubr.f32.gmra.mxu0 %v1193
  %v1330 = vpop.f32.mrf.mxu0
  %v1331 = vadd.f32 0.0, %v1330
  %v1332 = vpop.f32.mrf.mxu0
  %1333 = vmatprep.mubr.f32.mxu0 0.0
  %1334 = vmatmul.mubr.f32.gmra.mxu0 %v1196
  %v1335 = vpop.f32.mrf.mxu0
  %v1336 = vadd.f32 0.0, %v1335
  %v1337 = vpop.f32.mrf.mxu0
  %1338 = vmatprep.mubr.f32.mxu0 0.0
  %1339 = vmatmul.mubr.f32.gmra.mxu0 %v1199
  %v1340 = vpop.f32.mrf.mxu0
  %v1341 = vadd.f32 0.0, %v1340
  %v1342 = vpop.f32.mrf.mxu0
  %1343 = vmatprep.mubr.f32.mxu0 0.0
  %1344 = vmatmul.mubr.f32.gmra.mxu0 %v1202
  %v1345 = vpop.f32.mrf.mxu0
  %v1346 = vadd.f32 0.0, %v1345
  %v1347 = vpop.f32.mrf.mxu0
  %1348 = vdwg.mxu0
  %v1349 = vadd.f32 %v1135, %v1271
  %v1350 = vadd.f32 %v1136, %v1276
  %v1351 = vadd.f32 %v1137, %v1281
  %v1352 = vadd.f32 %v1138, %v1286
  %v1353 = vadd.f32 %v1139, %v1291
  %v1354 = vadd.f32 %v1140, %v1296
  %v1355 = vadd.f32 %v1141, %v1301
  %v1356 = vadd.f32 %v1142, %v1306
  %v1357 = vadd.f32 %v1143, %v1311
  %v1358 = vadd.f32 %v1144, %v1316
  %v1359 = vadd.f32 %v1145, %v1321
  %v1360 = vadd.f32 %v1146, %v1326
  %v1361 = vadd.f32 %v1147, %v1331
  %v1362 = vadd.f32 %v1148, %v1336
  %v1363 = vadd.f32 %v1149, %v1341
  %v1364 = vadd.f32 %v1150, %v1346
  %s1365 = scalar_lea.vmem %s5, 96
  %v1366 = vld [vmem:[%s1365] sm:$0xff]
  %v1367 = vld [vmem:[%s1365 + $0x8] sm:$0xff]
  %v1368 = vld [vmem:[%s1365 + $0x10] sm:$0xff]
  %v1369 = vld [vmem:[%s1365 + $0x18] sm:$0xff]
  %v1371 = vsel %vm647, %v549, 0
  %v1374 = vsel %vm647, %v554, 0
  %v1377 = vsel %vm647, %v559, 0
  %v1380 = vsel %vm647, %v564, 0
  %v1383 = vsel %vm647, %v569, 0
  %v1386 = vsel %vm647, %v574, 0
  %v1389 = vsel %vm647, %v579, 0
  %v1392 = vsel %vm647, %v584, 0
  %v1395 = vsel %vm647, %v589, 0
  %v1398 = vsel %vm647, %v594, 0
  %v1401 = vsel %vm647, %v599, 0
  %v1404 = vsel %vm647, %v604, 0
  %v1407 = vsel %vm647, %v609, 0
  %v1410 = vsel %vm647, %v614, 0
  %v1413 = vsel %vm647, %v619, 0
  %v1416 = vsel %vm647, %v624, 0
  %1418 = vmatprep.subr.mxu0 0.0
  %1419 = vmatpush1.msra.mxu0 0.0
  %1420 = vmatprep.subr.mxu0 0.0
  %1421 = vmatpush1.msra.mxu0 0.0
  %1422 = vmatprep.subr.mxu0 0.0
  %1423 = vmatpush1.msra.mxu0 0.0
  %1424 = vmatprep.subr.mxu0 0.0
  %1425 = vmatpush1.msra.mxu0 0.0
  %1426 = vmatprep.subr.mxu0 0.0
  %1427 = vmatpush1.msra.mxu0 0.0
  %1428 = vmatprep.subr.mxu0 0.0
  %1429 = vmatpush1.msra.mxu0 0.0
  %1430 = vmatprep.subr.mxu0 0.0
  %1431 = vmatpush1.msra.mxu0 0.0
  %1432 = vmatprep.subr.mxu0 0.0
  %1433 = vmatpush1.msra.mxu0 0.0
  %1434 = vmatprep.subr.mxu0 0.0
  %1435 = vmatpush1.msra.mxu0 0.0
  %1436 = vmatprep.subr.mxu0 0.0
  %1437 = vmatpush1.msra.mxu0 0.0
  %1438 = vmatprep.subr.mxu0 0.0
  %1439 = vmatpush1.msra.mxu0 0.0
  %1440 = vmatprep.subr.mxu0 0.0
  %1441 = vmatpush1.msra.mxu0 0.0
  %1442 = vmatprep.subr.mxu0 0.0
  %1443 = vmatpush1.msra.mxu0 %v1369
  %1444 = vmatprep.subr.mxu0 0.0
  %1445 = vmatpush1.msra.mxu0 %v1368
  %1446 = vmatprep.subr.mxu0 0.0
  %1447 = vmatpush1.msra.mxu0 %v1367
  %1448 = vmatprep.subr.mxu0 0.0
  %1449 = vmatpush1.msra.mxu0 %v1366
  %1450 = vmatprep.subr.mxu0 0.0
  %1451 = vmatpush2.msra.mxu0 0.0
  %1452 = vmatprep.subr.mxu0 0.0
  %1453 = vmatpush2.msra.mxu0 0.0
  %1454 = vmatprep.subr.mxu0 0.0
  %1455 = vmatpush2.msra.mxu0 0.0
  %1456 = vmatprep.subr.mxu0 0.0
  %1457 = vmatpush2.msra.mxu0 0.0
  %1458 = vmatprep.subr.mxu0 0.0
  %1459 = vmatpush2.msra.mxu0 0.0
  %1460 = vmatprep.subr.mxu0 0.0
  %1461 = vmatpush2.msra.mxu0 0.0
  %1462 = vmatprep.subr.mxu0 0.0
  %1463 = vmatpush2.msra.mxu0 0.0
  %1464 = vmatprep.subr.mxu0 0.0
  %1465 = vmatpush2.msra.mxu0 0.0
  %1466 = vmatprep.subr.mxu0 0.0
  %1467 = vmatpush2.msra.mxu0 0.0
  %1468 = vmatprep.subr.mxu0 0.0
  %1469 = vmatpush2.msra.mxu0 0.0
  %1470 = vmatprep.subr.mxu0 0.0
  %1471 = vmatpush2.msra.mxu0 0.0
  %1472 = vmatprep.subr.mxu0 0.0
  %1473 = vmatpush2.msra.mxu0 0.0
  %1474 = vmatprep.subr.mxu0 0.0
  %1475 = vmatpush2.msra.mxu0 0.0
  %1476 = vmatprep.subr.mxu0 0.0
  %1477 = vmatpush2.msra.mxu0 0.0
  %1478 = vmatprep.subr.mxu0 0.0
  %1479 = vmatpush2.msra.mxu0 0.0
  %1480 = vmatprep.subr.mxu0 0.0
  %1481 = vmatpush2.msra.mxu0 0.0
  %1482 = vmatprep.mubr.f32.mxu0 0.0
  %1483 = vmatmul.mubr.f32.gmra.mxu0 %v1371
  %v1484 = vpop.f32.mrf.mxu0
  %v1485 = vadd.f32 0.0, %v1484
  %v1486 = vpop.f32.mrf.mxu0
  %1487 = vmatprep.mubr.f32.mxu0 0.0
  %1488 = vmatmul.mubr.f32.gmra.mxu0 %v1374
  %v1489 = vpop.f32.mrf.mxu0
  %v1490 = vadd.f32 0.0, %v1489
  %v1491 = vpop.f32.mrf.mxu0
  %1492 = vmatprep.mubr.f32.mxu0 0.0
  %1493 = vmatmul.mubr.f32.gmra.mxu0 %v1377
  %v1494 = vpop.f32.mrf.mxu0
  %v1495 = vadd.f32 0.0, %v1494
  %v1496 = vpop.f32.mrf.mxu0
  %1497 = vmatprep.mubr.f32.mxu0 0.0
  %1498 = vmatmul.mubr.f32.gmra.mxu0 %v1380
  %v1499 = vpop.f32.mrf.mxu0
  %v1500 = vadd.f32 0.0, %v1499
  %v1501 = vpop.f32.mrf.mxu0
  %1502 = vmatprep.mubr.f32.mxu0 0.0
  %1503 = vmatmul.mubr.f32.gmra.mxu0 %v1383
  %v1504 = vpop.f32.mrf.mxu0
  %v1505 = vadd.f32 0.0, %v1504
  %v1506 = vpop.f32.mrf.mxu0
  %1507 = vmatprep.mubr.f32.mxu0 0.0
  %1508 = vmatmul.mubr.f32.gmra.mxu0 %v1386
  %v1509 = vpop.f32.mrf.mxu0
  %v1510 = vadd.f32 0.0, %v1509
  %v1511 = vpop.f32.mrf.mxu0
  %1512 = vmatprep.mubr.f32.mxu0 0.0
  %1513 = vmatmul.mubr.f32.gmra.mxu0 %v1389
  %v1514 = vpop.f32.mrf.mxu0
  %v1515 = vadd.f32 0.0, %v1514
  %v1516 = vpop.f32.mrf.mxu0
  %1517 = vmatprep.mubr.f32.mxu0 0.0
  %1518 = vmatmul.mubr.f32.gmra.mxu0 %v1392
  %v1519 = vpop.f32.mrf.mxu0
  %v1520 = vadd.f32 0.0, %v1519
  %v1521 = vpop.f32.mrf.mxu0
  %1522 = vmatprep.mubr.f32.mxu0 0.0
  %1523 = vmatmul.mubr.f32.gmra.mxu0 %v1395
  %v1524 = vpop.f32.mrf.mxu0
  %v1525 = vadd.f32 0.0, %v1524
  %v1526 = vpop.f32.mrf.mxu0
  %1527 = vmatprep.mubr.f32.mxu0 0.0
  %1528 = vmatmul.mubr.f32.gmra.mxu0 %v1398
  %v1529 = vpop.f32.mrf.mxu0
  %v1530 = vadd.f32 0.0, %v1529
  %v1531 = vpop.f32.mrf.mxu0
  %1532 = vmatprep.mubr.f32.mxu0 0.0
  %1533 = vmatmul.mubr.f32.gmra.mxu0 %v1401
  %v1534 = vpop.f32.mrf.mxu0
  %v1535 = vadd.f32 0.0, %v1534
  %v1536 = vpop.f32.mrf.mxu0
  %1537 = vmatprep.mubr.f32.mxu0 0.0
  %1538 = vmatmul.mubr.f32.gmra.mxu0 %v1404
  %v1539 = vpop.f32.mrf.mxu0
  %v1540 = vadd.f32 0.0, %v1539
  %v1541 = vpop.f32.mrf.mxu0
  %1542 = vmatprep.mubr.f32.mxu0 0.0
  %1543 = vmatmul.mubr.f32.gmra.mxu0 %v1407
  %v1544 = vpop.f32.mrf.mxu0
  %v1545 = vadd.f32 0.0, %v1544
  %v1546 = vpop.f32.mrf.mxu0
  %1547 = vmatprep.mubr.f32.mxu0 0.0
  %1548 = vmatmul.mubr.f32.gmra.mxu0 %v1410
  %v1549 = vpop.f32.mrf.mxu0
  %v1550 = vadd.f32 0.0, %v1549
  %v1551 = vpop.f32.mrf.mxu0
  %1552 = vmatprep.mubr.f32.mxu0 0.0
  %1553 = vmatmul.mubr.f32.gmra.mxu0 %v1413
  %v1554 = vpop.f32.mrf.mxu0
  %v1555 = vadd.f32 0.0, %v1554
  %v1556 = vpop.f32.mrf.mxu0
  %1557 = vmatprep.mubr.f32.mxu0 0.0
  %1558 = vmatmul.mubr.f32.gmra.mxu0 %v1416
  %v1559 = vpop.f32.mrf.mxu0
  %v1560 = vadd.f32 0.0, %v1559
  %v1561 = vpop.f32.mrf.mxu0
  %1562 = vdwg.mxu0
  %v1563 = vadd.f32 %v1349, %v1485
  %v1564 = vadd.f32 %v1350, %v1490
  %v1565 = vadd.f32 %v1351, %v1495
  %v1566 = vadd.f32 %v1352, %v1500
  %v1567 = vadd.f32 %v1353, %v1505
  %v1568 = vadd.f32 %v1354, %v1510
  %v1569 = vadd.f32 %v1355, %v1515
  %v1570 = vadd.f32 %v1356, %v1520
  %v1571 = vadd.f32 %v1357, %v1525
  %v1572 = vadd.f32 %v1358, %v1530
  %v1573 = vadd.f32 %v1359, %v1535
  %v1574 = vadd.f32 %v1360, %v1540
  %v1575 = vadd.f32 %v1361, %v1545
  %v1576 = vadd.f32 %v1362, %v1550
  %v1577 = vadd.f32 %v1363, %v1555
  %v1578 = vadd.f32 %v1364, %v1560
  %vm1579 = vcmp.ge.f32.partialorder %v1563, 0.0
  %vm1580 = vcmp.ge.f32.partialorder %v1564, 0.0
  %vm1581 = vcmp.ge.f32.partialorder %v1565, 0.0
  %vm1582 = vcmp.ge.f32.partialorder %v1566, 0.0
  %vm1583 = vcmp.ge.f32.partialorder %v1567, 0.0
  %vm1584 = vcmp.ge.f32.partialorder %v1568, 0.0
  %vm1585 = vcmp.ge.f32.partialorder %v1569, 0.0
  %vm1586 = vcmp.ge.f32.partialorder %v1570, 0.0
  %vm1587 = vcmp.ge.f32.partialorder %v1571, 0.0
  %vm1588 = vcmp.ge.f32.partialorder %v1572, 0.0
  %vm1589 = vcmp.ge.f32.partialorder %v1573, 0.0
  %vm1590 = vcmp.ge.f32.partialorder %v1574, 0.0
  %vm1591 = vcmp.ge.f32.partialorder %v1575, 0.0
  %vm1592 = vcmp.ge.f32.partialorder %v1576, 0.0
  %vm1593 = vcmp.ge.f32.partialorder %v1577, 0.0
  %vm1594 = vcmp.ge.f32.partialorder %v1578, 0.0
  %v1595 = vmul.f32 %v1563, 0.2
  %v1596 = vmul.f32 %v1564, 0.2
  %v1597 = vmul.f32 %v1565, 0.2
  %v1598 = vmul.f32 %v1566, 0.2
  %v1599 = vmul.f32 %v1567, 0.2
  %v1600 = vmul.f32 %v1568, 0.2
  %v1601 = vmul.f32 %v1569, 0.2
  %v1602 = vmul.f32 %v1570, 0.2
  %v1603 = vmul.f32 %v1571, 0.2
  %v1604 = vmul.f32 %v1572, 0.2
  %v1605 = vmul.f32 %v1573, 0.2
  %v1606 = vmul.f32 %v1574, 0.2
  %v1607 = vmul.f32 %v1575, 0.2
  %v1608 = vmul.f32 %v1576, 0.2
  %v1609 = vmul.f32 %v1577, 0.2
  %v1610 = vmul.f32 %v1578, 0.2
  %v1611 = vsel %vm1579, %v1563, %v1595
  %v1612 = vsel %vm1580, %v1564, %v1596
  %v1613 = vsel %vm1581, %v1565, %v1597
  %v1614 = vsel %vm1582, %v1566, %v1598
  %v1615 = vsel %vm1583, %v1567, %v1599
  %v1616 = vsel %vm1584, %v1568, %v1600
  %v1617 = vsel %vm1585, %v1569, %v1601
  %v1618 = vsel %vm1586, %v1570, %v1602
  %v1619 = vsel %vm1587, %v1571, %v1603
  %v1620 = vsel %vm1588, %v1572, %v1604
  %v1621 = vsel %vm1589, %v1573, %v1605
  %v1622 = vsel %vm1590, %v1574, %v1606
  %v1623 = vsel %vm1591, %v1575, %v1607
  %v1624 = vsel %vm1592, %v1576, %v1608
  %v1625 = vsel %vm1593, %v1577, %v1609
  %v1626 = vsel %vm1594, %v1578, %v1610
  %v1627 = vld [vmem:[%s9] sm:$0xff]
  %v1628 = vld [vmem:[%s9 + $0x8] sm:$0xff]
  %v1629 = vld [vmem:[%s9 + $0x10] sm:$0xff]
  %v1630 = vld [vmem:[%s9 + $0x18] sm:$0xff]
  %v1631 = vld [vmem:[%s9 + $0x20] sm:$0xff]
  %v1632 = vld [vmem:[%s9 + $0x28] sm:$0xff]
  %v1633 = vld [vmem:[%s9 + $0x30] sm:$0xff]
  %v1634 = vld [vmem:[%s9 + $0x38] sm:$0xff]
  %v1635 = vld [vmem:[%s9 + $0x40] sm:$0xff]
  %v1636 = vld [vmem:[%s9 + $0x48] sm:$0xff]
  %v1637 = vld [vmem:[%s9 + $0x50] sm:$0xff]
  %v1638 = vld [vmem:[%s9 + $0x58] sm:$0xff]
  %v1639 = vld [vmem:[%s9 + $0x60] sm:$0xff]
  %v1640 = vld [vmem:[%s9 + $0x68] sm:$0xff]
  %v1641 = vld [vmem:[%s9 + $0x70] sm:$0xff]
  %v1642 = vld [vmem:[%s9 + $0x78] sm:$0xff]
  %v1643 = vld [vmem:[%s9 + $0x80] sm:$0xff]
  %v1644 = vld [vmem:[%s9 + $0x88] sm:$0xff]
  %v1645 = vld [vmem:[%s9 + $0x90] sm:$0xff]
  %v1646 = vld [vmem:[%s9 + $0x98] sm:$0xff]
  %v1647 = vld [vmem:[%s9 + $0xa0] sm:$0xff]
  %v1648 = vld [vmem:[%s9 + $0xa8] sm:$0xff]
  %v1649 = vld [vmem:[%s9 + $0xb0] sm:$0xff]
  %v1650 = vld [vmem:[%s9 + $0xb8] sm:$0xff]
  %v1651 = vld [vmem:[%s9 + $0xc0] sm:$0xff]
  %v1652 = vld [vmem:[%s9 + $0xc8] sm:$0xff]
  %v1653 = vld [vmem:[%s9 + $0xd0] sm:$0xff]
  %v1654 = vld [vmem:[%s9 + $0xd8] sm:$0xff]
  %v1655 = vld [vmem:[%s9 + $0xe0] sm:$0xff]
  %v1656 = vld [vmem:[%s9 + $0xe8] sm:$0xff]
  %v1657 = vld [vmem:[%s9 + $0xf0] sm:$0xff]
  %v1658 = vld [vmem:[%s9 + $0xf8] sm:$0xff]
  %1659 = vmatprep.subr.mxu0 0.0
  %1660 = vmatpush1.msra.mxu0 %v1626
  %1661 = vmatprep.subr.mxu0 0.0
  %1662 = vmatpush1.msra.mxu0 %v1625
  %1663 = vmatprep.subr.mxu0 0.0
  %1664 = vmatpush1.msra.mxu0 %v1624
  %1665 = vmatprep.subr.mxu0 0.0
  %1666 = vmatpush1.msra.mxu0 %v1623
  %1667 = vmatprep.subr.mxu0 0.0
  %1668 = vmatpush1.msra.mxu0 %v1622
  %1669 = vmatprep.subr.mxu0 0.0
  %1670 = vmatpush1.msra.mxu0 %v1621
  %1671 = vmatprep.subr.mxu0 0.0
  %1672 = vmatpush1.msra.mxu0 %v1620
  %1673 = vmatprep.subr.mxu0 0.0
  %1674 = vmatpush1.msra.mxu0 %v1619
  %1675 = vmatprep.subr.mxu0 0.0
  %1676 = vmatpush1.msra.mxu0 %v1618
  %1677 = vmatprep.subr.mxu0 0.0
  %1678 = vmatpush1.msra.mxu0 %v1617
  %1679 = vmatprep.subr.mxu0 0.0
  %1680 = vmatpush1.msra.mxu0 %v1616
  %1681 = vmatprep.subr.mxu0 0.0
  %1682 = vmatpush1.msra.mxu0 %v1615
  %1683 = vmatprep.subr.mxu0 0.0
  %1684 = vmatpush1.msra.mxu0 %v1614
  %1685 = vmatprep.subr.mxu0 0.0
  %1686 = vmatpush1.msra.mxu0 %v1613
  %1687 = vmatprep.subr.mxu0 0.0
  %1688 = vmatpush1.msra.mxu0 %v1612
  %1689 = vmatprep.subr.mxu0 0.0
  %1690 = vmatpush1.msra.mxu0 %v1611
  %1691 = vmatprep.subr.mxu0 0.0
  %1692 = vmatpush2.msra.mxu0 0.0
  %1693 = vmatprep.subr.mxu0 0.0
  %1694 = vmatpush2.msra.mxu0 0.0
  %1695 = vmatprep.subr.mxu0 0.0
  %1696 = vmatpush2.msra.mxu0 0.0
  %1697 = vmatprep.subr.mxu0 0.0
  %1698 = vmatpush2.msra.mxu0 0.0
  %1699 = vmatprep.subr.mxu0 0.0
  %1700 = vmatpush2.msra.mxu0 0.0
  %1701 = vmatprep.subr.mxu0 0.0
  %1702 = vmatpush2.msra.mxu0 0.0
  %1703 = vmatprep.subr.mxu0 0.0
  %1704 = vmatpush2.msra.mxu0 0.0
  %1705 = vmatprep.subr.mxu0 0.0
  %1706 = vmatpush2.msra.mxu0 0.0
  %1707 = vmatprep.subr.mxu0 0.0
  %1708 = vmatpush2.msra.mxu0 0.0
  %1709 = vmatprep.subr.mxu0 0.0
  %1710 = vmatpush2.msra.mxu0 0.0
  %1711 = vmatprep.subr.mxu0 0.0
  %1712 = vmatpush2.msra.mxu0 0.0
  %1713 = vmatprep.subr.mxu0 0.0
  %1714 = vmatpush2.msra.mxu0 0.0
  %1715 = vmatprep.subr.mxu0 0.0
  %1716 = vmatpush2.msra.mxu0 0.0
  %1717 = vmatprep.subr.mxu0 0.0
  %1718 = vmatpush2.msra.mxu0 0.0
  %1719 = vmatprep.subr.mxu0 0.0
  %1720 = vmatpush2.msra.mxu0 0.0
  %1721 = vmatprep.subr.mxu0 0.0
  %1722 = vmatpush2.msra.mxu0 0.0
  %1723 = vmatprep.mubr.f32.mxu0 0.0
  %1724 = vmatmul.mubr.f32.gmra.mxu0 %v1627
  %v1725 = vpop.f32.mrf.mxu0
  %v1726 = vadd.f32 0.0, %v1725
  %v1727 = vpop.f32.mrf.mxu0
  %1728 = vmatprep.mubr.f32.mxu0 0.0
  %1729 = vmatmul.mubr.f32.gmra.mxu0 %v1628
  %v1730 = vpop.f32.mrf.mxu0
  %v1731 = vadd.f32 0.0, %v1730
  %v1732 = vpop.f32.mrf.mxu0
  %1733 = vmatprep.mubr.f32.mxu0 0.0
  %1734 = vmatmul.mubr.f32.gmra.mxu0 %v1629
  %v1735 = vpop.f32.mrf.mxu0
  %v1736 = vadd.f32 0.0, %v1735
  %v1737 = vpop.f32.mrf.mxu0
  %1738 = vmatprep.mubr.f32.mxu0 0.0
  %1739 = vmatmul.mubr.f32.gmra.mxu0 %v1630
  %v1740 = vpop.f32.mrf.mxu0
  %v1741 = vadd.f32 0.0, %v1740
  %v1742 = vpop.f32.mrf.mxu0
  %1743 = vmatprep.mubr.f32.mxu0 0.0
  %1744 = vmatmul.mubr.f32.gmra.mxu0 %v1631
  %v1745 = vpop.f32.mrf.mxu0
  %v1746 = vadd.f32 0.0, %v1745
  %v1747 = vpop.f32.mrf.mxu0
  %1748 = vmatprep.mubr.f32.mxu0 0.0
  %1749 = vmatmul.mubr.f32.gmra.mxu0 %v1632
  %v1750 = vpop.f32.mrf.mxu0
  %v1751 = vadd.f32 0.0, %v1750
  %v1752 = vpop.f32.mrf.mxu0
  %1753 = vmatprep.mubr.f32.mxu0 0.0
  %1754 = vmatmul.mubr.f32.gmra.mxu0 %v1633
  %v1755 = vpop.f32.mrf.mxu0
  %v1756 = vadd.f32 0.0, %v1755
  %v1757 = vpop.f32.mrf.mxu0
  %1758 = vmatprep.mubr.f32.mxu0 0.0
  %1759 = vmatmul.mubr.f32.gmra.mxu0 %v1634
  %v1760 = vpop.f32.mrf.mxu0
  %v1761 = vadd.f32 0.0, %v1760
  %v1762 = vpop.f32.mrf.mxu0
  %1763 = vmatprep.mubr.f32.mxu0 0.0
  %1764 = vmatmul.mubr.f32.gmra.mxu0 %v1635
  %v1765 = vpop.f32.mrf.mxu0
  %v1766 = vadd.f32 0.0, %v1765
  %v1767 = vpop.f32.mrf.mxu0
  %1768 = vmatprep.mubr.f32.mxu0 0.0
  %1769 = vmatmul.mubr.f32.gmra.mxu0 %v1636
  %v1770 = vpop.f32.mrf.mxu0
  %v1771 = vadd.f32 0.0, %v1770
  %v1772 = vpop.f32.mrf.mxu0
  %1773 = vmatprep.mubr.f32.mxu0 0.0
  %1774 = vmatmul.mubr.f32.gmra.mxu0 %v1637
  %v1775 = vpop.f32.mrf.mxu0
  %v1776 = vadd.f32 0.0, %v1775
  %v1777 = vpop.f32.mrf.mxu0
  %1778 = vmatprep.mubr.f32.mxu0 0.0
  %1779 = vmatmul.mubr.f32.gmra.mxu0 %v1638
  %v1780 = vpop.f32.mrf.mxu0
  %v1781 = vadd.f32 0.0, %v1780
  %v1782 = vpop.f32.mrf.mxu0
  %1783 = vmatprep.mubr.f32.mxu0 0.0
  %1784 = vmatmul.mubr.f32.gmra.mxu0 %v1639
  %v1785 = vpop.f32.mrf.mxu0
  %v1786 = vadd.f32 0.0, %v1785
  %v1787 = vpop.f32.mrf.mxu0
  %1788 = vmatprep.mubr.f32.mxu0 0.0
  %1789 = vmatmul.mubr.f32.gmra.mxu0 %v1640
  %v1790 = vpop.f32.mrf.mxu0
  %v1791 = vadd.f32 0.0, %v1790
  %v1792 = vpop.f32.mrf.mxu0
  %1793 = vmatprep.mubr.f32.mxu0 0.0
  %1794 = vmatmul.mubr.f32.gmra.mxu0 %v1641
  %v1795 = vpop.f32.mrf.mxu0
  %v1796 = vadd.f32 0.0, %v1795
  %v1797 = vpop.f32.mrf.mxu0
  %1798 = vmatprep.mubr.f32.mxu0 0.0
  %1799 = vmatmul.mubr.f32.gmra.mxu0 %v1642
  %v1800 = vpop.f32.mrf.mxu0
  %v1801 = vadd.f32 0.0, %v1800
  %v1802 = vpop.f32.mrf.mxu0
  %1803 = vmatprep.mubr.f32.mxu0 0.0
  %1804 = vmatmul.mubr.f32.gmra.mxu0 %v1643
  %v1805 = vpop.f32.mrf.mxu0
  %v1806 = vadd.f32 0.0, %v1805
  %v1807 = vpop.f32.mrf.mxu0
  %1808 = vmatprep.mubr.f32.mxu0 0.0
  %1809 = vmatmul.mubr.f32.gmra.mxu0 %v1644
  %v1810 = vpop.f32.mrf.mxu0
  %v1811 = vadd.f32 0.0, %v1810
  %v1812 = vpop.f32.mrf.mxu0
  %1813 = vmatprep.mubr.f32.mxu0 0.0
  %1814 = vmatmul.mubr.f32.gmra.mxu0 %v1645
  %v1815 = vpop.f32.mrf.mxu0
  %v1816 = vadd.f32 0.0, %v1815
  %v1817 = vpop.f32.mrf.mxu0
  %1818 = vmatprep.mubr.f32.mxu0 0.0
  %1819 = vmatmul.mubr.f32.gmra.mxu0 %v1646
  %v1820 = vpop.f32.mrf.mxu0
  %v1821 = vadd.f32 0.0, %v1820
  %v1822 = vpop.f32.mrf.mxu0
  %1823 = vmatprep.mubr.f32.mxu0 0.0
  %1824 = vmatmul.mubr.f32.gmra.mxu0 %v1647
  %v1825 = vpop.f32.mrf.mxu0
  %v1826 = vadd.f32 0.0, %v1825
  %v1827 = vpop.f32.mrf.mxu0
  %1828 = vmatprep.mubr.f32.mxu0 0.0
  %1829 = vmatmul.mubr.f32.gmra.mxu0 %v1648
  %v1830 = vpop.f32.mrf.mxu0
  %v1831 = vadd.f32 0.0, %v1830
  %v1832 = vpop.f32.mrf.mxu0
  %1833 = vmatprep.mubr.f32.mxu0 0.0
  %1834 = vmatmul.mubr.f32.gmra.mxu0 %v1649
  %v1835 = vpop.f32.mrf.mxu0
  %v1836 = vadd.f32 0.0, %v1835
  %v1837 = vpop.f32.mrf.mxu0
  %1838 = vmatprep.mubr.f32.mxu0 0.0
  %1839 = vmatmul.mubr.f32.gmra.mxu0 %v1650
  %v1840 = vpop.f32.mrf.mxu0
  %v1841 = vadd.f32 0.0, %v1840
  %v1842 = vpop.f32.mrf.mxu0
  %1843 = vmatprep.mubr.f32.mxu0 0.0
  %1844 = vmatmul.mubr.f32.gmra.mxu0 %v1651
  %v1845 = vpop.f32.mrf.mxu0
  %v1846 = vadd.f32 0.0, %v1845
  %v1847 = vpop.f32.mrf.mxu0
  %1848 = vmatprep.mubr.f32.mxu0 0.0
  %1849 = vmatmul.mubr.f32.gmra.mxu0 %v1652
  %v1850 = vpop.f32.mrf.mxu0
  %v1851 = vadd.f32 0.0, %v1850
  %v1852 = vpop.f32.mrf.mxu0
  %1853 = vmatprep.mubr.f32.mxu0 0.0
  %1854 = vmatmul.mubr.f32.gmra.mxu0 %v1653
  %v1855 = vpop.f32.mrf.mxu0
  %v1856 = vadd.f32 0.0, %v1855
  %v1857 = vpop.f32.mrf.mxu0
  %1858 = vmatprep.mubr.f32.mxu0 0.0
  %1859 = vmatmul.mubr.f32.gmra.mxu0 %v1654
  %v1860 = vpop.f32.mrf.mxu0
  %v1861 = vadd.f32 0.0, %v1860
  %v1862 = vpop.f32.mrf.mxu0
  %1863 = vmatprep.mubr.f32.mxu0 0.0
  %1864 = vmatmul.mubr.f32.gmra.mxu0 %v1655
  %v1865 = vpop.f32.mrf.mxu0
  %v1866 = vadd.f32 0.0, %v1865
  %v1867 = vpop.f32.mrf.mxu0
  %1868 = vmatprep.mubr.f32.mxu0 0.0
  %1869 = vmatmul.mubr.f32.gmra.mxu0 %v1656
  %v1870 = vpop.f32.mrf.mxu0
  %v1871 = vadd.f32 0.0, %v1870
  %v1872 = vpop.f32.mrf.mxu0
  %1873 = vmatprep.mubr.f32.mxu0 0.0
  %1874 = vmatmul.mubr.f32.gmra.mxu0 %v1657
  %v1875 = vpop.f32.mrf.mxu0
  %v1876 = vadd.f32 0.0, %v1875
  %v1877 = vpop.f32.mrf.mxu0
  %1878 = vmatprep.mubr.f32.mxu0 0.0
  %1879 = vmatmul.mubr.f32.gmra.mxu0 %v1658
  %v1880 = vpop.f32.mrf.mxu0
  %v1881 = vadd.f32 0.0, %v1880
  %v1882 = vpop.f32.mrf.mxu0
  %1883 = vdwg.mxu0
  %v1884 = vld [vmem:[%s13] sm:$0xff]
  %v1885 = vld [vmem:[%s13 + $0x8] sm:$0xff]
  %v1886 = vld [vmem:[%s13 + $0x10] sm:$0xff]
  %v1887 = vld [vmem:[%s13 + $0x18] sm:$0xff]
  %v1888 = vld [vmem:[%s13 + $0x20] sm:$0xff]
  %v1889 = vld [vmem:[%s13 + $0x28] sm:$0xff]
  %v1890 = vld [vmem:[%s13 + $0x30] sm:$0xff]
  %v1891 = vld [vmem:[%s13 + $0x38] sm:$0xff]
  %v1892 = vld [vmem:[%s13 + $0x40] sm:$0xff]
  %v1893 = vld [vmem:[%s13 + $0x48] sm:$0xff]
  %v1894 = vld [vmem:[%s13 + $0x50] sm:$0xff]
  %v1895 = vld [vmem:[%s13 + $0x58] sm:$0xff]
  %v1896 = vld [vmem:[%s13 + $0x60] sm:$0xff]
  %v1897 = vld [vmem:[%s13 + $0x68] sm:$0xff]
  %v1898 = vld [vmem:[%s13 + $0x70] sm:$0xff]
  %v1899 = vld [vmem:[%s13 + $0x78] sm:$0xff]
  %v1900 = vld [vmem:[%s13 + $0x80] sm:$0xff]
  %v1901 = vld [vmem:[%s13 + $0x88] sm:$0xff]
  %v1902 = vld [vmem:[%s13 + $0x90] sm:$0xff]
  %v1903 = vld [vmem:[%s13 + $0x98] sm:$0xff]
  %v1904 = vld [vmem:[%s13 + $0xa0] sm:$0xff]
  %v1905 = vld [vmem:[%s13 + $0xa8] sm:$0xff]
  %v1906 = vld [vmem:[%s13 + $0xb0] sm:$0xff]
  %v1907 = vld [vmem:[%s13 + $0xb8] sm:$0xff]
  %v1908 = vld [vmem:[%s11] sm:$0xff]
  %v1909 = vld [vmem:[%s11 + $0x8] sm:$0xff]
  %vm1910 = vcmask 130048
  %v1912 = vsel %vm1910, %v1726, 0
  %v1915 = vsel %vm1910, %v1731, 0
  %v1918 = vsel %vm1910, %v1736, 0
  %v1921 = vsel %vm1910, %v1741, 0
  %v1924 = vsel %vm1910, %v1746, 0
  %v1927 = vsel %vm1910, %v1751, 0
  %v1930 = vsel %vm1910, %v1756, 0
  %v1933 = vsel %vm1910, %v1761, 0
  %1935 = vmatprep.subr.mxu0 0.0
  %1936 = vmatpush1.msra.mxu0 0.0
  %1937 = vmatprep.subr.mxu0 0.0
  %1938 = vmatpush1.msra.mxu0 0.0
  %1939 = vmatprep.subr.mxu0 0.0
  %1940 = vmatpush1.msra.mxu0 0.0
  %1941 = vmatprep.subr.mxu0 0.0
  %1942 = vmatpush1.msra.mxu0 0.0
  %1943 = vmatprep.subr.mxu0 0.0
  %1944 = vmatpush1.msra.mxu0 0.0
  %1945 = vmatprep.subr.mxu0 0.0
  %1946 = vmatpush1.msra.mxu0 0.0
  %1947 = vmatprep.subr.mxu0 0.0
  %1948 = vmatpush1.msra.mxu0 0.0
  %1949 = vmatprep.subr.mxu0 0.0
  %1950 = vmatpush1.msra.mxu0 0.0
  %1951 = vmatprep.subr.mxu0 0.0
  %1952 = vmatpush1.msra.mxu0 0.0
  %1953 = vmatprep.subr.mxu0 0.0
  %1954 = vmatpush1.msra.mxu0 0.0
  %1955 = vmatprep.subr.mxu0 0.0
  %1956 = vmatpush1.msra.mxu0 0.0
  %1957 = vmatprep.subr.mxu0 0.0
  %1958 = vmatpush1.msra.mxu0 0.0
  %1959 = vmatprep.subr.mxu0 0.0
  %1960 = vmatpush1.msra.mxu0 0.0
  %1961 = vmatprep.subr.mxu0 0.0
  %1962 = vmatpush1.msra.mxu0 0.0
  %1963 = vmatprep.subr.mxu0 0.0
  %1964 = vmatpush1.msra.mxu0 %v1909
  %1965 = vmatprep.subr.mxu0 0.0
  %1966 = vmatpush1.msra.mxu0 %v1908
  %1967 = vmatprep.subr.mxu0 0.0
  %1968 = vmatpush2.msra.mxu0 0.0
  %1969 = vmatprep.subr.mxu0 0.0
  %1970 = vmatpush2.msra.mxu0 0.0
  %1971 = vmatprep.subr.mxu0 0.0
  %1972 = vmatpush2.msra.mxu0 0.0
  %1973 = vmatprep.subr.mxu0 0.0
  %1974 = vmatpush2.msra.mxu0 0.0
  %1975 = vmatprep.subr.mxu0 0.0
  %1976 = vmatpush2.msra.mxu0 0.0
  %1977 = vmatprep.subr.mxu0 0.0
  %1978 = vmatpush2.msra.mxu0 0.0
  %1979 = vmatprep.subr.mxu0 0.0
  %1980 = vmatpush2.msra.mxu0 0.0
  %1981 = vmatprep.subr.mxu0 0.0
  %1982 = vmatpush2.msra.mxu0 0.0
  %1983 = vmatprep.subr.mxu0 0.0
  %1984 = vmatpush2.msra.mxu0 0.0
  %1985 = vmatprep.subr.mxu0 0.0
  %1986 = vmatpush2.msra.mxu0 0.0
  %1987 = vmatprep.subr.mxu0 0.0
  %1988 = vmatpush2.msra.mxu0 0.0
  %1989 = vmatprep.subr.mxu0 0.0
  %1990 = vmatpush2.msra.mxu0 0.0
  %1991 = vmatprep.subr.mxu0 0.0
  %1992 = vmatpush2.msra.mxu0 0.0
  %1993 = vmatprep.subr.mxu0 0.0
  %1994 = vmatpush2.msra.mxu0 0.0
  %1995 = vmatprep.subr.mxu0 0.0
  %1996 = vmatpush2.msra.mxu0 0.0
  %1997 = vmatprep.subr.mxu0 0.0
  %1998 = vmatpush2.msra.mxu0 0.0
  %1999 = vmatprep.mubr.f32.mxu0 0.0
  %2000 = vmatmul.mubr.f32.gmra.mxu0 %v1912
  %v2001 = vpop.f32.mrf.mxu0
  %v2002 = vadd.f32 0.0, %v2001
  %v2003 = vpop.f32.mrf.mxu0
  %2004 = vmatprep.mubr.f32.mxu0 0.0
  %2005 = vmatmul.mubr.f32.gmra.mxu0 %v1915
  %v2006 = vpop.f32.mrf.mxu0
  %v2007 = vadd.f32 0.0, %v2006
  %v2008 = vpop.f32.mrf.mxu0
  %2009 = vmatprep.mubr.f32.mxu0 0.0
  %2010 = vmatmul.mubr.f32.gmra.mxu0 %v1918
  %v2011 = vpop.f32.mrf.mxu0
  %v2012 = vadd.f32 0.0, %v2011
  %v2013 = vpop.f32.mrf.mxu0
  %2014 = vmatprep.mubr.f32.mxu0 0.0
  %2015 = vmatmul.mubr.f32.gmra.mxu0 %v1921
  %v2016 = vpop.f32.mrf.mxu0
  %v2017 = vadd.f32 0.0, %v2016
  %v2018 = vpop.f32.mrf.mxu0
  %2019 = vmatprep.mubr.f32.mxu0 0.0
  %2020 = vmatmul.mubr.f32.gmra.mxu0 %v1924
  %v2021 = vpop.f32.mrf.mxu0
  %v2022 = vadd.f32 0.0, %v2021
  %v2023 = vpop.f32.mrf.mxu0
  %2024 = vmatprep.mubr.f32.mxu0 0.0
  %2025 = vmatmul.mubr.f32.gmra.mxu0 %v1927
  %v2026 = vpop.f32.mrf.mxu0
  %v2027 = vadd.f32 0.0, %v2026
  %v2028 = vpop.f32.mrf.mxu0
  %2029 = vmatprep.mubr.f32.mxu0 0.0
  %2030 = vmatmul.mubr.f32.gmra.mxu0 %v1930
  %v2031 = vpop.f32.mrf.mxu0
  %v2032 = vadd.f32 0.0, %v2031
  %v2033 = vpop.f32.mrf.mxu0
  %2034 = vmatprep.mubr.f32.mxu0 0.0
  %2035 = vmatmul.mubr.f32.gmra.mxu0 %v1933
  %v2036 = vpop.f32.mrf.mxu0
  %v2037 = vadd.f32 0.0, %v2036
  %v2038 = vpop.f32.mrf.mxu0
  %2039 = vdwg.mxu0
  %2041 = vset.pattern.permute.xlu0 0
  %2042 = vperm.xlu0 %2041, %v1884
  %v2043 = vpop.permute.xlu0 %2042
  %2046 = vset.pattern.permute.xlu0 0
  %2047 = vperm.xlu0 %2046, %v1885
  %v2048 = vpop.permute.xlu0 %2047
  %2051 = vset.pattern.permute.xlu0 0
  %2052 = vperm.xlu0 %2051, %v1886
  %v2053 = vpop.permute.xlu0 %2052
  %2056 = vset.pattern.permute.xlu0 0
  %2057 = vperm.xlu0 %2056, %v1887
  %v2058 = vpop.permute.xlu0 %2057
  %2061 = vset.pattern.permute.xlu0 0
  %2062 = vperm.xlu0 %2061, %v1888
  %v2063 = vpop.permute.xlu0 %2062
  %2066 = vset.pattern.permute.xlu0 0
  %2067 = vperm.xlu0 %2066, %v1889
  %v2068 = vpop.permute.xlu0 %2067
  %2071 = vset.pattern.permute.xlu0 0
  %2072 = vperm.xlu0 %2071, %v1890
  %v2073 = vpop.permute.xlu0 %2072
  %2076 = vset.pattern.permute.xlu0 0
  %2077 = vperm.xlu0 %2076, %v1891
  %v2078 = vpop.permute.xlu0 %2077
  %v2080 = vadd.f32 %v2043, %v2002
  %v2081 = vadd.f32 %v2048, %v2007
  %v2082 = vadd.f32 %v2053, %v2012
  %v2083 = vadd.f32 %v2058, %v2017
  %v2084 = vadd.f32 %v2063, %v2022
  %v2085 = vadd.f32 %v2068, %v2027
  %v2086 = vadd.f32 %v2073, %v2032
  %v2087 = vadd.f32 %v2078, %v2037
  %s2088 = scalar_lea.vmem %s11, 16
  %v2089 = vld [vmem:[%s2088] sm:$0xff]
  %v2090 = vld [vmem:[%s2088 + $0x8] sm:$0xff]
  %v2092 = vsel %vm1910, %v1766, 0
  %v2095 = vsel %vm1910, %v1771, 0
  %v2098 = vsel %vm1910, %v1776, 0
  %v2101 = vsel %vm1910, %v1781, 0
  %v2104 = vsel %vm1910, %v1786, 0
  %v2107 = vsel %vm1910, %v1791, 0
  %v2110 = vsel %vm1910, %v1796, 0
  %v2113 = vsel %vm1910, %v1801, 0
  %2115 = vmatprep.subr.mxu0 0.0
  %2116 = vmatpush1.msra.mxu0 0.0
  %2117 = vmatprep.subr.mxu0 0.0
  %2118 = vmatpush1.msra.mxu0 0.0
  %2119 = vmatprep.subr.mxu0 0.0
  %2120 = vmatpush1.msra.mxu0 0.0
  %2121 = vmatprep.subr.mxu0 0.0
  %2122 = vmatpush1.msra.mxu0 0.0
  %2123 = vmatprep.subr.mxu0 0.0
  %2124 = vmatpush1.msra.mxu0 0.0
  %2125 = vmatprep.subr.mxu0 0.0
  %2126 = vmatpush1.msra.mxu0 0.0
  %2127 = vmatprep.subr.mxu0 0.0
  %2128 = vmatpush1.msra.mxu0 0.0
  %2129 = vmatprep.subr.mxu0 0.0
  %2130 = vmatpush1.msra.mxu0 0.0
  %2131 = vmatprep.subr.mxu0 0.0
  %2132 = vmatpush1.msra.mxu0 0.0
  %2133 = vmatprep.subr.mxu0 0.0
  %2134 = vmatpush1.msra.mxu0 0.0
  %2135 = vmatprep.subr.mxu0 0.0
  %2136 = vmatpush1.msra.mxu0 0.0
  %2137 = vmatprep.subr.mxu0 0.0
  %2138 = vmatpush1.msra.mxu0 0.0
  %2139 = vmatprep.subr.mxu0 0.0
  %2140 = vmatpush1.msra.mxu0 0.0
  %2141 = vmatprep.subr.mxu0 0.0
  %2142 = vmatpush1.msra.mxu0 0.0
  %2143 = vmatprep.subr.mxu0 0.0
  %2144 = vmatpush1.msra.mxu0 %v2090
  %2145 = vmatprep.subr.mxu0 0.0
  %2146 = vmatpush1.msra.mxu0 %v2089
  %2147 = vmatprep.subr.mxu0 0.0
  %2148 = vmatpush2.msra.mxu0 0.0
  %2149 = vmatprep.subr.mxu0 0.0
  %2150 = vmatpush2.msra.mxu0 0.0
  %2151 = vmatprep.subr.mxu0 0.0
  %2152 = vmatpush2.msra.mxu0 0.0
  %2153 = vmatprep.subr.mxu0 0.0
  %2154 = vmatpush2.msra.mxu0 0.0
  %2155 = vmatprep.subr.mxu0 0.0
  %2156 = vmatpush2.msra.mxu0 0.0
  %2157 = vmatprep.subr.mxu0 0.0
  %2158 = vmatpush2.msra.mxu0 0.0
  %2159 = vmatprep.subr.mxu0 0.0
  %2160 = vmatpush2.msra.mxu0 0.0
  %2161 = vmatprep.subr.mxu0 0.0
  %2162 = vmatpush2.msra.mxu0 0.0
  %2163 = vmatprep.subr.mxu0 0.0
  %2164 = vmatpush2.msra.mxu0 0.0
  %2165 = vmatprep.subr.mxu0 0.0
  %2166 = vmatpush2.msra.mxu0 0.0
  %2167 = vmatprep.subr.mxu0 0.0
  %2168 = vmatpush2.msra.mxu0 0.0
  %2169 = vmatprep.subr.mxu0 0.0
  %2170 = vmatpush2.msra.mxu0 0.0
  %2171 = vmatprep.subr.mxu0 0.0
  %2172 = vmatpush2.msra.mxu0 0.0
  %2173 = vmatprep.subr.mxu0 0.0
  %2174 = vmatpush2.msra.mxu0 0.0
  %2175 = vmatprep.subr.mxu0 0.0
  %2176 = vmatpush2.msra.mxu0 0.0
  %2177 = vmatprep.subr.mxu0 0.0
  %2178 = vmatpush2.msra.mxu0 0.0
  %2179 = vmatprep.mubr.f32.mxu0 0.0
  %2180 = vmatmul.mubr.f32.gmra.mxu0 %v2092
  %v2181 = vpop.f32.mrf.mxu0
  %v2182 = vadd.f32 0.0, %v2181
  %v2183 = vpop.f32.mrf.mxu0
  %2184 = vmatprep.mubr.f32.mxu0 0.0
  %2185 = vmatmul.mubr.f32.gmra.mxu0 %v2095
  %v2186 = vpop.f32.mrf.mxu0
  %v2187 = vadd.f32 0.0, %v2186
  %v2188 = vpop.f32.mrf.mxu0
  %2189 = vmatprep.mubr.f32.mxu0 0.0
  %2190 = vmatmul.mubr.f32.gmra.mxu0 %v2098
  %v2191 = vpop.f32.mrf.mxu0
  %v2192 = vadd.f32 0.0, %v2191
  %v2193 = vpop.f32.mrf.mxu0
  %2194 = vmatprep.mubr.f32.mxu0 0.0
  %2195 = vmatmul.mubr.f32.gmra.mxu0 %v2101
  %v2196 = vpop.f32.mrf.mxu0
  %v2197 = vadd.f32 0.0, %v2196
  %v2198 = vpop.f32.mrf.mxu0
  %2199 = vmatprep.mubr.f32.mxu0 0.0
  %2200 = vmatmul.mubr.f32.gmra.mxu0 %v2104
  %v2201 = vpop.f32.mrf.mxu0
  %v2202 = vadd.f32 0.0, %v2201
  %v2203 = vpop.f32.mrf.mxu0
  %2204 = vmatprep.mubr.f32.mxu0 0.0
  %2205 = vmatmul.mubr.f32.gmra.mxu0 %v2107
  %v2206 = vpop.f32.mrf.mxu0
  %v2207 = vadd.f32 0.0, %v2206
  %v2208 = vpop.f32.mrf.mxu0
  %2209 = vmatprep.mubr.f32.mxu0 0.0
  %2210 = vmatmul.mubr.f32.gmra.mxu0 %v2110
  %v2211 = vpop.f32.mrf.mxu0
  %v2212 = vadd.f32 0.0, %v2211
  %v2213 = vpop.f32.mrf.mxu0
  %2214 = vmatprep.mubr.f32.mxu0 0.0
  %2215 = vmatmul.mubr.f32.gmra.mxu0 %v2113
  %v2216 = vpop.f32.mrf.mxu0
  %v2217 = vadd.f32 0.0, %v2216
  %v2218 = vpop.f32.mrf.mxu0
  %2219 = vdwg.mxu0
  %v2220 = vadd.f32 %v2080, %v2182
  %v2221 = vadd.f32 %v2081, %v2187
  %v2222 = vadd.f32 %v2082, %v2192
  %v2223 = vadd.f32 %v2083, %v2197
  %v2224 = vadd.f32 %v2084, %v2202
  %v2225 = vadd.f32 %v2085, %v2207
  %v2226 = vadd.f32 %v2086, %v2212
  %v2227 = vadd.f32 %v2087, %v2217
  %s2228 = scalar_lea.vmem %s11, 32
  %v2229 = vld [vmem:[%s2228] sm:$0xff]
  %v2230 = vld [vmem:[%s2228 + $0x8] sm:$0xff]
  %v2232 = vsel %vm1910, %v1806, 0
  %v2235 = vsel %vm1910, %v1811, 0
  %v2238 = vsel %vm1910, %v1816, 0
  %v2241 = vsel %vm1910, %v1821, 0
  %v2244 = vsel %vm1910, %v1826, 0
  %v2247 = vsel %vm1910, %v1831, 0
  %v2250 = vsel %vm1910, %v1836, 0
  %v2253 = vsel %vm1910, %v1841, 0
  %2255 = vmatprep.subr.mxu0 0.0
  %2256 = vmatpush1.msra.mxu0 0.0
  %2257 = vmatprep.subr.mxu0 0.0
  %2258 = vmatpush1.msra.mxu0 0.0
  %2259 = vmatprep.subr.mxu0 0.0
  %2260 = vmatpush1.msra.mxu0 0.0
  %2261 = vmatprep.subr.mxu0 0.0
  %2262 = vmatpush1.msra.mxu0 0.0
  %2263 = vmatprep.subr.mxu0 0.0
  %2264 = vmatpush1.msra.mxu0 0.0
  %2265 = vmatprep.subr.mxu0 0.0
  %2266 = vmatpush1.msra.mxu0 0.0
  %2267 = vmatprep.subr.mxu0 0.0
  %2268 = vmatpush1.msra.mxu0 0.0
  %2269 = vmatprep.subr.mxu0 0.0
  %2270 = vmatpush1.msra.mxu0 0.0
  %2271 = vmatprep.subr.mxu0 0.0
  %2272 = vmatpush1.msra.mxu0 0.0
  %2273 = vmatprep.subr.mxu0 0.0
  %2274 = vmatpush1.msra.mxu0 0.0
  %2275 = vmatprep.subr.mxu0 0.0
  %2276 = vmatpush1.msra.mxu0 0.0
  %2277 = vmatprep.subr.mxu0 0.0
  %2278 = vmatpush1.msra.mxu0 0.0
  %2279 = vmatprep.subr.mxu0 0.0
  %2280 = vmatpush1.msra.mxu0 0.0
  %2281 = vmatprep.subr.mxu0 0.0
  %2282 = vmatpush1.msra.mxu0 0.0
  %2283 = vmatprep.subr.mxu0 0.0
  %2284 = vmatpush1.msra.mxu0 %v2230
  %2285 = vmatprep.subr.mxu0 0.0
  %2286 = vmatpush1.msra.mxu0 %v2229
  %2287 = vmatprep.subr.mxu0 0.0
  %2288 = vmatpush2.msra.mxu0 0.0
  %2289 = vmatprep.subr.mxu0 0.0
  %2290 = vmatpush2.msra.mxu0 0.0
  %2291 = vmatprep.subr.mxu0 0.0
  %2292 = vmatpush2.msra.mxu0 0.0
  %2293 = vmatprep.subr.mxu0 0.0
  %2294 = vmatpush2.msra.mxu0 0.0
  %2295 = vmatprep.subr.mxu0 0.0
  %2296 = vmatpush2.msra.mxu0 0.0
  %2297 = vmatprep.subr.mxu0 0.0
  %2298 = vmatpush2.msra.mxu0 0.0
  %2299 = vmatprep.subr.mxu0 0.0
  %2300 = vmatpush2.msra.mxu0 0.0
  %2301 = vmatprep.subr.mxu0 0.0
  %2302 = vmatpush2.msra.mxu0 0.0
  %2303 = vmatprep.subr.mxu0 0.0
  %2304 = vmatpush2.msra.mxu0 0.0
  %2305 = vmatprep.subr.mxu0 0.0
  %2306 = vmatpush2.msra.mxu0 0.0
  %2307 = vmatprep.subr.mxu0 0.0
  %2308 = vmatpush2.msra.mxu0 0.0
  %2309 = vmatprep.subr.mxu0 0.0
  %2310 = vmatpush2.msra.mxu0 0.0
  %2311 = vmatprep.subr.mxu0 0.0
  %2312 = vmatpush2.msra.mxu0 0.0
  %2313 = vmatprep.subr.mxu0 0.0
  %2314 = vmatpush2.msra.mxu0 0.0
  %2315 = vmatprep.subr.mxu0 0.0
  %2316 = vmatpush2.msra.mxu0 0.0
  %2317 = vmatprep.subr.mxu0 0.0
  %2318 = vmatpush2.msra.mxu0 0.0
  %2319 = vmatprep.mubr.f32.mxu0 0.0
  %2320 = vmatmul.mubr.f32.gmra.mxu0 %v2232
  %v2321 = vpop.f32.mrf.mxu0
  %v2322 = vadd.f32 0.0, %v2321
  %v2323 = vpop.f32.mrf.mxu0
  %2324 = vmatprep.mubr.f32.mxu0 0.0
  %2325 = vmatmul.mubr.f32.gmra.mxu0 %v2235
  %v2326 = vpop.f32.mrf.mxu0
  %v2327 = vadd.f32 0.0, %v2326
  %v2328 = vpop.f32.mrf.mxu0
  %2329 = vmatprep.mubr.f32.mxu0 0.0
  %2330 = vmatmul.mubr.f32.gmra.mxu0 %v2238
  %v2331 = vpop.f32.mrf.mxu0
  %v2332 = vadd.f32 0.0, %v2331
  %v2333 = vpop.f32.mrf.mxu0
  %2334 = vmatprep.mubr.f32.mxu0 0.0
  %2335 = vmatmul.mubr.f32.gmra.mxu0 %v2241
  %v2336 = vpop.f32.mrf.mxu0
  %v2337 = vadd.f32 0.0, %v2336
  %v2338 = vpop.f32.mrf.mxu0
  %2339 = vmatprep.mubr.f32.mxu0 0.0
  %2340 = vmatmul.mubr.f32.gmra.mxu0 %v2244
  %v2341 = vpop.f32.mrf.mxu0
  %v2342 = vadd.f32 0.0, %v2341
  %v2343 = vpop.f32.mrf.mxu0
  %2344 = vmatprep.mubr.f32.mxu0 0.0
  %2345 = vmatmul.mubr.f32.gmra.mxu0 %v2247
  %v2346 = vpop.f32.mrf.mxu0
  %v2347 = vadd.f32 0.0, %v2346
  %v2348 = vpop.f32.mrf.mxu0
  %2349 = vmatprep.mubr.f32.mxu0 0.0
  %2350 = vmatmul.mubr.f32.gmra.mxu0 %v2250
  %v2351 = vpop.f32.mrf.mxu0
  %v2352 = vadd.f32 0.0, %v2351
  %v2353 = vpop.f32.mrf.mxu0
  %2354 = vmatprep.mubr.f32.mxu0 0.0
  %2355 = vmatmul.mubr.f32.gmra.mxu0 %v2253
  %v2356 = vpop.f32.mrf.mxu0
  %v2357 = vadd.f32 0.0, %v2356
  %v2358 = vpop.f32.mrf.mxu0
  %2359 = vdwg.mxu0
  %v2360 = vadd.f32 %v2220, %v2322
  %v2361 = vadd.f32 %v2221, %v2327
  %v2362 = vadd.f32 %v2222, %v2332
  %v2363 = vadd.f32 %v2223, %v2337
  %v2364 = vadd.f32 %v2224, %v2342
  %v2365 = vadd.f32 %v2225, %v2347
  %v2366 = vadd.f32 %v2226, %v2352
  %v2367 = vadd.f32 %v2227, %v2357
  %s2368 = scalar_lea.vmem %s11, 48
  %v2369 = vld [vmem:[%s2368] sm:$0xff]
  %v2370 = vld [vmem:[%s2368 + $0x8] sm:$0xff]
  %v2372 = vsel %vm1910, %v1846, 0
  %v2375 = vsel %vm1910, %v1851, 0
  %v2378 = vsel %vm1910, %v1856, 0
  %v2381 = vsel %vm1910, %v1861, 0
  %v2384 = vsel %vm1910, %v1866, 0
  %v2387 = vsel %vm1910, %v1871, 0
  %v2390 = vsel %vm1910, %v1876, 0
  %v2393 = vsel %vm1910, %v1881, 0
  %2395 = vmatprep.subr.mxu0 0.0
  %2396 = vmatpush1.msra.mxu0 0.0
  %2397 = vmatprep.subr.mxu0 0.0
  %2398 = vmatpush1.msra.mxu0 0.0
  %2399 = vmatprep.subr.mxu0 0.0
  %2400 = vmatpush1.msra.mxu0 0.0
  %2401 = vmatprep.subr.mxu0 0.0
  %2402 = vmatpush1.msra.mxu0 0.0
  %2403 = vmatprep.subr.mxu0 0.0
  %2404 = vmatpush1.msra.mxu0 0.0
  %2405 = vmatprep.subr.mxu0 0.0
  %2406 = vmatpush1.msra.mxu0 0.0
  %2407 = vmatprep.subr.mxu0 0.0
  %2408 = vmatpush1.msra.mxu0 0.0
  %2409 = vmatprep.subr.mxu0 0.0
  %2410 = vmatpush1.msra.mxu0 0.0
  %2411 = vmatprep.subr.mxu0 0.0
  %2412 = vmatpush1.msra.mxu0 0.0
  %2413 = vmatprep.subr.mxu0 0.0
  %2414 = vmatpush1.msra.mxu0 0.0
  %2415 = vmatprep.subr.mxu0 0.0
  %2416 = vmatpush1.msra.mxu0 0.0
  %2417 = vmatprep.subr.mxu0 0.0
  %2418 = vmatpush1.msra.mxu0 0.0
  %2419 = vmatprep.subr.mxu0 0.0
  %2420 = vmatpush1.msra.mxu0 0.0
  %2421 = vmatprep.subr.mxu0 0.0
  %2422 = vmatpush1.msra.mxu0 0.0
  %2423 = vmatprep.subr.mxu0 0.0
  %2424 = vmatpush1.msra.mxu0 %v2370
  %2425 = vmatprep.subr.mxu0 0.0
  %2426 = vmatpush1.msra.mxu0 %v2369
  %2427 = vmatprep.subr.mxu0 0.0
  %2428 = vmatpush2.msra.mxu0 0.0
  %2429 = vmatprep.subr.mxu0 0.0
  %2430 = vmatpush2.msra.mxu0 0.0
  %2431 = vmatprep.subr.mxu0 0.0
  %2432 = vmatpush2.msra.mxu0 0.0
  %2433 = vmatprep.subr.mxu0 0.0
  %2434 = vmatpush2.msra.mxu0 0.0
  %2435 = vmatprep.subr.mxu0 0.0
  %2436 = vmatpush2.msra.mxu0 0.0
  %2437 = vmatprep.subr.mxu0 0.0
  %2438 = vmatpush2.msra.mxu0 0.0
  %2439 = vmatprep.subr.mxu0 0.0
  %2440 = vmatpush2.msra.mxu0 0.0
  %2441 = vmatprep.subr.mxu0 0.0
  %2442 = vmatpush2.msra.mxu0 0.0
  %2443 = vmatprep.subr.mxu0 0.0
  %2444 = vmatpush2.msra.mxu0 0.0
  %2445 = vmatprep.subr.mxu0 0.0
  %2446 = vmatpush2.msra.mxu0 0.0
  %2447 = vmatprep.subr.mxu0 0.0
  %2448 = vmatpush2.msra.mxu0 0.0
  %2449 = vmatprep.subr.mxu0 0.0
  %2450 = vmatpush2.msra.mxu0 0.0
  %2451 = vmatprep.subr.mxu0 0.0
  %2452 = vmatpush2.msra.mxu0 0.0
  %2453 = vmatprep.subr.mxu0 0.0
  %2454 = vmatpush2.msra.mxu0 0.0
  %2455 = vmatprep.subr.mxu0 0.0
  %2456 = vmatpush2.msra.mxu0 0.0
  %2457 = vmatprep.subr.mxu0 0.0
  %2458 = vmatpush2.msra.mxu0 0.0
  %2459 = vmatprep.mubr.f32.mxu0 0.0
  %2460 = vmatmul.mubr.f32.gmra.mxu0 %v2372
  %v2461 = vpop.f32.mrf.mxu0
  %v2462 = vadd.f32 0.0, %v2461
  %v2463 = vpop.f32.mrf.mxu0
  %2464 = vmatprep.mubr.f32.mxu0 0.0
  %2465 = vmatmul.mubr.f32.gmra.mxu0 %v2375
  %v2466 = vpop.f32.mrf.mxu0
  %v2467 = vadd.f32 0.0, %v2466
  %v2468 = vpop.f32.mrf.mxu0
  %2469 = vmatprep.mubr.f32.mxu0 0.0
  %2470 = vmatmul.mubr.f32.gmra.mxu0 %v2378
  %v2471 = vpop.f32.mrf.mxu0
  %v2472 = vadd.f32 0.0, %v2471
  %v2473 = vpop.f32.mrf.mxu0
  %2474 = vmatprep.mubr.f32.mxu0 0.0
  %2475 = vmatmul.mubr.f32.gmra.mxu0 %v2381
  %v2476 = vpop.f32.mrf.mxu0
  %v2477 = vadd.f32 0.0, %v2476
  %v2478 = vpop.f32.mrf.mxu0
  %2479 = vmatprep.mubr.f32.mxu0 0.0
  %2480 = vmatmul.mubr.f32.gmra.mxu0 %v2384
  %v2481 = vpop.f32.mrf.mxu0
  %v2482 = vadd.f32 0.0, %v2481
  %v2483 = vpop.f32.mrf.mxu0
  %2484 = vmatprep.mubr.f32.mxu0 0.0
  %2485 = vmatmul.mubr.f32.gmra.mxu0 %v2387
  %v2486 = vpop.f32.mrf.mxu0
  %v2487 = vadd.f32 0.0, %v2486
  %v2488 = vpop.f32.mrf.mxu0
  %2489 = vmatprep.mubr.f32.mxu0 0.0
  %2490 = vmatmul.mubr.f32.gmra.mxu0 %v2390
  %v2491 = vpop.f32.mrf.mxu0
  %v2492 = vadd.f32 0.0, %v2491
  %v2493 = vpop.f32.mrf.mxu0
  %2494 = vmatprep.mubr.f32.mxu0 0.0
  %2495 = vmatmul.mubr.f32.gmra.mxu0 %v2393
  %v2496 = vpop.f32.mrf.mxu0
  %v2497 = vadd.f32 0.0, %v2496
  %v2498 = vpop.f32.mrf.mxu0
  %2499 = vdwg.mxu0
  %v2500 = vadd.f32 %v2360, %v2462
  %v2501 = vadd.f32 %v2361, %v2467
  %v2502 = vadd.f32 %v2362, %v2472
  %v2503 = vadd.f32 %v2363, %v2477
  %v2504 = vadd.f32 %v2364, %v2482
  %v2505 = vadd.f32 %v2365, %v2487
  %v2506 = vadd.f32 %v2366, %v2492
  %v2507 = vadd.f32 %v2367, %v2497
  %v2508 = vld [vmem:[%s15] sm:$0xff]
  %v2509 = vld [vmem:[%s15 + $0x8] sm:$0xff]
  %v2510 = vld [vmem:[%s15 + $0x10] sm:$0xff]
  %v2511 = vld [vmem:[%s15 + $0x18] sm:$0xff]
  %v2512 = vld [vmem:[%s15 + $0x20] sm:$0xff]
  %v2513 = vld [vmem:[%s15 + $0x28] sm:$0xff]
  %v2514 = vld [vmem:[%s15 + $0x30] sm:$0xff]
  %v2515 = vld [vmem:[%s15 + $0x38] sm:$0xff]
  %vm2516 = vcmask 64512
  %v2517 = vsel %vm2516, %v2500, 0.0
  %2518 = vadd.xlane.f32.xlu0 %v2517
  %v2519 = vpop.xlane.xlu0 %2518
  %v2520 = vsel %vm2516, %v2501, 0.0
  %2521 = vadd.xlane.f32.xlu0 %v2520
  %v2522 = vpop.xlane.xlu0 %2521
  %v2523 = vsel %vm2516, %v2502, 0.0
  %2524 = vadd.xlane.f32.xlu0 %v2523
  %v2525 = vpop.xlane.xlu0 %2524
  %v2526 = vsel %vm2516, %v2503, 0.0
  %2527 = vadd.xlane.f32.xlu0 %v2526
  %v2528 = vpop.xlane.xlu0 %2527
  %v2529 = vsel %vm2516, %v2504, 0.0
  %2530 = vadd.xlane.f32.xlu0 %v2529
  %v2531 = vpop.xlane.xlu0 %2530
  %v2532 = vsel %vm2516, %v2505, 0.0
  %2533 = vadd.xlane.f32.xlu0 %v2532
  %v2534 = vpop.xlane.xlu0 %2533
  %v2535 = vsel %vm2516, %v2506, 0.0
  %2536 = vadd.xlane.f32.xlu0 %v2535
  %v2537 = vpop.xlane.xlu0 %2536
  %v2538 = vsel %vm2516, %v2507, 0.0
  %2539 = vadd.xlane.f32.xlu0 %v2538
  %v2540 = vpop.xlane.xlu0 %2539
  %vm2541 = vcmask 523264
  %v2543 = vsel %vm2541, %v2508, 0
  %v2546 = vsel %vm2541, %v2509, 0
  %v2549 = vsel %vm2541, %v2510, 0
  %v2552 = vsel %vm2541, %v2511, 0
  %v2555 = vsel %vm2541, %v2512, 0
  %v2558 = vsel %vm2541, %v2513, 0
  %v2561 = vsel %vm2541, %v2514, 0
  %v2564 = vsel %vm2541, %v2515, 0
  %2566 = vmatprep.subr.mxu0 0.0
  %2567 = vmatpush1.msra.mxu0 0.0
  %2568 = vmatprep.subr.mxu0 0.0
  %2569 = vmatpush1.msra.mxu0 0.0
  %2570 = vmatprep.subr.mxu0 0.0
  %2571 = vmatpush1.msra.mxu0 0.0
  %2572 = vmatprep.subr.mxu0 0.0
  %2573 = vmatpush1.msra.mxu0 0.0
  %2574 = vmatprep.subr.mxu0 0.0
  %2575 = vmatpush1.msra.mxu0 0.0
  %2576 = vmatprep.subr.mxu0 0.0
  %2577 = vmatpush1.msra.mxu0 0.0
  %2578 = vmatprep.subr.mxu0 0.0
  %2579 = vmatpush1.msra.mxu0 0.0
  %2580 = vmatprep.subr.mxu0 0.0
  %2581 = vmatpush1.msra.mxu0 0.0
  %2582 = vmatprep.subr.mxu0 0.0
  %2583 = vmatpush1.msra.mxu0 %v2540
  %2584 = vmatprep.subr.mxu0 0.0
  %2585 = vmatpush1.msra.mxu0 %v2537
  %2586 = vmatprep.subr.mxu0 0.0
  %2587 = vmatpush1.msra.mxu0 %v2534
  %2588 = vmatprep.subr.mxu0 0.0
  %2589 = vmatpush1.msra.mxu0 %v2531
  %2590 = vmatprep.subr.mxu0 0.0
  %2591 = vmatpush1.msra.mxu0 %v2528
  %2592 = vmatprep.subr.mxu0 0.0
  %2593 = vmatpush1.msra.mxu0 %v2525
  %2594 = vmatprep.subr.mxu0 0.0
  %2595 = vmatpush1.msra.mxu0 %v2522
  %2596 = vmatprep.subr.mxu0 0.0
  %2597 = vmatpush1.msra.mxu0 %v2519
  %2598 = vmatprep.subr.mxu0 0.0
  %2599 = vmatpush2.msra.mxu0 0.0
  %2600 = vmatprep.subr.mxu0 0.0
  %2601 = vmatpush2.msra.mxu0 0.0
  %2602 = vmatprep.subr.mxu0 0.0
  %2603 = vmatpush2.msra.mxu0 0.0
  %2604 = vmatprep.subr.mxu0 0.0
  %2605 = vmatpush2.msra.mxu0 0.0
  %2606 = vmatprep.subr.mxu0 0.0
  %2607 = vmatpush2.msra.mxu0 0.0
  %2608 = vmatprep.subr.mxu0 0.0
  %2609 = vmatpush2.msra.mxu0 0.0
  %2610 = vmatprep.subr.mxu0 0.0
  %2611 = vmatpush2.msra.mxu0 0.0
  %2612 = vmatprep.subr.mxu0 0.0
  %2613 = vmatpush2.msra.mxu0 0.0
  %2614 = vmatprep.subr.mxu0 0.0
  %2615 = vmatpush2.msra.mxu0 0.0
  %2616 = vmatprep.subr.mxu0 0.0
  %2617 = vmatpush2.msra.mxu0 0.0
  %2618 = vmatprep.subr.mxu0 0.0
  %2619 = vmatpush2.msra.mxu0 0.0
  %2620 = vmatprep.subr.mxu0 0.0
  %2621 = vmatpush2.msra.mxu0 0.0
  %2622 = vmatprep.subr.mxu0 0.0
  %2623 = vmatpush2.msra.mxu0 0.0
  %2624 = vmatprep.subr.mxu0 0.0
  %2625 = vmatpush2.msra.mxu0 0.0
  %2626 = vmatprep.subr.mxu0 0.0
  %2627 = vmatpush2.msra.mxu0 0.0
  %2628 = vmatprep.subr.mxu0 0.0
  %2629 = vmatpush2.msra.mxu0 0.0
  %2630 = vmatprep.mubr.f32.mxu0 0.0
  %2631 = vmatmul.mubr.f32.gmra.mxu0 %v2543
  %v2632 = vpop.f32.mrf.mxu0
  %v2633 = vadd.f32 0.0, %v2632
  %v2634 = vpop.f32.mrf.mxu0
  %2635 = vmatprep.mubr.f32.mxu0 0.0
  %2636 = vmatmul.mubr.f32.gmra.mxu0 %v2546
  %v2637 = vpop.f32.mrf.mxu0
  %v2638 = vadd.f32 0.0, %v2637
  %v2639 = vpop.f32.mrf.mxu0
  %2640 = vmatprep.mubr.f32.mxu0 0.0
  %2641 = vmatmul.mubr.f32.gmra.mxu0 %v2549
  %v2642 = vpop.f32.mrf.mxu0
  %v2643 = vadd.f32 0.0, %v2642
  %v2644 = vpop.f32.mrf.mxu0
  %2645 = vmatprep.mubr.f32.mxu0 0.0
  %2646 = vmatmul.mubr.f32.gmra.mxu0 %v2552
  %v2647 = vpop.f32.mrf.mxu0
  %v2648 = vadd.f32 0.0, %v2647
  %v2649 = vpop.f32.mrf.mxu0
  %2650 = vmatprep.mubr.f32.mxu0 0.0
  %2651 = vmatmul.mubr.f32.gmra.mxu0 %v2555
  %v2652 = vpop.f32.mrf.mxu0
  %v2653 = vadd.f32 0.0, %v2652
  %v2654 = vpop.f32.mrf.mxu0
  %2655 = vmatprep.mubr.f32.mxu0 0.0
  %2656 = vmatmul.mubr.f32.gmra.mxu0 %v2558
  %v2657 = vpop.f32.mrf.mxu0
  %v2658 = vadd.f32 0.0, %v2657
  %v2659 = vpop.f32.mrf.mxu0
  %2660 = vmatprep.mubr.f32.mxu0 0.0
  %2661 = vmatmul.mubr.f32.gmra.mxu0 %v2561
  %v2662 = vpop.f32.mrf.mxu0
  %v2663 = vadd.f32 0.0, %v2662
  %v2664 = vpop.f32.mrf.mxu0
  %2665 = vmatprep.mubr.f32.mxu0 0.0
  %2666 = vmatmul.mubr.f32.gmra.mxu0 %v2564
  %v2667 = vpop.f32.mrf.mxu0
  %v2668 = vadd.f32 0.0, %v2667
  %v2669 = vpop.f32.mrf.mxu0
  %2670 = vdwg.mxu0
  %v2671 = vmul.f32 %v2633, 0.0078125
  %v2672 = vmul.f32 %v2638, 0.0078125
  %v2673 = vmul.f32 %v2643, 0.0078125
  %v2674 = vmul.f32 %v2648, 0.0078125
  %v2675 = vmul.f32 %v2653, 0.0078125
  %v2676 = vmul.f32 %v2658, 0.0078125
  %v2677 = vmul.f32 %v2663, 0.0078125
  %v2678 = vmul.f32 %v2668, 0.0078125
  %2680 = vset.pattern.permute.xlu0 0
  %2681 = vperm.xlu0 %2680, %v2671
  %v2682 = vpop.permute.xlu0 %2681
  %2685 = vset.pattern.permute.xlu0 0
  %2686 = vperm.xlu0 %2685, %v2672
  %v2687 = vpop.permute.xlu0 %2686
  %2690 = vset.pattern.permute.xlu0 0
  %2691 = vperm.xlu0 %2690, %v2673
  %v2692 = vpop.permute.xlu0 %2691
  %2695 = vset.pattern.permute.xlu0 0
  %2696 = vperm.xlu0 %2695, %v2674
  %v2697 = vpop.permute.xlu0 %2696
  %2700 = vset.pattern.permute.xlu0 0
  %2701 = vperm.xlu0 %2700, %v2675
  %v2702 = vpop.permute.xlu0 %2701
  %2705 = vset.pattern.permute.xlu0 0
  %2706 = vperm.xlu0 %2705, %v2676
  %v2707 = vpop.permute.xlu0 %2706
  %2710 = vset.pattern.permute.xlu0 0
  %2711 = vperm.xlu0 %2710, %v2677
  %v2712 = vpop.permute.xlu0 %2711
  %2715 = vset.pattern.permute.xlu0 0
  %2716 = vperm.xlu0 %2715, %v2678
  %v2717 = vpop.permute.xlu0 %2716
  %v2719 = vsub.f32 %v2500, %v2682
  %v2720 = vsub.f32 %v2501, %v2687
  %v2721 = vsub.f32 %v2502, %v2692
  %v2722 = vsub.f32 %v2503, %v2697
  %v2723 = vsub.f32 %v2504, %v2702
  %v2724 = vsub.f32 %v2505, %v2707
  %v2725 = vsub.f32 %v2506, %v2712
  %v2726 = vsub.f32 %v2507, %v2717
  %v2727 = vmul.f32 %v2719, %v2719
  %v2728 = vmul.f32 %v2720, %v2720
  %v2729 = vmul.f32 %v2721, %v2721
  %v2730 = vmul.f32 %v2722, %v2722
  %v2731 = vmul.f32 %v2723, %v2723
  %v2732 = vmul.f32 %v2724, %v2724
  %v2733 = vmul.f32 %v2725, %v2725
  %v2734 = vmul.f32 %v2726, %v2726
  %v2735 = vsel %vm2516, %v2727, 0.0
  %2736 = vadd.xlane.f32.xlu0 %v2735
  %v2737 = vpop.xlane.xlu0 %2736
  %v2738 = vsel %vm2516, %v2728, 0.0
  %2739 = vadd.xlane.f32.xlu0 %v2738
  %v2740 = vpop.xlane.xlu0 %2739
  %v2741 = vsel %vm2516, %v2729, 0.0
  %2742 = vadd.xlane.f32.xlu0 %v2741
  %v2743 = vpop.xlane.xlu0 %2742
  %v2744 = vsel %vm2516, %v2730, 0.0
  %2745 = vadd.xlane.f32.xlu0 %v2744
  %v2746 = vpop.xlane.xlu0 %2745
  %v2747 = vsel %vm2516, %v2731, 0.0
  %2748 = vadd.xlane.f32.xlu0 %v2747
  %v2749 = vpop.xlane.xlu0 %2748
  %v2750 = vsel %vm2516, %v2732, 0.0
  %2751 = vadd.xlane.f32.xlu0 %v2750
  %v2752 = vpop.xlane.xlu0 %2751
  %v2753 = vsel %vm2516, %v2733, 0.0
  %2754 = vadd.xlane.f32.xlu0 %v2753
  %v2755 = vpop.xlane.xlu0 %2754
  %v2756 = vsel %vm2516, %v2734, 0.0
  %2757 = vadd.xlane.f32.xlu0 %v2756
  %v2758 = vpop.xlane.xlu0 %2757
  %2759 = vmatprep.subr.mxu0 0.0
  %2760 = vmatpush1.msra.mxu0 0.0
  %2761 = vmatprep.subr.mxu0 0.0
  %2762 = vmatpush1.msra.mxu0 0.0
  %2763 = vmatprep.subr.mxu0 0.0
  %2764 = vmatpush1.msra.mxu0 0.0
  %2765 = vmatprep.subr.mxu0 0.0
  %2766 = vmatpush1.msra.mxu0 0.0
  %2767 = vmatprep.subr.mxu0 0.0
  %2768 = vmatpush1.msra.mxu0 0.0
  %2769 = vmatprep.subr.mxu0 0.0
  %2770 = vmatpush1.msra.mxu0 0.0
  %2771 = vmatprep.subr.mxu0 0.0
  %2772 = vmatpush1.msra.mxu0 0.0
  %2773 = vmatprep.subr.mxu0 0.0
  %2774 = vmatpush1.msra.mxu0 0.0
  %2775 = vmatprep.subr.mxu0 0.0
  %2776 = vmatpush1.msra.mxu0 %v2758
  %2777 = vmatprep.subr.mxu0 0.0
  %2778 = vmatpush1.msra.mxu0 %v2755
  %2779 = vmatprep.subr.mxu0 0.0
  %2780 = vmatpush1.msra.mxu0 %v2752
  %2781 = vmatprep.subr.mxu0 0.0
  %2782 = vmatpush1.msra.mxu0 %v2749
  %2783 = vmatprep.subr.mxu0 0.0
  %2784 = vmatpush1.msra.mxu0 %v2746
  %2785 = vmatprep.subr.mxu0 0.0
  %2786 = vmatpush1.msra.mxu0 %v2743
  %2787 = vmatprep.subr.mxu0 0.0
  %2788 = vmatpush1.msra.mxu0 %v2740
  %2789 = vmatprep.subr.mxu0 0.0
  %2790 = vmatpush1.msra.mxu0 %v2737
  %2791 = vmatprep.subr.mxu0 0.0
  %2792 = vmatpush2.msra.mxu0 0.0
  %2793 = vmatprep.subr.mxu0 0.0
  %2794 = vmatpush2.msra.mxu0 0.0
  %2795 = vmatprep.subr.mxu0 0.0
  %2796 = vmatpush2.msra.mxu0 0.0
  %2797 = vmatprep.subr.mxu0 0.0
  %2798 = vmatpush2.msra.mxu0 0.0
  %2799 = vmatprep.subr.mxu0 0.0
  %2800 = vmatpush2.msra.mxu0 0.0
  %2801 = vmatprep.subr.mxu0 0.0
  %2802 = vmatpush2.msra.mxu0 0.0
  %2803 = vmatprep.subr.mxu0 0.0
  %2804 = vmatpush2.msra.mxu0 0.0
  %2805 = vmatprep.subr.mxu0 0.0
  %2806 = vmatpush2.msra.mxu0 0.0
  %2807 = vmatprep.subr.mxu0 0.0
  %2808 = vmatpush2.msra.mxu0 0.0
  %2809 = vmatprep.subr.mxu0 0.0
  %2810 = vmatpush2.msra.mxu0 0.0
  %2811 = vmatprep.subr.mxu0 0.0
  %2812 = vmatpush2.msra.mxu0 0.0
  %2813 = vmatprep.subr.mxu0 0.0
  %2814 = vmatpush2.msra.mxu0 0.0
  %2815 = vmatprep.subr.mxu0 0.0
  %2816 = vmatpush2.msra.mxu0 0.0
  %2817 = vmatprep.subr.mxu0 0.0
  %2818 = vmatpush2.msra.mxu0 0.0
  %2819 = vmatprep.subr.mxu0 0.0
  %2820 = vmatpush2.msra.mxu0 0.0
  %2821 = vmatprep.subr.mxu0 0.0
  %2822 = vmatpush2.msra.mxu0 0.0
  %2823 = vmatprep.mubr.f32.mxu0 0.0
  %2824 = vmatmul.mubr.f32.gmra.mxu0 %v2543
  %v2825 = vpop.f32.mrf.mxu0
  %v2826 = vadd.f32 0.0, %v2825
  %v2827 = vpop.f32.mrf.mxu0
  %2828 = vmatprep.mubr.f32.mxu0 0.0
  %2829 = vmatmul.mubr.f32.gmra.mxu0 %v2546
  %v2830 = vpop.f32.mrf.mxu0
  %v2831 = vadd.f32 0.0, %v2830
  %v2832 = vpop.f32.mrf.mxu0
  %2833 = vmatprep.mubr.f32.mxu0 0.0
  %2834 = vmatmul.mubr.f32.gmra.mxu0 %v2549
  %v2835 = vpop.f32.mrf.mxu0
  %v2836 = vadd.f32 0.0, %v2835
  %v2837 = vpop.f32.mrf.mxu0
  %2838 = vmatprep.mubr.f32.mxu0 0.0
  %2839 = vmatmul.mubr.f32.gmra.mxu0 %v2552
  %v2840 = vpop.f32.mrf.mxu0
  %v2841 = vadd.f32 0.0, %v2840
  %v2842 = vpop.f32.mrf.mxu0
  %2843 = vmatprep.mubr.f32.mxu0 0.0
  %2844 = vmatmul.mubr.f32.gmra.mxu0 %v2555
  %v2845 = vpop.f32.mrf.mxu0
  %v2846 = vadd.f32 0.0, %v2845
  %v2847 = vpop.f32.mrf.mxu0
  %2848 = vmatprep.mubr.f32.mxu0 0.0
  %2849 = vmatmul.mubr.f32.gmra.mxu0 %v2558
  %v2850 = vpop.f32.mrf.mxu0
  %v2851 = vadd.f32 0.0, %v2850
  %v2852 = vpop.f32.mrf.mxu0
  %2853 = vmatprep.mubr.f32.mxu0 0.0
  %2854 = vmatmul.mubr.f32.gmra.mxu0 %v2561
  %v2855 = vpop.f32.mrf.mxu0
  %v2856 = vadd.f32 0.0, %v2855
  %v2857 = vpop.f32.mrf.mxu0
  %2858 = vmatprep.mubr.f32.mxu0 0.0
  %2859 = vmatmul.mubr.f32.gmra.mxu0 %v2564
  %v2860 = vpop.f32.mrf.mxu0
  %v2861 = vadd.f32 0.0, %v2860
  %v2862 = vpop.f32.mrf.mxu0
  %2863 = vdwg.mxu0
  %v2864 = vmul.f32 %v2826, 0.0078125
  %v2865 = vmul.f32 %v2831, 0.0078125
  %v2866 = vmul.f32 %v2836, 0.0078125
  %v2867 = vmul.f32 %v2841, 0.0078125
  %v2868 = vmul.f32 %v2846, 0.0078125
  %v2869 = vmul.f32 %v2851, 0.0078125
  %v2870 = vmul.f32 %v2856, 0.0078125
  %v2871 = vmul.f32 %v2861, 0.0078125
  %v2872 = vadd.f32 %v2864, 1e-05
  %v2873 = vadd.f32 %v2865, 1e-05
  %v2874 = vadd.f32 %v2866, 1e-05
  %v2875 = vadd.f32 %v2867, 1e-05
  %v2876 = vadd.f32 %v2868, 1e-05
  %v2877 = vadd.f32 %v2869, 1e-05
  %v2878 = vadd.f32 %v2870, 1e-05
  %v2879 = vadd.f32 %v2871, 1e-05
  %v2880 = vrsqrt.pop %v2872
  %v2881 = vrsqrt.pop %v2873
  %v2882 = vrsqrt.pop %v2874
  %v2883 = vrsqrt.pop %v2875
  %v2884 = vrsqrt.pop %v2876
  %v2885 = vrsqrt.pop %v2877
  %v2886 = vrsqrt.pop %v2878
  %v2887 = vrsqrt.pop %v2879
  %v2888 = vmul.f32 %v2880, %v1892
  %v2889 = vmul.f32 %v2881, %v1893
  %v2890 = vmul.f32 %v2882, %v1894
  %v2891 = vmul.f32 %v2883, %v1895
  %v2892 = vmul.f32 %v2884, %v1896
  %v2893 = vmul.f32 %v2885, %v1897
  %v2894 = vmul.f32 %v2886, %v1898
  %v2895 = vmul.f32 %v2887, %v1899
  %2897 = vset.pattern.permute.xlu0 0
  %2898 = vperm.xlu0 %2897, %v2888
  %v2899 = vpop.permute.xlu0 %2898
  %2902 = vset.pattern.permute.xlu0 0
  %2903 = vperm.xlu0 %2902, %v2889
  %v2904 = vpop.permute.xlu0 %2903
  %2907 = vset.pattern.permute.xlu0 0
  %2908 = vperm.xlu0 %2907, %v2890
  %v2909 = vpop.permute.xlu0 %2908
  %2912 = vset.pattern.permute.xlu0 0
  %2913 = vperm.xlu0 %2912, %v2891
  %v2914 = vpop.permute.xlu0 %2913
  %2917 = vset.pattern.permute.xlu0 0
  %2918 = vperm.xlu0 %2917, %v2892
  %v2919 = vpop.permute.xlu0 %2918
  %2922 = vset.pattern.permute.xlu0 0
  %2923 = vperm.xlu0 %2922, %v2893
  %v2924 = vpop.permute.xlu0 %2923
  %2927 = vset.pattern.permute.xlu0 0
  %2928 = vperm.xlu0 %2927, %v2894
  %v2929 = vpop.permute.xlu0 %2928
  %2932 = vset.pattern.permute.xlu0 0
  %2933 = vperm.xlu0 %2932, %v2895
  %v2934 = vpop.permute.xlu0 %2933
  %v2936 = vmul.f32 %v2719, %v2899
  %v2937 = vmul.f32 %v2720, %v2904
  %v2938 = vmul.f32 %v2721, %v2909
  %v2939 = vmul.f32 %v2722, %v2914
  %v2940 = vmul.f32 %v2723, %v2919
  %v2941 = vmul.f32 %v2724, %v2924
  %v2942 = vmul.f32 %v2725, %v2929
  %v2943 = vmul.f32 %v2726, %v2934
  %2945 = vset.pattern.permute.xlu0 0
  %2946 = vperm.xlu0 %2945, %v1900
  %v2947 = vpop.permute.xlu0 %2946
  %2950 = vset.pattern.permute.xlu0 0
  %2951 = vperm.xlu0 %2950, %v1901
  %v2952 = vpop.permute.xlu0 %2951
  %2955 = vset.pattern.permute.xlu0 0
  %2956 = vperm.xlu0 %2955, %v1902
  %v2957 = vpop.permute.xlu0 %2956
  %2960 = vset.pattern.permute.xlu0 0
  %2961 = vperm.xlu0 %2960, %v1903
  %v2962 = vpop.permute.xlu0 %2961
  %2965 = vset.pattern.permute.xlu0 0
  %2966 = vperm.xlu0 %2965, %v1904
  %v2967 = vpop.permute.xlu0 %2966
  %2970 = vset.pattern.permute.xlu0 0
  %2971 = vperm.xlu0 %2970, %v1905
  %v2972 = vpop.permute.xlu0 %2971
  %2975 = vset.pattern.permute.xlu0 0
  %2976 = vperm.xlu0 %2975, %v1906
  %v2977 = vpop.permute.xlu0 %2976
  %2980 = vset.pattern.permute.xlu0 0
  %2981 = vperm.xlu0 %2980, %v1907
  %v2982 = vpop.permute.xlu0 %2981
  %v2984 = vadd.f32 %v2936, %v2947
  %v2985 = vadd.f32 %v2937, %v2952
  %v2986 = vadd.f32 %v2938, %v2957
  %v2987 = vadd.f32 %v2939, %v2962
  %v2988 = vadd.f32 %v2940, %v2967
  %v2989 = vadd.f32 %v2941, %v2972
  %v2990 = vadd.f32 %v2942, %v2977
  %v2991 = vadd.f32 %v2943, %v2982
  %vm2992 = vcmp.ge.f32.partialorder %v2984, 0.0
  %vm2993 = vcmp.ge.f32.partialorder %v2985, 0.0
  %vm2994 = vcmp.ge.f32.partialorder %v2986, 0.0
  %vm2995 = vcmp.ge.f32.partialorder %v2987, 0.0
  %vm2996 = vcmp.ge.f32.partialorder %v2988, 0.0
  %vm2997 = vcmp.ge.f32.partialorder %v2989, 0.0
  %vm2998 = vcmp.ge.f32.partialorder %v2990, 0.0
  %vm2999 = vcmp.ge.f32.partialorder %v2991, 0.0
  %v3000 = vmul.f32 %v2984, 0.2
  %v3001 = vmul.f32 %v2985, 0.2
  %v3002 = vmul.f32 %v2986, 0.2
  %v3003 = vmul.f32 %v2987, 0.2
  %v3004 = vmul.f32 %v2988, 0.2
  %v3005 = vmul.f32 %v2989, 0.2
  %v3006 = vmul.f32 %v2990, 0.2
  %v3007 = vmul.f32 %v2991, 0.2
  %v3008 = vsel %vm2992, %v2984, %v3000
  %v3009 = vsel %vm2993, %v2985, %v3001
  %v3010 = vsel %vm2994, %v2986, %v3002
  %v3011 = vsel %vm2995, %v2987, %v3003
  %v3012 = vsel %vm2996, %v2988, %v3004
  %v3013 = vsel %vm2997, %v2989, %v3005
  %v3014 = vsel %vm2998, %v2990, %v3006
  %v3015 = vsel %vm2999, %v2991, %v3007
  %v3016 = vld [vmem:[%s17] sm:$0xff]
  %v3017 = vld [vmem:[%s17 + $0x8] sm:$0xff]
  %v3018 = vld [vmem:[%s17 + $0x10] sm:$0xff]
  %v3019 = vld [vmem:[%s17 + $0x18] sm:$0xff]
  %v3020 = vld [vmem:[%s17 + $0x20] sm:$0xff]
  %v3021 = vld [vmem:[%s17 + $0x28] sm:$0xff]
  %v3022 = vld [vmem:[%s17 + $0x30] sm:$0xff]
  %v3023 = vld [vmem:[%s17 + $0x38] sm:$0xff]
  %v3024 = vld [vmem:[%s17 + $0x40] sm:$0xff]
  %v3025 = vld [vmem:[%s17 + $0x48] sm:$0xff]
  %v3026 = vld [vmem:[%s17 + $0x50] sm:$0xff]
  %v3027 = vld [vmem:[%s17 + $0x58] sm:$0xff]
  %v3028 = vld [vmem:[%s17 + $0x60] sm:$0xff]
  %v3029 = vld [vmem:[%s17 + $0x68] sm:$0xff]
  %v3030 = vld [vmem:[%s17 + $0x70] sm:$0xff]
  %v3031 = vld [vmem:[%s17 + $0x78] sm:$0xff]
  %v3032 = vld [vmem:[%s17 + $0x80] sm:$0xff]
  %v3033 = vld [vmem:[%s17 + $0x88] sm:$0xff]
  %v3034 = vld [vmem:[%s17 + $0x90] sm:$0xff]
  %v3035 = vld [vmem:[%s17 + $0x98] sm:$0xff]
  %v3036 = vld [vmem:[%s17 + $0xa0] sm:$0xff]
  %v3037 = vld [vmem:[%s17 + $0xa8] sm:$0xff]
  %v3038 = vld [vmem:[%s17 + $0xb0] sm:$0xff]
  %v3039 = vld [vmem:[%s17 + $0xb8] sm:$0xff]
  %v3040 = vld [vmem:[%s17 + $0xc0] sm:$0xff]
  %v3041 = vld [vmem:[%s17 + $0xc8] sm:$0xff]
  %v3042 = vld [vmem:[%s17 + $0xd0] sm:$0xff]
  %v3043 = vld [vmem:[%s17 + $0xd8] sm:$0xff]
  %v3044 = vld [vmem:[%s17 + $0xe0] sm:$0xff]
  %v3045 = vld [vmem:[%s17 + $0xe8] sm:$0xff]
  %v3046 = vld [vmem:[%s17 + $0xf0] sm:$0xff]
  %v3047 = vld [vmem:[%s17 + $0xf8] sm:$0xff]
  %v3049 = vsel %vm2541, %v3016, 0
  %v3052 = vsel %vm2541, %v3017, 0
  %v3055 = vsel %vm2541, %v3018, 0
  %v3058 = vsel %vm2541, %v3019, 0
  %v3061 = vsel %vm2541, %v3020, 0
  %v3064 = vsel %vm2541, %v3021, 0
  %v3067 = vsel %vm2541, %v3022, 0
  %v3070 = vsel %vm2541, %v3023, 0
  %v3073 = vsel %vm2541, %v3024, 0
  %v3076 = vsel %vm2541, %v3025, 0
  %v3079 = vsel %vm2541, %v3026, 0
  %v3082 = vsel %vm2541, %v3027, 0
  %v3085 = vsel %vm2541, %v3028, 0
  %v3088 = vsel %vm2541, %v3029, 0
  %v3091 = vsel %vm2541, %v3030, 0
  %v3094 = vsel %vm2541, %v3031, 0
  %v3097 = vsel %vm2541, %v3032, 0
  %v3100 = vsel %vm2541, %v3033, 0
  %v3103 = vsel %vm2541, %v3034, 0
  %v3106 = vsel %vm2541, %v3035, 0
  %v3109 = vsel %vm2541, %v3036, 0
  %v3112 = vsel %vm2541, %v3037, 0
  %v3115 = vsel %vm2541, %v3038, 0
  %v3118 = vsel %vm2541, %v3039, 0
  %v3121 = vsel %vm2541, %v3040, 0
  %v3124 = vsel %vm2541, %v3041, 0
  %v3127 = vsel %vm2541, %v3042, 0
  %v3130 = vsel %vm2541, %v3043, 0
  %v3133 = vsel %vm2541, %v3044, 0
  %v3136 = vsel %vm2541, %v3045, 0
  %v3139 = vsel %vm2541, %v3046, 0
  %v3142 = vsel %vm2541, %v3047, 0
  %3144 = vmatprep.subr.mxu0 0.0
  %3145 = vmatpush1.msra.mxu0 0.0
  %3146 = vmatprep.subr.mxu0 0.0
  %3147 = vmatpush1.msra.mxu0 0.0
  %3148 = vmatprep.subr.mxu0 0.0
  %3149 = vmatpush1.msra.mxu0 0.0
  %3150 = vmatprep.subr.mxu0 0.0
  %3151 = vmatpush1.msra.mxu0 0.0
  %3152 = vmatprep.subr.mxu0 0.0
  %3153 = vmatpush1.msra.mxu0 0.0
  %3154 = vmatprep.subr.mxu0 0.0
  %3155 = vmatpush1.msra.mxu0 0.0
  %3156 = vmatprep.subr.mxu0 0.0
  %3157 = vmatpush1.msra.mxu0 0.0
  %3158 = vmatprep.subr.mxu0 0.0
  %3159 = vmatpush1.msra.mxu0 0.0
  %3160 = vmatprep.subr.mxu0 0.0
  %3161 = vmatpush1.msra.mxu0 %v3015
  %3162 = vmatprep.subr.mxu0 0.0
  %3163 = vmatpush1.msra.mxu0 %v3014
  %3164 = vmatprep.subr.mxu0 0.0
  %3165 = vmatpush1.msra.mxu0 %v3013
  %3166 = vmatprep.subr.mxu0 0.0
  %3167 = vmatpush1.msra.mxu0 %v3012
  %3168 = vmatprep.subr.mxu0 0.0
  %3169 = vmatpush1.msra.mxu0 %v3011
  %3170 = vmatprep.subr.mxu0 0.0
  %3171 = vmatpush1.msra.mxu0 %v3010
  %3172 = vmatprep.subr.mxu0 0.0
  %3173 = vmatpush1.msra.mxu0 %v3009
  %3174 = vmatprep.subr.mxu0 0.0
  %3175 = vmatpush1.msra.mxu0 %v3008
  %3176 = vmatprep.subr.mxu0 0.0
  %3177 = vmatpush2.msra.mxu0 0.0
  %3178 = vmatprep.subr.mxu0 0.0
  %3179 = vmatpush2.msra.mxu0 0.0
  %3180 = vmatprep.subr.mxu0 0.0
  %3181 = vmatpush2.msra.mxu0 0.0
  %3182 = vmatprep.subr.mxu0 0.0
  %3183 = vmatpush2.msra.mxu0 0.0
  %3184 = vmatprep.subr.mxu0 0.0
  %3185 = vmatpush2.msra.mxu0 0.0
  %3186 = vmatprep.subr.mxu0 0.0
  %3187 = vmatpush2.msra.mxu0 0.0
  %3188 = vmatprep.subr.mxu0 0.0
  %3189 = vmatpush2.msra.mxu0 0.0
  %3190 = vmatprep.subr.mxu0 0.0
  %3191 = vmatpush2.msra.mxu0 0.0
  %3192 = vmatprep.subr.mxu0 0.0
  %3193 = vmatpush2.msra.mxu0 0.0
  %3194 = vmatprep.subr.mxu0 0.0
  %3195 = vmatpush2.msra.mxu0 0.0
  %3196 = vmatprep.subr.mxu0 0.0
  %3197 = vmatpush2.msra.mxu0 0.0
  %3198 = vmatprep.subr.mxu0 0.0
  %3199 = vmatpush2.msra.mxu0 0.0
  %3200 = vmatprep.subr.mxu0 0.0
  %3201 = vmatpush2.msra.mxu0 0.0
  %3202 = vmatprep.subr.mxu0 0.0
  %3203 = vmatpush2.msra.mxu0 0.0
  %3204 = vmatprep.subr.mxu0 0.0
  %3205 = vmatpush2.msra.mxu0 0.0
  %3206 = vmatprep.subr.mxu0 0.0
  %3207 = vmatpush2.msra.mxu0 0.0
  %3208 = vmatprep.mubr.f32.mxu0 0.0
  %3209 = vmatmul.mubr.f32.gmra.mxu0 %v3049
  %v3210 = vpop.f32.mrf.mxu0
  %v3211 = vadd.f32 0.0, %v3210
  %v3212 = vpop.f32.mrf.mxu0
  %3213 = vmatprep.mubr.f32.mxu0 0.0
  %3214 = vmatmul.mubr.f32.gmra.mxu0 %v3052
  %v3215 = vpop.f32.mrf.mxu0
  %v3216 = vadd.f32 0.0, %v3215
  %v3217 = vpop.f32.mrf.mxu0
  %3218 = vmatprep.mubr.f32.mxu0 0.0
  %3219 = vmatmul.mubr.f32.gmra.mxu0 %v3055
  %v3220 = vpop.f32.mrf.mxu0
  %v3221 = vadd.f32 0.0, %v3220
  %v3222 = vpop.f32.mrf.mxu0
  %3223 = vmatprep.mubr.f32.mxu0 0.0
  %3224 = vmatmul.mubr.f32.gmra.mxu0 %v3058
  %v3225 = vpop.f32.mrf.mxu0
  %v3226 = vadd.f32 0.0, %v3225
  %v3227 = vpop.f32.mrf.mxu0
  %3228 = vmatprep.mubr.f32.mxu0 0.0
  %3229 = vmatmul.mubr.f32.gmra.mxu0 %v3061
  %v3230 = vpop.f32.mrf.mxu0
  %v3231 = vadd.f32 0.0, %v3230
  %v3232 = vpop.f32.mrf.mxu0
  %3233 = vmatprep.mubr.f32.mxu0 0.0
  %3234 = vmatmul.mubr.f32.gmra.mxu0 %v3064
  %v3235 = vpop.f32.mrf.mxu0
  %v3236 = vadd.f32 0.0, %v3235
  %v3237 = vpop.f32.mrf.mxu0
  %3238 = vmatprep.mubr.f32.mxu0 0.0
  %3239 = vmatmul.mubr.f32.gmra.mxu0 %v3067
  %v3240 = vpop.f32.mrf.mxu0
  %v3241 = vadd.f32 0.0, %v3240
  %v3242 = vpop.f32.mrf.mxu0
  %3243 = vmatprep.mubr.f32.mxu0 0.0
  %3244 = vmatmul.mubr.f32.gmra.mxu0 %v3070
  %v3245 = vpop.f32.mrf.mxu0
  %v3246 = vadd.f32 0.0, %v3245
  %v3247 = vpop.f32.mrf.mxu0
  %3248 = vmatprep.mubr.f32.mxu0 0.0
  %3249 = vmatmul.mubr.f32.gmra.mxu0 %v3073
  %v3250 = vpop.f32.mrf.mxu0
  %v3251 = vadd.f32 0.0, %v3250
  %v3252 = vpop.f32.mrf.mxu0
  %3253 = vmatprep.mubr.f32.mxu0 0.0
  %3254 = vmatmul.mubr.f32.gmra.mxu0 %v3076
  %v3255 = vpop.f32.mrf.mxu0
  %v3256 = vadd.f32 0.0, %v3255
  %v3257 = vpop.f32.mrf.mxu0
  %3258 = vmatprep.mubr.f32.mxu0 0.0
  %3259 = vmatmul.mubr.f32.gmra.mxu0 %v3079
  %v3260 = vpop.f32.mrf.mxu0
  %v3261 = vadd.f32 0.0, %v3260
  %v3262 = vpop.f32.mrf.mxu0
  %3263 = vmatprep.mubr.f32.mxu0 0.0
  %3264 = vmatmul.mubr.f32.gmra.mxu0 %v3082
  %v3265 = vpop.f32.mrf.mxu0
  %v3266 = vadd.f32 0.0, %v3265
  %v3267 = vpop.f32.mrf.mxu0
  %3268 = vmatprep.mubr.f32.mxu0 0.0
  %3269 = vmatmul.mubr.f32.gmra.mxu0 %v3085
  %v3270 = vpop.f32.mrf.mxu0
  %v3271 = vadd.f32 0.0, %v3270
  %v3272 = vpop.f32.mrf.mxu0
  %3273 = vmatprep.mubr.f32.mxu0 0.0
  %3274 = vmatmul.mubr.f32.gmra.mxu0 %v3088
  %v3275 = vpop.f32.mrf.mxu0
  %v3276 = vadd.f32 0.0, %v3275
  %v3277 = vpop.f32.mrf.mxu0
  %3278 = vmatprep.mubr.f32.mxu0 0.0
  %3279 = vmatmul.mubr.f32.gmra.mxu0 %v3091
  %v3280 = vpop.f32.mrf.mxu0
  %v3281 = vadd.f32 0.0, %v3280
  %v3282 = vpop.f32.mrf.mxu0
  %3283 = vmatprep.mubr.f32.mxu0 0.0
  %3284 = vmatmul.mubr.f32.gmra.mxu0 %v3094
  %v3285 = vpop.f32.mrf.mxu0
  %v3286 = vadd.f32 0.0, %v3285
  %v3287 = vpop.f32.mrf.mxu0
  %3288 = vmatprep.mubr.f32.mxu0 0.0
  %3289 = vmatmul.mubr.f32.gmra.mxu0 %v3097
  %v3290 = vpop.f32.mrf.mxu0
  %v3291 = vadd.f32 0.0, %v3290
  %v3292 = vpop.f32.mrf.mxu0
  %3293 = vmatprep.mubr.f32.mxu0 0.0
  %3294 = vmatmul.mubr.f32.gmra.mxu0 %v3100
  %v3295 = vpop.f32.mrf.mxu0
  %v3296 = vadd.f32 0.0, %v3295
  %v3297 = vpop.f32.mrf.mxu0
  %3298 = vmatprep.mubr.f32.mxu0 0.0
  %3299 = vmatmul.mubr.f32.gmra.mxu0 %v3103
  %v3300 = vpop.f32.mrf.mxu0
  %v3301 = vadd.f32 0.0, %v3300
  %v3302 = vpop.f32.mrf.mxu0
  %3303 = vmatprep.mubr.f32.mxu0 0.0
  %3304 = vmatmul.mubr.f32.gmra.mxu0 %v3106
  %v3305 = vpop.f32.mrf.mxu0
  %v3306 = vadd.f32 0.0, %v3305
  %v3307 = vpop.f32.mrf.mxu0
  %3308 = vmatprep.mubr.f32.mxu0 0.0
  %3309 = vmatmul.mubr.f32.gmra.mxu0 %v3109
  %v3310 = vpop.f32.mrf.mxu0
  %v3311 = vadd.f32 0.0, %v3310
  %v3312 = vpop.f32.mrf.mxu0
  %3313 = vmatprep.mubr.f32.mxu0 0.0
  %3314 = vmatmul.mubr.f32.gmra.mxu0 %v3112
  %v3315 = vpop.f32.mrf.mxu0
  %v3316 = vadd.f32 0.0, %v3315
  %v3317 = vpop.f32.mrf.mxu0
  %3318 = vmatprep.mubr.f32.mxu0 0.0
  %3319 = vmatmul.mubr.f32.gmra.mxu0 %v3115
  %v3320 = vpop.f32.mrf.mxu0
  %v3321 = vadd.f32 0.0, %v3320
  %v3322 = vpop.f32.mrf.mxu0
  %3323 = vmatprep.mubr.f32.mxu0 0.0
  %3324 = vmatmul.mubr.f32.gmra.mxu0 %v3118
  %v3325 = vpop.f32.mrf.mxu0
  %v3326 = vadd.f32 0.0, %v3325
  %v3327 = vpop.f32.mrf.mxu0
  %3328 = vmatprep.mubr.f32.mxu0 0.0
  %3329 = vmatmul.mubr.f32.gmra.mxu0 %v3121
  %v3330 = vpop.f32.mrf.mxu0
  %v3331 = vadd.f32 0.0, %v3330
  %v3332 = vpop.f32.mrf.mxu0
  %3333 = vmatprep.mubr.f32.mxu0 0.0
  %3334 = vmatmul.mubr.f32.gmra.mxu0 %v3124
  %v3335 = vpop.f32.mrf.mxu0
  %v3336 = vadd.f32 0.0, %v3335
  %v3337 = vpop.f32.mrf.mxu0
  %3338 = vmatprep.mubr.f32.mxu0 0.0
  %3339 = vmatmul.mubr.f32.gmra.mxu0 %v3127
  %v3340 = vpop.f32.mrf.mxu0
  %v3341 = vadd.f32 0.0, %v3340
  %v3342 = vpop.f32.mrf.mxu0
  %3343 = vmatprep.mubr.f32.mxu0 0.0
  %3344 = vmatmul.mubr.f32.gmra.mxu0 %v3130
  %v3345 = vpop.f32.mrf.mxu0
  %v3346 = vadd.f32 0.0, %v3345
  %v3347 = vpop.f32.mrf.mxu0
  %3348 = vmatprep.mubr.f32.mxu0 0.0
  %3349 = vmatmul.mubr.f32.gmra.mxu0 %v3133
  %v3350 = vpop.f32.mrf.mxu0
  %v3351 = vadd.f32 0.0, %v3350
  %v3352 = vpop.f32.mrf.mxu0
  %3353 = vmatprep.mubr.f32.mxu0 0.0
  %3354 = vmatmul.mubr.f32.gmra.mxu0 %v3136
  %v3355 = vpop.f32.mrf.mxu0
  %v3356 = vadd.f32 0.0, %v3355
  %v3357 = vpop.f32.mrf.mxu0
  %3358 = vmatprep.mubr.f32.mxu0 0.0
  %3359 = vmatmul.mubr.f32.gmra.mxu0 %v3139
  %v3360 = vpop.f32.mrf.mxu0
  %v3361 = vadd.f32 0.0, %v3360
  %v3362 = vpop.f32.mrf.mxu0
  %3363 = vmatprep.mubr.f32.mxu0 0.0
  %3364 = vmatmul.mubr.f32.gmra.mxu0 %v3142
  %v3365 = vpop.f32.mrf.mxu0
  %v3366 = vadd.f32 0.0, %v3365
  %v3367 = vpop.f32.mrf.mxu0
  %3368 = vdwg.mxu0
  %v3369 = vld [vmem:[%s21] sm:$0xff]
  %v3370 = vld [vmem:[%s21 + $0x8] sm:$0xff]
  %v3371 = vld [vmem:[%s21 + $0x10] sm:$0xff]
  %v3372 = vld [vmem:[%s21 + $0x18] sm:$0xff]
  %v3373 = vld [vmem:[%s21 + $0x20] sm:$0xff]
  %v3374 = vld [vmem:[%s21 + $0x28] sm:$0xff]
  %v3375 = vld [vmem:[%s21 + $0x30] sm:$0xff]
  %v3376 = vld [vmem:[%s21 + $0x38] sm:$0xff]
  %v3377 = vld [vmem:[%s21 + $0x40] sm:$0xff]
  %v3378 = vld [vmem:[%s21 + $0x48] sm:$0xff]
  %v3379 = vld [vmem:[%s21 + $0x50] sm:$0xff]
  %v3380 = vld [vmem:[%s21 + $0x58] sm:$0xff]
  %v3381 = vld [vmem:[%s21 + $0x60] sm:$0xff]
  %v3382 = vld [vmem:[%s21 + $0x68] sm:$0xff]
  %v3383 = vld [vmem:[%s21 + $0x70] sm:$0xff]
  %v3384 = vld [vmem:[%s21 + $0x78] sm:$0xff]
  %v3385 = vld [vmem:[%s21 + $0x80] sm:$0xff]
  %v3386 = vld [vmem:[%s21 + $0x88] sm:$0xff]
  %v3387 = vld [vmem:[%s21 + $0x90] sm:$0xff]
  %v3388 = vld [vmem:[%s21 + $0x98] sm:$0xff]
  %v3389 = vld [vmem:[%s21 + $0xa0] sm:$0xff]
  %v3390 = vld [vmem:[%s21 + $0xa8] sm:$0xff]
  %v3391 = vld [vmem:[%s21 + $0xb0] sm:$0xff]
  %v3392 = vld [vmem:[%s21 + $0xb8] sm:$0xff]
  %v3393 = vld [vmem:[%s19] sm:$0xff]
  %v3395 = vsel %vm2516, %v3211, 0
  %v3398 = vsel %vm2516, %v3216, 0
  %v3401 = vsel %vm2516, %v3221, 0
  %v3404 = vsel %vm2516, %v3226, 0
  %v3407 = vsel %vm2516, %v3231, 0
  %v3410 = vsel %vm2516, %v3236, 0
  %v3413 = vsel %vm2516, %v3241, 0
  %v3416 = vsel %vm2516, %v3246, 0
  %3418 = vmatprep.subr.mxu0 0.0
  %3419 = vmatpush1.msra.mxu0 0.0
  %3420 = vmatprep.subr.mxu0 0.0
  %3421 = vmatpush1.msra.mxu0 0.0
  %3422 = vmatprep.subr.mxu0 0.0
  %3423 = vmatpush1.msra.mxu0 0.0
  %3424 = vmatprep.subr.mxu0 0.0
  %3425 = vmatpush1.msra.mxu0 0.0
  %3426 = vmatprep.subr.mxu0 0.0
  %3427 = vmatpush1.msra.mxu0 0.0
  %3428 = vmatprep.subr.mxu0 0.0
  %3429 = vmatpush1.msra.mxu0 0.0
  %3430 = vmatprep.subr.mxu0 0.0
  %3431 = vmatpush1.msra.mxu0 0.0
  %3432 = vmatprep.subr.mxu0 0.0
  %3433 = vmatpush1.msra.mxu0 0.0
  %3434 = vmatprep.subr.mxu0 0.0
  %3435 = vmatpush1.msra.mxu0 0.0
  %3436 = vmatprep.subr.mxu0 0.0
  %3437 = vmatpush1.msra.mxu0 0.0
  %3438 = vmatprep.subr.mxu0 0.0
  %3439 = vmatpush1.msra.mxu0 0.0
  %3440 = vmatprep.subr.mxu0 0.0
  %3441 = vmatpush1.msra.mxu0 0.0
  %3442 = vmatprep.subr.mxu0 0.0
  %3443 = vmatpush1.msra.mxu0 0.0
  %3444 = vmatprep.subr.mxu0 0.0
  %3445 = vmatpush1.msra.mxu0 0.0
  %3446 = vmatprep.subr.mxu0 0.0
  %3447 = vmatpush1.msra.mxu0 0.0
  %3448 = vmatprep.subr.mxu0 0.0
  %3449 = vmatpush1.msra.mxu0 %v3393
  %3450 = vmatprep.subr.mxu0 0.0
  %3451 = vmatpush2.msra.mxu0 0.0
  %3452 = vmatprep.subr.mxu0 0.0
  %3453 = vmatpush2.msra.mxu0 0.0
  %3454 = vmatprep.subr.mxu0 0.0
  %3455 = vmatpush2.msra.mxu0 0.0
  %3456 = vmatprep.subr.mxu0 0.0
  %3457 = vmatpush2.msra.mxu0 0.0
  %3458 = vmatprep.subr.mxu0 0.0
  %3459 = vmatpush2.msra.mxu0 0.0
  %3460 = vmatprep.subr.mxu0 0.0
  %3461 = vmatpush2.msra.mxu0 0.0
  %3462 = vmatprep.subr.mxu0 0.0
  %3463 = vmatpush2.msra.mxu0 0.0
  %3464 = vmatprep.subr.mxu0 0.0
  %3465 = vmatpush2.msra.mxu0 0.0
  %3466 = vmatprep.subr.mxu0 0.0
  %3467 = vmatpush2.msra.mxu0 0.0
  %3468 = vmatprep.subr.mxu0 0.0
  %3469 = vmatpush2.msra.mxu0 0.0
  %3470 = vmatprep.subr.mxu0 0.0
  %3471 = vmatpush2.msra.mxu0 0.0
  %3472 = vmatprep.subr.mxu0 0.0
  %3473 = vmatpush2.msra.mxu0 0.0
  %3474 = vmatprep.subr.mxu0 0.0
  %3475 = vmatpush2.msra.mxu0 0.0
  %3476 = vmatprep.subr.mxu0 0.0
  %3477 = vmatpush2.msra.mxu0 0.0
  %3478 = vmatprep.subr.mxu0 0.0
  %3479 = vmatpush2.msra.mxu0 0.0
  %3480 = vmatprep.subr.mxu0 0.0
  %3481 = vmatpush2.msra.mxu0 0.0
  %3482 = vmatprep.mubr.f32.mxu0 0.0
  %3483 = vmatmul.mubr.f32.gmra.mxu0 %v3395
  %v3484 = vpop.f32.mrf.mxu0
  %v3485 = vadd.f32 0.0, %v3484
  %v3486 = vpop.f32.mrf.mxu0
  %3487 = vmatprep.mubr.f32.mxu0 0.0
  %3488 = vmatmul.mubr.f32.gmra.mxu0 %v3398
  %v3489 = vpop.f32.mrf.mxu0
  %v3490 = vadd.f32 0.0, %v3489
  %v3491 = vpop.f32.mrf.mxu0
  %3492 = vmatprep.mubr.f32.mxu0 0.0
  %3493 = vmatmul.mubr.f32.gmra.mxu0 %v3401
  %v3494 = vpop.f32.mrf.mxu0
  %v3495 = vadd.f32 0.0, %v3494
  %v3496 = vpop.f32.mrf.mxu0
  %3497 = vmatprep.mubr.f32.mxu0 0.0
  %3498 = vmatmul.mubr.f32.gmra.mxu0 %v3404
  %v3499 = vpop.f32.mrf.mxu0
  %v3500 = vadd.f32 0.0, %v3499
  %v3501 = vpop.f32.mrf.mxu0
  %3502 = vmatprep.mubr.f32.mxu0 0.0
  %3503 = vmatmul.mubr.f32.gmra.mxu0 %v3407
  %v3504 = vpop.f32.mrf.mxu0
  %v3505 = vadd.f32 0.0, %v3504
  %v3506 = vpop.f32.mrf.mxu0
  %3507 = vmatprep.mubr.f32.mxu0 0.0
  %3508 = vmatmul.mubr.f32.gmra.mxu0 %v3410
  %v3509 = vpop.f32.mrf.mxu0
  %v3510 = vadd.f32 0.0, %v3509
  %v3511 = vpop.f32.mrf.mxu0
  %3512 = vmatprep.mubr.f32.mxu0 0.0
  %3513 = vmatmul.mubr.f32.gmra.mxu0 %v3413
  %v3514 = vpop.f32.mrf.mxu0
  %v3515 = vadd.f32 0.0, %v3514
  %v3516 = vpop.f32.mrf.mxu0
  %3517 = vmatprep.mubr.f32.mxu0 0.0
  %3518 = vmatmul.mubr.f32.gmra.mxu0 %v3416
  %v3519 = vpop.f32.mrf.mxu0
  %v3520 = vadd.f32 0.0, %v3519
  %v3521 = vpop.f32.mrf.mxu0
  %3522 = vdwg.mxu0
  %3524 = vset.pattern.permute.xlu0 0
  %3525 = vperm.xlu0 %3524, %v3369
  %v3526 = vpop.permute.xlu0 %3525
  %3529 = vset.pattern.permute.xlu0 0
  %3530 = vperm.xlu0 %3529, %v3370
  %v3531 = vpop.permute.xlu0 %3530
  %3534 = vset.pattern.permute.xlu0 0
  %3535 = vperm.xlu0 %3534, %v3371
  %v3536 = vpop.permute.xlu0 %3535
  %3539 = vset.pattern.permute.xlu0 0
  %3540 = vperm.xlu0 %3539, %v3372
  %v3541 = vpop.permute.xlu0 %3540
  %3544 = vset.pattern.permute.xlu0 0
  %3545 = vperm.xlu0 %3544, %v3373
  %v3546 = vpop.permute.xlu0 %3545
  %3549 = vset.pattern.permute.xlu0 0
  %3550 = vperm.xlu0 %3549, %v3374
  %v3551 = vpop.permute.xlu0 %3550
  %3554 = vset.pattern.permute.xlu0 0
  %3555 = vperm.xlu0 %3554, %v3375
  %v3556 = vpop.permute.xlu0 %3555
  %3559 = vset.pattern.permute.xlu0 0
  %3560 = vperm.xlu0 %3559, %v3376
  %v3561 = vpop.permute.xlu0 %3560
  %v3563 = vadd.f32 %v3526, %v3485
  %v3564 = vadd.f32 %v3531, %v3490
  %v3565 = vadd.f32 %v3536, %v3495
  %v3566 = vadd.f32 %v3541, %v3500
  %v3567 = vadd.f32 %v3546, %v3505
  %v3568 = vadd.f32 %v3551, %v3510
  %v3569 = vadd.f32 %v3556, %v3515
  %v3570 = vadd.f32 %v3561, %v3520
  %s3571 = scalar_lea.vmem %s19, 8
  %v3572 = vld [vmem:[%s3571] sm:$0xff]
  %v3574 = vsel %vm2516, %v3251, 0
  %v3577 = vsel %vm2516, %v3256, 0
  %v3580 = vsel %vm2516, %v3261, 0
  %v3583 = vsel %vm2516, %v3266, 0
  %v3586 = vsel %vm2516, %v3271, 0
  %v3589 = vsel %vm2516, %v3276, 0
  %v3592 = vsel %vm2516, %v3281, 0
  %v3595 = vsel %vm2516, %v3286, 0
  %3597 = vmatprep.subr.mxu0 0.0
  %3598 = vmatpush1.msra.mxu0 0.0
  %3599 = vmatprep.subr.mxu0 0.0
  %3600 = vmatpush1.msra.mxu0 0.0
  %3601 = vmatprep.subr.mxu0 0.0
  %3602 = vmatpush1.msra.mxu0 0.0
  %3603 = vmatprep.subr.mxu0 0.0
  %3604 = vmatpush1.msra.mxu0 0.0
  %3605 = vmatprep.subr.mxu0 0.0
  %3606 = vmatpush1.msra.mxu0 0.0
  %3607 = vmatprep.subr.mxu0 0.0
  %3608 = vmatpush1.msra.mxu0 0.0
  %3609 = vmatprep.subr.mxu0 0.0
  %3610 = vmatpush1.msra.mxu0 0.0
  %3611 = vmatprep.subr.mxu0 0.0
  %3612 = vmatpush1.msra.mxu0 0.0
  %3613 = vmatprep.subr.mxu0 0.0
  %3614 = vmatpush1.msra.mxu0 0.0
  %3615 = vmatprep.subr.mxu0 0.0
  %3616 = vmatpush1.msra.mxu0 0.0
  %3617 = vmatprep.subr.mxu0 0.0
  %3618 = vmatpush1.msra.mxu0 0.0
  %3619 = vmatprep.subr.mxu0 0.0
  %3620 = vmatpush1.msra.mxu0 0.0
  %3621 = vmatprep.subr.mxu0 0.0
  %3622 = vmatpush1.msra.mxu0 0.0
  %3623 = vmatprep.subr.mxu0 0.0
  %3624 = vmatpush1.msra.mxu0 0.0
  %3625 = vmatprep.subr.mxu0 0.0
  %3626 = vmatpush1.msra.mxu0 0.0
  %3627 = vmatprep.subr.mxu0 0.0
  %3628 = vmatpush1.msra.mxu0 %v3572
  %3629 = vmatprep.subr.mxu0 0.0
  %3630 = vmatpush2.msra.mxu0 0.0
  %3631 = vmatprep.subr.mxu0 0.0
  %3632 = vmatpush2.msra.mxu0 0.0
  %3633 = vmatprep.subr.mxu0 0.0
  %3634 = vmatpush2.msra.mxu0 0.0
  %3635 = vmatprep.subr.mxu0 0.0
  %3636 = vmatpush2.msra.mxu0 0.0
  %3637 = vmatprep.subr.mxu0 0.0
  %3638 = vmatpush2.msra.mxu0 0.0
  %3639 = vmatprep.subr.mxu0 0.0
  %3640 = vmatpush2.msra.mxu0 0.0
  %3641 = vmatprep.subr.mxu0 0.0
  %3642 = vmatpush2.msra.mxu0 0.0
  %3643 = vmatprep.subr.mxu0 0.0
  %3644 = vmatpush2.msra.mxu0 0.0
  %3645 = vmatprep.subr.mxu0 0.0
  %3646 = vmatpush2.msra.mxu0 0.0
  %3647 = vmatprep.subr.mxu0 0.0
  %3648 = vmatpush2.msra.mxu0 0.0
  %3649 = vmatprep.subr.mxu0 0.0
  %3650 = vmatpush2.msra.mxu0 0.0
  %3651 = vmatprep.subr.mxu0 0.0
  %3652 = vmatpush2.msra.mxu0 0.0
  %3653 = vmatprep.subr.mxu0 0.0
  %3654 = vmatpush2.msra.mxu0 0.0
  %3655 = vmatprep.subr.mxu0 0.0
  %3656 = vmatpush2.msra.mxu0 0.0
  %3657 = vmatprep.subr.mxu0 0.0
  %3658 = vmatpush2.msra.mxu0 0.0
  %3659 = vmatprep.subr.mxu0 0.0
  %3660 = vmatpush2.msra.mxu0 0.0
  %3661 = vmatprep.mubr.f32.mxu0 0.0
  %3662 = vmatmul.mubr.f32.gmra.mxu0 %v3574
  %v3663 = vpop.f32.mrf.mxu0
  %v3664 = vadd.f32 0.0, %v3663
  %v3665 = vpop.f32.mrf.mxu0
  %3666 = vmatprep.mubr.f32.mxu0 0.0
  %3667 = vmatmul.mubr.f32.gmra.mxu0 %v3577
  %v3668 = vpop.f32.mrf.mxu0
  %v3669 = vadd.f32 0.0, %v3668
  %v3670 = vpop.f32.mrf.mxu0
  %3671 = vmatprep.mubr.f32.mxu0 0.0
  %3672 = vmatmul.mubr.f32.gmra.mxu0 %v3580
  %v3673 = vpop.f32.mrf.mxu0
  %v3674 = vadd.f32 0.0, %v3673
  %v3675 = vpop.f32.mrf.mxu0
  %3676 = vmatprep.mubr.f32.mxu0 0.0
  %3677 = vmatmul.mubr.f32.gmra.mxu0 %v3583
  %v3678 = vpop.f32.mrf.mxu0
  %v3679 = vadd.f32 0.0, %v3678
  %v3680 = vpop.f32.mrf.mxu0
  %3681 = vmatprep.mubr.f32.mxu0 0.0
  %3682 = vmatmul.mubr.f32.gmra.mxu0 %v3586
  %v3683 = vpop.f32.mrf.mxu0
  %v3684 = vadd.f32 0.0, %v3683
  %v3685 = vpop.f32.mrf.mxu0
  %3686 = vmatprep.mubr.f32.mxu0 0.0
  %3687 = vmatmul.mubr.f32.gmra.mxu0 %v3589
  %v3688 = vpop.f32.mrf.mxu0
  %v3689 = vadd.f32 0.0, %v3688
  %v3690 = vpop.f32.mrf.mxu0
  %3691 = vmatprep.mubr.f32.mxu0 0.0
  %3692 = vmatmul.mubr.f32.gmra.mxu0 %v3592
  %v3693 = vpop.f32.mrf.mxu0
  %v3694 = vadd.f32 0.0, %v3693
  %v3695 = vpop.f32.mrf.mxu0
  %3696 = vmatprep.mubr.f32.mxu0 0.0
  %3697 = vmatmul.mubr.f32.gmra.mxu0 %v3595
  %v3698 = vpop.f32.mrf.mxu0
  %v3699 = vadd.f32 0.0, %v3698
  %v3700 = vpop.f32.mrf.mxu0
  %3701 = vdwg.mxu0
  %v3702 = vadd.f32 %v3563, %v3664
  %v3703 = vadd.f32 %v3564, %v3669
  %v3704 = vadd.f32 %v3565, %v3674
  %v3705 = vadd.f32 %v3566, %v3679
  %v3706 = vadd.f32 %v3567, %v3684
  %v3707 = vadd.f32 %v3568, %v3689
  %v3708 = vadd.f32 %v3569, %v3694
  %v3709 = vadd.f32 %v3570, %v3699
  %s3710 = scalar_lea.vmem %s19, 16
  %v3711 = vld [vmem:[%s3710] sm:$0xff]
  %v3713 = vsel %vm2516, %v3291, 0
  %v3716 = vsel %vm2516, %v3296, 0
  %v3719 = vsel %vm2516, %v3301, 0
  %v3722 = vsel %vm2516, %v3306, 0
  %v3725 = vsel %vm2516, %v3311, 0
  %v3728 = vsel %vm2516, %v3316, 0
  %v3731 = vsel %vm2516, %v3321, 0
  %v3734 = vsel %vm2516, %v3326, 0
  %3736 = vmatprep.subr.mxu0 0.0
  %3737 = vmatpush1.msra.mxu0 0.0
  %3738 = vmatprep.subr.mxu0 0.0
  %3739 = vmatpush1.msra.mxu0 0.0
  %3740 = vmatprep.subr.mxu0 0.0
  %3741 = vmatpush1.msra.mxu0 0.0
  %3742 = vmatprep.subr.mxu0 0.0
  %3743 = vmatpush1.msra.mxu0 0.0
  %3744 = vmatprep.subr.mxu0 0.0
  %3745 = vmatpush1.msra.mxu0 0.0
  %3746 = vmatprep.subr.mxu0 0.0
  %3747 = vmatpush1.msra.mxu0 0.0
  %3748 = vmatprep.subr.mxu0 0.0
  %3749 = vmatpush1.msra.mxu0 0.0
  %3750 = vmatprep.subr.mxu0 0.0
  %3751 = vmatpush1.msra.mxu0 0.0
  %3752 = vmatprep.subr.mxu0 0.0
  %3753 = vmatpush1.msra.mxu0 0.0
  %3754 = vmatprep.subr.mxu0 0.0
  %3755 = vmatpush1.msra.mxu0 0.0
  %3756 = vmatprep.subr.mxu0 0.0
  %3757 = vmatpush1.msra.mxu0 0.0
  %3758 = vmatprep.subr.mxu0 0.0
  %3759 = vmatpush1.msra.mxu0 0.0
  %3760 = vmatprep.subr.mxu0 0.0
  %3761 = vmatpush1.msra.mxu0 0.0
  %3762 = vmatprep.subr.mxu0 0.0
  %3763 = vmatpush1.msra.mxu0 0.0
  %3764 = vmatprep.subr.mxu0 0.0
  %3765 = vmatpush1.msra.mxu0 0.0
  %3766 = vmatprep.subr.mxu0 0.0
  %3767 = vmatpush1.msra.mxu0 %v3711
  %3768 = vmatprep.subr.mxu0 0.0
  %3769 = vmatpush2.msra.mxu0 0.0
  %3770 = vmatprep.subr.mxu0 0.0
  %3771 = vmatpush2.msra.mxu0 0.0
  %3772 = vmatprep.subr.mxu0 0.0
  %3773 = vmatpush2.msra.mxu0 0.0
  %3774 = vmatprep.subr.mxu0 0.0
  %3775 = vmatpush2.msra.mxu0 0.0
  %3776 = vmatprep.subr.mxu0 0.0
  %3777 = vmatpush2.msra.mxu0 0.0
  %3778 = vmatprep.subr.mxu0 0.0
  %3779 = vmatpush2.msra.mxu0 0.0
  %3780 = vmatprep.subr.mxu0 0.0
  %3781 = vmatpush2.msra.mxu0 0.0
  %3782 = vmatprep.subr.mxu0 0.0
  %3783 = vmatpush2.msra.mxu0 0.0
  %3784 = vmatprep.subr.mxu0 0.0
  %3785 = vmatpush2.msra.mxu0 0.0
  %3786 = vmatprep.subr.mxu0 0.0
  %3787 = vmatpush2.msra.mxu0 0.0
  %3788 = vmatprep.subr.mxu0 0.0
  %3789 = vmatpush2.msra.mxu0 0.0
  %3790 = vmatprep.subr.mxu0 0.0
  %3791 = vmatpush2.msra.mxu0 0.0
  %3792 = vmatprep.subr.mxu0 0.0
  %3793 = vmatpush2.msra.mxu0 0.0
  %3794 = vmatprep.subr.mxu0 0.0
  %3795 = vmatpush2.msra.mxu0 0.0
  %3796 = vmatprep.subr.mxu0 0.0
  %3797 = vmatpush2.msra.mxu0 0.0
  %3798 = vmatprep.subr.mxu0 0.0
  %3799 = vmatpush2.msra.mxu0 0.0
  %3800 = vmatprep.mubr.f32.mxu0 0.0
  %3801 = vmatmul.mubr.f32.gmra.mxu0 %v3713
  %v3802 = vpop.f32.mrf.mxu0
  %v3803 = vadd.f32 0.0, %v3802
  %v3804 = vpop.f32.mrf.mxu0
  %3805 = vmatprep.mubr.f32.mxu0 0.0
  %3806 = vmatmul.mubr.f32.gmra.mxu0 %v3716
  %v3807 = vpop.f32.mrf.mxu0
  %v3808 = vadd.f32 0.0, %v3807
  %v3809 = vpop.f32.mrf.mxu0
  %3810 = vmatprep.mubr.f32.mxu0 0.0
  %3811 = vmatmul.mubr.f32.gmra.mxu0 %v3719
  %v3812 = vpop.f32.mrf.mxu0
  %v3813 = vadd.f32 0.0, %v3812
  %v3814 = vpop.f32.mrf.mxu0
  %3815 = vmatprep.mubr.f32.mxu0 0.0
  %3816 = vmatmul.mubr.f32.gmra.mxu0 %v3722
  %v3817 = vpop.f32.mrf.mxu0
  %v3818 = vadd.f32 0.0, %v3817
  %v3819 = vpop.f32.mrf.mxu0
  %3820 = vmatprep.mubr.f32.mxu0 0.0
  %3821 = vmatmul.mubr.f32.gmra.mxu0 %v3725
  %v3822 = vpop.f32.mrf.mxu0
  %v3823 = vadd.f32 0.0, %v3822
  %v3824 = vpop.f32.mrf.mxu0
  %3825 = vmatprep.mubr.f32.mxu0 0.0
  %3826 = vmatmul.mubr.f32.gmra.mxu0 %v3728
  %v3827 = vpop.f32.mrf.mxu0
  %v3828 = vadd.f32 0.0, %v3827
  %v3829 = vpop.f32.mrf.mxu0
  %3830 = vmatprep.mubr.f32.mxu0 0.0
  %3831 = vmatmul.mubr.f32.gmra.mxu0 %v3731
  %v3832 = vpop.f32.mrf.mxu0
  %v3833 = vadd.f32 0.0, %v3832
  %v3834 = vpop.f32.mrf.mxu0
  %3835 = vmatprep.mubr.f32.mxu0 0.0
  %3836 = vmatmul.mubr.f32.gmra.mxu0 %v3734
  %v3837 = vpop.f32.mrf.mxu0
  %v3838 = vadd.f32 0.0, %v3837
  %v3839 = vpop.f32.mrf.mxu0
  %3840 = vdwg.mxu0
  %v3841 = vadd.f32 %v3702, %v3803
  %v3842 = vadd.f32 %v3703, %v3808
  %v3843 = vadd.f32 %v3704, %v3813
  %v3844 = vadd.f32 %v3705, %v3818
  %v3845 = vadd.f32 %v3706, %v3823
  %v3846 = vadd.f32 %v3707, %v3828
  %v3847 = vadd.f32 %v3708, %v3833
  %v3848 = vadd.f32 %v3709, %v3838
  %s3849 = scalar_lea.vmem %s19, 24
  %v3850 = vld [vmem:[%s3849] sm:$0xff]
  %v3852 = vsel %vm2516, %v3331, 0
  %v3855 = vsel %vm2516, %v3336, 0
  %v3858 = vsel %vm2516, %v3341, 0
  %v3861 = vsel %vm2516, %v3346, 0
  %v3864 = vsel %vm2516, %v3351, 0
  %v3867 = vsel %vm2516, %v3356, 0
  %v3870 = vsel %vm2516, %v3361, 0
  %v3873 = vsel %vm2516, %v3366, 0
  %3875 = vmatprep.subr.mxu0 0.0
  %3876 = vmatpush1.msra.mxu0 0.0
  %3877 = vmatprep.subr.mxu0 0.0
  %3878 = vmatpush1.msra.mxu0 0.0
  %3879 = vmatprep.subr.mxu0 0.0
  %3880 = vmatpush1.msra.mxu0 0.0
  %3881 = vmatprep.subr.mxu0 0.0
  %3882 = vmatpush1.msra.mxu0 0.0
  %3883 = vmatprep.subr.mxu0 0.0
  %3884 = vmatpush1.msra.mxu0 0.0
  %3885 = vmatprep.subr.mxu0 0.0
  %3886 = vmatpush1.msra.mxu0 0.0
  %3887 = vmatprep.subr.mxu0 0.0
  %3888 = vmatpush1.msra.mxu0 0.0
  %3889 = vmatprep.subr.mxu0 0.0
  %3890 = vmatpush1.msra.mxu0 0.0
  %3891 = vmatprep.subr.mxu0 0.0
  %3892 = vmatpush1.msra.mxu0 0.0
  %3893 = vmatprep.subr.mxu0 0.0
  %3894 = vmatpush1.msra.mxu0 0.0
  %3895 = vmatprep.subr.mxu0 0.0
  %3896 = vmatpush1.msra.mxu0 0.0
  %3897 = vmatprep.subr.mxu0 0.0
  %3898 = vmatpush1.msra.mxu0 0.0
  %3899 = vmatprep.subr.mxu0 0.0
  %3900 = vmatpush1.msra.mxu0 0.0
  %3901 = vmatprep.subr.mxu0 0.0
  %3902 = vmatpush1.msra.mxu0 0.0
  %3903 = vmatprep.subr.mxu0 0.0
  %3904 = vmatpush1.msra.mxu0 0.0
  %3905 = vmatprep.subr.mxu0 0.0
  %3906 = vmatpush1.msra.mxu0 %v3850
  %3907 = vmatprep.subr.mxu0 0.0
  %3908 = vmatpush2.msra.mxu0 0.0
  %3909 = vmatprep.subr.mxu0 0.0
  %3910 = vmatpush2.msra.mxu0 0.0
  %3911 = vmatprep.subr.mxu0 0.0
  %3912 = vmatpush2.msra.mxu0 0.0
  %3913 = vmatprep.subr.mxu0 0.0
  %3914 = vmatpush2.msra.mxu0 0.0
  %3915 = vmatprep.subr.mxu0 0.0
  %3916 = vmatpush2.msra.mxu0 0.0
  %3917 = vmatprep.subr.mxu0 0.0
  %3918 = vmatpush2.msra.mxu0 0.0
  %3919 = vmatprep.subr.mxu0 0.0
  %3920 = vmatpush2.msra.mxu0 0.0
  %3921 = vmatprep.subr.mxu0 0.0
  %3922 = vmatpush2.msra.mxu0 0.0
  %3923 = vmatprep.subr.mxu0 0.0
  %3924 = vmatpush2.msra.mxu0 0.0
  %3925 = vmatprep.subr.mxu0 0.0
  %3926 = vmatpush2.msra.mxu0 0.0
  %3927 = vmatprep.subr.mxu0 0.0
  %3928 = vmatpush2.msra.mxu0 0.0
  %3929 = vmatprep.subr.mxu0 0.0
  %3930 = vmatpush2.msra.mxu0 0.0
  %3931 = vmatprep.subr.mxu0 0.0
  %3932 = vmatpush2.msra.mxu0 0.0
  %3933 = vmatprep.subr.mxu0 0.0
  %3934 = vmatpush2.msra.mxu0 0.0
  %3935 = vmatprep.subr.mxu0 0.0
  %3936 = vmatpush2.msra.mxu0 0.0
  %3937 = vmatprep.subr.mxu0 0.0
  %3938 = vmatpush2.msra.mxu0 0.0
  %3939 = vmatprep.mubr.f32.mxu0 0.0
  %3940 = vmatmul.mubr.f32.gmra.mxu0 %v3852
  %v3941 = vpop.f32.mrf.mxu0
  %v3942 = vadd.f32 0.0, %v3941
  %v3943 = vpop.f32.mrf.mxu0
  %3944 = vmatprep.mubr.f32.mxu0 0.0
  %3945 = vmatmul.mubr.f32.gmra.mxu0 %v3855
  %v3946 = vpop.f32.mrf.mxu0
  %v3947 = vadd.f32 0.0, %v3946
  %v3948 = vpop.f32.mrf.mxu0
  %3949 = vmatprep.mubr.f32.mxu0 0.0
  %3950 = vmatmul.mubr.f32.gmra.mxu0 %v3858
  %v3951 = vpop.f32.mrf.mxu0
  %v3952 = vadd.f32 0.0, %v3951
  %v3953 = vpop.f32.mrf.mxu0
  %3954 = vmatprep.mubr.f32.mxu0 0.0
  %3955 = vmatmul.mubr.f32.gmra.mxu0 %v3861
  %v3956 = vpop.f32.mrf.mxu0
  %v3957 = vadd.f32 0.0, %v3956
  %v3958 = vpop.f32.mrf.mxu0
  %3959 = vmatprep.mubr.f32.mxu0 0.0
  %3960 = vmatmul.mubr.f32.gmra.mxu0 %v3864
  %v3961 = vpop.f32.mrf.mxu0
  %v3962 = vadd.f32 0.0, %v3961
  %v3963 = vpop.f32.mrf.mxu0
  %3964 = vmatprep.mubr.f32.mxu0 0.0
  %3965 = vmatmul.mubr.f32.gmra.mxu0 %v3867
  %v3966 = vpop.f32.mrf.mxu0
  %v3967 = vadd.f32 0.0, %v3966
  %v3968 = vpop.f32.mrf.mxu0
  %3969 = vmatprep.mubr.f32.mxu0 0.0
  %3970 = vmatmul.mubr.f32.gmra.mxu0 %v3870
  %v3971 = vpop.f32.mrf.mxu0
  %v3972 = vadd.f32 0.0, %v3971
  %v3973 = vpop.f32.mrf.mxu0
  %3974 = vmatprep.mubr.f32.mxu0 0.0
  %3975 = vmatmul.mubr.f32.gmra.mxu0 %v3873
  %v3976 = vpop.f32.mrf.mxu0
  %v3977 = vadd.f32 0.0, %v3976
  %v3978 = vpop.f32.mrf.mxu0
  %3979 = vdwg.mxu0
  %v3980 = vadd.f32 %v3841, %v3942
  %v3981 = vadd.f32 %v3842, %v3947
  %v3982 = vadd.f32 %v3843, %v3952
  %v3983 = vadd.f32 %v3844, %v3957
  %v3984 = vadd.f32 %v3845, %v3962
  %v3985 = vadd.f32 %v3846, %v3967
  %v3986 = vadd.f32 %v3847, %v3972
  %v3987 = vadd.f32 %v3848, %v3977
  %v3988 = vld [vmem:[%s23] sm:$0xff]
  %v3989 = vld [vmem:[%s23 + $0x8] sm:$0xff]
  %v3990 = vld [vmem:[%s23 + $0x10] sm:$0xff]
  %v3991 = vld [vmem:[%s23 + $0x18] sm:$0xff]
  %v3992 = vld [vmem:[%s23 + $0x20] sm:$0xff]
  %v3993 = vld [vmem:[%s23 + $0x28] sm:$0xff]
  %v3994 = vld [vmem:[%s23 + $0x30] sm:$0xff]
  %v3995 = vld [vmem:[%s23 + $0x38] sm:$0xff]
  %vm3996 = vcmask 31744
  %v3997 = vsel %vm3996, %v3980, 0.0
  %3998 = vadd.xlane.f32.xlu0 %v3997
  %v3999 = vpop.xlane.xlu0 %3998
  %v4000 = vsel %vm3996, %v3981, 0.0
  %4001 = vadd.xlane.f32.xlu0 %v4000
  %v4002 = vpop.xlane.xlu0 %4001
  %v4003 = vsel %vm3996, %v3982, 0.0
  %4004 = vadd.xlane.f32.xlu0 %v4003
  %v4005 = vpop.xlane.xlu0 %4004
  %v4006 = vsel %vm3996, %v3983, 0.0
  %4007 = vadd.xlane.f32.xlu0 %v4006
  %v4008 = vpop.xlane.xlu0 %4007
  %v4009 = vsel %vm3996, %v3984, 0.0
  %4010 = vadd.xlane.f32.xlu0 %v4009
  %v4011 = vpop.xlane.xlu0 %4010
  %v4012 = vsel %vm3996, %v3985, 0.0
  %4013 = vadd.xlane.f32.xlu0 %v4012
  %v4014 = vpop.xlane.xlu0 %4013
  %v4015 = vsel %vm3996, %v3986, 0.0
  %4016 = vadd.xlane.f32.xlu0 %v4015
  %v4017 = vpop.xlane.xlu0 %4016
  %v4018 = vsel %vm3996, %v3987, 0.0
  %4019 = vadd.xlane.f32.xlu0 %v4018
  %v4020 = vpop.xlane.xlu0 %4019
  %v4022 = vsel %vm2541, %v3988, 0
  %v4025 = vsel %vm2541, %v3989, 0
  %v4028 = vsel %vm2541, %v3990, 0
  %v4031 = vsel %vm2541, %v3991, 0
  %v4034 = vsel %vm2541, %v3992, 0
  %v4037 = vsel %vm2541, %v3993, 0
  %v4040 = vsel %vm2541, %v3994, 0
  %v4043 = vsel %vm2541, %v3995, 0
  %4045 = vmatprep.subr.mxu0 0.0
  %4046 = vmatpush1.msra.mxu0 0.0
  %4047 = vmatprep.subr.mxu0 0.0
  %4048 = vmatpush1.msra.mxu0 0.0
  %4049 = vmatprep.subr.mxu0 0.0
  %4050 = vmatpush1.msra.mxu0 0.0
  %4051 = vmatprep.subr.mxu0 0.0
  %4052 = vmatpush1.msra.mxu0 0.0
  %4053 = vmatprep.subr.mxu0 0.0
  %4054 = vmatpush1.msra.mxu0 0.0
  %4055 = vmatprep.subr.mxu0 0.0
  %4056 = vmatpush1.msra.mxu0 0.0
  %4057 = vmatprep.subr.mxu0 0.0
  %4058 = vmatpush1.msra.mxu0 0.0
  %4059 = vmatprep.subr.mxu0 0.0
  %4060 = vmatpush1.msra.mxu0 0.0
  %4061 = vmatprep.subr.mxu0 0.0
  %4062 = vmatpush1.msra.mxu0 %v4020
  %4063 = vmatprep.subr.mxu0 0.0
  %4064 = vmatpush1.msra.mxu0 %v4017
  %4065 = vmatprep.subr.mxu0 0.0
  %4066 = vmatpush1.msra.mxu0 %v4014
  %4067 = vmatprep.subr.mxu0 0.0
  %4068 = vmatpush1.msra.mxu0 %v4011
  %4069 = vmatprep.subr.mxu0 0.0
  %4070 = vmatpush1.msra.mxu0 %v4008
  %4071 = vmatprep.subr.mxu0 0.0
  %4072 = vmatpush1.msra.mxu0 %v4005
  %4073 = vmatprep.subr.mxu0 0.0
  %4074 = vmatpush1.msra.mxu0 %v4002
  %4075 = vmatprep.subr.mxu0 0.0
  %4076 = vmatpush1.msra.mxu0 %v3999
  %4077 = vmatprep.subr.mxu0 0.0
  %4078 = vmatpush2.msra.mxu0 0.0
  %4079 = vmatprep.subr.mxu0 0.0
  %4080 = vmatpush2.msra.mxu0 0.0
  %4081 = vmatprep.subr.mxu0 0.0
  %4082 = vmatpush2.msra.mxu0 0.0
  %4083 = vmatprep.subr.mxu0 0.0
  %4084 = vmatpush2.msra.mxu0 0.0
  %4085 = vmatprep.subr.mxu0 0.0
  %4086 = vmatpush2.msra.mxu0 0.0
  %4087 = vmatprep.subr.mxu0 0.0
  %4088 = vmatpush2.msra.mxu0 0.0
  %4089 = vmatprep.subr.mxu0 0.0
  %4090 = vmatpush2.msra.mxu0 0.0
  %4091 = vmatprep.subr.mxu0 0.0
  %4092 = vmatpush2.msra.mxu0 0.0
  %4093 = vmatprep.subr.mxu0 0.0
  %4094 = vmatpush2.msra.mxu0 0.0
  %4095 = vmatprep.subr.mxu0 0.0
  %4096 = vmatpush2.msra.mxu0 0.0
  %4097 = vmatprep.subr.mxu0 0.0
  %4098 = vmatpush2.msra.mxu0 0.0
  %4099 = vmatprep.subr.mxu0 0.0
  %4100 = vmatpush2.msra.mxu0 0.0
  %4101 = vmatprep.subr.mxu0 0.0
  %4102 = vmatpush2.msra.mxu0 0.0
  %4103 = vmatprep.subr.mxu0 0.0
  %4104 = vmatpush2.msra.mxu0 0.0
  %4105 = vmatprep.subr.mxu0 0.0
  %4106 = vmatpush2.msra.mxu0 0.0
  %4107 = vmatprep.subr.mxu0 0.0
  %4108 = vmatpush2.msra.mxu0 0.0
  %4109 = vmatprep.mubr.f32.mxu0 0.0
  %4110 = vmatmul.mubr.f32.gmra.mxu0 %v4022
  %v4111 = vpop.f32.mrf.mxu0
  %v4112 = vadd.f32 0.0, %v4111
  %v4113 = vpop.f32.mrf.mxu0
  %4114 = vmatprep.mubr.f32.mxu0 0.0
  %4115 = vmatmul.mubr.f32.gmra.mxu0 %v4025
  %v4116 = vpop.f32.mrf.mxu0
  %v4117 = vadd.f32 0.0, %v4116
  %v4118 = vpop.f32.mrf.mxu0
  %4119 = vmatprep.mubr.f32.mxu0 0.0
  %4120 = vmatmul.mubr.f32.gmra.mxu0 %v4028
  %v4121 = vpop.f32.mrf.mxu0
  %v4122 = vadd.f32 0.0, %v4121
  %v4123 = vpop.f32.mrf.mxu0
  %4124 = vmatprep.mubr.f32.mxu0 0.0
  %4125 = vmatmul.mubr.f32.gmra.mxu0 %v4031
  %v4126 = vpop.f32.mrf.mxu0
  %v4127 = vadd.f32 0.0, %v4126
  %v4128 = vpop.f32.mrf.mxu0
  %4129 = vmatprep.mubr.f32.mxu0 0.0
  %4130 = vmatmul.mubr.f32.gmra.mxu0 %v4034
  %v4131 = vpop.f32.mrf.mxu0
  %v4132 = vadd.f32 0.0, %v4131
  %v4133 = vpop.f32.mrf.mxu0
  %4134 = vmatprep.mubr.f32.mxu0 0.0
  %4135 = vmatmul.mubr.f32.gmra.mxu0 %v4037
  %v4136 = vpop.f32.mrf.mxu0
  %v4137 = vadd.f32 0.0, %v4136
  %v4138 = vpop.f32.mrf.mxu0
  %4139 = vmatprep.mubr.f32.mxu0 0.0
  %4140 = vmatmul.mubr.f32.gmra.mxu0 %v4040
  %v4141 = vpop.f32.mrf.mxu0
  %v4142 = vadd.f32 0.0, %v4141
  %v4143 = vpop.f32.mrf.mxu0
  %4144 = vmatprep.mubr.f32.mxu0 0.0
  %4145 = vmatmul.mubr.f32.gmra.mxu0 %v4043
  %v4146 = vpop.f32.mrf.mxu0
  %v4147 = vadd.f32 0.0, %v4146
  %v4148 = vpop.f32.mrf.mxu0
  %4149 = vdwg.mxu0
  %v4150 = vmul.f32 %v4112, 0.03125
  %v4151 = vmul.f32 %v4117, 0.03125
  %v4152 = vmul.f32 %v4122, 0.03125
  %v4153 = vmul.f32 %v4127, 0.03125
  %v4154 = vmul.f32 %v4132, 0.03125
  %v4155 = vmul.f32 %v4137, 0.03125
  %v4156 = vmul.f32 %v4142, 0.03125
  %v4157 = vmul.f32 %v4147, 0.03125
  %4159 = vset.pattern.permute.xlu0 0
  %4160 = vperm.xlu0 %4159, %v4150
  %v4161 = vpop.permute.xlu0 %4160
  %4164 = vset.pattern.permute.xlu0 0
  %4165 = vperm.xlu0 %4164, %v4151
  %v4166 = vpop.permute.xlu0 %4165
  %4169 = vset.pattern.permute.xlu0 0
  %4170 = vperm.xlu0 %4169, %v4152
  %v4171 = vpop.permute.xlu0 %4170
  %4174 = vset.pattern.permute.xlu0 0
  %4175 = vperm.xlu0 %4174, %v4153
  %v4176 = vpop.permute.xlu0 %4175
  %4179 = vset.pattern.permute.xlu0 0
  %4180 = vperm.xlu0 %4179, %v4154
  %v4181 = vpop.permute.xlu0 %4180
  %4184 = vset.pattern.permute.xlu0 0
  %4185 = vperm.xlu0 %4184, %v4155
  %v4186 = vpop.permute.xlu0 %4185
  %4189 = vset.pattern.permute.xlu0 0
  %4190 = vperm.xlu0 %4189, %v4156
  %v4191 = vpop.permute.xlu0 %4190
  %4194 = vset.pattern.permute.xlu0 0
  %4195 = vperm.xlu0 %4194, %v4157
  %v4196 = vpop.permute.xlu0 %4195
  %v4198 = vsub.f32 %v3980, %v4161
  %v4199 = vsub.f32 %v3981, %v4166
  %v4200 = vsub.f32 %v3982, %v4171
  %v4201 = vsub.f32 %v3983, %v4176
  %v4202 = vsub.f32 %v3984, %v4181
  %v4203 = vsub.f32 %v3985, %v4186
  %v4204 = vsub.f32 %v3986, %v4191
  %v4205 = vsub.f32 %v3987, %v4196
  %v4206 = vmul.f32 %v4198, %v4198
  %v4207 = vmul.f32 %v4199, %v4199
  %v4208 = vmul.f32 %v4200, %v4200
  %v4209 = vmul.f32 %v4201, %v4201
  %v4210 = vmul.f32 %v4202, %v4202
  %v4211 = vmul.f32 %v4203, %v4203
  %v4212 = vmul.f32 %v4204, %v4204
  %v4213 = vmul.f32 %v4205, %v4205
  %v4214 = vsel %vm3996, %v4206, 0.0
  %4215 = vadd.xlane.f32.xlu0 %v4214
  %v4216 = vpop.xlane.xlu0 %4215
  %v4217 = vsel %vm3996, %v4207, 0.0
  %4218 = vadd.xlane.f32.xlu0 %v4217
  %v4219 = vpop.xlane.xlu0 %4218
  %v4220 = vsel %vm3996, %v4208, 0.0
  %4221 = vadd.xlane.f32.xlu0 %v4220
  %v4222 = vpop.xlane.xlu0 %4221
  %v4223 = vsel %vm3996, %v4209, 0.0
  %4224 = vadd.xlane.f32.xlu0 %v4223
  %v4225 = vpop.xlane.xlu0 %4224
  %v4226 = vsel %vm3996, %v4210, 0.0
  %4227 = vadd.xlane.f32.xlu0 %v4226
  %v4228 = vpop.xlane.xlu0 %4227
  %v4229 = vsel %vm3996, %v4211, 0.0
  %4230 = vadd.xlane.f32.xlu0 %v4229
  %v4231 = vpop.xlane.xlu0 %4230
  %v4232 = vsel %vm3996, %v4212, 0.0
  %4233 = vadd.xlane.f32.xlu0 %v4232
  %v4234 = vpop.xlane.xlu0 %4233
  %v4235 = vsel %vm3996, %v4213, 0.0
  %4236 = vadd.xlane.f32.xlu0 %v4235
  %v4237 = vpop.xlane.xlu0 %4236
  %4238 = vmatprep.subr.mxu0 0.0
  %4239 = vmatpush1.msra.mxu0 0.0
  %4240 = vmatprep.subr.mxu0 0.0
  %4241 = vmatpush1.msra.mxu0 0.0
  %4242 = vmatprep.subr.mxu0 0.0
  %4243 = vmatpush1.msra.mxu0 0.0
  %4244 = vmatprep.subr.mxu0 0.0
  %4245 = vmatpush1.msra.mxu0 0.0
  %4246 = vmatprep.subr.mxu0 0.0
  %4247 = vmatpush1.msra.mxu0 0.0
  %4248 = vmatprep.subr.mxu0 0.0
  %4249 = vmatpush1.msra.mxu0 0.0
  %4250 = vmatprep.subr.mxu0 0.0
  %4251 = vmatpush1.msra.mxu0 0.0
  %4252 = vmatprep.subr.mxu0 0.0
  %4253 = vmatpush1.msra.mxu0 0.0
  %4254 = vmatprep.subr.mxu0 0.0
  %4255 = vmatpush1.msra.mxu0 %v4237
  %4256 = vmatprep.subr.mxu0 0.0
  %4257 = vmatpush1.msra.mxu0 %v4234
  %4258 = vmatprep.subr.mxu0 0.0
  %4259 = vmatpush1.msra.mxu0 %v4231
  %4260 = vmatprep.subr.mxu0 0.0
  %4261 = vmatpush1.msra.mxu0 %v4228
  %4262 = vmatprep.subr.mxu0 0.0
  %4263 = vmatpush1.msra.mxu0 %v4225
  %4264 = vmatprep.subr.mxu0 0.0
  %4265 = vmatpush1.msra.mxu0 %v4222
  %4266 = vmatprep.subr.mxu0 0.0
  %4267 = vmatpush1.msra.mxu0 %v4219
  %4268 = vmatprep.subr.mxu0 0.0
  %4269 = vmatpush1.msra.mxu0 %v4216
  %4270 = vmatprep.subr.mxu0 0.0
  %4271 = vmatpush2.msra.mxu0 0.0
  %4272 = vmatprep.subr.mxu0 0.0
  %4273 = vmatpush2.msra.mxu0 0.0
  %4274 = vmatprep.subr.mxu0 0.0
  %4275 = vmatpush2.msra.mxu0 0.0
  %4276 = vmatprep.subr.mxu0 0.0
  %4277 = vmatpush2.msra.mxu0 0.0
  %4278 = vmatprep.subr.mxu0 0.0
  %4279 = vmatpush2.msra.mxu0 0.0
  %4280 = vmatprep.subr.mxu0 0.0
  %4281 = vmatpush2.msra.mxu0 0.0
  %4282 = vmatprep.subr.mxu0 0.0
  %4283 = vmatpush2.msra.mxu0 0.0
  %4284 = vmatprep.subr.mxu0 0.0
  %4285 = vmatpush2.msra.mxu0 0.0
  %4286 = vmatprep.subr.mxu0 0.0
  %4287 = vmatpush2.msra.mxu0 0.0
  %4288 = vmatprep.subr.mxu0 0.0
  %4289 = vmatpush2.msra.mxu0 0.0
  %4290 = vmatprep.subr.mxu0 0.0
  %4291 = vmatpush2.msra.mxu0 0.0
  %4292 = vmatprep.subr.mxu0 0.0
  %4293 = vmatpush2.msra.mxu0 0.0
  %4294 = vmatprep.subr.mxu0 0.0
  %4295 = vmatpush2.msra.mxu0 0.0
  %4296 = vmatprep.subr.mxu0 0.0
  %4297 = vmatpush2.msra.mxu0 0.0
  %4298 = vmatprep.subr.mxu0 0.0
  %4299 = vmatpush2.msra.mxu0 0.0
  %4300 = vmatprep.subr.mxu0 0.0
  %4301 = vmatpush2.msra.mxu0 0.0
  %4302 = vmatprep.mubr.f32.mxu0 0.0
  %4303 = vmatmul.mubr.f32.gmra.mxu0 %v4022
  %v4304 = vpop.f32.mrf.mxu0
  %v4305 = vadd.f32 0.0, %v4304
  %v4306 = vpop.f32.mrf.mxu0
  %4307 = vmatprep.mubr.f32.mxu0 0.0
  %4308 = vmatmul.mubr.f32.gmra.mxu0 %v4025
  %v4309 = vpop.f32.mrf.mxu0
  %v4310 = vadd.f32 0.0, %v4309
  %v4311 = vpop.f32.mrf.mxu0
  %4312 = vmatprep.mubr.f32.mxu0 0.0
  %4313 = vmatmul.mubr.f32.gmra.mxu0 %v4028
  %v4314 = vpop.f32.mrf.mxu0
  %v4315 = vadd.f32 0.0, %v4314
  %v4316 = vpop.f32.mrf.mxu0
  %4317 = vmatprep.mubr.f32.mxu0 0.0
  %4318 = vmatmul.mubr.f32.gmra.mxu0 %v4031
  %v4319 = vpop.f32.mrf.mxu0
  %v4320 = vadd.f32 0.0, %v4319
  %v4321 = vpop.f32.mrf.mxu0
  %4322 = vmatprep.mubr.f32.mxu0 0.0
  %4323 = vmatmul.mubr.f32.gmra.mxu0 %v4034
  %v4324 = vpop.f32.mrf.mxu0
  %v4325 = vadd.f32 0.0, %v4324
  %v4326 = vpop.f32.mrf.mxu0
  %4327 = vmatprep.mubr.f32.mxu0 0.0
  %4328 = vmatmul.mubr.f32.gmra.mxu0 %v4037
  %v4329 = vpop.f32.mrf.mxu0
  %v4330 = vadd.f32 0.0, %v4329
  %v4331 = vpop.f32.mrf.mxu0
  %4332 = vmatprep.mubr.f32.mxu0 0.0
  %4333 = vmatmul.mubr.f32.gmra.mxu0 %v4040
  %v4334 = vpop.f32.mrf.mxu0
  %v4335 = vadd.f32 0.0, %v4334
  %v4336 = vpop.f32.mrf.mxu0
  %4337 = vmatprep.mubr.f32.mxu0 0.0
  %4338 = vmatmul.mubr.f32.gmra.mxu0 %v4043
  %v4339 = vpop.f32.mrf.mxu0
  %v4340 = vadd.f32 0.0, %v4339
  %v4341 = vpop.f32.mrf.mxu0
  %4342 = vdwg.mxu0
  %v4343 = vmul.f32 %v4305, 0.03125
  %v4344 = vmul.f32 %v4310, 0.03125
  %v4345 = vmul.f32 %v4315, 0.03125
  %v4346 = vmul.f32 %v4320, 0.03125
  %v4347 = vmul.f32 %v4325, 0.03125
  %v4348 = vmul.f32 %v4330, 0.03125
  %v4349 = vmul.f32 %v4335, 0.03125
  %v4350 = vmul.f32 %v4340, 0.03125
  %v4351 = vadd.f32 %v4343, 1e-05
  %v4352 = vadd.f32 %v4344, 1e-05
  %v4353 = vadd.f32 %v4345, 1e-05
  %v4354 = vadd.f32 %v4346, 1e-05
  %v4355 = vadd.f32 %v4347, 1e-05
  %v4356 = vadd.f32 %v4348, 1e-05
  %v4357 = vadd.f32 %v4349, 1e-05
  %v4358 = vadd.f32 %v4350, 1e-05
  %v4359 = vrsqrt.pop %v4351
  %v4360 = vrsqrt.pop %v4352
  %v4361 = vrsqrt.pop %v4353
  %v4362 = vrsqrt.pop %v4354
  %v4363 = vrsqrt.pop %v4355
  %v4364 = vrsqrt.pop %v4356
  %v4365 = vrsqrt.pop %v4357
  %v4366 = vrsqrt.pop %v4358
  %v4367 = vmul.f32 %v4359, %v3377
  %v4368 = vmul.f32 %v4360, %v3378
  %v4369 = vmul.f32 %v4361, %v3379
  %v4370 = vmul.f32 %v4362, %v3380
  %v4371 = vmul.f32 %v4363, %v3381
  %v4372 = vmul.f32 %v4364, %v3382
  %v4373 = vmul.f32 %v4365, %v3383
  %v4374 = vmul.f32 %v4366, %v3384
  %4376 = vset.pattern.permute.xlu0 0
  %4377 = vperm.xlu0 %4376, %v4367
  %v4378 = vpop.permute.xlu0 %4377
  %4381 = vset.pattern.permute.xlu0 0
  %4382 = vperm.xlu0 %4381, %v4368
  %v4383 = vpop.permute.xlu0 %4382
  %4386 = vset.pattern.permute.xlu0 0
  %4387 = vperm.xlu0 %4386, %v4369
  %v4388 = vpop.permute.xlu0 %4387
  %4391 = vset.pattern.permute.xlu0 0
  %4392 = vperm.xlu0 %4391, %v4370
  %v4393 = vpop.permute.xlu0 %4392
  %4396 = vset.pattern.permute.xlu0 0
  %4397 = vperm.xlu0 %4396, %v4371
  %v4398 = vpop.permute.xlu0 %4397
  %4401 = vset.pattern.permute.xlu0 0
  %4402 = vperm.xlu0 %4401, %v4372
  %v4403 = vpop.permute.xlu0 %4402
  %4406 = vset.pattern.permute.xlu0 0
  %4407 = vperm.xlu0 %4406, %v4373
  %v4408 = vpop.permute.xlu0 %4407
  %4411 = vset.pattern.permute.xlu0 0
  %4412 = vperm.xlu0 %4411, %v4374
  %v4413 = vpop.permute.xlu0 %4412
  %v4415 = vmul.f32 %v4198, %v4378
  %v4416 = vmul.f32 %v4199, %v4383
  %v4417 = vmul.f32 %v4200, %v4388
  %v4418 = vmul.f32 %v4201, %v4393
  %v4419 = vmul.f32 %v4202, %v4398
  %v4420 = vmul.f32 %v4203, %v4403
  %v4421 = vmul.f32 %v4204, %v4408
  %v4422 = vmul.f32 %v4205, %v4413
  %4424 = vset.pattern.permute.xlu0 0
  %4425 = vperm.xlu0 %4424, %v3385
  %v4426 = vpop.permute.xlu0 %4425
  %4429 = vset.pattern.permute.xlu0 0
  %4430 = vperm.xlu0 %4429, %v3386
  %v4431 = vpop.permute.xlu0 %4430
  %4434 = vset.pattern.permute.xlu0 0
  %4435 = vperm.xlu0 %4434, %v3387
  %v4436 = vpop.permute.xlu0 %4435
  %4439 = vset.pattern.permute.xlu0 0
  %4440 = vperm.xlu0 %4439, %v3388
  %v4441 = vpop.permute.xlu0 %4440
  %4444 = vset.pattern.permute.xlu0 0
  %4445 = vperm.xlu0 %4444, %v3389
  %v4446 = vpop.permute.xlu0 %4445
  %4449 = vset.pattern.permute.xlu0 0
  %4450 = vperm.xlu0 %4449, %v3390
  %v4451 = vpop.permute.xlu0 %4450
  %4454 = vset.pattern.permute.xlu0 0
  %4455 = vperm.xlu0 %4454, %v3391
  %v4456 = vpop.permute.xlu0 %4455
  %4459 = vset.pattern.permute.xlu0 0
  %4460 = vperm.xlu0 %4459, %v3392
  %v4461 = vpop.permute.xlu0 %4460
  %v4463 = vadd.f32 %v4415, %v4426
  %v4464 = vadd.f32 %v4416, %v4431
  %v4465 = vadd.f32 %v4417, %v4436
  %v4466 = vadd.f32 %v4418, %v4441
  %v4467 = vadd.f32 %v4419, %v4446
  %v4468 = vadd.f32 %v4420, %v4451
  %v4469 = vadd.f32 %v4421, %v4456
  %v4470 = vadd.f32 %v4422, %v4461
  %vm4471 = vcmp.ge.f32.partialorder %v4463, 0.0
  %vm4472 = vcmp.ge.f32.partialorder %v4464, 0.0
  %vm4473 = vcmp.ge.f32.partialorder %v4465, 0.0
  %vm4474 = vcmp.ge.f32.partialorder %v4466, 0.0
  %vm4475 = vcmp.ge.f32.partialorder %v4467, 0.0
  %vm4476 = vcmp.ge.f32.partialorder %v4468, 0.0
  %vm4477 = vcmp.ge.f32.partialorder %v4469, 0.0
  %vm4478 = vcmp.ge.f32.partialorder %v4470, 0.0
  %v4479 = vmul.f32 %v4463, 0.2
  %v4480 = vmul.f32 %v4464, 0.2
  %v4481 = vmul.f32 %v4465, 0.2
  %v4482 = vmul.f32 %v4466, 0.2
  %v4483 = vmul.f32 %v4467, 0.2
  %v4484 = vmul.f32 %v4468, 0.2
  %v4485 = vmul.f32 %v4469, 0.2
  %v4486 = vmul.f32 %v4470, 0.2
  %v4487 = vsel %vm4471, %v4463, %v4479
  %v4488 = vsel %vm4472, %v4464, %v4480
  %v4489 = vsel %vm4473, %v4465, %v4481
  %v4490 = vsel %vm4474, %v4466, %v4482
  %v4491 = vsel %vm4475, %v4467, %v4483
  %v4492 = vsel %vm4476, %v4468, %v4484
  %v4493 = vsel %vm4477, %v4469, %v4485
  %v4494 = vsel %vm4478, %v4470, %v4486
  %v4495 = vld [vmem:[%s25] sm:$0xff]
  %v4496 = vld [vmem:[%s25 + $0x8] sm:$0xff]
  %v4497 = vld [vmem:[%s25 + $0x10] sm:$0xff]
  %v4498 = vld [vmem:[%s25 + $0x18] sm:$0xff]
  %v4499 = vld [vmem:[%s25 + $0x20] sm:$0xff]
  %v4500 = vld [vmem:[%s25 + $0x28] sm:$0xff]
  %v4501 = vld [vmem:[%s25 + $0x30] sm:$0xff]
  %v4502 = vld [vmem:[%s25 + $0x38] sm:$0xff]
  %v4503 = vld [vmem:[%s25 + $0x40] sm:$0xff]
  %v4504 = vld [vmem:[%s25 + $0x48] sm:$0xff]
  %v4505 = vld [vmem:[%s25 + $0x50] sm:$0xff]
  %v4506 = vld [vmem:[%s25 + $0x58] sm:$0xff]
  %v4507 = vld [vmem:[%s25 + $0x60] sm:$0xff]
  %v4508 = vld [vmem:[%s25 + $0x68] sm:$0xff]
  %v4509 = vld [vmem:[%s25 + $0x70] sm:$0xff]
  %v4510 = vld [vmem:[%s25 + $0x78] sm:$0xff]
  %v4512 = vsel %vm2541, %v4495, 0
  %v4515 = vsel %vm2541, %v4496, 0
  %v4518 = vsel %vm2541, %v4497, 0
  %v4521 = vsel %vm2541, %v4498, 0
  %v4524 = vsel %vm2541, %v4499, 0
  %v4527 = vsel %vm2541, %v4500, 0
  %v4530 = vsel %vm2541, %v4501, 0
  %v4533 = vsel %vm2541, %v4502, 0
  %v4536 = vsel %vm2541, %v4503, 0
  %v4539 = vsel %vm2541, %v4504, 0
  %v4542 = vsel %vm2541, %v4505, 0
  %v4545 = vsel %vm2541, %v4506, 0
  %v4548 = vsel %vm2541, %v4507, 0
  %v4551 = vsel %vm2541, %v4508, 0
  %v4554 = vsel %vm2541, %v4509, 0
  %v4557 = vsel %vm2541, %v4510, 0
  %4559 = vmatprep.subr.mxu0 0.0
  %4560 = vmatpush1.msra.mxu0 0.0
  %4561 = vmatprep.subr.mxu0 0.0
  %4562 = vmatpush1.msra.mxu0 0.0
  %4563 = vmatprep.subr.mxu0 0.0
  %4564 = vmatpush1.msra.mxu0 0.0
  %4565 = vmatprep.subr.mxu0 0.0
  %4566 = vmatpush1.msra.mxu0 0.0
  %4567 = vmatprep.subr.mxu0 0.0
  %4568 = vmatpush1.msra.mxu0 0.0
  %4569 = vmatprep.subr.mxu0 0.0
  %4570 = vmatpush1.msra.mxu0 0.0
  %4571 = vmatprep.subr.mxu0 0.0
  %4572 = vmatpush1.msra.mxu0 0.0
  %4573 = vmatprep.subr.mxu0 0.0
  %4574 = vmatpush1.msra.mxu0 0.0
  %4575 = vmatprep.subr.mxu0 0.0
  %4576 = vmatpush1.msra.mxu0 %v4494
  %4577 = vmatprep.subr.mxu0 0.0
  %4578 = vmatpush1.msra.mxu0 %v4493
  %4579 = vmatprep.subr.mxu0 0.0
  %4580 = vmatpush1.msra.mxu0 %v4492
  %4581 = vmatprep.subr.mxu0 0.0
  %4582 = vmatpush1.msra.mxu0 %v4491
  %4583 = vmatprep.subr.mxu0 0.0
  %4584 = vmatpush1.msra.mxu0 %v4490
  %4585 = vmatprep.subr.mxu0 0.0
  %4586 = vmatpush1.msra.mxu0 %v4489
  %4587 = vmatprep.subr.mxu0 0.0
  %4588 = vmatpush1.msra.mxu0 %v4488
  %4589 = vmatprep.subr.mxu0 0.0
  %4590 = vmatpush1.msra.mxu0 %v4487
  %4591 = vmatprep.subr.mxu0 0.0
  %4592 = vmatpush2.msra.mxu0 0.0
  %4593 = vmatprep.subr.mxu0 0.0
  %4594 = vmatpush2.msra.mxu0 0.0
  %4595 = vmatprep.subr.mxu0 0.0
  %4596 = vmatpush2.msra.mxu0 0.0
  %4597 = vmatprep.subr.mxu0 0.0
  %4598 = vmatpush2.msra.mxu0 0.0
  %4599 = vmatprep.subr.mxu0 0.0
  %4600 = vmatpush2.msra.mxu0 0.0
  %4601 = vmatprep.subr.mxu0 0.0
  %4602 = vmatpush2.msra.mxu0 0.0
  %4603 = vmatprep.subr.mxu0 0.0
  %4604 = vmatpush2.msra.mxu0 0.0
  %4605 = vmatprep.subr.mxu0 0.0
  %4606 = vmatpush2.msra.mxu0 0.0
  %4607 = vmatprep.subr.mxu0 0.0
  %4608 = vmatpush2.msra.mxu0 0.0
  %4609 = vmatprep.subr.mxu0 0.0
  %4610 = vmatpush2.msra.mxu0 0.0
  %4611 = vmatprep.subr.mxu0 0.0
  %4612 = vmatpush2.msra.mxu0 0.0
  %4613 = vmatprep.subr.mxu0 0.0
  %4614 = vmatpush2.msra.mxu0 0.0
  %4615 = vmatprep.subr.mxu0 0.0
  %4616 = vmatpush2.msra.mxu0 0.0
  %4617 = vmatprep.subr.mxu0 0.0
  %4618 = vmatpush2.msra.mxu0 0.0
  %4619 = vmatprep.subr.mxu0 0.0
  %4620 = vmatpush2.msra.mxu0 0.0
  %4621 = vmatprep.subr.mxu0 0.0
  %4622 = vmatpush2.msra.mxu0 0.0
  %4623 = vmatprep.mubr.f32.mxu0 0.0
  %4624 = vmatmul.mubr.f32.gmra.mxu0 %v4512
  %v4625 = vpop.f32.mrf.mxu0
  %v4626 = vadd.f32 0.0, %v4625
  %v4627 = vpop.f32.mrf.mxu0
  %4628 = vmatprep.mubr.f32.mxu0 0.0
  %4629 = vmatmul.mubr.f32.gmra.mxu0 %v4515
  %v4630 = vpop.f32.mrf.mxu0
  %v4631 = vadd.f32 0.0, %v4630
  %v4632 = vpop.f32.mrf.mxu0
  %4633 = vmatprep.mubr.f32.mxu0 0.0
  %4634 = vmatmul.mubr.f32.gmra.mxu0 %v4518
  %v4635 = vpop.f32.mrf.mxu0
  %v4636 = vadd.f32 0.0, %v4635
  %v4637 = vpop.f32.mrf.mxu0
  %4638 = vmatprep.mubr.f32.mxu0 0.0
  %4639 = vmatmul.mubr.f32.gmra.mxu0 %v4521
  %v4640 = vpop.f32.mrf.mxu0
  %v4641 = vadd.f32 0.0, %v4640
  %v4642 = vpop.f32.mrf.mxu0
  %4643 = vmatprep.mubr.f32.mxu0 0.0
  %4644 = vmatmul.mubr.f32.gmra.mxu0 %v4524
  %v4645 = vpop.f32.mrf.mxu0
  %v4646 = vadd.f32 0.0, %v4645
  %v4647 = vpop.f32.mrf.mxu0
  %4648 = vmatprep.mubr.f32.mxu0 0.0
  %4649 = vmatmul.mubr.f32.gmra.mxu0 %v4527
  %v4650 = vpop.f32.mrf.mxu0
  %v4651 = vadd.f32 0.0, %v4650
  %v4652 = vpop.f32.mrf.mxu0
  %4653 = vmatprep.mubr.f32.mxu0 0.0
  %4654 = vmatmul.mubr.f32.gmra.mxu0 %v4530
  %v4655 = vpop.f32.mrf.mxu0
  %v4656 = vadd.f32 0.0, %v4655
  %v4657 = vpop.f32.mrf.mxu0
  %4658 = vmatprep.mubr.f32.mxu0 0.0
  %4659 = vmatmul.mubr.f32.gmra.mxu0 %v4533
  %v4660 = vpop.f32.mrf.mxu0
  %v4661 = vadd.f32 0.0, %v4660
  %v4662 = vpop.f32.mrf.mxu0
  %4663 = vmatprep.mubr.f32.mxu0 0.0
  %4664 = vmatmul.mubr.f32.gmra.mxu0 %v4536
  %v4665 = vpop.f32.mrf.mxu0
  %v4666 = vadd.f32 0.0, %v4665
  %v4667 = vpop.f32.mrf.mxu0
  %4668 = vmatprep.mubr.f32.mxu0 0.0
  %4669 = vmatmul.mubr.f32.gmra.mxu0 %v4539
  %v4670 = vpop.f32.mrf.mxu0
  %v4671 = vadd.f32 0.0, %v4670
  %v4672 = vpop.f32.mrf.mxu0
  %4673 = vmatprep.mubr.f32.mxu0 0.0
  %4674 = vmatmul.mubr.f32.gmra.mxu0 %v4542
  %v4675 = vpop.f32.mrf.mxu0
  %v4676 = vadd.f32 0.0, %v4675
  %v4677 = vpop.f32.mrf.mxu0
  %4678 = vmatprep.mubr.f32.mxu0 0.0
  %4679 = vmatmul.mubr.f32.gmra.mxu0 %v4545
  %v4680 = vpop.f32.mrf.mxu0
  %v4681 = vadd.f32 0.0, %v4680
  %v4682 = vpop.f32.mrf.mxu0
  %4683 = vmatprep.mubr.f32.mxu0 0.0
  %4684 = vmatmul.mubr.f32.gmra.mxu0 %v4548
  %v4685 = vpop.f32.mrf.mxu0
  %v4686 = vadd.f32 0.0, %v4685
  %v4687 = vpop.f32.mrf.mxu0
  %4688 = vmatprep.mubr.f32.mxu0 0.0
  %4689 = vmatmul.mubr.f32.gmra.mxu0 %v4551
  %v4690 = vpop.f32.mrf.mxu0
  %v4691 = vadd.f32 0.0, %v4690
  %v4692 = vpop.f32.mrf.mxu0
  %4693 = vmatprep.mubr.f32.mxu0 0.0
  %4694 = vmatmul.mubr.f32.gmra.mxu0 %v4554
  %v4695 = vpop.f32.mrf.mxu0
  %v4696 = vadd.f32 0.0, %v4695
  %v4697 = vpop.f32.mrf.mxu0
  %4698 = vmatprep.mubr.f32.mxu0 0.0
  %4699 = vmatmul.mubr.f32.gmra.mxu0 %v4557
  %v4700 = vpop.f32.mrf.mxu0
  %v4701 = vadd.f32 0.0, %v4700
  %v4702 = vpop.f32.mrf.mxu0
  %4703 = vdwg.mxu0
  %v4704 = vld [vmem:[%s29] sm:$0xff]
  %v4705 = vld [vmem:[%s29 + $0x8] sm:$0xff]
  %v4706 = vld [vmem:[%s29 + $0x10] sm:$0xff]
  %v4707 = vld [vmem:[%s29 + $0x18] sm:$0xff]
  %v4708 = vld [vmem:[%s29 + $0x20] sm:$0xff]
  %v4709 = vld [vmem:[%s29 + $0x28] sm:$0xff]
  %v4710 = vld [vmem:[%s29 + $0x30] sm:$0xff]
  %v4711 = vld [vmem:[%s29 + $0x38] sm:$0xff]
  %v4712 = vld [vmem:[%s29 + $0x40] sm:$0xff]
  %v4713 = vld [vmem:[%s29 + $0x48] sm:$0xff]
  %v4714 = vld [vmem:[%s29 + $0x50] sm:$0xff]
  %v4715 = vld [vmem:[%s29 + $0x58] sm:$0xff]
  %v4716 = vld [vmem:[%s27] sm:$0xf]
  %v4718 = vsel %vm3996, %v4626, 0
  %v4721 = vsel %vm3996, %v4631, 0
  %v4724 = vsel %vm3996, %v4636, 0
  %v4727 = vsel %vm3996, %v4641, 0
  %vm4729 = vcmask 1043456
  %v4731 = vsel %vm4729, %v4716, 0
  %4733 = vmatprep.subr.mxu0 0.0
  %4734 = vmatpush1.msra.mxu0 0.0
  %4735 = vmatprep.subr.mxu0 0.0
  %4736 = vmatpush1.msra.mxu0 0.0
  %4737 = vmatprep.subr.mxu0 0.0
  %4738 = vmatpush1.msra.mxu0 0.0
  %4739 = vmatprep.subr.mxu0 0.0
  %4740 = vmatpush1.msra.mxu0 0.0
  %4741 = vmatprep.subr.mxu0 0.0
  %4742 = vmatpush1.msra.mxu0 0.0
  %4743 = vmatprep.subr.mxu0 0.0
  %4744 = vmatpush1.msra.mxu0 0.0
  %4745 = vmatprep.subr.mxu0 0.0
  %4746 = vmatpush1.msra.mxu0 0.0
  %4747 = vmatprep.subr.mxu0 0.0
  %4748 = vmatpush1.msra.mxu0 0.0
  %4749 = vmatprep.subr.mxu0 0.0
  %4750 = vmatpush1.msra.mxu0 0.0
  %4751 = vmatprep.subr.mxu0 0.0
  %4752 = vmatpush1.msra.mxu0 0.0
  %4753 = vmatprep.subr.mxu0 0.0
  %4754 = vmatpush1.msra.mxu0 0.0
  %4755 = vmatprep.subr.mxu0 0.0
  %4756 = vmatpush1.msra.mxu0 0.0
  %4757 = vmatprep.subr.mxu0 0.0
  %4758 = vmatpush1.msra.mxu0 0.0
  %4759 = vmatprep.subr.mxu0 0.0
  %4760 = vmatpush1.msra.mxu0 0.0
  %4761 = vmatprep.subr.mxu0 0.0
  %4762 = vmatpush1.msra.mxu0 0.0
  %4763 = vmatprep.subr.mxu0 0.0
  %4764 = vmatpush1.msra.mxu0 %v4731
  %4765 = vmatprep.subr.mxu0 0.0
  %4766 = vmatpush2.msra.mxu0 0.0
  %4767 = vmatprep.subr.mxu0 0.0
  %4768 = vmatpush2.msra.mxu0 0.0
  %4769 = vmatprep.subr.mxu0 0.0
  %4770 = vmatpush2.msra.mxu0 0.0
  %4771 = vmatprep.subr.mxu0 0.0
  %4772 = vmatpush2.msra.mxu0 0.0
  %4773 = vmatprep.subr.mxu0 0.0
  %4774 = vmatpush2.msra.mxu0 0.0
  %4775 = vmatprep.subr.mxu0 0.0
  %4776 = vmatpush2.msra.mxu0 0.0
  %4777 = vmatprep.subr.mxu0 0.0
  %4778 = vmatpush2.msra.mxu0 0.0
  %4779 = vmatprep.subr.mxu0 0.0
  %4780 = vmatpush2.msra.mxu0 0.0
  %4781 = vmatprep.subr.mxu0 0.0
  %4782 = vmatpush2.msra.mxu0 0.0
  %4783 = vmatprep.subr.mxu0 0.0
  %4784 = vmatpush2.msra.mxu0 0.0
  %4785 = vmatprep.subr.mxu0 0.0
  %4786 = vmatpush2.msra.mxu0 0.0
  %4787 = vmatprep.subr.mxu0 0.0
  %4788 = vmatpush2.msra.mxu0 0.0
  %4789 = vmatprep.subr.mxu0 0.0
  %4790 = vmatpush2.msra.mxu0 0.0
  %4791 = vmatprep.subr.mxu0 0.0
  %4792 = vmatpush2.msra.mxu0 0.0
  %4793 = vmatprep.subr.mxu0 0.0
  %4794 = vmatpush2.msra.mxu0 0.0
  %4795 = vmatprep.subr.mxu0 0.0
  %4796 = vmatpush2.msra.mxu0 0.0
  %4797 = vmatprep.mubr.f32.mxu0 0.0
  %4798 = vmatmul.mubr.f32.gmra.mxu0 %v4718
  %v4799 = vpop.f32.mrf.mxu0
  %v4800 = vadd.f32 0.0, %v4799
  %v4801 = vpop.f32.mrf.mxu0
  %4802 = vmatprep.mubr.f32.mxu0 0.0
  %4803 = vmatmul.mubr.f32.gmra.mxu0 %v4721
  %v4804 = vpop.f32.mrf.mxu0
  %v4805 = vadd.f32 0.0, %v4804
  %v4806 = vpop.f32.mrf.mxu0
  %4807 = vmatprep.mubr.f32.mxu0 0.0
  %4808 = vmatmul.mubr.f32.gmra.mxu0 %v4724
  %v4809 = vpop.f32.mrf.mxu0
  %v4810 = vadd.f32 0.0, %v4809
  %v4811 = vpop.f32.mrf.mxu0
  %4812 = vmatprep.mubr.f32.mxu0 0.0
  %4813 = vmatmul.mubr.f32.gmra.mxu0 %v4727
  %v4814 = vpop.f32.mrf.mxu0
  %v4815 = vadd.f32 0.0, %v4814
  %v4816 = vpop.f32.mrf.mxu0
  %4817 = vdwg.mxu0
  %4819 = vset.pattern.permute.xlu0 0
  %4820 = vperm.xlu0 %4819, %v4704
  %v4821 = vpop.permute.xlu0 %4820
  %4824 = vset.pattern.permute.xlu0 0
  %4825 = vperm.xlu0 %4824, %v4705
  %v4826 = vpop.permute.xlu0 %4825
  %4829 = vset.pattern.permute.xlu0 0
  %4830 = vperm.xlu0 %4829, %v4706
  %v4831 = vpop.permute.xlu0 %4830
  %4834 = vset.pattern.permute.xlu0 0
  %4835 = vperm.xlu0 %4834, %v4707
  %v4836 = vpop.permute.xlu0 %4835
  %v4838 = vadd.f32 %v4821, %v4800
  %v4839 = vadd.f32 %v4826, %v4805
  %v4840 = vadd.f32 %v4831, %v4810
  %v4841 = vadd.f32 %v4836, %v4815
  %s4842 = scalar_lea.vmem %s27, 4
  %v4843 = vld [vmem:[%s4842] sm:$0xf]
  %v4845 = vsel %vm3996, %v4646, 0
  %v4848 = vsel %vm3996, %v4651, 0
  %v4851 = vsel %vm3996, %v4656, 0
  %v4854 = vsel %vm3996, %v4661, 0
  %v4857 = vsel %vm4729, %v4843, 0
  %4859 = vmatprep.subr.mxu0 0.0
  %4860 = vmatpush1.msra.mxu0 0.0
  %4861 = vmatprep.subr.mxu0 0.0
  %4862 = vmatpush1.msra.mxu0 0.0
  %4863 = vmatprep.subr.mxu0 0.0
  %4864 = vmatpush1.msra.mxu0 0.0
  %4865 = vmatprep.subr.mxu0 0.0
  %4866 = vmatpush1.msra.mxu0 0.0
  %4867 = vmatprep.subr.mxu0 0.0
  %4868 = vmatpush1.msra.mxu0 0.0
  %4869 = vmatprep.subr.mxu0 0.0
  %4870 = vmatpush1.msra.mxu0 0.0
  %4871 = vmatprep.subr.mxu0 0.0
  %4872 = vmatpush1.msra.mxu0 0.0
  %4873 = vmatprep.subr.mxu0 0.0
  %4874 = vmatpush1.msra.mxu0 0.0
  %4875 = vmatprep.subr.mxu0 0.0
  %4876 = vmatpush1.msra.mxu0 0.0
  %4877 = vmatprep.subr.mxu0 0.0
  %4878 = vmatpush1.msra.mxu0 0.0
  %4879 = vmatprep.subr.mxu0 0.0
  %4880 = vmatpush1.msra.mxu0 0.0
  %4881 = vmatprep.subr.mxu0 0.0
  %4882 = vmatpush1.msra.mxu0 0.0
  %4883 = vmatprep.subr.mxu0 0.0
  %4884 = vmatpush1.msra.mxu0 0.0
  %4885 = vmatprep.subr.mxu0 0.0
  %4886 = vmatpush1.msra.mxu0 0.0
  %4887 = vmatprep.subr.mxu0 0.0
  %4888 = vmatpush1.msra.mxu0 0.0
  %4889 = vmatprep.subr.mxu0 0.0
  %4890 = vmatpush1.msra.mxu0 %v4857
  %4891 = vmatprep.subr.mxu0 0.0
  %4892 = vmatpush2.msra.mxu0 0.0
  %4893 = vmatprep.subr.mxu0 0.0
  %4894 = vmatpush2.msra.mxu0 0.0
  %4895 = vmatprep.subr.mxu0 0.0
  %4896 = vmatpush2.msra.mxu0 0.0
  %4897 = vmatprep.subr.mxu0 0.0
  %4898 = vmatpush2.msra.mxu0 0.0
  %4899 = vmatprep.subr.mxu0 0.0
  %4900 = vmatpush2.msra.mxu0 0.0
  %4901 = vmatprep.subr.mxu0 0.0
  %4902 = vmatpush2.msra.mxu0 0.0
  %4903 = vmatprep.subr.mxu0 0.0
  %4904 = vmatpush2.msra.mxu0 0.0
  %4905 = vmatprep.subr.mxu0 0.0
  %4906 = vmatpush2.msra.mxu0 0.0
  %4907 = vmatprep.subr.mxu0 0.0
  %4908 = vmatpush2.msra.mxu0 0.0
  %4909 = vmatprep.subr.mxu0 0.0
  %4910 = vmatpush2.msra.mxu0 0.0
  %4911 = vmatprep.subr.mxu0 0.0
  %4912 = vmatpush2.msra.mxu0 0.0
  %4913 = vmatprep.subr.mxu0 0.0
  %4914 = vmatpush2.msra.mxu0 0.0
  %4915 = vmatprep.subr.mxu0 0.0
  %4916 = vmatpush2.msra.mxu0 0.0
  %4917 = vmatprep.subr.mxu0 0.0
  %4918 = vmatpush2.msra.mxu0 0.0
  %4919 = vmatprep.subr.mxu0 0.0
  %4920 = vmatpush2.msra.mxu0 0.0
  %4921 = vmatprep.subr.mxu0 0.0
  %4922 = vmatpush2.msra.mxu0 0.0
  %4923 = vmatprep.mubr.f32.mxu0 0.0
  %4924 = vmatmul.mubr.f32.gmra.mxu0 %v4845
  %v4925 = vpop.f32.mrf.mxu0
  %v4926 = vadd.f32 0.0, %v4925
  %v4927 = vpop.f32.mrf.mxu0
  %4928 = vmatprep.mubr.f32.mxu0 0.0
  %4929 = vmatmul.mubr.f32.gmra.mxu0 %v4848
  %v4930 = vpop.f32.mrf.mxu0
  %v4931 = vadd.f32 0.0, %v4930
  %v4932 = vpop.f32.mrf.mxu0
  %4933 = vmatprep.mubr.f32.mxu0 0.0
  %4934 = vmatmul.mubr.f32.gmra.mxu0 %v4851
  %v4935 = vpop.f32.mrf.mxu0
  %v4936 = vadd.f32 0.0, %v4935
  %v4937 = vpop.f32.mrf.mxu0
  %4938 = vmatprep.mubr.f32.mxu0 0.0
  %4939 = vmatmul.mubr.f32.gmra.mxu0 %v4854
  %v4940 = vpop.f32.mrf.mxu0
  %v4941 = vadd.f32 0.0, %v4940
  %v4942 = vpop.f32.mrf.mxu0
  %4943 = vdwg.mxu0
  %v4944 = vadd.f32 %v4838, %v4926
  %v4945 = vadd.f32 %v4839, %v4931
  %v4946 = vadd.f32 %v4840, %v4936
  %v4947 = vadd.f32 %v4841, %v4941
  %s4948 = scalar_lea.vmem %s27, 8
  %v4949 = vld [vmem:[%s4948] sm:$0xf]
  %v4951 = vsel %vm3996, %v4666, 0
  %v4954 = vsel %vm3996, %v4671, 0
  %v4957 = vsel %vm3996, %v4676, 0
  %v4960 = vsel %vm3996, %v4681, 0
  %v4963 = vsel %vm4729, %v4949, 0
  %4965 = vmatprep.subr.mxu0 0.0
  %4966 = vmatpush1.msra.mxu0 0.0
  %4967 = vmatprep.subr.mxu0 0.0
  %4968 = vmatpush1.msra.mxu0 0.0
  %4969 = vmatprep.subr.mxu0 0.0
  %4970 = vmatpush1.msra.mxu0 0.0
  %4971 = vmatprep.subr.mxu0 0.0
  %4972 = vmatpush1.msra.mxu0 0.0
  %4973 = vmatprep.subr.mxu0 0.0
  %4974 = vmatpush1.msra.mxu0 0.0
  %4975 = vmatprep.subr.mxu0 0.0
  %4976 = vmatpush1.msra.mxu0 0.0
  %4977 = vmatprep.subr.mxu0 0.0
  %4978 = vmatpush1.msra.mxu0 0.0
  %4979 = vmatprep.subr.mxu0 0.0
  %4980 = vmatpush1.msra.mxu0 0.0
  %4981 = vmatprep.subr.mxu0 0.0
  %4982 = vmatpush1.msra.mxu0 0.0
  %4983 = vmatprep.subr.mxu0 0.0
  %4984 = vmatpush1.msra.mxu0 0.0
  %4985 = vmatprep.subr.mxu0 0.0
  %4986 = vmatpush1.msra.mxu0 0.0
  %4987 = vmatprep.subr.mxu0 0.0
  %4988 = vmatpush1.msra.mxu0 0.0
  %4989 = vmatprep.subr.mxu0 0.0
  %4990 = vmatpush1.msra.mxu0 0.0
  %4991 = vmatprep.subr.mxu0 0.0
  %4992 = vmatpush1.msra.mxu0 0.0
  %4993 = vmatprep.subr.mxu0 0.0
  %4994 = vmatpush1.msra.mxu0 0.0
  %4995 = vmatprep.subr.mxu0 0.0
  %4996 = vmatpush1.msra.mxu0 %v4963
  %4997 = vmatprep.subr.mxu0 0.0
  %4998 = vmatpush2.msra.mxu0 0.0
  %4999 = vmatprep.subr.mxu0 0.0
  %5000 = vmatpush2.msra.mxu0 0.0
  %5001 = vmatprep.subr.mxu0 0.0
  %5002 = vmatpush2.msra.mxu0 0.0
  %5003 = vmatprep.subr.mxu0 0.0
  %5004 = vmatpush2.msra.mxu0 0.0
  %5005 = vmatprep.subr.mxu0 0.0
  %5006 = vmatpush2.msra.mxu0 0.0
  %5007 = vmatprep.subr.mxu0 0.0
  %5008 = vmatpush2.msra.mxu0 0.0
  %5009 = vmatprep.subr.mxu0 0.0
  %5010 = vmatpush2.msra.mxu0 0.0
  %5011 = vmatprep.subr.mxu0 0.0
  %5012 = vmatpush2.msra.mxu0 0.0
  %5013 = vmatprep.subr.mxu0 0.0
  %5014 = vmatpush2.msra.mxu0 0.0
  %5015 = vmatprep.subr.mxu0 0.0
  %5016 = vmatpush2.msra.mxu0 0.0
  %5017 = vmatprep.subr.mxu0 0.0
  %5018 = vmatpush2.msra.mxu0 0.0
  %5019 = vmatprep.subr.mxu0 0.0
  %5020 = vmatpush2.msra.mxu0 0.0
  %5021 = vmatprep.subr.mxu0 0.0
  %5022 = vmatpush2.msra.mxu0 0.0
  %5023 = vmatprep.subr.mxu0 0.0
  %5024 = vmatpush2.msra.mxu0 0.0
  %5025 = vmatprep.subr.mxu0 0.0
  %5026 = vmatpush2.msra.mxu0 0.0
  %5027 = vmatprep.subr.mxu0 0.0
  %5028 = vmatpush2.msra.mxu0 0.0
  %5029 = vmatprep.mubr.f32.mxu0 0.0
  %5030 = vmatmul.mubr.f32.gmra.mxu0 %v4951
  %v5031 = vpop.f32.mrf.mxu0
  %v5032 = vadd.f32 0.0, %v5031
  %v5033 = vpop.f32.mrf.mxu0
  %5034 = vmatprep.mubr.f32.mxu0 0.0
  %5035 = vmatmul.mubr.f32.gmra.mxu0 %v4954
  %v5036 = vpop.f32.mrf.mxu0
  %v5037 = vadd.f32 0.0, %v5036
  %v5038 = vpop.f32.mrf.mxu0
  %5039 = vmatprep.mubr.f32.mxu0 0.0
  %5040 = vmatmul.mubr.f32.gmra.mxu0 %v4957
  %v5041 = vpop.f32.mrf.mxu0
  %v5042 = vadd.f32 0.0, %v5041
  %v5043 = vpop.f32.mrf.mxu0
  %5044 = vmatprep.mubr.f32.mxu0 0.0
  %5045 = vmatmul.mubr.f32.gmra.mxu0 %v4960
  %v5046 = vpop.f32.mrf.mxu0
  %v5047 = vadd.f32 0.0, %v5046
  %v5048 = vpop.f32.mrf.mxu0
  %5049 = vdwg.mxu0
  %v5050 = vadd.f32 %v4944, %v5032
  %v5051 = vadd.f32 %v4945, %v5037
  %v5052 = vadd.f32 %v4946, %v5042
  %v5053 = vadd.f32 %v4947, %v5047
  %s5054 = scalar_lea.vmem %s27, 12
  %v5055 = vld [vmem:[%s5054] sm:$0xf]
  %v5057 = vsel %vm3996, %v4686, 0
  %v5060 = vsel %vm3996, %v4691, 0
  %v5063 = vsel %vm3996, %v4696, 0
  %v5066 = vsel %vm3996, %v4701, 0
  %v5069 = vsel %vm4729, %v5055, 0
  %5071 = vmatprep.subr.mxu0 0.0
  %5072 = vmatpush1.msra.mxu0 0.0
  %5073 = vmatprep.subr.mxu0 0.0
  %5074 = vmatpush1.msra.mxu0 0.0
  %5075 = vmatprep.subr.mxu0 0.0
  %5076 = vmatpush1.msra.mxu0 0.0
  %5077 = vmatprep.subr.mxu0 0.0
  %5078 = vmatpush1.msra.mxu0 0.0
  %5079 = vmatprep.subr.mxu0 0.0
  %5080 = vmatpush1.msra.mxu0 0.0
  %5081 = vmatprep.subr.mxu0 0.0
  %5082 = vmatpush1.msra.mxu0 0.0
  %5083 = vmatprep.subr.mxu0 0.0
  %5084 = vmatpush1.msra.mxu0 0.0
  %5085 = vmatprep.subr.mxu0 0.0
  %5086 = vmatpush1.msra.mxu0 0.0
  %5087 = vmatprep.subr.mxu0 0.0
  %5088 = vmatpush1.msra.mxu0 0.0
  %5089 = vmatprep.subr.mxu0 0.0
  %5090 = vmatpush1.msra.mxu0 0.0
  %5091 = vmatprep.subr.mxu0 0.0
  %5092 = vmatpush1.msra.mxu0 0.0
  %5093 = vmatprep.subr.mxu0 0.0
  %5094 = vmatpush1.msra.mxu0 0.0
  %5095 = vmatprep.subr.mxu0 0.0
  %5096 = vmatpush1.msra.mxu0 0.0
  %5097 = vmatprep.subr.mxu0 0.0
  %5098 = vmatpush1.msra.mxu0 0.0
  %5099 = vmatprep.subr.mxu0 0.0
  %5100 = vmatpush1.msra.mxu0 0.0
  %5101 = vmatprep.subr.mxu0 0.0
  %5102 = vmatpush1.msra.mxu0 %v5069
  %5103 = vmatprep.subr.mxu0 0.0
  %5104 = vmatpush2.msra.mxu0 0.0
  %5105 = vmatprep.subr.mxu0 0.0
  %5106 = vmatpush2.msra.mxu0 0.0
  %5107 = vmatprep.subr.mxu0 0.0
  %5108 = vmatpush2.msra.mxu0 0.0
  %5109 = vmatprep.subr.mxu0 0.0
  %5110 = vmatpush2.msra.mxu0 0.0
  %5111 = vmatprep.subr.mxu0 0.0
  %5112 = vmatpush2.msra.mxu0 0.0
  %5113 = vmatprep.subr.mxu0 0.0
  %5114 = vmatpush2.msra.mxu0 0.0
  %5115 = vmatprep.subr.mxu0 0.0
  %5116 = vmatpush2.msra.mxu0 0.0
  %5117 = vmatprep.subr.mxu0 0.0
  %5118 = vmatpush2.msra.mxu0 0.0
  %5119 = vmatprep.subr.mxu0 0.0
  %5120 = vmatpush2.msra.mxu0 0.0
  %5121 = vmatprep.subr.mxu0 0.0
  %5122 = vmatpush2.msra.mxu0 0.0
  %5123 = vmatprep.subr.mxu0 0.0
  %5124 = vmatpush2.msra.mxu0 0.0
  %5125 = vmatprep.subr.mxu0 0.0
  %5126 = vmatpush2.msra.mxu0 0.0
  %5127 = vmatprep.subr.mxu0 0.0
  %5128 = vmatpush2.msra.mxu0 0.0
  %5129 = vmatprep.subr.mxu0 0.0
  %5130 = vmatpush2.msra.mxu0 0.0
  %5131 = vmatprep.subr.mxu0 0.0
  %5132 = vmatpush2.msra.mxu0 0.0
  %5133 = vmatprep.subr.mxu0 0.0
  %5134 = vmatpush2.msra.mxu0 0.0
  %5135 = vmatprep.mubr.f32.mxu0 0.0
  %5136 = vmatmul.mubr.f32.gmra.mxu0 %v5057
  %v5137 = vpop.f32.mrf.mxu0
  %v5138 = vadd.f32 0.0, %v5137
  %v5139 = vpop.f32.mrf.mxu0
  %5140 = vmatprep.mubr.f32.mxu0 0.0
  %5141 = vmatmul.mubr.f32.gmra.mxu0 %v5060
  %v5142 = vpop.f32.mrf.mxu0
  %v5143 = vadd.f32 0.0, %v5142
  %v5144 = vpop.f32.mrf.mxu0
  %5145 = vmatprep.mubr.f32.mxu0 0.0
  %5146 = vmatmul.mubr.f32.gmra.mxu0 %v5063
  %v5147 = vpop.f32.mrf.mxu0
  %v5148 = vadd.f32 0.0, %v5147
  %v5149 = vpop.f32.mrf.mxu0
  %5150 = vmatprep.mubr.f32.mxu0 0.0
  %5151 = vmatmul.mubr.f32.gmra.mxu0 %v5066
  %v5152 = vpop.f32.mrf.mxu0
  %v5153 = vadd.f32 0.0, %v5152
  %v5154 = vpop.f32.mrf.mxu0
  %5155 = vdwg.mxu0
  %v5156 = vadd.f32 %v5050, %v5138
  %v5157 = vadd.f32 %v5051, %v5143
  %v5158 = vadd.f32 %v5052, %v5148
  %v5159 = vadd.f32 %v5053, %v5153
  %v5160 = vld [vmem:[%s31] sm:$0xff]
  %v5161 = vld [vmem:[%s31 + $0x8] sm:$0xff]
  %v5162 = vld [vmem:[%s31 + $0x10] sm:$0xff]
  %v5163 = vld [vmem:[%s31 + $0x18] sm:$0xff]
  %vm5164 = vcmask 15360
  %v5165 = vsel %vm5164, %v5156, 0.0
  %5166 = vadd.xlane.f32.xlu0 %v5165
  %v5167 = vpop.xlane.xlu0 %5166
  %v5168 = vsel %vm5164, %v5157, 0.0
  %5169 = vadd.xlane.f32.xlu0 %v5168
  %v5170 = vpop.xlane.xlu0 %5169
  %v5171 = vsel %vm5164, %v5158, 0.0
  %5172 = vadd.xlane.f32.xlu0 %v5171
  %v5173 = vpop.xlane.xlu0 %5172
  %v5174 = vsel %vm5164, %v5159, 0.0
  %5175 = vadd.xlane.f32.xlu0 %v5174
  %v5176 = vpop.xlane.xlu0 %5175
  %v5178 = vsel %vm647, %v5160, 0
  %v5181 = vsel %vm647, %v5161, 0
  %v5184 = vsel %vm647, %v5162, 0
  %v5187 = vsel %vm647, %v5163, 0
  %5189 = vmatprep.subr.mxu0 0.0
  %5190 = vmatpush1.msra.mxu0 0.0
  %5191 = vmatprep.subr.mxu0 0.0
  %5192 = vmatpush1.msra.mxu0 0.0
  %5193 = vmatprep.subr.mxu0 0.0
  %5194 = vmatpush1.msra.mxu0 0.0
  %5195 = vmatprep.subr.mxu0 0.0
  %5196 = vmatpush1.msra.mxu0 0.0
  %5197 = vmatprep.subr.mxu0 0.0
  %5198 = vmatpush1.msra.mxu0 0.0
  %5199 = vmatprep.subr.mxu0 0.0
  %5200 = vmatpush1.msra.mxu0 0.0
  %5201 = vmatprep.subr.mxu0 0.0
  %5202 = vmatpush1.msra.mxu0 0.0
  %5203 = vmatprep.subr.mxu0 0.0
  %5204 = vmatpush1.msra.mxu0 0.0
  %5205 = vmatprep.subr.mxu0 0.0
  %5206 = vmatpush1.msra.mxu0 0.0
  %5207 = vmatprep.subr.mxu0 0.0
  %5208 = vmatpush1.msra.mxu0 0.0
  %5209 = vmatprep.subr.mxu0 0.0
  %5210 = vmatpush1.msra.mxu0 0.0
  %5211 = vmatprep.subr.mxu0 0.0
  %5212 = vmatpush1.msra.mxu0 0.0
  %5213 = vmatprep.subr.mxu0 0.0
  %5214 = vmatpush1.msra.mxu0 %v5176
  %5215 = vmatprep.subr.mxu0 0.0
  %5216 = vmatpush1.msra.mxu0 %v5173
  %5217 = vmatprep.subr.mxu0 0.0
  %5218 = vmatpush1.msra.mxu0 %v5170
  %5219 = vmatprep.subr.mxu0 0.0
  %5220 = vmatpush1.msra.mxu0 %v5167
  %5221 = vmatprep.subr.mxu0 0.0
  %5222 = vmatpush2.msra.mxu0 0.0
  %5223 = vmatprep.subr.mxu0 0.0
  %5224 = vmatpush2.msra.mxu0 0.0
  %5225 = vmatprep.subr.mxu0 0.0
  %5226 = vmatpush2.msra.mxu0 0.0
  %5227 = vmatprep.subr.mxu0 0.0
  %5228 = vmatpush2.msra.mxu0 0.0
  %5229 = vmatprep.subr.mxu0 0.0
  %5230 = vmatpush2.msra.mxu0 0.0
  %5231 = vmatprep.subr.mxu0 0.0
  %5232 = vmatpush2.msra.mxu0 0.0
  %5233 = vmatprep.subr.mxu0 0.0
  %5234 = vmatpush2.msra.mxu0 0.0
  %5235 = vmatprep.subr.mxu0 0.0
  %5236 = vmatpush2.msra.mxu0 0.0
  %5237 = vmatprep.subr.mxu0 0.0
  %5238 = vmatpush2.msra.mxu0 0.0
  %5239 = vmatprep.subr.mxu0 0.0
  %5240 = vmatpush2.msra.mxu0 0.0
  %5241 = vmatprep.subr.mxu0 0.0
  %5242 = vmatpush2.msra.mxu0 0.0
  %5243 = vmatprep.subr.mxu0 0.0
  %5244 = vmatpush2.msra.mxu0 0.0
  %5245 = vmatprep.subr.mxu0 0.0
  %5246 = vmatpush2.msra.mxu0 0.0
  %5247 = vmatprep.subr.mxu0 0.0
  %5248 = vmatpush2.msra.mxu0 0.0
  %5249 = vmatprep.subr.mxu0 0.0
  %5250 = vmatpush2.msra.mxu0 0.0
  %5251 = vmatprep.subr.mxu0 0.0
  %5252 = vmatpush2.msra.mxu0 0.0
  %5253 = vmatprep.mubr.f32.mxu0 0.0
  %5254 = vmatmul.mubr.f32.gmra.mxu0 %v5178
  %v5255 = vpop.f32.mrf.mxu0
  %v5256 = vadd.f32 0.0, %v5255
  %v5257 = vpop.f32.mrf.mxu0
  %5258 = vmatprep.mubr.f32.mxu0 0.0
  %5259 = vmatmul.mubr.f32.gmra.mxu0 %v5181
  %v5260 = vpop.f32.mrf.mxu0
  %v5261 = vadd.f32 0.0, %v5260
  %v5262 = vpop.f32.mrf.mxu0
  %5263 = vmatprep.mubr.f32.mxu0 0.0
  %5264 = vmatmul.mubr.f32.gmra.mxu0 %v5184
  %v5265 = vpop.f32.mrf.mxu0
  %v5266 = vadd.f32 0.0, %v5265
  %v5267 = vpop.f32.mrf.mxu0
  %5268 = vmatprep.mubr.f32.mxu0 0.0
  %5269 = vmatmul.mubr.f32.gmra.mxu0 %v5187
  %v5270 = vpop.f32.mrf.mxu0
  %v5271 = vadd.f32 0.0, %v5270
  %v5272 = vpop.f32.mrf.mxu0
  %5273 = vdwg.mxu0
  %v5274 = vmul.f32 %v5256, 0.125
  %v5275 = vmul.f32 %v5261, 0.125
  %v5276 = vmul.f32 %v5266, 0.125
  %v5277 = vmul.f32 %v5271, 0.125
  %5279 = vset.pattern.permute.xlu0 0
  %5280 = vperm.xlu0 %5279, %v5274
  %v5281 = vpop.permute.xlu0 %5280
  %5284 = vset.pattern.permute.xlu0 0
  %5285 = vperm.xlu0 %5284, %v5275
  %v5286 = vpop.permute.xlu0 %5285
  %5289 = vset.pattern.permute.xlu0 0
  %5290 = vperm.xlu0 %5289, %v5276
  %v5291 = vpop.permute.xlu0 %5290
  %5294 = vset.pattern.permute.xlu0 0
  %5295 = vperm.xlu0 %5294, %v5277
  %v5296 = vpop.permute.xlu0 %5295
  %v5298 = vsub.f32 %v5156, %v5281
  %v5299 = vsub.f32 %v5157, %v5286
  %v5300 = vsub.f32 %v5158, %v5291
  %v5301 = vsub.f32 %v5159, %v5296
  %v5302 = vmul.f32 %v5298, %v5298
  %v5303 = vmul.f32 %v5299, %v5299
  %v5304 = vmul.f32 %v5300, %v5300
  %v5305 = vmul.f32 %v5301, %v5301
  %v5306 = vsel %vm5164, %v5302, 0.0
  %5307 = vadd.xlane.f32.xlu0 %v5306
  %v5308 = vpop.xlane.xlu0 %5307
  %v5309 = vsel %vm5164, %v5303, 0.0
  %5310 = vadd.xlane.f32.xlu0 %v5309
  %v5311 = vpop.xlane.xlu0 %5310
  %v5312 = vsel %vm5164, %v5304, 0.0
  %5313 = vadd.xlane.f32.xlu0 %v5312
  %v5314 = vpop.xlane.xlu0 %5313
  %v5315 = vsel %vm5164, %v5305, 0.0
  %5316 = vadd.xlane.f32.xlu0 %v5315
  %v5317 = vpop.xlane.xlu0 %5316
  %5318 = vmatprep.subr.mxu0 0.0
  %5319 = vmatpush1.msra.mxu0 0.0
  %5320 = vmatprep.subr.mxu0 0.0
  %5321 = vmatpush1.msra.mxu0 0.0
  %5322 = vmatprep.subr.mxu0 0.0
  %5323 = vmatpush1.msra.mxu0 0.0
  %5324 = vmatprep.subr.mxu0 0.0
  %5325 = vmatpush1.msra.mxu0 0.0
  %5326 = vmatprep.subr.mxu0 0.0
  %5327 = vmatpush1.msra.mxu0 0.0
  %5328 = vmatprep.subr.mxu0 0.0
  %5329 = vmatpush1.msra.mxu0 0.0
  %5330 = vmatprep.subr.mxu0 0.0
  %5331 = vmatpush1.msra.mxu0 0.0
  %5332 = vmatprep.subr.mxu0 0.0
  %5333 = vmatpush1.msra.mxu0 0.0
  %5334 = vmatprep.subr.mxu0 0.0
  %5335 = vmatpush1.msra.mxu0 0.0
  %5336 = vmatprep.subr.mxu0 0.0
  %5337 = vmatpush1.msra.mxu0 0.0
  %5338 = vmatprep.subr.mxu0 0.0
  %5339 = vmatpush1.msra.mxu0 0.0
  %5340 = vmatprep.subr.mxu0 0.0
  %5341 = vmatpush1.msra.mxu0 0.0
  %5342 = vmatprep.subr.mxu0 0.0
  %5343 = vmatpush1.msra.mxu0 %v5317
  %5344 = vmatprep.subr.mxu0 0.0
  %5345 = vmatpush1.msra.mxu0 %v5314
  %5346 = vmatprep.subr.mxu0 0.0
  %5347 = vmatpush1.msra.mxu0 %v5311
  %5348 = vmatprep.subr.mxu0 0.0
  %5349 = vmatpush1.msra.mxu0 %v5308
  %5350 = vmatprep.subr.mxu0 0.0
  %5351 = vmatpush2.msra.mxu0 0.0
  %5352 = vmatprep.subr.mxu0 0.0
  %5353 = vmatpush2.msra.mxu0 0.0
  %5354 = vmatprep.subr.mxu0 0.0
  %5355 = vmatpush2.msra.mxu0 0.0
  %5356 = vmatprep.subr.mxu0 0.0
  %5357 = vmatpush2.msra.mxu0 0.0
  %5358 = vmatprep.subr.mxu0 0.0
  %5359 = vmatpush2.msra.mxu0 0.0
  %5360 = vmatprep.subr.mxu0 0.0
  %5361 = vmatpush2.msra.mxu0 0.0
  %5362 = vmatprep.subr.mxu0 0.0
  %5363 = vmatpush2.msra.mxu0 0.0
  %5364 = vmatprep.subr.mxu0 0.0
  %5365 = vmatpush2.msra.mxu0 0.0
  %5366 = vmatprep.subr.mxu0 0.0
  %5367 = vmatpush2.msra.mxu0 0.0
  %5368 = vmatprep.subr.mxu0 0.0
  %5369 = vmatpush2.msra.mxu0 0.0
  %5370 = vmatprep.subr.mxu0 0.0
  %5371 = vmatpush2.msra.mxu0 0.0
  %5372 = vmatprep.subr.mxu0 0.0
  %5373 = vmatpush2.msra.mxu0 0.0
  %5374 = vmatprep.subr.mxu0 0.0
  %5375 = vmatpush2.msra.mxu0 0.0
  %5376 = vmatprep.subr.mxu0 0.0
  %5377 = vmatpush2.msra.mxu0 0.0
  %5378 = vmatprep.subr.mxu0 0.0
  %5379 = vmatpush2.msra.mxu0 0.0
  %5380 = vmatprep.subr.mxu0 0.0
  %5381 = vmatpush2.msra.mxu0 0.0
  %5382 = vmatprep.mubr.f32.mxu0 0.0
  %5383 = vmatmul.mubr.f32.gmra.mxu0 %v5178
  %v5384 = vpop.f32.mrf.mxu0
  %v5385 = vadd.f32 0.0, %v5384
  %v5386 = vpop.f32.mrf.mxu0
  %5387 = vmatprep.mubr.f32.mxu0 0.0
  %5388 = vmatmul.mubr.f32.gmra.mxu0 %v5181
  %v5389 = vpop.f32.mrf.mxu0
  %v5390 = vadd.f32 0.0, %v5389
  %v5391 = vpop.f32.mrf.mxu0
  %5392 = vmatprep.mubr.f32.mxu0 0.0
  %5393 = vmatmul.mubr.f32.gmra.mxu0 %v5184
  %v5394 = vpop.f32.mrf.mxu0
  %v5395 = vadd.f32 0.0, %v5394
  %v5396 = vpop.f32.mrf.mxu0
  %5397 = vmatprep.mubr.f32.mxu0 0.0
  %5398 = vmatmul.mubr.f32.gmra.mxu0 %v5187
  %v5399 = vpop.f32.mrf.mxu0
  %v5400 = vadd.f32 0.0, %v5399
  %v5401 = vpop.f32.mrf.mxu0
  %5402 = vdwg.mxu0
  %v5403 = vmul.f32 %v5385, 0.125
  %v5404 = vmul.f32 %v5390, 0.125
  %v5405 = vmul.f32 %v5395, 0.125
  %v5406 = vmul.f32 %v5400, 0.125
  %v5407 = vadd.f32 %v5403, 1e-05
  %v5408 = vadd.f32 %v5404, 1e-05
  %v5409 = vadd.f32 %v5405, 1e-05
  %v5410 = vadd.f32 %v5406, 1e-05
  %v5411 = vrsqrt.pop %v5407
  %v5412 = vrsqrt.pop %v5408
  %v5413 = vrsqrt.pop %v5409
  %v5414 = vrsqrt.pop %v5410
  %v5415 = vmul.f32 %v5411, %v4708
  %v5416 = vmul.f32 %v5412, %v4709
  %v5417 = vmul.f32 %v5413, %v4710
  %v5418 = vmul.f32 %v5414, %v4711
  %5420 = vset.pattern.permute.xlu0 0
  %5421 = vperm.xlu0 %5420, %v5415
  %v5422 = vpop.permute.xlu0 %5421
  %5425 = vset.pattern.permute.xlu0 0
  %5426 = vperm.xlu0 %5425, %v5416
  %v5427 = vpop.permute.xlu0 %5426
  %5430 = vset.pattern.permute.xlu0 0
  %5431 = vperm.xlu0 %5430, %v5417
  %v5432 = vpop.permute.xlu0 %5431
  %5435 = vset.pattern.permute.xlu0 0
  %5436 = vperm.xlu0 %5435, %v5418
  %v5437 = vpop.permute.xlu0 %5436
  %v5439 = vmul.f32 %v5298, %v5422
  %v5440 = vmul.f32 %v5299, %v5427
  %v5441 = vmul.f32 %v5300, %v5432
  %v5442 = vmul.f32 %v5301, %v5437
  %5444 = vset.pattern.permute.xlu0 0
  %5445 = vperm.xlu0 %5444, %v4712
  %v5446 = vpop.permute.xlu0 %5445
  %5449 = vset.pattern.permute.xlu0 0
  %5450 = vperm.xlu0 %5449, %v4713
  %v5451 = vpop.permute.xlu0 %5450
  %5454 = vset.pattern.permute.xlu0 0
  %5455 = vperm.xlu0 %5454, %v4714
  %v5456 = vpop.permute.xlu0 %5455
  %5459 = vset.pattern.permute.xlu0 0
  %5460 = vperm.xlu0 %5459, %v4715
  %v5461 = vpop.permute.xlu0 %5460
  %v5463 = vadd.f32 %v5439, %v5446
  %v5464 = vadd.f32 %v5440, %v5451
  %v5465 = vadd.f32 %v5441, %v5456
  %v5466 = vadd.f32 %v5442, %v5461
  %vm5467 = vcmp.ge.f32.partialorder %v5463, 0.0
  %vm5468 = vcmp.ge.f32.partialorder %v5464, 0.0
  %vm5469 = vcmp.ge.f32.partialorder %v5465, 0.0
  %vm5470 = vcmp.ge.f32.partialorder %v5466, 0.0
  %v5471 = vmul.f32 %v5463, 0.2
  %v5472 = vmul.f32 %v5464, 0.2
  %v5473 = vmul.f32 %v5465, 0.2
  %v5474 = vmul.f32 %v5466, 0.2
  %v5475 = vsel %vm5467, %v5463, %v5471
  %v5476 = vsel %vm5468, %v5464, %v5472
  %v5477 = vsel %vm5469, %v5465, %v5473
  %v5478 = vsel %vm5470, %v5466, %v5474
  %v5479 = vld [vmem:[%s33] sm:$0xff]
  %v5480 = vld [vmem:[%s33 + $0x8] sm:$0xff]
  %v5481 = vld [vmem:[%s33 + $0x10] sm:$0xff]
  %v5482 = vld [vmem:[%s33 + $0x18] sm:$0xff]
  %v5483 = vld [vmem:[%s33 + $0x20] sm:$0xff]
  %v5484 = vld [vmem:[%s33 + $0x28] sm:$0xff]
  %v5485 = vld [vmem:[%s33 + $0x30] sm:$0xff]
  %v5486 = vld [vmem:[%s33 + $0x38] sm:$0xff]
  %v5488 = vsel %vm647, %v5479, 0
  %v5491 = vsel %vm647, %v5480, 0
  %v5494 = vsel %vm647, %v5481, 0
  %v5497 = vsel %vm647, %v5482, 0
  %v5500 = vsel %vm647, %v5483, 0
  %v5503 = vsel %vm647, %v5484, 0
  %v5506 = vsel %vm647, %v5485, 0
  %v5509 = vsel %vm647, %v5486, 0
  %5511 = vmatprep.subr.mxu0 0.0
  %5512 = vmatpush1.msra.mxu0 0.0
  %5513 = vmatprep.subr.mxu0 0.0
  %5514 = vmatpush1.msra.mxu0 0.0
  %5515 = vmatprep.subr.mxu0 0.0
  %5516 = vmatpush1.msra.mxu0 0.0
  %5517 = vmatprep.subr.mxu0 0.0
  %5518 = vmatpush1.msra.mxu0 0.0
  %5519 = vmatprep.subr.mxu0 0.0
  %5520 = vmatpush1.msra.mxu0 0.0
  %5521 = vmatprep.subr.mxu0 0.0
  %5522 = vmatpush1.msra.mxu0 0.0
  %5523 = vmatprep.subr.mxu0 0.0
  %5524 = vmatpush1.msra.mxu0 0.0
  %5525 = vmatprep.subr.mxu0 0.0
  %5526 = vmatpush1.msra.mxu0 0.0
  %5527 = vmatprep.subr.mxu0 0.0
  %5528 = vmatpush1.msra.mxu0 0.0
  %5529 = vmatprep.subr.mxu0 0.0
  %5530 = vmatpush1.msra.mxu0 0.0
  %5531 = vmatprep.subr.mxu0 0.0
  %5532 = vmatpush1.msra.mxu0 0.0
  %5533 = vmatprep.subr.mxu0 0.0
  %5534 = vmatpush1.msra.mxu0 0.0
  %5535 = vmatprep.subr.mxu0 0.0
  %5536 = vmatpush1.msra.mxu0 %v5478
  %5537 = vmatprep.subr.mxu0 0.0
  %5538 = vmatpush1.msra.mxu0 %v5477
  %5539 = vmatprep.subr.mxu0 0.0
  %5540 = vmatpush1.msra.mxu0 %v5476
  %5541 = vmatprep.subr.mxu0 0.0
  %5542 = vmatpush1.msra.mxu0 %v5475
  %5543 = vmatprep.subr.mxu0 0.0
  %5544 = vmatpush2.msra.mxu0 0.0
  %5545 = vmatprep.subr.mxu0 0.0
  %5546 = vmatpush2.msra.mxu0 0.0
  %5547 = vmatprep.subr.mxu0 0.0
  %5548 = vmatpush2.msra.mxu0 0.0
  %5549 = vmatprep.subr.mxu0 0.0
  %5550 = vmatpush2.msra.mxu0 0.0
  %5551 = vmatprep.subr.mxu0 0.0
  %5552 = vmatpush2.msra.mxu0 0.0
  %5553 = vmatprep.subr.mxu0 0.0
  %5554 = vmatpush2.msra.mxu0 0.0
  %5555 = vmatprep.subr.mxu0 0.0
  %5556 = vmatpush2.msra.mxu0 0.0
  %5557 = vmatprep.subr.mxu0 0.0
  %5558 = vmatpush2.msra.mxu0 0.0
  %5559 = vmatprep.subr.mxu0 0.0
  %5560 = vmatpush2.msra.mxu0 0.0
  %5561 = vmatprep.subr.mxu0 0.0
  %5562 = vmatpush2.msra.mxu0 0.0
  %5563 = vmatprep.subr.mxu0 0.0
  %5564 = vmatpush2.msra.mxu0 0.0
  %5565 = vmatprep.subr.mxu0 0.0
  %5566 = vmatpush2.msra.mxu0 0.0
  %5567 = vmatprep.subr.mxu0 0.0
  %5568 = vmatpush2.msra.mxu0 0.0
  %5569 = vmatprep.subr.mxu0 0.0
  %5570 = vmatpush2.msra.mxu0 0.0
  %5571 = vmatprep.subr.mxu0 0.0
  %5572 = vmatpush2.msra.mxu0 0.0
  %5573 = vmatprep.subr.mxu0 0.0
  %5574 = vmatpush2.msra.mxu0 0.0
  %5575 = vmatprep.mubr.f32.mxu0 0.0
  %5576 = vmatmul.mubr.f32.gmra.mxu0 %v5488
  %v5577 = vpop.f32.mrf.mxu0
  %v5578 = vadd.f32 0.0, %v5577
  %v5579 = vpop.f32.mrf.mxu0
  %5580 = vmatprep.mubr.f32.mxu0 0.0
  %5581 = vmatmul.mubr.f32.gmra.mxu0 %v5491
  %v5582 = vpop.f32.mrf.mxu0
  %v5583 = vadd.f32 0.0, %v5582
  %v5584 = vpop.f32.mrf.mxu0
  %5585 = vmatprep.mubr.f32.mxu0 0.0
  %5586 = vmatmul.mubr.f32.gmra.mxu0 %v5494
  %v5587 = vpop.f32.mrf.mxu0
  %v5588 = vadd.f32 0.0, %v5587
  %v5589 = vpop.f32.mrf.mxu0
  %5590 = vmatprep.mubr.f32.mxu0 0.0
  %5591 = vmatmul.mubr.f32.gmra.mxu0 %v5497
  %v5592 = vpop.f32.mrf.mxu0
  %v5593 = vadd.f32 0.0, %v5592
  %v5594 = vpop.f32.mrf.mxu0
  %5595 = vmatprep.mubr.f32.mxu0 0.0
  %5596 = vmatmul.mubr.f32.gmra.mxu0 %v5500
  %v5597 = vpop.f32.mrf.mxu0
  %v5598 = vadd.f32 0.0, %v5597
  %v5599 = vpop.f32.mrf.mxu0
  %5600 = vmatprep.mubr.f32.mxu0 0.0
  %5601 = vmatmul.mubr.f32.gmra.mxu0 %v5503
  %v5602 = vpop.f32.mrf.mxu0
  %v5603 = vadd.f32 0.0, %v5602
  %v5604 = vpop.f32.mrf.mxu0
  %5605 = vmatprep.mubr.f32.mxu0 0.0
  %5606 = vmatmul.mubr.f32.gmra.mxu0 %v5506
  %v5607 = vpop.f32.mrf.mxu0
  %v5608 = vadd.f32 0.0, %v5607
  %v5609 = vpop.f32.mrf.mxu0
  %5610 = vmatprep.mubr.f32.mxu0 0.0
  %5611 = vmatmul.mubr.f32.gmra.mxu0 %v5509
  %v5612 = vpop.f32.mrf.mxu0
  %v5613 = vadd.f32 0.0, %v5612
  %v5614 = vpop.f32.mrf.mxu0
  %5615 = vdwg.mxu0
  %v5616 = vld [vmem:[%s37] sm:$0xff]
  %v5617 = vld [vmem:[%s37 + $0x8] sm:$0xff]
  %v5618 = vld [vmem:[%s37 + $0x10] sm:$0xff]
  %v5619 = vld [vmem:[%s37 + $0x18] sm:$0xff]
  %v5620 = vld [vmem:[%s37 + $0x20] sm:$0xff]
  %v5621 = vld [vmem:[%s37 + $0x28] sm:$0xff]
  %v5622 = vld [vmem:[%s37 + $0x30] sm:$0xff]
  %v5623 = vld [vmem:[%s37 + $0x38] sm:$0xff]
  %v5624 = vld [vmem:[%s37 + $0x40] sm:$0xff]
  %v5625 = vld [vmem:[%s37 + $0x48] sm:$0xff]
  %v5626 = vld [vmem:[%s37 + $0x50] sm:$0xff]
  %v5627 = vld [vmem:[%s37 + $0x58] sm:$0xff]
  %v5628 = vld [vmem:[%s35] sm:$0x3]
  %v5630 = vsel %vm5164, %v5578, 0
  %v5633 = vsel %vm5164, %v5583, 0
  %v5636 = vsel %vm5164, %v5588, 0
  %v5639 = vsel %vm5164, %v5593, 0
  %vm5641 = vcmask 1041408
  %v5643 = vsel %vm5641, %v5628, 0
  %5645 = vmatprep.subr.mxu0 0.0
  %5646 = vmatpush1.msra.mxu0 0.0
  %5647 = vmatprep.subr.mxu0 0.0
  %5648 = vmatpush1.msra.mxu0 0.0
  %5649 = vmatprep.subr.mxu0 0.0
  %5650 = vmatpush1.msra.mxu0 0.0
  %5651 = vmatprep.subr.mxu0 0.0
  %5652 = vmatpush1.msra.mxu0 0.0
  %5653 = vmatprep.subr.mxu0 0.0
  %5654 = vmatpush1.msra.mxu0 0.0
  %5655 = vmatprep.subr.mxu0 0.0
  %5656 = vmatpush1.msra.mxu0 0.0
  %5657 = vmatprep.subr.mxu0 0.0
  %5658 = vmatpush1.msra.mxu0 0.0
  %5659 = vmatprep.subr.mxu0 0.0
  %5660 = vmatpush1.msra.mxu0 0.0
  %5661 = vmatprep.subr.mxu0 0.0
  %5662 = vmatpush1.msra.mxu0 0.0
  %5663 = vmatprep.subr.mxu0 0.0
  %5664 = vmatpush1.msra.mxu0 0.0
  %5665 = vmatprep.subr.mxu0 0.0
  %5666 = vmatpush1.msra.mxu0 0.0
  %5667 = vmatprep.subr.mxu0 0.0
  %5668 = vmatpush1.msra.mxu0 0.0
  %5669 = vmatprep.subr.mxu0 0.0
  %5670 = vmatpush1.msra.mxu0 0.0
  %5671 = vmatprep.subr.mxu0 0.0
  %5672 = vmatpush1.msra.mxu0 0.0
  %5673 = vmatprep.subr.mxu0 0.0
  %5674 = vmatpush1.msra.mxu0 0.0
  %5675 = vmatprep.subr.mxu0 0.0
  %5676 = vmatpush1.msra.mxu0 %v5643
  %5677 = vmatprep.subr.mxu0 0.0
  %5678 = vmatpush2.msra.mxu0 0.0
  %5679 = vmatprep.subr.mxu0 0.0
  %5680 = vmatpush2.msra.mxu0 0.0
  %5681 = vmatprep.subr.mxu0 0.0
  %5682 = vmatpush2.msra.mxu0 0.0
  %5683 = vmatprep.subr.mxu0 0.0
  %5684 = vmatpush2.msra.mxu0 0.0
  %5685 = vmatprep.subr.mxu0 0.0
  %5686 = vmatpush2.msra.mxu0 0.0
  %5687 = vmatprep.subr.mxu0 0.0
  %5688 = vmatpush2.msra.mxu0 0.0
  %5689 = vmatprep.subr.mxu0 0.0
  %5690 = vmatpush2.msra.mxu0 0.0
  %5691 = vmatprep.subr.mxu0 0.0
  %5692 = vmatpush2.msra.mxu0 0.0
  %5693 = vmatprep.subr.mxu0 0.0
  %5694 = vmatpush2.msra.mxu0 0.0
  %5695 = vmatprep.subr.mxu0 0.0
  %5696 = vmatpush2.msra.mxu0 0.0
  %5697 = vmatprep.subr.mxu0 0.0
  %5698 = vmatpush2.msra.mxu0 0.0
  %5699 = vmatprep.subr.mxu0 0.0
  %5700 = vmatpush2.msra.mxu0 0.0
  %5701 = vmatprep.subr.mxu0 0.0
  %5702 = vmatpush2.msra.mxu0 0.0
  %5703 = vmatprep.subr.mxu0 0.0
  %5704 = vmatpush2.msra.mxu0 0.0
  %5705 = vmatprep.subr.mxu0 0.0
  %5706 = vmatpush2.msra.mxu0 0.0
  %5707 = vmatprep.subr.mxu0 0.0
  %5708 = vmatpush2.msra.mxu0 0.0
  %5709 = vmatprep.mubr.f32.mxu0 0.0
  %5710 = vmatmul.mubr.f32.gmra.mxu0 %v5630
  %v5711 = vpop.f32.mrf.mxu0
  %v5712 = vadd.f32 0.0, %v5711
  %v5713 = vpop.f32.mrf.mxu0
  %5714 = vmatprep.mubr.f32.mxu0 0.0
  %5715 = vmatmul.mubr.f32.gmra.mxu0 %v5633
  %v5716 = vpop.f32.mrf.mxu0
  %v5717 = vadd.f32 0.0, %v5716
  %v5718 = vpop.f32.mrf.mxu0
  %5719 = vmatprep.mubr.f32.mxu0 0.0
  %5720 = vmatmul.mubr.f32.gmra.mxu0 %v5636
  %v5721 = vpop.f32.mrf.mxu0
  %v5722 = vadd.f32 0.0, %v5721
  %v5723 = vpop.f32.mrf.mxu0
  %5724 = vmatprep.mubr.f32.mxu0 0.0
  %5725 = vmatmul.mubr.f32.gmra.mxu0 %v5639
  %v5726 = vpop.f32.mrf.mxu0
  %v5727 = vadd.f32 0.0, %v5726
  %v5728 = vpop.f32.mrf.mxu0
  %5729 = vdwg.mxu0
  %v5730 = vadd.f32 %v5616, %v5712
  %v5731 = vadd.f32 %v5617, %v5717
  %v5732 = vadd.f32 %v5618, %v5722
  %v5733 = vadd.f32 %v5619, %v5727
  %s5734 = scalar_lea.vmem %s35, 2
  %v5735 = vld [vmem:[%s5734] sm:$0x3]
  %v5737 = vsel %vm5164, %v5598, 0
  %v5740 = vsel %vm5164, %v5603, 0
  %v5743 = vsel %vm5164, %v5608, 0
  %v5746 = vsel %vm5164, %v5613, 0
  %v5749 = vsel %vm5641, %v5735, 0
  %5751 = vmatprep.subr.mxu0 0.0
  %5752 = vmatpush1.msra.mxu0 0.0
  %5753 = vmatprep.subr.mxu0 0.0
  %5754 = vmatpush1.msra.mxu0 0.0
  %5755 = vmatprep.subr.mxu0 0.0
  %5756 = vmatpush1.msra.mxu0 0.0
  %5757 = vmatprep.subr.mxu0 0.0
  %5758 = vmatpush1.msra.mxu0 0.0
  %5759 = vmatprep.subr.mxu0 0.0
  %5760 = vmatpush1.msra.mxu0 0.0
  %5761 = vmatprep.subr.mxu0 0.0
  %5762 = vmatpush1.msra.mxu0 0.0
  %5763 = vmatprep.subr.mxu0 0.0
  %5764 = vmatpush1.msra.mxu0 0.0
  %5765 = vmatprep.subr.mxu0 0.0
  %5766 = vmatpush1.msra.mxu0 0.0
  %5767 = vmatprep.subr.mxu0 0.0
  %5768 = vmatpush1.msra.mxu0 0.0
  %5769 = vmatprep.subr.mxu0 0.0
  %5770 = vmatpush1.msra.mxu0 0.0
  %5771 = vmatprep.subr.mxu0 0.0
  %5772 = vmatpush1.msra.mxu0 0.0
  %5773 = vmatprep.subr.mxu0 0.0
  %5774 = vmatpush1.msra.mxu0 0.0
  %5775 = vmatprep.subr.mxu0 0.0
  %5776 = vmatpush1.msra.mxu0 0.0
  %5777 = vmatprep.subr.mxu0 0.0
  %5778 = vmatpush1.msra.mxu0 0.0
  %5779 = vmatprep.subr.mxu0 0.0
  %5780 = vmatpush1.msra.mxu0 0.0
  %5781 = vmatprep.subr.mxu0 0.0
  %5782 = vmatpush1.msra.mxu0 %v5749
  %5783 = vmatprep.subr.mxu0 0.0
  %5784 = vmatpush2.msra.mxu0 0.0
  %5785 = vmatprep.subr.mxu0 0.0
  %5786 = vmatpush2.msra.mxu0 0.0
  %5787 = vmatprep.subr.mxu0 0.0
  %5788 = vmatpush2.msra.mxu0 0.0
  %5789 = vmatprep.subr.mxu0 0.0
  %5790 = vmatpush2.msra.mxu0 0.0
  %5791 = vmatprep.subr.mxu0 0.0
  %5792 = vmatpush2.msra.mxu0 0.0
  %5793 = vmatprep.subr.mxu0 0.0
  %5794 = vmatpush2.msra.mxu0 0.0
  %5795 = vmatprep.subr.mxu0 0.0
  %5796 = vmatpush2.msra.mxu0 0.0
  %5797 = vmatprep.subr.mxu0 0.0
  %5798 = vmatpush2.msra.mxu0 0.0
  %5799 = vmatprep.subr.mxu0 0.0
  %5800 = vmatpush2.msra.mxu0 0.0
  %5801 = vmatprep.subr.mxu0 0.0
  %5802 = vmatpush2.msra.mxu0 0.0
  %5803 = vmatprep.subr.mxu0 0.0
  %5804 = vmatpush2.msra.mxu0 0.0
  %5805 = vmatprep.subr.mxu0 0.0
  %5806 = vmatpush2.msra.mxu0 0.0
  %5807 = vmatprep.subr.mxu0 0.0
  %5808 = vmatpush2.msra.mxu0 0.0
  %5809 = vmatprep.subr.mxu0 0.0
  %5810 = vmatpush2.msra.mxu0 0.0
  %5811 = vmatprep.subr.mxu0 0.0
  %5812 = vmatpush2.msra.mxu0 0.0
  %5813 = vmatprep.subr.mxu0 0.0
  %5814 = vmatpush2.msra.mxu0 0.0
  %5815 = vmatprep.mubr.f32.mxu0 0.0
  %5816 = vmatmul.mubr.f32.gmra.mxu0 %v5737
  %v5817 = vpop.f32.mrf.mxu0
  %v5818 = vadd.f32 0.0, %v5817
  %v5819 = vpop.f32.mrf.mxu0
  %5820 = vmatprep.mubr.f32.mxu0 0.0
  %5821 = vmatmul.mubr.f32.gmra.mxu0 %v5740
  %v5822 = vpop.f32.mrf.mxu0
  %v5823 = vadd.f32 0.0, %v5822
  %v5824 = vpop.f32.mrf.mxu0
  %5825 = vmatprep.mubr.f32.mxu0 0.0
  %5826 = vmatmul.mubr.f32.gmra.mxu0 %v5743
  %v5827 = vpop.f32.mrf.mxu0
  %v5828 = vadd.f32 0.0, %v5827
  %v5829 = vpop.f32.mrf.mxu0
  %5830 = vmatprep.mubr.f32.mxu0 0.0
  %5831 = vmatmul.mubr.f32.gmra.mxu0 %v5746
  %v5832 = vpop.f32.mrf.mxu0
  %v5833 = vadd.f32 0.0, %v5832
  %v5834 = vpop.f32.mrf.mxu0
  %5835 = vdwg.mxu0
  %v5836 = vadd.f32 %v5730, %v5818
  %v5837 = vadd.f32 %v5731, %v5823
  %v5838 = vadd.f32 %v5732, %v5828
  %v5839 = vadd.f32 %v5733, %v5833
  %v5840 = vld [vmem:[%s39] sm:$0xff]
  %v5841 = vld [vmem:[%s39 + $0x8] sm:$0xff]
  %v5842 = vld [vmem:[%s39 + $0x10] sm:$0xff]
  %v5843 = vld [vmem:[%s39 + $0x18] sm:$0xff]
  %v5844 = vadd.f32 %v5836, 0.0
  %v5845 = vadd.f32 %v5837, 0.0
  %v5846 = vadd.f32 %v5838, 0.0
  %v5847 = vadd.f32 %v5839, 0.0
  %v5849 = vsel %vm647, %v5840, 0
  %v5852 = vsel %vm647, %v5841, 0
  %v5855 = vsel %vm647, %v5842, 0
  %v5858 = vsel %vm647, %v5843, 0
  %5860 = vmatprep.subr.mxu0 0.0
  %5861 = vmatpush1.msra.mxu0 0.0
  %5862 = vmatprep.subr.mxu0 0.0
  %5863 = vmatpush1.msra.mxu0 0.0
  %5864 = vmatprep.subr.mxu0 0.0
  %5865 = vmatpush1.msra.mxu0 0.0
  %5866 = vmatprep.subr.mxu0 0.0
  %5867 = vmatpush1.msra.mxu0 0.0
  %5868 = vmatprep.subr.mxu0 0.0
  %5869 = vmatpush1.msra.mxu0 0.0
  %5870 = vmatprep.subr.mxu0 0.0
  %5871 = vmatpush1.msra.mxu0 0.0
  %5872 = vmatprep.subr.mxu0 0.0
  %5873 = vmatpush1.msra.mxu0 0.0
  %5874 = vmatprep.subr.mxu0 0.0
  %5875 = vmatpush1.msra.mxu0 0.0
  %5876 = vmatprep.subr.mxu0 0.0
  %5877 = vmatpush1.msra.mxu0 0.0
  %5878 = vmatprep.subr.mxu0 0.0
  %5879 = vmatpush1.msra.mxu0 0.0
  %5880 = vmatprep.subr.mxu0 0.0
  %5881 = vmatpush1.msra.mxu0 0.0
  %5882 = vmatprep.subr.mxu0 0.0
  %5883 = vmatpush1.msra.mxu0 0.0
  %5884 = vmatprep.subr.mxu0 0.0
  %5885 = vmatpush1.msra.mxu0 %v5847
  %5886 = vmatprep.subr.mxu0 0.0
  %5887 = vmatpush1.msra.mxu0 %v5846
  %5888 = vmatprep.subr.mxu0 0.0
  %5889 = vmatpush1.msra.mxu0 %v5845
  %5890 = vmatprep.subr.mxu0 0.0
  %5891 = vmatpush1.msra.mxu0 %v5844
  %5892 = vmatprep.subr.mxu0 0.0
  %5893 = vmatpush2.msra.mxu0 0.0
  %5894 = vmatprep.subr.mxu0 0.0
  %5895 = vmatpush2.msra.mxu0 0.0
  %5896 = vmatprep.subr.mxu0 0.0
  %5897 = vmatpush2.msra.mxu0 0.0
  %5898 = vmatprep.subr.mxu0 0.0
  %5899 = vmatpush2.msra.mxu0 0.0
  %5900 = vmatprep.subr.mxu0 0.0
  %5901 = vmatpush2.msra.mxu0 0.0
  %5902 = vmatprep.subr.mxu0 0.0
  %5903 = vmatpush2.msra.mxu0 0.0
  %5904 = vmatprep.subr.mxu0 0.0
  %5905 = vmatpush2.msra.mxu0 0.0
  %5906 = vmatprep.subr.mxu0 0.0
  %5907 = vmatpush2.msra.mxu0 0.0
  %5908 = vmatprep.subr.mxu0 0.0
  %5909 = vmatpush2.msra.mxu0 0.0
  %5910 = vmatprep.subr.mxu0 0.0
  %5911 = vmatpush2.msra.mxu0 0.0
  %5912 = vmatprep.subr.mxu0 0.0
  %5913 = vmatpush2.msra.mxu0 0.0
  %5914 = vmatprep.subr.mxu0 0.0
  %5915 = vmatpush2.msra.mxu0 0.0
  %5916 = vmatprep.subr.mxu0 0.0
  %5917 = vmatpush2.msra.mxu0 0.0
  %5918 = vmatprep.subr.mxu0 0.0
  %5919 = vmatpush2.msra.mxu0 0.0
  %5920 = vmatprep.subr.mxu0 0.0
  %5921 = vmatpush2.msra.mxu0 0.0
  %5922 = vmatprep.subr.mxu0 0.0
  %5923 = vmatpush2.msra.mxu0 0.0
  %5924 = vmatprep.mubr.f32.mxu0 0.0
  %5925 = vmatmul.mubr.f32.gmra.mxu0 %v5849
  %v5926 = vpop.f32.mrf.mxu0
  %v5927 = vadd.f32 0.0, %v5926
  %v5928 = vpop.f32.mrf.mxu0
  %5929 = vmatprep.mubr.f32.mxu0 0.0
  %5930 = vmatmul.mubr.f32.gmra.mxu0 %v5852
  %v5931 = vpop.f32.mrf.mxu0
  %v5932 = vadd.f32 0.0, %v5931
  %v5933 = vpop.f32.mrf.mxu0
  %5934 = vmatprep.mubr.f32.mxu0 0.0
  %5935 = vmatmul.mubr.f32.gmra.mxu0 %v5855
  %v5936 = vpop.f32.mrf.mxu0
  %v5937 = vadd.f32 0.0, %v5936
  %v5938 = vpop.f32.mrf.mxu0
  %5939 = vmatprep.mubr.f32.mxu0 0.0
  %5940 = vmatmul.mubr.f32.gmra.mxu0 %v5858
  %v5941 = vpop.f32.mrf.mxu0
  %v5942 = vadd.f32 0.0, %v5941
  %v5943 = vpop.f32.mrf.mxu0
  %5944 = vdwg.mxu0
  %v5945 = vmul.f32 %v5927, 0.5
  %v5946 = vmul.f32 %v5932, 0.5
  %v5947 = vmul.f32 %v5937, 0.5
  %v5948 = vmul.f32 %v5942, 0.5
  %v5949 = vsub.f32 %v5836, %v5945
  %v5950 = vsub.f32 %v5837, %v5946
  %v5951 = vsub.f32 %v5838, %v5947
  %v5952 = vsub.f32 %v5839, %v5948
  %v5953 = vmul.f32 %v5949, %v5949
  %v5954 = vmul.f32 %v5950, %v5950
  %v5955 = vmul.f32 %v5951, %v5951
  %v5956 = vmul.f32 %v5952, %v5952
  %v5957 = vadd.f32 %v5953, 0.0
  %v5958 = vadd.f32 %v5954, 0.0
  %v5959 = vadd.f32 %v5955, 0.0
  %v5960 = vadd.f32 %v5956, 0.0
  %5961 = vmatprep.subr.mxu0 0.0
  %5962 = vmatpush1.msra.mxu0 0.0
  %5963 = vmatprep.subr.mxu0 0.0
  %5964 = vmatpush1.msra.mxu0 0.0
  %5965 = vmatprep.subr.mxu0 0.0
  %5966 = vmatpush1.msra.mxu0 0.0
  %5967 = vmatprep.subr.mxu0 0.0
  %5968 = vmatpush1.msra.mxu0 0.0
  %5969 = vmatprep.subr.mxu0 0.0
  %5970 = vmatpush1.msra.mxu0 0.0
  %5971 = vmatprep.subr.mxu0 0.0
  %5972 = vmatpush1.msra.mxu0 0.0
  %5973 = vmatprep.subr.mxu0 0.0
  %5974 = vmatpush1.msra.mxu0 0.0
  %5975 = vmatprep.subr.mxu0 0.0
  %5976 = vmatpush1.msra.mxu0 0.0
  %5977 = vmatprep.subr.mxu0 0.0
  %5978 = vmatpush1.msra.mxu0 0.0
  %5979 = vmatprep.subr.mxu0 0.0
  %5980 = vmatpush1.msra.mxu0 0.0
  %5981 = vmatprep.subr.mxu0 0.0
  %5982 = vmatpush1.msra.mxu0 0.0
  %5983 = vmatprep.subr.mxu0 0.0
  %5984 = vmatpush1.msra.mxu0 0.0
  %5985 = vmatprep.subr.mxu0 0.0
  %5986 = vmatpush1.msra.mxu0 %v5960
  %5987 = vmatprep.subr.mxu0 0.0
  %5988 = vmatpush1.msra.mxu0 %v5959
  %5989 = vmatprep.subr.mxu0 0.0
  %5990 = vmatpush1.msra.mxu0 %v5958
  %5991 = vmatprep.subr.mxu0 0.0
  %5992 = vmatpush1.msra.mxu0 %v5957
  %5993 = vmatprep.subr.mxu0 0.0
  %5994 = vmatpush2.msra.mxu0 0.0
  %5995 = vmatprep.subr.mxu0 0.0
  %5996 = vmatpush2.msra.mxu0 0.0
  %5997 = vmatprep.subr.mxu0 0.0
  %5998 = vmatpush2.msra.mxu0 0.0
  %5999 = vmatprep.subr.mxu0 0.0
  %6000 = vmatpush2.msra.mxu0 0.0
  %6001 = vmatprep.subr.mxu0 0.0
  %6002 = vmatpush2.msra.mxu0 0.0
  %6003 = vmatprep.subr.mxu0 0.0
  %6004 = vmatpush2.msra.mxu0 0.0
  %6005 = vmatprep.subr.mxu0 0.0
  %6006 = vmatpush2.msra.mxu0 0.0
  %6007 = vmatprep.subr.mxu0 0.0
  %6008 = vmatpush2.msra.mxu0 0.0
  %6009 = vmatprep.subr.mxu0 0.0
  %6010 = vmatpush2.msra.mxu0 0.0
  %6011 = vmatprep.subr.mxu0 0.0
  %6012 = vmatpush2.msra.mxu0 0.0
  %6013 = vmatprep.subr.mxu0 0.0
  %6014 = vmatpush2.msra.mxu0 0.0
  %6015 = vmatprep.subr.mxu0 0.0
  %6016 = vmatpush2.msra.mxu0 0.0
  %6017 = vmatprep.subr.mxu0 0.0
  %6018 = vmatpush2.msra.mxu0 0.0
  %6019 = vmatprep.subr.mxu0 0.0
  %6020 = vmatpush2.msra.mxu0 0.0
  %6021 = vmatprep.subr.mxu0 0.0
  %6022 = vmatpush2.msra.mxu0 0.0
  %6023 = vmatprep.subr.mxu0 0.0
  %6024 = vmatpush2.msra.mxu0 0.0
  %6025 = vmatprep.mubr.f32.mxu0 0.0
  %6026 = vmatmul.mubr.f32.gmra.mxu0 %v5849
  %v6027 = vpop.f32.mrf.mxu0
  %v6028 = vadd.f32 0.0, %v6027
  %v6029 = vpop.f32.mrf.mxu0
  %6030 = vmatprep.mubr.f32.mxu0 0.0
  %6031 = vmatmul.mubr.f32.gmra.mxu0 %v5852
  %v6032 = vpop.f32.mrf.mxu0
  %v6033 = vadd.f32 0.0, %v6032
  %v6034 = vpop.f32.mrf.mxu0
  %6035 = vmatprep.mubr.f32.mxu0 0.0
  %6036 = vmatmul.mubr.f32.gmra.mxu0 %v5855
  %v6037 = vpop.f32.mrf.mxu0
  %v6038 = vadd.f32 0.0, %v6037
  %v6039 = vpop.f32.mrf.mxu0
  %6040 = vmatprep.mubr.f32.mxu0 0.0
  %6041 = vmatmul.mubr.f32.gmra.mxu0 %v5858
  %v6042 = vpop.f32.mrf.mxu0
  %v6043 = vadd.f32 0.0, %v6042
  %v6044 = vpop.f32.mrf.mxu0
  %6045 = vdwg.mxu0
  %v6046 = vmul.f32 %v6028, 0.5
  %v6047 = vmul.f32 %v6033, 0.5
  %v6048 = vmul.f32 %v6038, 0.5
  %v6049 = vmul.f32 %v6043, 0.5
  %v6050 = vadd.f32 %v6046, 1e-05
  %v6051 = vadd.f32 %v6047, 1e-05
  %v6052 = vadd.f32 %v6048, 1e-05
  %v6053 = vadd.f32 %v6049, 1e-05
  %v6054 = vrsqrt.pop %v6050
  %v6055 = vrsqrt.pop %v6051
  %v6056 = vrsqrt.pop %v6052
  %v6057 = vrsqrt.pop %v6053
  %v6058 = vmul.f32 %v6054, %v5620
  %v6059 = vmul.f32 %v6055, %v5621
  %v6060 = vmul.f32 %v6056, %v5622
  %v6061 = vmul.f32 %v6057, %v5623
  %v6062 = vmul.f32 %v5949, %v6058
  %v6063 = vmul.f32 %v5950, %v6059
  %v6064 = vmul.f32 %v5951, %v6060
  %v6065 = vmul.f32 %v5952, %v6061
  %v6066 = vadd.f32 %v6062, %v5624
  %v6067 = vadd.f32 %v6063, %v5625
  %v6068 = vadd.f32 %v6064, %v5626
  %v6069 = vadd.f32 %v6065, %v5627
  %v6070 = vmax.f32 %v6066, 0.0
  %v6071 = vmax.f32 %v6067, 0.0
  %v6072 = vmax.f32 %v6068, 0.0
  %v6073 = vmax.f32 %v6069, 0.0
  %v6074 = vld [vmem:[%s41] sm:$0xff]
  %v6075 = vld [vmem:[%s41 + $0x8] sm:$0xff]
  %v6076 = vld [vmem:[%s41 + $0x10] sm:$0xff]
  %v6077 = vld [vmem:[%s41 + $0x18] sm:$0xff]
  %v6079 = vsel %vm647, %v6074, 0
  %v6082 = vsel %vm647, %v6075, 0
  %v6085 = vsel %vm647, %v6076, 0
  %v6088 = vsel %vm647, %v6077, 0
  %6090 = vmatprep.subr.mxu0 0.0
  %6091 = vmatpush1.msra.mxu0 0.0
  %6092 = vmatprep.subr.mxu0 0.0
  %6093 = vmatpush1.msra.mxu0 0.0
  %6094 = vmatprep.subr.mxu0 0.0
  %6095 = vmatpush1.msra.mxu0 0.0
  %6096 = vmatprep.subr.mxu0 0.0
  %6097 = vmatpush1.msra.mxu0 0.0
  %6098 = vmatprep.subr.mxu0 0.0
  %6099 = vmatpush1.msra.mxu0 0.0
  %6100 = vmatprep.subr.mxu0 0.0
  %6101 = vmatpush1.msra.mxu0 0.0
  %6102 = vmatprep.subr.mxu0 0.0
  %6103 = vmatpush1.msra.mxu0 0.0
  %6104 = vmatprep.subr.mxu0 0.0
  %6105 = vmatpush1.msra.mxu0 0.0
  %6106 = vmatprep.subr.mxu0 0.0
  %6107 = vmatpush1.msra.mxu0 0.0
  %6108 = vmatprep.subr.mxu0 0.0
  %6109 = vmatpush1.msra.mxu0 0.0
  %6110 = vmatprep.subr.mxu0 0.0
  %6111 = vmatpush1.msra.mxu0 0.0
  %6112 = vmatprep.subr.mxu0 0.0
  %6113 = vmatpush1.msra.mxu0 0.0
  %6114 = vmatprep.subr.mxu0 0.0
  %6115 = vmatpush1.msra.mxu0 %v6073
  %6116 = vmatprep.subr.mxu0 0.0
  %6117 = vmatpush1.msra.mxu0 %v6072
  %6118 = vmatprep.subr.mxu0 0.0
  %6119 = vmatpush1.msra.mxu0 %v6071
  %6120 = vmatprep.subr.mxu0 0.0
  %6121 = vmatpush1.msra.mxu0 %v6070
  %6122 = vmatprep.subr.mxu0 0.0
  %6123 = vmatpush2.msra.mxu0 0.0
  %6124 = vmatprep.subr.mxu0 0.0
  %6125 = vmatpush2.msra.mxu0 0.0
  %6126 = vmatprep.subr.mxu0 0.0
  %6127 = vmatpush2.msra.mxu0 0.0
  %6128 = vmatprep.subr.mxu0 0.0
  %6129 = vmatpush2.msra.mxu0 0.0
  %6130 = vmatprep.subr.mxu0 0.0
  %6131 = vmatpush2.msra.mxu0 0.0
  %6132 = vmatprep.subr.mxu0 0.0
  %6133 = vmatpush2.msra.mxu0 0.0
  %6134 = vmatprep.subr.mxu0 0.0
  %6135 = vmatpush2.msra.mxu0 0.0
  %6136 = vmatprep.subr.mxu0 0.0
  %6137 = vmatpush2.msra.mxu0 0.0
  %6138 = vmatprep.subr.mxu0 0.0
  %6139 = vmatpush2.msra.mxu0 0.0
  %6140 = vmatprep.subr.mxu0 0.0
  %6141 = vmatpush2.msra.mxu0 0.0
  %6142 = vmatprep.subr.mxu0 0.0
  %6143 = vmatpush2.msra.mxu0 0.0
  %6144 = vmatprep.subr.mxu0 0.0
  %6145 = vmatpush2.msra.mxu0 0.0
  %6146 = vmatprep.subr.mxu0 0.0
  %6147 = vmatpush2.msra.mxu0 0.0
  %6148 = vmatprep.subr.mxu0 0.0
  %6149 = vmatpush2.msra.mxu0 0.0
  %6150 = vmatprep.subr.mxu0 0.0
  %6151 = vmatpush2.msra.mxu0 0.0
  %6152 = vmatprep.subr.mxu0 0.0
  %6153 = vmatpush2.msra.mxu0 0.0
  %6154 = vmatprep.mubr.f32.mxu0 0.0
  %6155 = vmatmul.mubr.f32.gmra.mxu0 %v6079
  %v6156 = vpop.f32.mrf.mxu0
  %v6157 = vadd.f32 0.0, %v6156
  %v6158 = vpop.f32.mrf.mxu0
  %6159 = vmatprep.mubr.f32.mxu0 0.0
  %6160 = vmatmul.mubr.f32.gmra.mxu0 %v6082
  %v6161 = vpop.f32.mrf.mxu0
  %v6162 = vadd.f32 0.0, %v6161
  %v6163 = vpop.f32.mrf.mxu0
  %6164 = vmatprep.mubr.f32.mxu0 0.0
  %6165 = vmatmul.mubr.f32.gmra.mxu0 %v6085
  %v6166 = vpop.f32.mrf.mxu0
  %v6167 = vadd.f32 0.0, %v6166
  %v6168 = vpop.f32.mrf.mxu0
  %6169 = vmatprep.mubr.f32.mxu0 0.0
  %6170 = vmatmul.mubr.f32.gmra.mxu0 %v6088
  %v6171 = vpop.f32.mrf.mxu0
  %v6172 = vadd.f32 0.0, %v6171
  %v6173 = vpop.f32.mrf.mxu0
  %6174 = vdwg.mxu0
  %v6175 = vld [vmem:[%s45] sm:$0xff]
  %v6176 = vld [vmem:[%s45 + $0x8] sm:$0xff]
  %v6177 = vld [vmem:[%s45 + $0x10] sm:$0xff]
  %v6178 = vld [vmem:[%s45 + $0x18] sm:$0xff]
  %v6179 = vld [vmem:[%s45 + $0x20] sm:$0xff]
  %v6180 = vld [vmem:[%s45 + $0x28] sm:$0xff]
  %v6181 = vld [vmem:[%s45 + $0x30] sm:$0xff]
  %v6182 = vld [vmem:[%s45 + $0x38] sm:$0xff]
  %v6183 = vld [vmem:[%s45 + $0x40] sm:$0xff]
  %v6184 = vld [vmem:[%s45 + $0x48] sm:$0xff]
  %v6185 = vld [vmem:[%s45 + $0x50] sm:$0xff]
  %v6186 = vld [vmem:[%s45 + $0x58] sm:$0xff]
  %v6187 = vld [vmem:[%s43] sm:$0x1]
  %6189 = vset.pattern.permute.xlu0 0
  %6190 = vperm.xlu0 %6189, %v6157
  %v6191 = vpop.permute.xlu0 %6190
  %6194 = vset.pattern.permute.xlu0 0
  %6195 = vperm.xlu0 %6194, %v6162
  %v6196 = vpop.permute.xlu0 %6195
  %6199 = vset.pattern.permute.xlu0 0
  %6200 = vperm.xlu0 %6199, %v6167
  %v6201 = vpop.permute.xlu0 %6200
  %6204 = vset.pattern.permute.xlu0 0
  %6205 = vperm.xlu0 %6204, %v6172
  %v6206 = vpop.permute.xlu0 %6205
  %v6209 = vlaneseq
  %v6210 = vshrl.u32 %v6209, 7
  %v6211 = vsub.s32 0, %v6210
  %v6212 = vrot.slane %v6187, %v6211
  %v6214 = vmul.f32 %v6191, %v6212
  %v6215 = vmul.f32 %v6196, %v6212
  %v6216 = vmul.f32 %v6201, %v6212
  %v6217 = vmul.f32 %v6206, %v6212
  %6219 = vset.pattern.permute.xlu0 0
  %6220 = vperm.xlu0 %6219, %v6175
  %v6221 = vpop.permute.xlu0 %6220
  %6224 = vset.pattern.permute.xlu0 0
  %6225 = vperm.xlu0 %6224, %v6176
  %v6226 = vpop.permute.xlu0 %6225
  %6229 = vset.pattern.permute.xlu0 0
  %6230 = vperm.xlu0 %6229, %v6177
  %v6231 = vpop.permute.xlu0 %6230
  %6234 = vset.pattern.permute.xlu0 0
  %6235 = vperm.xlu0 %6234, %v6178
  %v6236 = vpop.permute.xlu0 %6235
  %v6238 = vadd.f32 %v6221, %v6214
  %v6239 = vadd.f32 %v6226, %v6215
  %v6240 = vadd.f32 %v6231, %v6216
  %v6241 = vadd.f32 %v6236, %v6217
  %v6242 = vld [vmem:[%s47] sm:$0xff]
  %v6243 = vld [vmem:[%s47 + $0x8] sm:$0xff]
  %v6244 = vld [vmem:[%s47 + $0x10] sm:$0xff]
  %v6245 = vld [vmem:[%s47 + $0x18] sm:$0xff]
  %v6246 = vsel %vm5164, %v6238, 0.0
  %6247 = vadd.xlane.f32.xlu0 %v6246
  %v6248 = vpop.xlane.xlu0 %6247
  %v6249 = vsel %vm5164, %v6239, 0.0
  %6250 = vadd.xlane.f32.xlu0 %v6249
  %v6251 = vpop.xlane.xlu0 %6250
  %v6252 = vsel %vm5164, %v6240, 0.0
  %6253 = vadd.xlane.f32.xlu0 %v6252
  %v6254 = vpop.xlane.xlu0 %6253
  %v6255 = vsel %vm5164, %v6241, 0.0
  %6256 = vadd.xlane.f32.xlu0 %v6255
  %v6257 = vpop.xlane.xlu0 %6256
  %v6259 = vsel %vm647, %v6242, 0
  %v6262 = vsel %vm647, %v6243, 0
  %v6265 = vsel %vm647, %v6244, 0
  %v6268 = vsel %vm647, %v6245, 0
  %6270 = vmatprep.subr.mxu0 0.0
  %6271 = vmatpush1.msra.mxu0 0.0
  %6272 = vmatprep.subr.mxu0 0.0
  %6273 = vmatpush1.msra.mxu0 0.0
  %6274 = vmatprep.subr.mxu0 0.0
  %6275 = vmatpush1.msra.mxu0 0.0
  %6276 = vmatprep.subr.mxu0 0.0
  %6277 = vmatpush1.msra.mxu0 0.0
  %6278 = vmatprep.subr.mxu0 0.0
  %6279 = vmatpush1.msra.mxu0 0.0
  %6280 = vmatprep.subr.mxu0 0.0
  %6281 = vmatpush1.msra.mxu0 0.0
  %6282 = vmatprep.subr.mxu0 0.0
  %6283 = vmatpush1.msra.mxu0 0.0
  %6284 = vmatprep.subr.mxu0 0.0
  %6285 = vmatpush1.msra.mxu0 0.0
  %6286 = vmatprep.subr.mxu0 0.0
  %6287 = vmatpush1.msra.mxu0 0.0
  %6288 = vmatprep.subr.mxu0 0.0
  %6289 = vmatpush1.msra.mxu0 0.0
  %6290 = vmatprep.subr.mxu0 0.0
  %6291 = vmatpush1.msra.mxu0 0.0
  %6292 = vmatprep.subr.mxu0 0.0
  %6293 = vmatpush1.msra.mxu0 0.0
  %6294 = vmatprep.subr.mxu0 0.0
  %6295 = vmatpush1.msra.mxu0 %v6257
  %6296 = vmatprep.subr.mxu0 0.0
  %6297 = vmatpush1.msra.mxu0 %v6254
  %6298 = vmatprep.subr.mxu0 0.0
  %6299 = vmatpush1.msra.mxu0 %v6251
  %6300 = vmatprep.subr.mxu0 0.0
  %6301 = vmatpush1.msra.mxu0 %v6248
  %6302 = vmatprep.subr.mxu0 0.0
  %6303 = vmatpush2.msra.mxu0 0.0
  %6304 = vmatprep.subr.mxu0 0.0
  %6305 = vmatpush2.msra.mxu0 0.0
  %6306 = vmatprep.subr.mxu0 0.0
  %6307 = vmatpush2.msra.mxu0 0.0
  %6308 = vmatprep.subr.mxu0 0.0
  %6309 = vmatpush2.msra.mxu0 0.0
  %6310 = vmatprep.subr.mxu0 0.0
  %6311 = vmatpush2.msra.mxu0 0.0
  %6312 = vmatprep.subr.mxu0 0.0
  %6313 = vmatpush2.msra.mxu0 0.0
  %6314 = vmatprep.subr.mxu0 0.0
  %6315 = vmatpush2.msra.mxu0 0.0
  %6316 = vmatprep.subr.mxu0 0.0
  %6317 = vmatpush2.msra.mxu0 0.0
  %6318 = vmatprep.subr.mxu0 0.0
  %6319 = vmatpush2.msra.mxu0 0.0
  %6320 = vmatprep.subr.mxu0 0.0
  %6321 = vmatpush2.msra.mxu0 0.0
  %6322 = vmatprep.subr.mxu0 0.0
  %6323 = vmatpush2.msra.mxu0 0.0
  %6324 = vmatprep.subr.mxu0 0.0
  %6325 = vmatpush2.msra.mxu0 0.0
  %6326 = vmatprep.subr.mxu0 0.0
  %6327 = vmatpush2.msra.mxu0 0.0
  %6328 = vmatprep.subr.mxu0 0.0
  %6329 = vmatpush2.msra.mxu0 0.0
  %6330 = vmatprep.subr.mxu0 0.0
  %6331 = vmatpush2.msra.mxu0 0.0
  %6332 = vmatprep.subr.mxu0 0.0
  %6333 = vmatpush2.msra.mxu0 0.0
  %6334 = vmatprep.mubr.f32.mxu0 0.0
  %6335 = vmatmul.mubr.f32.gmra.mxu0 %v6259
  %v6336 = vpop.f32.mrf.mxu0
  %v6337 = vadd.f32 0.0, %v6336
  %v6338 = vpop.f32.mrf.mxu0
  %6339 = vmatprep.mubr.f32.mxu0 0.0
  %6340 = vmatmul.mubr.f32.gmra.mxu0 %v6262
  %v6341 = vpop.f32.mrf.mxu0
  %v6342 = vadd.f32 0.0, %v6341
  %v6343 = vpop.f32.mrf.mxu0
  %6344 = vmatprep.mubr.f32.mxu0 0.0
  %6345 = vmatmul.mubr.f32.gmra.mxu0 %v6265
  %v6346 = vpop.f32.mrf.mxu0
  %v6347 = vadd.f32 0.0, %v6346
  %v6348 = vpop.f32.mrf.mxu0
  %6349 = vmatprep.mubr.f32.mxu0 0.0
  %6350 = vmatmul.mubr.f32.gmra.mxu0 %v6268
  %v6351 = vpop.f32.mrf.mxu0
  %v6352 = vadd.f32 0.0, %v6351
  %v6353 = vpop.f32.mrf.mxu0
  %6354 = vdwg.mxu0
  %v6355 = vmul.f32 %v6337, 0.125
  %v6356 = vmul.f32 %v6342, 0.125
  %v6357 = vmul.f32 %v6347, 0.125
  %v6358 = vmul.f32 %v6352, 0.125
  %6360 = vset.pattern.permute.xlu0 0
  %6361 = vperm.xlu0 %6360, %v6355
  %v6362 = vpop.permute.xlu0 %6361
  %6365 = vset.pattern.permute.xlu0 0
  %6366 = vperm.xlu0 %6365, %v6356
  %v6367 = vpop.permute.xlu0 %6366
  %6370 = vset.pattern.permute.xlu0 0
  %6371 = vperm.xlu0 %6370, %v6357
  %v6372 = vpop.permute.xlu0 %6371
  %6375 = vset.pattern.permute.xlu0 0
  %6376 = vperm.xlu0 %6375, %v6358
  %v6377 = vpop.permute.xlu0 %6376
  %v6379 = vsub.f32 %v6238, %v6362
  %v6380 = vsub.f32 %v6239, %v6367
  %v6381 = vsub.f32 %v6240, %v6372
  %v6382 = vsub.f32 %v6241, %v6377
  %v6383 = vmul.f32 %v6379, %v6379
  %v6384 = vmul.f32 %v6380, %v6380
  %v6385 = vmul.f32 %v6381, %v6381
  %v6386 = vmul.f32 %v6382, %v6382
  %v6387 = vsel %vm5164, %v6383, 0.0
  %6388 = vadd.xlane.f32.xlu0 %v6387
  %v6389 = vpop.xlane.xlu0 %6388
  %v6390 = vsel %vm5164, %v6384, 0.0
  %6391 = vadd.xlane.f32.xlu0 %v6390
  %v6392 = vpop.xlane.xlu0 %6391
  %v6393 = vsel %vm5164, %v6385, 0.0
  %6394 = vadd.xlane.f32.xlu0 %v6393
  %v6395 = vpop.xlane.xlu0 %6394
  %v6396 = vsel %vm5164, %v6386, 0.0
  %6397 = vadd.xlane.f32.xlu0 %v6396
  %v6398 = vpop.xlane.xlu0 %6397
  %6399 = vmatprep.subr.mxu0 0.0
  %6400 = vmatpush1.msra.mxu0 0.0
  %6401 = vmatprep.subr.mxu0 0.0
  %6402 = vmatpush1.msra.mxu0 0.0
  %6403 = vmatprep.subr.mxu0 0.0
  %6404 = vmatpush1.msra.mxu0 0.0
  %6405 = vmatprep.subr.mxu0 0.0
  %6406 = vmatpush1.msra.mxu0 0.0
  %6407 = vmatprep.subr.mxu0 0.0
  %6408 = vmatpush1.msra.mxu0 0.0
  %6409 = vmatprep.subr.mxu0 0.0
  %6410 = vmatpush1.msra.mxu0 0.0
  %6411 = vmatprep.subr.mxu0 0.0
  %6412 = vmatpush1.msra.mxu0 0.0
  %6413 = vmatprep.subr.mxu0 0.0
  %6414 = vmatpush1.msra.mxu0 0.0
  %6415 = vmatprep.subr.mxu0 0.0
  %6416 = vmatpush1.msra.mxu0 0.0
  %6417 = vmatprep.subr.mxu0 0.0
  %6418 = vmatpush1.msra.mxu0 0.0
  %6419 = vmatprep.subr.mxu0 0.0
  %6420 = vmatpush1.msra.mxu0 0.0
  %6421 = vmatprep.subr.mxu0 0.0
  %6422 = vmatpush1.msra.mxu0 0.0
  %6423 = vmatprep.subr.mxu0 0.0
  %6424 = vmatpush1.msra.mxu0 %v6398
  %6425 = vmatprep.subr.mxu0 0.0
  %6426 = vmatpush1.msra.mxu0 %v6395
  %6427 = vmatprep.subr.mxu0 0.0
  %6428 = vmatpush1.msra.mxu0 %v6392
  %6429 = vmatprep.subr.mxu0 0.0
  %6430 = vmatpush1.msra.mxu0 %v6389
  %6431 = vmatprep.subr.mxu0 0.0
  %6432 = vmatpush2.msra.mxu0 0.0
  %6433 = vmatprep.subr.mxu0 0.0
  %6434 = vmatpush2.msra.mxu0 0.0
  %6435 = vmatprep.subr.mxu0 0.0
  %6436 = vmatpush2.msra.mxu0 0.0
  %6437 = vmatprep.subr.mxu0 0.0
  %6438 = vmatpush2.msra.mxu0 0.0
  %6439 = vmatprep.subr.mxu0 0.0
  %6440 = vmatpush2.msra.mxu0 0.0
  %6441 = vmatprep.subr.mxu0 0.0
  %6442 = vmatpush2.msra.mxu0 0.0
  %6443 = vmatprep.subr.mxu0 0.0
  %6444 = vmatpush2.msra.mxu0 0.0
  %6445 = vmatprep.subr.mxu0 0.0
  %6446 = vmatpush2.msra.mxu0 0.0
  %6447 = vmatprep.subr.mxu0 0.0
  %6448 = vmatpush2.msra.mxu0 0.0
  %6449 = vmatprep.subr.mxu0 0.0
  %6450 = vmatpush2.msra.mxu0 0.0
  %6451 = vmatprep.subr.mxu0 0.0
  %6452 = vmatpush2.msra.mxu0 0.0
  %6453 = vmatprep.subr.mxu0 0.0
  %6454 = vmatpush2.msra.mxu0 0.0
  %6455 = vmatprep.subr.mxu0 0.0
  %6456 = vmatpush2.msra.mxu0 0.0
  %6457 = vmatprep.subr.mxu0 0.0
  %6458 = vmatpush2.msra.mxu0 0.0
  %6459 = vmatprep.subr.mxu0 0.0
  %6460 = vmatpush2.msra.mxu0 0.0
  %6461 = vmatprep.subr.mxu0 0.0
  %6462 = vmatpush2.msra.mxu0 0.0
  %6463 = vmatprep.mubr.f32.mxu0 0.0
  %6464 = vmatmul.mubr.f32.gmra.mxu0 %v6259
  %v6465 = vpop.f32.mrf.mxu0
  %v6466 = vadd.f32 0.0, %v6465
  %v6467 = vpop.f32.mrf.mxu0
  %6468 = vmatprep.mubr.f32.mxu0 0.0
  %6469 = vmatmul.mubr.f32.gmra.mxu0 %v6262
  %v6470 = vpop.f32.mrf.mxu0
  %v6471 = vadd.f32 0.0, %v6470
  %v6472 = vpop.f32.mrf.mxu0
  %6473 = vmatprep.mubr.f32.mxu0 0.0
  %6474 = vmatmul.mubr.f32.gmra.mxu0 %v6265
  %v6475 = vpop.f32.mrf.mxu0
  %v6476 = vadd.f32 0.0, %v6475
  %v6477 = vpop.f32.mrf.mxu0
  %6478 = vmatprep.mubr.f32.mxu0 0.0
  %6479 = vmatmul.mubr.f32.gmra.mxu0 %v6268
  %v6480 = vpop.f32.mrf.mxu0
  %v6481 = vadd.f32 0.0, %v6480
  %v6482 = vpop.f32.mrf.mxu0
  %6483 = vdwg.mxu0
  %v6484 = vmul.f32 %v6466, 0.125
  %v6485 = vmul.f32 %v6471, 0.125
  %v6486 = vmul.f32 %v6476, 0.125
  %v6487 = vmul.f32 %v6481, 0.125
  %v6488 = vadd.f32 %v6484, 1e-05
  %v6489 = vadd.f32 %v6485, 1e-05
  %v6490 = vadd.f32 %v6486, 1e-05
  %v6491 = vadd.f32 %v6487, 1e-05
  %v6492 = vrsqrt.pop %v6488
  %v6493 = vrsqrt.pop %v6489
  %v6494 = vrsqrt.pop %v6490
  %v6495 = vrsqrt.pop %v6491
  %v6496 = vmul.f32 %v6492, %v6179
  %v6497 = vmul.f32 %v6493, %v6180
  %v6498 = vmul.f32 %v6494, %v6181
  %v6499 = vmul.f32 %v6495, %v6182
  %6501 = vset.pattern.permute.xlu0 0
  %6502 = vperm.xlu0 %6501, %v6496
  %v6503 = vpop.permute.xlu0 %6502
  %6506 = vset.pattern.permute.xlu0 0
  %6507 = vperm.xlu0 %6506, %v6497
  %v6508 = vpop.permute.xlu0 %6507
  %6511 = vset.pattern.permute.xlu0 0
  %6512 = vperm.xlu0 %6511, %v6498
  %v6513 = vpop.permute.xlu0 %6512
  %6516 = vset.pattern.permute.xlu0 0
  %6517 = vperm.xlu0 %6516, %v6499
  %v6518 = vpop.permute.xlu0 %6517
  %v6520 = vmul.f32 %v6379, %v6503
  %v6521 = vmul.f32 %v6380, %v6508
  %v6522 = vmul.f32 %v6381, %v6513
  %v6523 = vmul.f32 %v6382, %v6518
  %6525 = vset.pattern.permute.xlu0 0
  %6526 = vperm.xlu0 %6525, %v6183
  %v6527 = vpop.permute.xlu0 %6526
  %6530 = vset.pattern.permute.xlu0 0
  %6531 = vperm.xlu0 %6530, %v6184
  %v6532 = vpop.permute.xlu0 %6531
  %6535 = vset.pattern.permute.xlu0 0
  %6536 = vperm.xlu0 %6535, %v6185
  %v6537 = vpop.permute.xlu0 %6536
  %6540 = vset.pattern.permute.xlu0 0
  %6541 = vperm.xlu0 %6540, %v6186
  %v6542 = vpop.permute.xlu0 %6541
  %v6544 = vadd.f32 %v6520, %v6527
  %v6545 = vadd.f32 %v6521, %v6532
  %v6546 = vadd.f32 %v6522, %v6537
  %v6547 = vadd.f32 %v6523, %v6542
  %v6548 = vmax.f32 %v6544, 0.0
  %v6549 = vmax.f32 %v6545, 0.0
  %v6550 = vmax.f32 %v6546, 0.0
  %v6551 = vmax.f32 %v6547, 0.0
  %v6552 = vld [vmem:[%s49] sm:$0xff]
  %v6553 = vld [vmem:[%s49 + $0x8] sm:$0xff]
  %v6554 = vld [vmem:[%s49 + $0x10] sm:$0xff]
  %v6555 = vld [vmem:[%s49 + $0x18] sm:$0xff]
  %v6556 = vld [vmem:[%s49 + $0x20] sm:$0xff]
  %v6557 = vld [vmem:[%s49 + $0x28] sm:$0xff]
  %v6558 = vld [vmem:[%s49 + $0x30] sm:$0xff]
  %v6559 = vld [vmem:[%s49 + $0x38] sm:$0xff]
  %v6560 = vld [vmem:[%s49 + $0x40] sm:$0xff]
  %v6561 = vld [vmem:[%s49 + $0x48] sm:$0xff]
  %v6562 = vld [vmem:[%s49 + $0x50] sm:$0xff]
  %v6563 = vld [vmem:[%s49 + $0x58] sm:$0xff]
  %v6564 = vld [vmem:[%s49 + $0x60] sm:$0xff]
  %v6565 = vld [vmem:[%s49 + $0x68] sm:$0xff]
  %v6566 = vld [vmem:[%s49 + $0x70] sm:$0xff]
  %v6567 = vld [vmem:[%s49 + $0x78] sm:$0xff]
  %v6568 = vld [vmem:[%s49 + $0x80] sm:$0xff]
  %v6569 = vld [vmem:[%s49 + $0x88] sm:$0xff]
  %v6570 = vld [vmem:[%s49 + $0x90] sm:$0xff]
  %v6571 = vld [vmem:[%s49 + $0x98] sm:$0xff]
  %v6572 = vld [vmem:[%s49 + $0xa0] sm:$0xff]
  %v6573 = vld [vmem:[%s49 + $0xa8] sm:$0xff]
  %v6574 = vld [vmem:[%s49 + $0xb0] sm:$0xff]
  %v6575 = vld [vmem:[%s49 + $0xb8] sm:$0xff]
  %v6577 = vsel %vm647, %v6552, 0
  %v6580 = vsel %vm647, %v6553, 0
  %v6583 = vsel %vm647, %v6554, 0
  %v6586 = vsel %vm647, %v6555, 0
  %v6589 = vsel %vm647, %v6556, 0
  %v6592 = vsel %vm647, %v6557, 0
  %v6595 = vsel %vm647, %v6558, 0
  %v6598 = vsel %vm647, %v6559, 0
  %v6601 = vsel %vm647, %v6560, 0
  %v6604 = vsel %vm647, %v6561, 0
  %v6607 = vsel %vm647, %v6562, 0
  %v6610 = vsel %vm647, %v6563, 0
  %v6613 = vsel %vm647, %v6564, 0
  %v6616 = vsel %vm647, %v6565, 0
  %v6619 = vsel %vm647, %v6566, 0
  %v6622 = vsel %vm647, %v6567, 0
  %v6625 = vsel %vm647, %v6568, 0
  %v6628 = vsel %vm647, %v6569, 0
  %v6631 = vsel %vm647, %v6570, 0
  %v6634 = vsel %vm647, %v6571, 0
  %v6637 = vsel %vm647, %v6572, 0
  %v6640 = vsel %vm647, %v6573, 0
  %v6643 = vsel %vm647, %v6574, 0
  %v6646 = vsel %vm647, %v6575, 0
  %6648 = vmatprep.subr.mxu0 0.0
  %6649 = vmatpush1.msra.mxu0 0.0
  %6650 = vmatprep.subr.mxu0 0.0
  %6651 = vmatpush1.msra.mxu0 0.0
  %6652 = vmatprep.subr.mxu0 0.0
  %6653 = vmatpush1.msra.mxu0 0.0
  %6654 = vmatprep.subr.mxu0 0.0
  %6655 = vmatpush1.msra.mxu0 0.0
  %6656 = vmatprep.subr.mxu0 0.0
  %6657 = vmatpush1.msra.mxu0 0.0
  %6658 = vmatprep.subr.mxu0 0.0
  %6659 = vmatpush1.msra.mxu0 0.0
  %6660 = vmatprep.subr.mxu0 0.0
  %6661 = vmatpush1.msra.mxu0 0.0
  %6662 = vmatprep.subr.mxu0 0.0
  %6663 = vmatpush1.msra.mxu0 0.0
  %6664 = vmatprep.subr.mxu0 0.0
  %6665 = vmatpush1.msra.mxu0 0.0
  %6666 = vmatprep.subr.mxu0 0.0
  %6667 = vmatpush1.msra.mxu0 0.0
  %6668 = vmatprep.subr.mxu0 0.0
  %6669 = vmatpush1.msra.mxu0 0.0
  %6670 = vmatprep.subr.mxu0 0.0
  %6671 = vmatpush1.msra.mxu0 0.0
  %6672 = vmatprep.subr.mxu0 0.0
  %6673 = vmatpush1.msra.mxu0 %v6551
  %6674 = vmatprep.subr.mxu0 0.0
  %6675 = vmatpush1.msra.mxu0 %v6550
  %6676 = vmatprep.subr.mxu0 0.0
  %6677 = vmatpush1.msra.mxu0 %v6549
  %6678 = vmatprep.subr.mxu0 0.0
  %6679 = vmatpush1.msra.mxu0 %v6548
  %6680 = vmatprep.subr.mxu0 0.0
  %6681 = vmatpush2.msra.mxu0 0.0
  %6682 = vmatprep.subr.mxu0 0.0
  %6683 = vmatpush2.msra.mxu0 0.0
  %6684 = vmatprep.subr.mxu0 0.0
  %6685 = vmatpush2.msra.mxu0 0.0
  %6686 = vmatprep.subr.mxu0 0.0
  %6687 = vmatpush2.msra.mxu0 0.0
  %6688 = vmatprep.subr.mxu0 0.0
  %6689 = vmatpush2.msra.mxu0 0.0
  %6690 = vmatprep.subr.mxu0 0.0
  %6691 = vmatpush2.msra.mxu0 0.0
  %6692 = vmatprep.subr.mxu0 0.0
  %6693 = vmatpush2.msra.mxu0 0.0
  %6694 = vmatprep.subr.mxu0 0.0
  %6695 = vmatpush2.msra.mxu0 0.0
  %6696 = vmatprep.subr.mxu0 0.0
  %6697 = vmatpush2.msra.mxu0 0.0
  %6698 = vmatprep.subr.mxu0 0.0
  %6699 = vmatpush2.msra.mxu0 0.0
  %6700 = vmatprep.subr.mxu0 0.0
  %6701 = vmatpush2.msra.mxu0 0.0
  %6702 = vmatprep.subr.mxu0 0.0
  %6703 = vmatpush2.msra.mxu0 0.0
  %6704 = vmatprep.subr.mxu0 0.0
  %6705 = vmatpush2.msra.mxu0 0.0
  %6706 = vmatprep.subr.mxu0 0.0
  %6707 = vmatpush2.msra.mxu0 0.0
  %6708 = vmatprep.subr.mxu0 0.0
  %6709 = vmatpush2.msra.mxu0 0.0
  %6710 = vmatprep.subr.mxu0 0.0
  %6711 = vmatpush2.msra.mxu0 0.0
  %6712 = vmatprep.mubr.f32.mxu0 0.0
  %6713 = vmatmul.mubr.f32.gmra.mxu0 %v6577
  %v6714 = vpop.f32.mrf.mxu0
  %v6715 = vadd.f32 0.0, %v6714
  %v6716 = vpop.f32.mrf.mxu0
  %6717 = vmatprep.mubr.f32.mxu0 0.0
  %6718 = vmatmul.mubr.f32.gmra.mxu0 %v6580
  %v6719 = vpop.f32.mrf.mxu0
  %v6720 = vadd.f32 0.0, %v6719
  %v6721 = vpop.f32.mrf.mxu0
  %6722 = vmatprep.mubr.f32.mxu0 0.0
  %6723 = vmatmul.mubr.f32.gmra.mxu0 %v6583
  %v6724 = vpop.f32.mrf.mxu0
  %v6725 = vadd.f32 0.0, %v6724
  %v6726 = vpop.f32.mrf.mxu0
  %6727 = vmatprep.mubr.f32.mxu0 0.0
  %6728 = vmatmul.mubr.f32.gmra.mxu0 %v6586
  %v6729 = vpop.f32.mrf.mxu0
  %v6730 = vadd.f32 0.0, %v6729
  %v6731 = vpop.f32.mrf.mxu0
  %6732 = vmatprep.mubr.f32.mxu0 0.0
  %6733 = vmatmul.mubr.f32.gmra.mxu0 %v6589
  %v6734 = vpop.f32.mrf.mxu0
  %v6735 = vadd.f32 0.0, %v6734
  %v6736 = vpop.f32.mrf.mxu0
  %6737 = vmatprep.mubr.f32.mxu0 0.0
  %6738 = vmatmul.mubr.f32.gmra.mxu0 %v6592
  %v6739 = vpop.f32.mrf.mxu0
  %v6740 = vadd.f32 0.0, %v6739
  %v6741 = vpop.f32.mrf.mxu0
  %6742 = vmatprep.mubr.f32.mxu0 0.0
  %6743 = vmatmul.mubr.f32.gmra.mxu0 %v6595
  %v6744 = vpop.f32.mrf.mxu0
  %v6745 = vadd.f32 0.0, %v6744
  %v6746 = vpop.f32.mrf.mxu0
  %6747 = vmatprep.mubr.f32.mxu0 0.0
  %6748 = vmatmul.mubr.f32.gmra.mxu0 %v6598
  %v6749 = vpop.f32.mrf.mxu0
  %v6750 = vadd.f32 0.0, %v6749
  %v6751 = vpop.f32.mrf.mxu0
  %6752 = vmatprep.mubr.f32.mxu0 0.0
  %6753 = vmatmul.mubr.f32.gmra.mxu0 %v6601
  %v6754 = vpop.f32.mrf.mxu0
  %v6755 = vadd.f32 0.0, %v6754
  %v6756 = vpop.f32.mrf.mxu0
  %6757 = vmatprep.mubr.f32.mxu0 0.0
  %6758 = vmatmul.mubr.f32.gmra.mxu0 %v6604
  %v6759 = vpop.f32.mrf.mxu0
  %v6760 = vadd.f32 0.0, %v6759
  %v6761 = vpop.f32.mrf.mxu0
  %6762 = vmatprep.mubr.f32.mxu0 0.0
  %6763 = vmatmul.mubr.f32.gmra.mxu0 %v6607
  %v6764 = vpop.f32.mrf.mxu0
  %v6765 = vadd.f32 0.0, %v6764
  %v6766 = vpop.f32.mrf.mxu0
  %6767 = vmatprep.mubr.f32.mxu0 0.0
  %6768 = vmatmul.mubr.f32.gmra.mxu0 %v6610
  %v6769 = vpop.f32.mrf.mxu0
  %v6770 = vadd.f32 0.0, %v6769
  %v6771 = vpop.f32.mrf.mxu0
  %6772 = vmatprep.mubr.f32.mxu0 0.0
  %6773 = vmatmul.mubr.f32.gmra.mxu0 %v6613
  %v6774 = vpop.f32.mrf.mxu0
  %v6775 = vadd.f32 0.0, %v6774
  %v6776 = vpop.f32.mrf.mxu0
  %6777 = vmatprep.mubr.f32.mxu0 0.0
  %6778 = vmatmul.mubr.f32.gmra.mxu0 %v6616
  %v6779 = vpop.f32.mrf.mxu0
  %v6780 = vadd.f32 0.0, %v6779
  %v6781 = vpop.f32.mrf.mxu0
  %6782 = vmatprep.mubr.f32.mxu0 0.0
  %6783 = vmatmul.mubr.f32.gmra.mxu0 %v6619
  %v6784 = vpop.f32.mrf.mxu0
  %v6785 = vadd.f32 0.0, %v6784
  %v6786 = vpop.f32.mrf.mxu0
  %6787 = vmatprep.mubr.f32.mxu0 0.0
  %6788 = vmatmul.mubr.f32.gmra.mxu0 %v6622
  %v6789 = vpop.f32.mrf.mxu0
  %v6790 = vadd.f32 0.0, %v6789
  %v6791 = vpop.f32.mrf.mxu0
  %6792 = vmatprep.mubr.f32.mxu0 0.0
  %6793 = vmatmul.mubr.f32.gmra.mxu0 %v6625
  %v6794 = vpop.f32.mrf.mxu0
  %v6795 = vadd.f32 0.0, %v6794
  %v6796 = vpop.f32.mrf.mxu0
  %6797 = vmatprep.mubr.f32.mxu0 0.0
  %6798 = vmatmul.mubr.f32.gmra.mxu0 %v6628
  %v6799 = vpop.f32.mrf.mxu0
  %v6800 = vadd.f32 0.0, %v6799
  %v6801 = vpop.f32.mrf.mxu0
  %6802 = vmatprep.mubr.f32.mxu0 0.0
  %6803 = vmatmul.mubr.f32.gmra.mxu0 %v6631
  %v6804 = vpop.f32.mrf.mxu0
  %v6805 = vadd.f32 0.0, %v6804
  %v6806 = vpop.f32.mrf.mxu0
  %6807 = vmatprep.mubr.f32.mxu0 0.0
  %6808 = vmatmul.mubr.f32.gmra.mxu0 %v6634
  %v6809 = vpop.f32.mrf.mxu0
  %v6810 = vadd.f32 0.0, %v6809
  %v6811 = vpop.f32.mrf.mxu0
  %6812 = vmatprep.mubr.f32.mxu0 0.0
  %6813 = vmatmul.mubr.f32.gmra.mxu0 %v6637
  %v6814 = vpop.f32.mrf.mxu0
  %v6815 = vadd.f32 0.0, %v6814
  %v6816 = vpop.f32.mrf.mxu0
  %6817 = vmatprep.mubr.f32.mxu0 0.0
  %6818 = vmatmul.mubr.f32.gmra.mxu0 %v6640
  %v6819 = vpop.f32.mrf.mxu0
  %v6820 = vadd.f32 0.0, %v6819
  %v6821 = vpop.f32.mrf.mxu0
  %6822 = vmatprep.mubr.f32.mxu0 0.0
  %6823 = vmatmul.mubr.f32.gmra.mxu0 %v6643
  %v6824 = vpop.f32.mrf.mxu0
  %v6825 = vadd.f32 0.0, %v6824
  %v6826 = vpop.f32.mrf.mxu0
  %6827 = vmatprep.mubr.f32.mxu0 0.0
  %6828 = vmatmul.mubr.f32.gmra.mxu0 %v6646
  %v6829 = vpop.f32.mrf.mxu0
  %v6830 = vadd.f32 0.0, %v6829
  %v6831 = vpop.f32.mrf.mxu0
  %6832 = vdwg.mxu0
  %v6833 = vld [vmem:[%s53] sm:$0xff]
  %v6834 = vld [vmem:[%s53 + $0x8] sm:$0xff]
  %v6835 = vld [vmem:[%s53 + $0x10] sm:$0xff]
  %v6836 = vld [vmem:[%s53 + $0x18] sm:$0xff]
  %v6837 = vld [vmem:[%s53 + $0x20] sm:$0xff]
  %v6838 = vld [vmem:[%s53 + $0x28] sm:$0xff]
  %v6839 = vld [vmem:[%s53 + $0x30] sm:$0xff]
  %v6840 = vld [vmem:[%s53 + $0x38] sm:$0xff]
  %v6841 = vld [vmem:[%s53 + $0x40] sm:$0xff]
  %v6842 = vld [vmem:[%s53 + $0x48] sm:$0xff]
  %v6843 = vld [vmem:[%s53 + $0x50] sm:$0xff]
  %v6844 = vld [vmem:[%s53 + $0x58] sm:$0xff]
  %v6845 = vld [vmem:[%s53 + $0x60] sm:$0xff]
  %v6846 = vld [vmem:[%s53 + $0x68] sm:$0xff]
  %v6847 = vld [vmem:[%s53 + $0x70] sm:$0xff]
  %v6848 = vld [vmem:[%s53 + $0x78] sm:$0xff]
  %v6849 = vld [vmem:[%s53 + $0x80] sm:$0xff]
  %v6850 = vld [vmem:[%s53 + $0x88] sm:$0xff]
  %v6851 = vld [vmem:[%s53 + $0x90] sm:$0xff]
  %v6852 = vld [vmem:[%s53 + $0x98] sm:$0xff]
  %v6853 = vld [vmem:[%s53 + $0xa0] sm:$0xff]
  %v6854 = vld [vmem:[%s53 + $0xa8] sm:$0xff]
  %v6855 = vld [vmem:[%s53 + $0xb0] sm:$0xff]
  %v6856 = vld [vmem:[%s53 + $0xb8] sm:$0xff]
  %v6857 = vld [vmem:[%s51] sm:$0x3]
  %v6859 = vsel %vm5164, %v6715, 0
  %v6862 = vsel %vm5164, %v6720, 0
  %v6865 = vsel %vm5164, %v6725, 0
  %v6868 = vsel %vm5164, %v6730, 0
  %v6871 = vsel %vm5164, %v6735, 0
  %v6874 = vsel %vm5164, %v6740, 0
  %v6877 = vsel %vm5164, %v6745, 0
  %v6880 = vsel %vm5164, %v6750, 0
  %v6883 = vsel %vm5641, %v6857, 0
  %6885 = vmatprep.subr.mxu0 0.0
  %6886 = vmatpush1.msra.mxu0 0.0
  %6887 = vmatprep.subr.mxu0 0.0
  %6888 = vmatpush1.msra.mxu0 0.0
  %6889 = vmatprep.subr.mxu0 0.0
  %6890 = vmatpush1.msra.mxu0 0.0
  %6891 = vmatprep.subr.mxu0 0.0
  %6892 = vmatpush1.msra.mxu0 0.0
  %6893 = vmatprep.subr.mxu0 0.0
  %6894 = vmatpush1.msra.mxu0 0.0
  %6895 = vmatprep.subr.mxu0 0.0
  %6896 = vmatpush1.msra.mxu0 0.0
  %6897 = vmatprep.subr.mxu0 0.0
  %6898 = vmatpush1.msra.mxu0 0.0
  %6899 = vmatprep.subr.mxu0 0.0
  %6900 = vmatpush1.msra.mxu0 0.0
  %6901 = vmatprep.subr.mxu0 0.0
  %6902 = vmatpush1.msra.mxu0 0.0
  %6903 = vmatprep.subr.mxu0 0.0
  %6904 = vmatpush1.msra.mxu0 0.0
  %6905 = vmatprep.subr.mxu0 0.0
  %6906 = vmatpush1.msra.mxu0 0.0
  %6907 = vmatprep.subr.mxu0 0.0
  %6908 = vmatpush1.msra.mxu0 0.0
  %6909 = vmatprep.subr.mxu0 0.0
  %6910 = vmatpush1.msra.mxu0 0.0
  %6911 = vmatprep.subr.mxu0 0.0
  %6912 = vmatpush1.msra.mxu0 0.0
  %6913 = vmatprep.subr.mxu0 0.0
  %6914 = vmatpush1.msra.mxu0 0.0
  %6915 = vmatprep.subr.mxu0 0.0
  %6916 = vmatpush1.msra.mxu0 %v6883
  %6917 = vmatprep.subr.mxu0 0.0
  %6918 = vmatpush2.msra.mxu0 0.0
  %6919 = vmatprep.subr.mxu0 0.0
  %6920 = vmatpush2.msra.mxu0 0.0
  %6921 = vmatprep.subr.mxu0 0.0
  %6922 = vmatpush2.msra.mxu0 0.0
  %6923 = vmatprep.subr.mxu0 0.0
  %6924 = vmatpush2.msra.mxu0 0.0
  %6925 = vmatprep.subr.mxu0 0.0
  %6926 = vmatpush2.msra.mxu0 0.0
  %6927 = vmatprep.subr.mxu0 0.0
  %6928 = vmatpush2.msra.mxu0 0.0
  %6929 = vmatprep.subr.mxu0 0.0
  %6930 = vmatpush2.msra.mxu0 0.0
  %6931 = vmatprep.subr.mxu0 0.0
  %6932 = vmatpush2.msra.mxu0 0.0
  %6933 = vmatprep.subr.mxu0 0.0
  %6934 = vmatpush2.msra.mxu0 0.0
  %6935 = vmatprep.subr.mxu0 0.0
  %6936 = vmatpush2.msra.mxu0 0.0
  %6937 = vmatprep.subr.mxu0 0.0
  %6938 = vmatpush2.msra.mxu0 0.0
  %6939 = vmatprep.subr.mxu0 0.0
  %6940 = vmatpush2.msra.mxu0 0.0
  %6941 = vmatprep.subr.mxu0 0.0
  %6942 = vmatpush2.msra.mxu0 0.0
  %6943 = vmatprep.subr.mxu0 0.0
  %6944 = vmatpush2.msra.mxu0 0.0
  %6945 = vmatprep.subr.mxu0 0.0
  %6946 = vmatpush2.msra.mxu0 0.0
  %6947 = vmatprep.subr.mxu0 0.0
  %6948 = vmatpush2.msra.mxu0 0.0
  %6949 = vmatprep.mubr.f32.mxu0 0.0
  %6950 = vmatmul.mubr.f32.gmra.mxu0 %v6859
  %v6951 = vpop.f32.mrf.mxu0
  %v6952 = vadd.f32 0.0, %v6951
  %v6953 = vpop.f32.mrf.mxu0
  %6954 = vmatprep.mubr.f32.mxu0 0.0
  %6955 = vmatmul.mubr.f32.gmra.mxu0 %v6862
  %v6956 = vpop.f32.mrf.mxu0
  %v6957 = vadd.f32 0.0, %v6956
  %v6958 = vpop.f32.mrf.mxu0
  %6959 = vmatprep.mubr.f32.mxu0 0.0
  %6960 = vmatmul.mubr.f32.gmra.mxu0 %v6865
  %v6961 = vpop.f32.mrf.mxu0
  %v6962 = vadd.f32 0.0, %v6961
  %v6963 = vpop.f32.mrf.mxu0
  %6964 = vmatprep.mubr.f32.mxu0 0.0
  %6965 = vmatmul.mubr.f32.gmra.mxu0 %v6868
  %v6966 = vpop.f32.mrf.mxu0
  %v6967 = vadd.f32 0.0, %v6966
  %v6968 = vpop.f32.mrf.mxu0
  %6969 = vmatprep.mubr.f32.mxu0 0.0
  %6970 = vmatmul.mubr.f32.gmra.mxu0 %v6871
  %v6971 = vpop.f32.mrf.mxu0
  %v6972 = vadd.f32 0.0, %v6971
  %v6973 = vpop.f32.mrf.mxu0
  %6974 = vmatprep.mubr.f32.mxu0 0.0
  %6975 = vmatmul.mubr.f32.gmra.mxu0 %v6874
  %v6976 = vpop.f32.mrf.mxu0
  %v6977 = vadd.f32 0.0, %v6976
  %v6978 = vpop.f32.mrf.mxu0
  %6979 = vmatprep.mubr.f32.mxu0 0.0
  %6980 = vmatmul.mubr.f32.gmra.mxu0 %v6877
  %v6981 = vpop.f32.mrf.mxu0
  %v6982 = vadd.f32 0.0, %v6981
  %v6983 = vpop.f32.mrf.mxu0
  %6984 = vmatprep.mubr.f32.mxu0 0.0
  %6985 = vmatmul.mubr.f32.gmra.mxu0 %v6880
  %v6986 = vpop.f32.mrf.mxu0
  %v6987 = vadd.f32 0.0, %v6986
  %v6988 = vpop.f32.mrf.mxu0
  %6989 = vdwg.mxu0
  %6991 = vset.pattern.permute.xlu0 0
  %6992 = vperm.xlu0 %6991, %v6833
  %v6993 = vpop.permute.xlu0 %6992
  %6996 = vset.pattern.permute.xlu0 0
  %6997 = vperm.xlu0 %6996, %v6834
  %v6998 = vpop.permute.xlu0 %6997
  %7001 = vset.pattern.permute.xlu0 0
  %7002 = vperm.xlu0 %7001, %v6835
  %v7003 = vpop.permute.xlu0 %7002
  %7006 = vset.pattern.permute.xlu0 0
  %7007 = vperm.xlu0 %7006, %v6836
  %v7008 = vpop.permute.xlu0 %7007
  %7011 = vset.pattern.permute.xlu0 0
  %7012 = vperm.xlu0 %7011, %v6837
  %v7013 = vpop.permute.xlu0 %7012
  %7016 = vset.pattern.permute.xlu0 0
  %7017 = vperm.xlu0 %7016, %v6838
  %v7018 = vpop.permute.xlu0 %7017
  %7021 = vset.pattern.permute.xlu0 0
  %7022 = vperm.xlu0 %7021, %v6839
  %v7023 = vpop.permute.xlu0 %7022
  %7026 = vset.pattern.permute.xlu0 0
  %7027 = vperm.xlu0 %7026, %v6840
  %v7028 = vpop.permute.xlu0 %7027
  %v7030 = vadd.f32 %v6993, %v6952
  %v7031 = vadd.f32 %v6998, %v6957
  %v7032 = vadd.f32 %v7003, %v6962
  %v7033 = vadd.f32 %v7008, %v6967
  %v7034 = vadd.f32 %v7013, %v6972
  %v7035 = vadd.f32 %v7018, %v6977
  %v7036 = vadd.f32 %v7023, %v6982
  %v7037 = vadd.f32 %v7028, %v6987
  %s7038 = scalar_lea.vmem %s51, 2
  %v7039 = vld [vmem:[%s7038] sm:$0x3]
  %v7041 = vsel %vm5164, %v6755, 0
  %v7044 = vsel %vm5164, %v6760, 0
  %v7047 = vsel %vm5164, %v6765, 0
  %v7050 = vsel %vm5164, %v6770, 0
  %v7053 = vsel %vm5164, %v6775, 0
  %v7056 = vsel %vm5164, %v6780, 0
  %v7059 = vsel %vm5164, %v6785, 0
  %v7062 = vsel %vm5164, %v6790, 0
  %v7065 = vsel %vm5641, %v7039, 0
  %7067 = vmatprep.subr.mxu0 0.0
  %7068 = vmatpush1.msra.mxu0 0.0
  %7069 = vmatprep.subr.mxu0 0.0
  %7070 = vmatpush1.msra.mxu0 0.0
  %7071 = vmatprep.subr.mxu0 0.0
  %7072 = vmatpush1.msra.mxu0 0.0
  %7073 = vmatprep.subr.mxu0 0.0
  %7074 = vmatpush1.msra.mxu0 0.0
  %7075 = vmatprep.subr.mxu0 0.0
  %7076 = vmatpush1.msra.mxu0 0.0
  %7077 = vmatprep.subr.mxu0 0.0
  %7078 = vmatpush1.msra.mxu0 0.0
  %7079 = vmatprep.subr.mxu0 0.0
  %7080 = vmatpush1.msra.mxu0 0.0
  %7081 = vmatprep.subr.mxu0 0.0
  %7082 = vmatpush1.msra.mxu0 0.0
  %7083 = vmatprep.subr.mxu0 0.0
  %7084 = vmatpush1.msra.mxu0 0.0
  %7085 = vmatprep.subr.mxu0 0.0
  %7086 = vmatpush1.msra.mxu0 0.0
  %7087 = vmatprep.subr.mxu0 0.0
  %7088 = vmatpush1.msra.mxu0 0.0
  %7089 = vmatprep.subr.mxu0 0.0
  %7090 = vmatpush1.msra.mxu0 0.0
  %7091 = vmatprep.subr.mxu0 0.0
  %7092 = vmatpush1.msra.mxu0 0.0
  %7093 = vmatprep.subr.mxu0 0.0
  %7094 = vmatpush1.msra.mxu0 0.0
  %7095 = vmatprep.subr.mxu0 0.0
  %7096 = vmatpush1.msra.mxu0 0.0
  %7097 = vmatprep.subr.mxu0 0.0
  %7098 = vmatpush1.msra.mxu0 %v7065
  %7099 = vmatprep.subr.mxu0 0.0
  %7100 = vmatpush2.msra.mxu0 0.0
  %7101 = vmatprep.subr.mxu0 0.0
  %7102 = vmatpush2.msra.mxu0 0.0
  %7103 = vmatprep.subr.mxu0 0.0
  %7104 = vmatpush2.msra.mxu0 0.0
  %7105 = vmatprep.subr.mxu0 0.0
  %7106 = vmatpush2.msra.mxu0 0.0
  %7107 = vmatprep.subr.mxu0 0.0
  %7108 = vmatpush2.msra.mxu0 0.0
  %7109 = vmatprep.subr.mxu0 0.0
  %7110 = vmatpush2.msra.mxu0 0.0
  %7111 = vmatprep.subr.mxu0 0.0
  %7112 = vmatpush2.msra.mxu0 0.0
  %7113 = vmatprep.subr.mxu0 0.0
  %7114 = vmatpush2.msra.mxu0 0.0
  %7115 = vmatprep.subr.mxu0 0.0
  %7116 = vmatpush2.msra.mxu0 0.0
  %7117 = vmatprep.subr.mxu0 0.0
  %7118 = vmatpush2.msra.mxu0 0.0
  %7119 = vmatprep.subr.mxu0 0.0
  %7120 = vmatpush2.msra.mxu0 0.0
  %7121 = vmatprep.subr.mxu0 0.0
  %7122 = vmatpush2.msra.mxu0 0.0
  %7123 = vmatprep.subr.mxu0 0.0
  %7124 = vmatpush2.msra.mxu0 0.0
  %7125 = vmatprep.subr.mxu0 0.0
  %7126 = vmatpush2.msra.mxu0 0.0
  %7127 = vmatprep.subr.mxu0 0.0
  %7128 = vmatpush2.msra.mxu0 0.0
  %7129 = vmatprep.subr.mxu0 0.0
  %7130 = vmatpush2.msra.mxu0 0.0
  %7131 = vmatprep.mubr.f32.mxu0 0.0
  %7132 = vmatmul.mubr.f32.gmra.mxu0 %v7041
  %v7133 = vpop.f32.mrf.mxu0
  %v7134 = vadd.f32 0.0, %v7133
  %v7135 = vpop.f32.mrf.mxu0
  %7136 = vmatprep.mubr.f32.mxu0 0.0
  %7137 = vmatmul.mubr.f32.gmra.mxu0 %v7044
  %v7138 = vpop.f32.mrf.mxu0
  %v7139 = vadd.f32 0.0, %v7138
  %v7140 = vpop.f32.mrf.mxu0
  %7141 = vmatprep.mubr.f32.mxu0 0.0
  %7142 = vmatmul.mubr.f32.gmra.mxu0 %v7047
  %v7143 = vpop.f32.mrf.mxu0
  %v7144 = vadd.f32 0.0, %v7143
  %v7145 = vpop.f32.mrf.mxu0
  %7146 = vmatprep.mubr.f32.mxu0 0.0
  %7147 = vmatmul.mubr.f32.gmra.mxu0 %v7050
  %v7148 = vpop.f32.mrf.mxu0
  %v7149 = vadd.f32 0.0, %v7148
  %v7150 = vpop.f32.mrf.mxu0
  %7151 = vmatprep.mubr.f32.mxu0 0.0
  %7152 = vmatmul.mubr.f32.gmra.mxu0 %v7053
  %v7153 = vpop.f32.mrf.mxu0
  %v7154 = vadd.f32 0.0, %v7153
  %v7155 = vpop.f32.mrf.mxu0
  %7156 = vmatprep.mubr.f32.mxu0 0.0
  %7157 = vmatmul.mubr.f32.gmra.mxu0 %v7056
  %v7158 = vpop.f32.mrf.mxu0
  %v7159 = vadd.f32 0.0, %v7158
  %v7160 = vpop.f32.mrf.mxu0
  %7161 = vmatprep.mubr.f32.mxu0 0.0
  %7162 = vmatmul.mubr.f32.gmra.mxu0 %v7059
  %v7163 = vpop.f32.mrf.mxu0
  %v7164 = vadd.f32 0.0, %v7163
  %v7165 = vpop.f32.mrf.mxu0
  %7166 = vmatprep.mubr.f32.mxu0 0.0
  %7167 = vmatmul.mubr.f32.gmra.mxu0 %v7062
  %v7168 = vpop.f32.mrf.mxu0
  %v7169 = vadd.f32 0.0, %v7168
  %v7170 = vpop.f32.mrf.mxu0
  %7171 = vdwg.mxu0
  %v7172 = vadd.f32 %v7030, %v7134
  %v7173 = vadd.f32 %v7031, %v7139
  %v7174 = vadd.f32 %v7032, %v7144
  %v7175 = vadd.f32 %v7033, %v7149
  %v7176 = vadd.f32 %v7034, %v7154
  %v7177 = vadd.f32 %v7035, %v7159
  %v7178 = vadd.f32 %v7036, %v7164
  %v7179 = vadd.f32 %v7037, %v7169
  %s7180 = scalar_lea.vmem %s51, 4
  %v7181 = vld [vmem:[%s7180] sm:$0x3]
  %v7183 = vsel %vm5164, %v6795, 0
  %v7186 = vsel %vm5164, %v6800, 0
  %v7189 = vsel %vm5164, %v6805, 0
  %v7192 = vsel %vm5164, %v6810, 0
  %v7195 = vsel %vm5164, %v6815, 0
  %v7198 = vsel %vm5164, %v6820, 0
  %v7201 = vsel %vm5164, %v6825, 0
  %v7204 = vsel %vm5164, %v6830, 0
  %v7207 = vsel %vm5641, %v7181, 0
  %7209 = vmatprep.subr.mxu0 0.0
  %7210 = vmatpush1.msra.mxu0 0.0
  %7211 = vmatprep.subr.mxu0 0.0
  %7212 = vmatpush1.msra.mxu0 0.0
  %7213 = vmatprep.subr.mxu0 0.0
  %7214 = vmatpush1.msra.mxu0 0.0
  %7215 = vmatprep.subr.mxu0 0.0
  %7216 = vmatpush1.msra.mxu0 0.0
  %7217 = vmatprep.subr.mxu0 0.0
  %7218 = vmatpush1.msra.mxu0 0.0
  %7219 = vmatprep.subr.mxu0 0.0
  %7220 = vmatpush1.msra.mxu0 0.0
  %7221 = vmatprep.subr.mxu0 0.0
  %7222 = vmatpush1.msra.mxu0 0.0
  %7223 = vmatprep.subr.mxu0 0.0
  %7224 = vmatpush1.msra.mxu0 0.0
  %7225 = vmatprep.subr.mxu0 0.0
  %7226 = vmatpush1.msra.mxu0 0.0
  %7227 = vmatprep.subr.mxu0 0.0
  %7228 = vmatpush1.msra.mxu0 0.0
  %7229 = vmatprep.subr.mxu0 0.0
  %7230 = vmatpush1.msra.mxu0 0.0
  %7231 = vmatprep.subr.mxu0 0.0
  %7232 = vmatpush1.msra.mxu0 0.0
  %7233 = vmatprep.subr.mxu0 0.0
  %7234 = vmatpush1.msra.mxu0 0.0
  %7235 = vmatprep.subr.mxu0 0.0
  %7236 = vmatpush1.msra.mxu0 0.0
  %7237 = vmatprep.subr.mxu0 0.0
  %7238 = vmatpush1.msra.mxu0 0.0
  %7239 = vmatprep.subr.mxu0 0.0
  %7240 = vmatpush1.msra.mxu0 %v7207
  %7241 = vmatprep.subr.mxu0 0.0
  %7242 = vmatpush2.msra.mxu0 0.0
  %7243 = vmatprep.subr.mxu0 0.0
  %7244 = vmatpush2.msra.mxu0 0.0
  %7245 = vmatprep.subr.mxu0 0.0
  %7246 = vmatpush2.msra.mxu0 0.0
  %7247 = vmatprep.subr.mxu0 0.0
  %7248 = vmatpush2.msra.mxu0 0.0
  %7249 = vmatprep.subr.mxu0 0.0
  %7250 = vmatpush2.msra.mxu0 0.0
  %7251 = vmatprep.subr.mxu0 0.0
  %7252 = vmatpush2.msra.mxu0 0.0
  %7253 = vmatprep.subr.mxu0 0.0
  %7254 = vmatpush2.msra.mxu0 0.0
  %7255 = vmatprep.subr.mxu0 0.0
  %7256 = vmatpush2.msra.mxu0 0.0
  %7257 = vmatprep.subr.mxu0 0.0
  %7258 = vmatpush2.msra.mxu0 0.0
  %7259 = vmatprep.subr.mxu0 0.0
  %7260 = vmatpush2.msra.mxu0 0.0
  %7261 = vmatprep.subr.mxu0 0.0
  %7262 = vmatpush2.msra.mxu0 0.0
  %7263 = vmatprep.subr.mxu0 0.0
  %7264 = vmatpush2.msra.mxu0 0.0
  %7265 = vmatprep.subr.mxu0 0.0
  %7266 = vmatpush2.msra.mxu0 0.0
  %7267 = vmatprep.subr.mxu0 0.0
  %7268 = vmatpush2.msra.mxu0 0.0
  %7269 = vmatprep.subr.mxu0 0.0
  %7270 = vmatpush2.msra.mxu0 0.0
  %7271 = vmatprep.subr.mxu0 0.0
  %7272 = vmatpush2.msra.mxu0 0.0
  %7273 = vmatprep.mubr.f32.mxu0 0.0
  %7274 = vmatmul.mubr.f32.gmra.mxu0 %v7183
  %v7275 = vpop.f32.mrf.mxu0
  %v7276 = vadd.f32 0.0, %v7275
  %v7277 = vpop.f32.mrf.mxu0
  %7278 = vmatprep.mubr.f32.mxu0 0.0
  %7279 = vmatmul.mubr.f32.gmra.mxu0 %v7186
  %v7280 = vpop.f32.mrf.mxu0
  %v7281 = vadd.f32 0.0, %v7280
  %v7282 = vpop.f32.mrf.mxu0
  %7283 = vmatprep.mubr.f32.mxu0 0.0
  %7284 = vmatmul.mubr.f32.gmra.mxu0 %v7189
  %v7285 = vpop.f32.mrf.mxu0
  %v7286 = vadd.f32 0.0, %v7285
  %v7287 = vpop.f32.mrf.mxu0
  %7288 = vmatprep.mubr.f32.mxu0 0.0
  %7289 = vmatmul.mubr.f32.gmra.mxu0 %v7192
  %v7290 = vpop.f32.mrf.mxu0
  %v7291 = vadd.f32 0.0, %v7290
  %v7292 = vpop.f32.mrf.mxu0
  %7293 = vmatprep.mubr.f32.mxu0 0.0
  %7294 = vmatmul.mubr.f32.gmra.mxu0 %v7195
  %v7295 = vpop.f32.mrf.mxu0
  %v7296 = vadd.f32 0.0, %v7295
  %v7297 = vpop.f32.mrf.mxu0
  %7298 = vmatprep.mubr.f32.mxu0 0.0
  %7299 = vmatmul.mubr.f32.gmra.mxu0 %v7198
  %v7300 = vpop.f32.mrf.mxu0
  %v7301 = vadd.f32 0.0, %v7300
  %v7302 = vpop.f32.mrf.mxu0
  %7303 = vmatprep.mubr.f32.mxu0 0.0
  %7304 = vmatmul.mubr.f32.gmra.mxu0 %v7201
  %v7305 = vpop.f32.mrf.mxu0
  %v7306 = vadd.f32 0.0, %v7305
  %v7307 = vpop.f32.mrf.mxu0
  %7308 = vmatprep.mubr.f32.mxu0 0.0
  %7309 = vmatmul.mubr.f32.gmra.mxu0 %v7204
  %v7310 = vpop.f32.mrf.mxu0
  %v7311 = vadd.f32 0.0, %v7310
  %v7312 = vpop.f32.mrf.mxu0
  %7313 = vdwg.mxu0
  %v7314 = vadd.f32 %v7172, %v7276
  %v7315 = vadd.f32 %v7173, %v7281
  %v7316 = vadd.f32 %v7174, %v7286
  %v7317 = vadd.f32 %v7175, %v7291
  %v7318 = vadd.f32 %v7176, %v7296
  %v7319 = vadd.f32 %v7177, %v7301
  %v7320 = vadd.f32 %v7178, %v7306
  %v7321 = vadd.f32 %v7179, %v7311
  %v7322 = vld [vmem:[%s55] sm:$0xff]
  %v7323 = vld [vmem:[%s55 + $0x8] sm:$0xff]
  %v7324 = vld [vmem:[%s55 + $0x10] sm:$0xff]
  %v7325 = vld [vmem:[%s55 + $0x18] sm:$0xff]
  %v7326 = vld [vmem:[%s55 + $0x20] sm:$0xff]
  %v7327 = vld [vmem:[%s55 + $0x28] sm:$0xff]
  %v7328 = vld [vmem:[%s55 + $0x30] sm:$0xff]
  %v7329 = vld [vmem:[%s55 + $0x38] sm:$0xff]
  %v7330 = vsel %vm3996, %v7314, 0.0
  %7331 = vadd.xlane.f32.xlu0 %v7330
  %v7332 = vpop.xlane.xlu0 %7331
  %v7333 = vsel %vm3996, %v7315, 0.0
  %7334 = vadd.xlane.f32.xlu0 %v7333
  %v7335 = vpop.xlane.xlu0 %7334
  %v7336 = vsel %vm3996, %v7316, 0.0
  %7337 = vadd.xlane.f32.xlu0 %v7336
  %v7338 = vpop.xlane.xlu0 %7337
  %v7339 = vsel %vm3996, %v7317, 0.0
  %7340 = vadd.xlane.f32.xlu0 %v7339
  %v7341 = vpop.xlane.xlu0 %7340
  %v7342 = vsel %vm3996, %v7318, 0.0
  %7343 = vadd.xlane.f32.xlu0 %v7342
  %v7344 = vpop.xlane.xlu0 %7343
  %v7345 = vsel %vm3996, %v7319, 0.0
  %7346 = vadd.xlane.f32.xlu0 %v7345
  %v7347 = vpop.xlane.xlu0 %7346
  %v7348 = vsel %vm3996, %v7320, 0.0
  %7349 = vadd.xlane.f32.xlu0 %v7348
  %v7350 = vpop.xlane.xlu0 %7349
  %v7351 = vsel %vm3996, %v7321, 0.0
  %7352 = vadd.xlane.f32.xlu0 %v7351
  %v7353 = vpop.xlane.xlu0 %7352
  %v7355 = vsel %vm2541, %v7322, 0
  %v7358 = vsel %vm2541, %v7323, 0
  %v7361 = vsel %vm2541, %v7324, 0
  %v7364 = vsel %vm2541, %v7325, 0
  %v7367 = vsel %vm2541, %v7326, 0
  %v7370 = vsel %vm2541, %v7327, 0
  %v7373 = vsel %vm2541, %v7328, 0
  %v7376 = vsel %vm2541, %v7329, 0
  %7378 = vmatprep.subr.mxu0 0.0
  %7379 = vmatpush1.msra.mxu0 0.0
  %7380 = vmatprep.subr.mxu0 0.0
  %7381 = vmatpush1.msra.mxu0 0.0
  %7382 = vmatprep.subr.mxu0 0.0
  %7383 = vmatpush1.msra.mxu0 0.0
  %7384 = vmatprep.subr.mxu0 0.0
  %7385 = vmatpush1.msra.mxu0 0.0
  %7386 = vmatprep.subr.mxu0 0.0
  %7387 = vmatpush1.msra.mxu0 0.0
  %7388 = vmatprep.subr.mxu0 0.0
  %7389 = vmatpush1.msra.mxu0 0.0
  %7390 = vmatprep.subr.mxu0 0.0
  %7391 = vmatpush1.msra.mxu0 0.0
  %7392 = vmatprep.subr.mxu0 0.0
  %7393 = vmatpush1.msra.mxu0 0.0
  %7394 = vmatprep.subr.mxu0 0.0
  %7395 = vmatpush1.msra.mxu0 %v7353
  %7396 = vmatprep.subr.mxu0 0.0
  %7397 = vmatpush1.msra.mxu0 %v7350
  %7398 = vmatprep.subr.mxu0 0.0
  %7399 = vmatpush1.msra.mxu0 %v7347
  %7400 = vmatprep.subr.mxu0 0.0
  %7401 = vmatpush1.msra.mxu0 %v7344
  %7402 = vmatprep.subr.mxu0 0.0
  %7403 = vmatpush1.msra.mxu0 %v7341
  %7404 = vmatprep.subr.mxu0 0.0
  %7405 = vmatpush1.msra.mxu0 %v7338
  %7406 = vmatprep.subr.mxu0 0.0
  %7407 = vmatpush1.msra.mxu0 %v7335
  %7408 = vmatprep.subr.mxu0 0.0
  %7409 = vmatpush1.msra.mxu0 %v7332
  %7410 = vmatprep.subr.mxu0 0.0
  %7411 = vmatpush2.msra.mxu0 0.0
  %7412 = vmatprep.subr.mxu0 0.0
  %7413 = vmatpush2.msra.mxu0 0.0
  %7414 = vmatprep.subr.mxu0 0.0
  %7415 = vmatpush2.msra.mxu0 0.0
  %7416 = vmatprep.subr.mxu0 0.0
  %7417 = vmatpush2.msra.mxu0 0.0
  %7418 = vmatprep.subr.mxu0 0.0
  %7419 = vmatpush2.msra.mxu0 0.0
  %7420 = vmatprep.subr.mxu0 0.0
  %7421 = vmatpush2.msra.mxu0 0.0
  %7422 = vmatprep.subr.mxu0 0.0
  %7423 = vmatpush2.msra.mxu0 0.0
  %7424 = vmatprep.subr.mxu0 0.0
  %7425 = vmatpush2.msra.mxu0 0.0
  %7426 = vmatprep.subr.mxu0 0.0
  %7427 = vmatpush2.msra.mxu0 0.0
  %7428 = vmatprep.subr.mxu0 0.0
  %7429 = vmatpush2.msra.mxu0 0.0
  %7430 = vmatprep.subr.mxu0 0.0
  %7431 = vmatpush2.msra.mxu0 0.0
  %7432 = vmatprep.subr.mxu0 0.0
  %7433 = vmatpush2.msra.mxu0 0.0
  %7434 = vmatprep.subr.mxu0 0.0
  %7435 = vmatpush2.msra.mxu0 0.0
  %7436 = vmatprep.subr.mxu0 0.0
  %7437 = vmatpush2.msra.mxu0 0.0
  %7438 = vmatprep.subr.mxu0 0.0
  %7439 = vmatpush2.msra.mxu0 0.0
  %7440 = vmatprep.subr.mxu0 0.0
  %7441 = vmatpush2.msra.mxu0 0.0
  %7442 = vmatprep.mubr.f32.mxu0 0.0
  %7443 = vmatmul.mubr.f32.gmra.mxu0 %v7355
  %v7444 = vpop.f32.mrf.mxu0
  %v7445 = vadd.f32 0.0, %v7444
  %v7446 = vpop.f32.mrf.mxu0
  %7447 = vmatprep.mubr.f32.mxu0 0.0
  %7448 = vmatmul.mubr.f32.gmra.mxu0 %v7358
  %v7449 = vpop.f32.mrf.mxu0
  %v7450 = vadd.f32 0.0, %v7449
  %v7451 = vpop.f32.mrf.mxu0
  %7452 = vmatprep.mubr.f32.mxu0 0.0
  %7453 = vmatmul.mubr.f32.gmra.mxu0 %v7361
  %v7454 = vpop.f32.mrf.mxu0
  %v7455 = vadd.f32 0.0, %v7454
  %v7456 = vpop.f32.mrf.mxu0
  %7457 = vmatprep.mubr.f32.mxu0 0.0
  %7458 = vmatmul.mubr.f32.gmra.mxu0 %v7364
  %v7459 = vpop.f32.mrf.mxu0
  %v7460 = vadd.f32 0.0, %v7459
  %v7461 = vpop.f32.mrf.mxu0
  %7462 = vmatprep.mubr.f32.mxu0 0.0
  %7463 = vmatmul.mubr.f32.gmra.mxu0 %v7367
  %v7464 = vpop.f32.mrf.mxu0
  %v7465 = vadd.f32 0.0, %v7464
  %v7466 = vpop.f32.mrf.mxu0
  %7467 = vmatprep.mubr.f32.mxu0 0.0
  %7468 = vmatmul.mubr.f32.gmra.mxu0 %v7370
  %v7469 = vpop.f32.mrf.mxu0
  %v7470 = vadd.f32 0.0, %v7469
  %v7471 = vpop.f32.mrf.mxu0
  %7472 = vmatprep.mubr.f32.mxu0 0.0
  %7473 = vmatmul.mubr.f32.gmra.mxu0 %v7373
  %v7474 = vpop.f32.mrf.mxu0
  %v7475 = vadd.f32 0.0, %v7474
  %v7476 = vpop.f32.mrf.mxu0
  %7477 = vmatprep.mubr.f32.mxu0 0.0
  %7478 = vmatmul.mubr.f32.gmra.mxu0 %v7376
  %v7479 = vpop.f32.mrf.mxu0
  %v7480 = vadd.f32 0.0, %v7479
  %v7481 = vpop.f32.mrf.mxu0
  %7482 = vdwg.mxu0
  %v7483 = vmul.f32 %v7445, 0.03125
  %v7484 = vmul.f32 %v7450, 0.03125
  %v7485 = vmul.f32 %v7455, 0.03125
  %v7486 = vmul.f32 %v7460, 0.03125
  %v7487 = vmul.f32 %v7465, 0.03125
  %v7488 = vmul.f32 %v7470, 0.03125
  %v7489 = vmul.f32 %v7475, 0.03125
  %v7490 = vmul.f32 %v7480, 0.03125
  %7492 = vset.pattern.permute.xlu0 0
  %7493 = vperm.xlu0 %7492, %v7483
  %v7494 = vpop.permute.xlu0 %7493
  %7497 = vset.pattern.permute.xlu0 0
  %7498 = vperm.xlu0 %7497, %v7484
  %v7499 = vpop.permute.xlu0 %7498
  %7502 = vset.pattern.permute.xlu0 0
  %7503 = vperm.xlu0 %7502, %v7485
  %v7504 = vpop.permute.xlu0 %7503
  %7507 = vset.pattern.permute.xlu0 0
  %7508 = vperm.xlu0 %7507, %v7486
  %v7509 = vpop.permute.xlu0 %7508
  %7512 = vset.pattern.permute.xlu0 0
  %7513 = vperm.xlu0 %7512, %v7487
  %v7514 = vpop.permute.xlu0 %7513
  %7517 = vset.pattern.permute.xlu0 0
  %7518 = vperm.xlu0 %7517, %v7488
  %v7519 = vpop.permute.xlu0 %7518
  %7522 = vset.pattern.permute.xlu0 0
  %7523 = vperm.xlu0 %7522, %v7489
  %v7524 = vpop.permute.xlu0 %7523
  %7527 = vset.pattern.permute.xlu0 0
  %7528 = vperm.xlu0 %7527, %v7490
  %v7529 = vpop.permute.xlu0 %7528
  %v7531 = vsub.f32 %v7314, %v7494
  %v7532 = vsub.f32 %v7315, %v7499
  %v7533 = vsub.f32 %v7316, %v7504
  %v7534 = vsub.f32 %v7317, %v7509
  %v7535 = vsub.f32 %v7318, %v7514
  %v7536 = vsub.f32 %v7319, %v7519
  %v7537 = vsub.f32 %v7320, %v7524
  %v7538 = vsub.f32 %v7321, %v7529
  %v7539 = vmul.f32 %v7531, %v7531
  %v7540 = vmul.f32 %v7532, %v7532
  %v7541 = vmul.f32 %v7533, %v7533
  %v7542 = vmul.f32 %v7534, %v7534
  %v7543 = vmul.f32 %v7535, %v7535
  %v7544 = vmul.f32 %v7536, %v7536
  %v7545 = vmul.f32 %v7537, %v7537
  %v7546 = vmul.f32 %v7538, %v7538
  %v7547 = vsel %vm3996, %v7539, 0.0
  %7548 = vadd.xlane.f32.xlu0 %v7547
  %v7549 = vpop.xlane.xlu0 %7548
  %v7550 = vsel %vm3996, %v7540, 0.0
  %7551 = vadd.xlane.f32.xlu0 %v7550
  %v7552 = vpop.xlane.xlu0 %7551
  %v7553 = vsel %vm3996, %v7541, 0.0
  %7554 = vadd.xlane.f32.xlu0 %v7553
  %v7555 = vpop.xlane.xlu0 %7554
  %v7556 = vsel %vm3996, %v7542, 0.0
  %7557 = vadd.xlane.f32.xlu0 %v7556
  %v7558 = vpop.xlane.xlu0 %7557
  %v7559 = vsel %vm3996, %v7543, 0.0
  %7560 = vadd.xlane.f32.xlu0 %v7559
  %v7561 = vpop.xlane.xlu0 %7560
  %v7562 = vsel %vm3996, %v7544, 0.0
  %7563 = vadd.xlane.f32.xlu0 %v7562
  %v7564 = vpop.xlane.xlu0 %7563
  %v7565 = vsel %vm3996, %v7545, 0.0
  %7566 = vadd.xlane.f32.xlu0 %v7565
  %v7567 = vpop.xlane.xlu0 %7566
  %v7568 = vsel %vm3996, %v7546, 0.0
  %7569 = vadd.xlane.f32.xlu0 %v7568
  %v7570 = vpop.xlane.xlu0 %7569
  %7571 = vmatprep.subr.mxu0 0.0
  %7572 = vmatpush1.msra.mxu0 0.0
  %7573 = vmatprep.subr.mxu0 0.0
  %7574 = vmatpush1.msra.mxu0 0.0
  %7575 = vmatprep.subr.mxu0 0.0
  %7576 = vmatpush1.msra.mxu0 0.0
  %7577 = vmatprep.subr.mxu0 0.0
  %7578 = vmatpush1.msra.mxu0 0.0
  %7579 = vmatprep.subr.mxu0 0.0
  %7580 = vmatpush1.msra.mxu0 0.0
  %7581 = vmatprep.subr.mxu0 0.0
  %7582 = vmatpush1.msra.mxu0 0.0
  %7583 = vmatprep.subr.mxu0 0.0
  %7584 = vmatpush1.msra.mxu0 0.0
  %7585 = vmatprep.subr.mxu0 0.0
  %7586 = vmatpush1.msra.mxu0 0.0
  %7587 = vmatprep.subr.mxu0 0.0
  %7588 = vmatpush1.msra.mxu0 %v7570
  %7589 = vmatprep.subr.mxu0 0.0
  %7590 = vmatpush1.msra.mxu0 %v7567
  %7591 = vmatprep.subr.mxu0 0.0
  %7592 = vmatpush1.msra.mxu0 %v7564
  %7593 = vmatprep.subr.mxu0 0.0
  %7594 = vmatpush1.msra.mxu0 %v7561
  %7595 = vmatprep.subr.mxu0 0.0
  %7596 = vmatpush1.msra.mxu0 %v7558
  %7597 = vmatprep.subr.mxu0 0.0
  %7598 = vmatpush1.msra.mxu0 %v7555
  %7599 = vmatprep.subr.mxu0 0.0
  %7600 = vmatpush1.msra.mxu0 %v7552
  %7601 = vmatprep.subr.mxu0 0.0
  %7602 = vmatpush1.msra.mxu0 %v7549
  %7603 = vmatprep.subr.mxu0 0.0
  %7604 = vmatpush2.msra.mxu0 0.0
  %7605 = vmatprep.subr.mxu0 0.0
  %7606 = vmatpush2.msra.mxu0 0.0
  %7607 = vmatprep.subr.mxu0 0.0
  %7608 = vmatpush2.msra.mxu0 0.0
  %7609 = vmatprep.subr.mxu0 0.0
  %7610 = vmatpush2.msra.mxu0 0.0
  %7611 = vmatprep.subr.mxu0 0.0
  %7612 = vmatpush2.msra.mxu0 0.0
  %7613 = vmatprep.subr.mxu0 0.0
  %7614 = vmatpush2.msra.mxu0 0.0
  %7615 = vmatprep.subr.mxu0 0.0
  %7616 = vmatpush2.msra.mxu0 0.0
  %7617 = vmatprep.subr.mxu0 0.0
  %7618 = vmatpush2.msra.mxu0 0.0
  %7619 = vmatprep.subr.mxu0 0.0
  %7620 = vmatpush2.msra.mxu0 0.0
  %7621 = vmatprep.subr.mxu0 0.0
  %7622 = vmatpush2.msra.mxu0 0.0
  %7623 = vmatprep.subr.mxu0 0.0
  %7624 = vmatpush2.msra.mxu0 0.0
  %7625 = vmatprep.subr.mxu0 0.0
  %7626 = vmatpush2.msra.mxu0 0.0
  %7627 = vmatprep.subr.mxu0 0.0
  %7628 = vmatpush2.msra.mxu0 0.0
  %7629 = vmatprep.subr.mxu0 0.0
  %7630 = vmatpush2.msra.mxu0 0.0
  %7631 = vmatprep.subr.mxu0 0.0
  %7632 = vmatpush2.msra.mxu0 0.0
  %7633 = vmatprep.subr.mxu0 0.0
  %7634 = vmatpush2.msra.mxu0 0.0
  %7635 = vmatprep.mubr.f32.mxu0 0.0
  %7636 = vmatmul.mubr.f32.gmra.mxu0 %v7355
  %v7637 = vpop.f32.mrf.mxu0
  %v7638 = vadd.f32 0.0, %v7637
  %v7639 = vpop.f32.mrf.mxu0
  %7640 = vmatprep.mubr.f32.mxu0 0.0
  %7641 = vmatmul.mubr.f32.gmra.mxu0 %v7358
  %v7642 = vpop.f32.mrf.mxu0
  %v7643 = vadd.f32 0.0, %v7642
  %v7644 = vpop.f32.mrf.mxu0
  %7645 = vmatprep.mubr.f32.mxu0 0.0
  %7646 = vmatmul.mubr.f32.gmra.mxu0 %v7361
  %v7647 = vpop.f32.mrf.mxu0
  %v7648 = vadd.f32 0.0, %v7647
  %v7649 = vpop.f32.mrf.mxu0
  %7650 = vmatprep.mubr.f32.mxu0 0.0
  %7651 = vmatmul.mubr.f32.gmra.mxu0 %v7364
  %v7652 = vpop.f32.mrf.mxu0
  %v7653 = vadd.f32 0.0, %v7652
  %v7654 = vpop.f32.mrf.mxu0
  %7655 = vmatprep.mubr.f32.mxu0 0.0
  %7656 = vmatmul.mubr.f32.gmra.mxu0 %v7367
  %v7657 = vpop.f32.mrf.mxu0
  %v7658 = vadd.f32 0.0, %v7657
  %v7659 = vpop.f32.mrf.mxu0
  %7660 = vmatprep.mubr.f32.mxu0 0.0
  %7661 = vmatmul.mubr.f32.gmra.mxu0 %v7370
  %v7662 = vpop.f32.mrf.mxu0
  %v7663 = vadd.f32 0.0, %v7662
  %v7664 = vpop.f32.mrf.mxu0
  %7665 = vmatprep.mubr.f32.mxu0 0.0
  %7666 = vmatmul.mubr.f32.gmra.mxu0 %v7373
  %v7667 = vpop.f32.mrf.mxu0
  %v7668 = vadd.f32 0.0, %v7667
  %v7669 = vpop.f32.mrf.mxu0
  %7670 = vmatprep.mubr.f32.mxu0 0.0
  %7671 = vmatmul.mubr.f32.gmra.mxu0 %v7376
  %v7672 = vpop.f32.mrf.mxu0
  %v7673 = vadd.f32 0.0, %v7672
  %v7674 = vpop.f32.mrf.mxu0
  %7675 = vdwg.mxu0
  %v7676 = vmul.f32 %v7638, 0.03125
  %v7677 = vmul.f32 %v7643, 0.03125
  %v7678 = vmul.f32 %v7648, 0.03125
  %v7679 = vmul.f32 %v7653, 0.03125
  %v7680 = vmul.f32 %v7658, 0.03125
  %v7681 = vmul.f32 %v7663, 0.03125
  %v7682 = vmul.f32 %v7668, 0.03125
  %v7683 = vmul.f32 %v7673, 0.03125
  %v7684 = vadd.f32 %v7676, 1e-05
  %v7685 = vadd.f32 %v7677, 1e-05
  %v7686 = vadd.f32 %v7678, 1e-05
  %v7687 = vadd.f32 %v7679, 1e-05
  %v7688 = vadd.f32 %v7680, 1e-05
  %v7689 = vadd.f32 %v7681, 1e-05
  %v7690 = vadd.f32 %v7682, 1e-05
  %v7691 = vadd.f32 %v7683, 1e-05
  %v7692 = vrsqrt.pop %v7684
  %v7693 = vrsqrt.pop %v7685
  %v7694 = vrsqrt.pop %v7686
  %v7695 = vrsqrt.pop %v7687
  %v7696 = vrsqrt.pop %v7688
  %v7697 = vrsqrt.pop %v7689
  %v7698 = vrsqrt.pop %v7690
  %v7699 = vrsqrt.pop %v7691
  %v7700 = vmul.f32 %v7692, %v6841
  %v7701 = vmul.f32 %v7693, %v6842
  %v7702 = vmul.f32 %v7694, %v6843
  %v7703 = vmul.f32 %v7695, %v6844
  %v7704 = vmul.f32 %v7696, %v6845
  %v7705 = vmul.f32 %v7697, %v6846
  %v7706 = vmul.f32 %v7698, %v6847
  %v7707 = vmul.f32 %v7699, %v6848
  %7709 = vset.pattern.permute.xlu0 0
  %7710 = vperm.xlu0 %7709, %v7700
  %v7711 = vpop.permute.xlu0 %7710
  %7714 = vset.pattern.permute.xlu0 0
  %7715 = vperm.xlu0 %7714, %v7701
  %v7716 = vpop.permute.xlu0 %7715
  %7719 = vset.pattern.permute.xlu0 0
  %7720 = vperm.xlu0 %7719, %v7702
  %v7721 = vpop.permute.xlu0 %7720
  %7724 = vset.pattern.permute.xlu0 0
  %7725 = vperm.xlu0 %7724, %v7703
  %v7726 = vpop.permute.xlu0 %7725
  %7729 = vset.pattern.permute.xlu0 0
  %7730 = vperm.xlu0 %7729, %v7704
  %v7731 = vpop.permute.xlu0 %7730
  %7734 = vset.pattern.permute.xlu0 0
  %7735 = vperm.xlu0 %7734, %v7705
  %v7736 = vpop.permute.xlu0 %7735
  %7739 = vset.pattern.permute.xlu0 0
  %7740 = vperm.xlu0 %7739, %v7706
  %v7741 = vpop.permute.xlu0 %7740
  %7744 = vset.pattern.permute.xlu0 0
  %7745 = vperm.xlu0 %7744, %v7707
  %v7746 = vpop.permute.xlu0 %7745
  %v7748 = vmul.f32 %v7531, %v7711
  %v7749 = vmul.f32 %v7532, %v7716
  %v7750 = vmul.f32 %v7533, %v7721
  %v7751 = vmul.f32 %v7534, %v7726
  %v7752 = vmul.f32 %v7535, %v7731
  %v7753 = vmul.f32 %v7536, %v7736
  %v7754 = vmul.f32 %v7537, %v7741
  %v7755 = vmul.f32 %v7538, %v7746
  %7757 = vset.pattern.permute.xlu0 0
  %7758 = vperm.xlu0 %7757, %v6849
  %v7759 = vpop.permute.xlu0 %7758
  %7762 = vset.pattern.permute.xlu0 0
  %7763 = vperm.xlu0 %7762, %v6850
  %v7764 = vpop.permute.xlu0 %7763
  %7767 = vset.pattern.permute.xlu0 0
  %7768 = vperm.xlu0 %7767, %v6851
  %v7769 = vpop.permute.xlu0 %7768
  %7772 = vset.pattern.permute.xlu0 0
  %7773 = vperm.xlu0 %7772, %v6852
  %v7774 = vpop.permute.xlu0 %7773
  %7777 = vset.pattern.permute.xlu0 0
  %7778 = vperm.xlu0 %7777, %v6853
  %v7779 = vpop.permute.xlu0 %7778
  %7782 = vset.pattern.permute.xlu0 0
  %7783 = vperm.xlu0 %7782, %v6854
  %v7784 = vpop.permute.xlu0 %7783
  %7787 = vset.pattern.permute.xlu0 0
  %7788 = vperm.xlu0 %7787, %v6855
  %v7789 = vpop.permute.xlu0 %7788
  %7792 = vset.pattern.permute.xlu0 0
  %7793 = vperm.xlu0 %7792, %v6856
  %v7794 = vpop.permute.xlu0 %7793
  %v7796 = vadd.f32 %v7748, %v7759
  %v7797 = vadd.f32 %v7749, %v7764
  %v7798 = vadd.f32 %v7750, %v7769
  %v7799 = vadd.f32 %v7751, %v7774
  %v7800 = vadd.f32 %v7752, %v7779
  %v7801 = vadd.f32 %v7753, %v7784
  %v7802 = vadd.f32 %v7754, %v7789
  %v7803 = vadd.f32 %v7755, %v7794
  %v7804 = vmax.f32 %v7796, 0.0
  %v7805 = vmax.f32 %v7797, 0.0
  %v7806 = vmax.f32 %v7798, 0.0
  %v7807 = vmax.f32 %v7799, 0.0
  %v7808 = vmax.f32 %v7800, 0.0
  %v7809 = vmax.f32 %v7801, 0.0
  %v7810 = vmax.f32 %v7802, 0.0
  %v7811 = vmax.f32 %v7803, 0.0
  %v7812 = vld [vmem:[%s57] sm:$0xff]
  %v7813 = vld [vmem:[%s57 + $0x8] sm:$0xff]
  %v7814 = vld [vmem:[%s57 + $0x10] sm:$0xff]
  %v7815 = vld [vmem:[%s57 + $0x18] sm:$0xff]
  %v7816 = vld [vmem:[%s57 + $0x20] sm:$0xff]
  %v7817 = vld [vmem:[%s57 + $0x28] sm:$0xff]
  %v7818 = vld [vmem:[%s57 + $0x30] sm:$0xff]
  %v7819 = vld [vmem:[%s57 + $0x38] sm:$0xff]
  %v7820 = vld [vmem:[%s57 + $0x40] sm:$0xff]
  %v7821 = vld [vmem:[%s57 + $0x48] sm:$0xff]
  %v7822 = vld [vmem:[%s57 + $0x50] sm:$0xff]
  %v7823 = vld [vmem:[%s57 + $0x58] sm:$0xff]
  %v7824 = vld [vmem:[%s57 + $0x60] sm:$0xff]
  %v7825 = vld [vmem:[%s57 + $0x68] sm:$0xff]
  %v7826 = vld [vmem:[%s57 + $0x70] sm:$0xff]
  %v7827 = vld [vmem:[%s57 + $0x78] sm:$0xff]
  %v7828 = vld [vmem:[%s57 + $0x80] sm:$0xff]
  %v7829 = vld [vmem:[%s57 + $0x88] sm:$0xff]
  %v7830 = vld [vmem:[%s57 + $0x90] sm:$0xff]
  %v7831 = vld [vmem:[%s57 + $0x98] sm:$0xff]
  %v7832 = vld [vmem:[%s57 + $0xa0] sm:$0xff]
  %v7833 = vld [vmem:[%s57 + $0xa8] sm:$0xff]
  %v7834 = vld [vmem:[%s57 + $0xb0] sm:$0xff]
  %v7835 = vld [vmem:[%s57 + $0xb8] sm:$0xff]
  %v7837 = vsel %vm2541, %v7812, 0
  %v7840 = vsel %vm2541, %v7813, 0
  %v7843 = vsel %vm2541, %v7814, 0
  %v7846 = vsel %vm2541, %v7815, 0
  %v7849 = vsel %vm2541, %v7816, 0
  %v7852 = vsel %vm2541, %v7817, 0
  %v7855 = vsel %vm2541, %v7818, 0
  %v7858 = vsel %vm2541, %v7819, 0
  %v7861 = vsel %vm2541, %v7820, 0
  %v7864 = vsel %vm2541, %v7821, 0
  %v7867 = vsel %vm2541, %v7822, 0
  %v7870 = vsel %vm2541, %v7823, 0
  %v7873 = vsel %vm2541, %v7824, 0
  %v7876 = vsel %vm2541, %v7825, 0
  %v7879 = vsel %vm2541, %v7826, 0
  %v7882 = vsel %vm2541, %v7827, 0
  %v7885 = vsel %vm2541, %v7828, 0
  %v7888 = vsel %vm2541, %v7829, 0
  %v7891 = vsel %vm2541, %v7830, 0
  %v7894 = vsel %vm2541, %v7831, 0
  %v7897 = vsel %vm2541, %v7832, 0
  %v7900 = vsel %vm2541, %v7833, 0
  %v7903 = vsel %vm2541, %v7834, 0
  %v7906 = vsel %vm2541, %v7835, 0
  %7908 = vmatprep.subr.mxu0 0.0
  %7909 = vmatpush1.msra.mxu0 0.0
  %7910 = vmatprep.subr.mxu0 0.0
  %7911 = vmatpush1.msra.mxu0 0.0
  %7912 = vmatprep.subr.mxu0 0.0
  %7913 = vmatpush1.msra.mxu0 0.0
  %7914 = vmatprep.subr.mxu0 0.0
  %7915 = vmatpush1.msra.mxu0 0.0
  %7916 = vmatprep.subr.mxu0 0.0
  %7917 = vmatpush1.msra.mxu0 0.0
  %7918 = vmatprep.subr.mxu0 0.0
  %7919 = vmatpush1.msra.mxu0 0.0
  %7920 = vmatprep.subr.mxu0 0.0
  %7921 = vmatpush1.msra.mxu0 0.0
  %7922 = vmatprep.subr.mxu0 0.0
  %7923 = vmatpush1.msra.mxu0 0.0
  %7924 = vmatprep.subr.mxu0 0.0
  %7925 = vmatpush1.msra.mxu0 %v7811
  %7926 = vmatprep.subr.mxu0 0.0
  %7927 = vmatpush1.msra.mxu0 %v7810
  %7928 = vmatprep.subr.mxu0 0.0
  %7929 = vmatpush1.msra.mxu0 %v7809
  %7930 = vmatprep.subr.mxu0 0.0
  %7931 = vmatpush1.msra.mxu0 %v7808
  %7932 = vmatprep.subr.mxu0 0.0
  %7933 = vmatpush1.msra.mxu0 %v7807
  %7934 = vmatprep.subr.mxu0 0.0
  %7935 = vmatpush1.msra.mxu0 %v7806
  %7936 = vmatprep.subr.mxu0 0.0
  %7937 = vmatpush1.msra.mxu0 %v7805
  %7938 = vmatprep.subr.mxu0 0.0
  %7939 = vmatpush1.msra.mxu0 %v7804
  %7940 = vmatprep.subr.mxu0 0.0
  %7941 = vmatpush2.msra.mxu0 0.0
  %7942 = vmatprep.subr.mxu0 0.0
  %7943 = vmatpush2.msra.mxu0 0.0
  %7944 = vmatprep.subr.mxu0 0.0
  %7945 = vmatpush2.msra.mxu0 0.0
  %7946 = vmatprep.subr.mxu0 0.0
  %7947 = vmatpush2.msra.mxu0 0.0
  %7948 = vmatprep.subr.mxu0 0.0
  %7949 = vmatpush2.msra.mxu0 0.0
  %7950 = vmatprep.subr.mxu0 0.0
  %7951 = vmatpush2.msra.mxu0 0.0
  %7952 = vmatprep.subr.mxu0 0.0
  %7953 = vmatpush2.msra.mxu0 0.0
  %7954 = vmatprep.subr.mxu0 0.0
  %7955 = vmatpush2.msra.mxu0 0.0
  %7956 = vmatprep.subr.mxu0 0.0
  %7957 = vmatpush2.msra.mxu0 0.0
  %7958 = vmatprep.subr.mxu0 0.0
  %7959 = vmatpush2.msra.mxu0 0.0
  %7960 = vmatprep.subr.mxu0 0.0
  %7961 = vmatpush2.msra.mxu0 0.0
  %7962 = vmatprep.subr.mxu0 0.0
  %7963 = vmatpush2.msra.mxu0 0.0
  %7964 = vmatprep.subr.mxu0 0.0
  %7965 = vmatpush2.msra.mxu0 0.0
  %7966 = vmatprep.subr.mxu0 0.0
  %7967 = vmatpush2.msra.mxu0 0.0
  %7968 = vmatprep.subr.mxu0 0.0
  %7969 = vmatpush2.msra.mxu0 0.0
  %7970 = vmatprep.subr.mxu0 0.0
  %7971 = vmatpush2.msra.mxu0 0.0
  %7972 = vmatprep.mubr.f32.mxu0 0.0
  %7973 = vmatmul.mubr.f32.gmra.mxu0 %v7837
  %v7974 = vpop.f32.mrf.mxu0
  %v7975 = vadd.f32 0.0, %v7974
  %v7976 = vpop.f32.mrf.mxu0
  %7977 = vmatprep.mubr.f32.mxu0 0.0
  %7978 = vmatmul.mubr.f32.gmra.mxu0 %v7840
  %v7979 = vpop.f32.mrf.mxu0
  %v7980 = vadd.f32 0.0, %v7979
  %v7981 = vpop.f32.mrf.mxu0
  %7982 = vmatprep.mubr.f32.mxu0 0.0
  %7983 = vmatmul.mubr.f32.gmra.mxu0 %v7843
  %v7984 = vpop.f32.mrf.mxu0
  %v7985 = vadd.f32 0.0, %v7984
  %v7986 = vpop.f32.mrf.mxu0
  %7987 = vmatprep.mubr.f32.mxu0 0.0
  %7988 = vmatmul.mubr.f32.gmra.mxu0 %v7846
  %v7989 = vpop.f32.mrf.mxu0
  %v7990 = vadd.f32 0.0, %v7989
  %v7991 = vpop.f32.mrf.mxu0
  %7992 = vmatprep.mubr.f32.mxu0 0.0
  %7993 = vmatmul.mubr.f32.gmra.mxu0 %v7849
  %v7994 = vpop.f32.mrf.mxu0
  %v7995 = vadd.f32 0.0, %v7994
  %v7996 = vpop.f32.mrf.mxu0
  %7997 = vmatprep.mubr.f32.mxu0 0.0
  %7998 = vmatmul.mubr.f32.gmra.mxu0 %v7852
  %v7999 = vpop.f32.mrf.mxu0
  %v8000 = vadd.f32 0.0, %v7999
  %v8001 = vpop.f32.mrf.mxu0
  %8002 = vmatprep.mubr.f32.mxu0 0.0
  %8003 = vmatmul.mubr.f32.gmra.mxu0 %v7855
  %v8004 = vpop.f32.mrf.mxu0
  %v8005 = vadd.f32 0.0, %v8004
  %v8006 = vpop.f32.mrf.mxu0
  %8007 = vmatprep.mubr.f32.mxu0 0.0
  %8008 = vmatmul.mubr.f32.gmra.mxu0 %v7858
  %v8009 = vpop.f32.mrf.mxu0
  %v8010 = vadd.f32 0.0, %v8009
  %v8011 = vpop.f32.mrf.mxu0
  %8012 = vmatprep.mubr.f32.mxu0 0.0
  %8013 = vmatmul.mubr.f32.gmra.mxu0 %v7861
  %v8014 = vpop.f32.mrf.mxu0
  %v8015 = vadd.f32 0.0, %v8014
  %v8016 = vpop.f32.mrf.mxu0
  %8017 = vmatprep.mubr.f32.mxu0 0.0
  %8018 = vmatmul.mubr.f32.gmra.mxu0 %v7864
  %v8019 = vpop.f32.mrf.mxu0
  %v8020 = vadd.f32 0.0, %v8019
  %v8021 = vpop.f32.mrf.mxu0
  %8022 = vmatprep.mubr.f32.mxu0 0.0
  %8023 = vmatmul.mubr.f32.gmra.mxu0 %v7867
  %v8024 = vpop.f32.mrf.mxu0
  %v8025 = vadd.f32 0.0, %v8024
  %v8026 = vpop.f32.mrf.mxu0
  %8027 = vmatprep.mubr.f32.mxu0 0.0
  %8028 = vmatmul.mubr.f32.gmra.mxu0 %v7870
  %v8029 = vpop.f32.mrf.mxu0
  %v8030 = vadd.f32 0.0, %v8029
  %v8031 = vpop.f32.mrf.mxu0
  %8032 = vmatprep.mubr.f32.mxu0 0.0
  %8033 = vmatmul.mubr.f32.gmra.mxu0 %v7873
  %v8034 = vpop.f32.mrf.mxu0
  %v8035 = vadd.f32 0.0, %v8034
  %v8036 = vpop.f32.mrf.mxu0
  %8037 = vmatprep.mubr.f32.mxu0 0.0
  %8038 = vmatmul.mubr.f32.gmra.mxu0 %v7876
  %v8039 = vpop.f32.mrf.mxu0
  %v8040 = vadd.f32 0.0, %v8039
  %v8041 = vpop.f32.mrf.mxu0
  %8042 = vmatprep.mubr.f32.mxu0 0.0
  %8043 = vmatmul.mubr.f32.gmra.mxu0 %v7879
  %v8044 = vpop.f32.mrf.mxu0
  %v8045 = vadd.f32 0.0, %v8044
  %v8046 = vpop.f32.mrf.mxu0
  %8047 = vmatprep.mubr.f32.mxu0 0.0
  %8048 = vmatmul.mubr.f32.gmra.mxu0 %v7882
  %v8049 = vpop.f32.mrf.mxu0
  %v8050 = vadd.f32 0.0, %v8049
  %v8051 = vpop.f32.mrf.mxu0
  %8052 = vmatprep.mubr.f32.mxu0 0.0
  %8053 = vmatmul.mubr.f32.gmra.mxu0 %v7885
  %v8054 = vpop.f32.mrf.mxu0
  %v8055 = vadd.f32 0.0, %v8054
  %v8056 = vpop.f32.mrf.mxu0
  %8057 = vmatprep.mubr.f32.mxu0 0.0
  %8058 = vmatmul.mubr.f32.gmra.mxu0 %v7888
  %v8059 = vpop.f32.mrf.mxu0
  %v8060 = vadd.f32 0.0, %v8059
  %v8061 = vpop.f32.mrf.mxu0
  %8062 = vmatprep.mubr.f32.mxu0 0.0
  %8063 = vmatmul.mubr.f32.gmra.mxu0 %v7891
  %v8064 = vpop.f32.mrf.mxu0
  %v8065 = vadd.f32 0.0, %v8064
  %v8066 = vpop.f32.mrf.mxu0
  %8067 = vmatprep.mubr.f32.mxu0 0.0
  %8068 = vmatmul.mubr.f32.gmra.mxu0 %v7894
  %v8069 = vpop.f32.mrf.mxu0
  %v8070 = vadd.f32 0.0, %v8069
  %v8071 = vpop.f32.mrf.mxu0
  %8072 = vmatprep.mubr.f32.mxu0 0.0
  %8073 = vmatmul.mubr.f32.gmra.mxu0 %v7897
  %v8074 = vpop.f32.mrf.mxu0
  %v8075 = vadd.f32 0.0, %v8074
  %v8076 = vpop.f32.mrf.mxu0
  %8077 = vmatprep.mubr.f32.mxu0 0.0
  %8078 = vmatmul.mubr.f32.gmra.mxu0 %v7900
  %v8079 = vpop.f32.mrf.mxu0
  %v8080 = vadd.f32 0.0, %v8079
  %v8081 = vpop.f32.mrf.mxu0
  %8082 = vmatprep.mubr.f32.mxu0 0.0
  %8083 = vmatmul.mubr.f32.gmra.mxu0 %v7903
  %v8084 = vpop.f32.mrf.mxu0
  %v8085 = vadd.f32 0.0, %v8084
  %v8086 = vpop.f32.mrf.mxu0
  %8087 = vmatprep.mubr.f32.mxu0 0.0
  %8088 = vmatmul.mubr.f32.gmra.mxu0 %v7906
  %v8089 = vpop.f32.mrf.mxu0
  %v8090 = vadd.f32 0.0, %v8089
  %v8091 = vpop.f32.mrf.mxu0
  %8092 = vdwg.mxu0
  %v8093 = vld [vmem:[%s61] sm:$0xff]
  %v8094 = vld [vmem:[%s61 + $0x8] sm:$0xff]
  %v8095 = vld [vmem:[%s61 + $0x10] sm:$0xff]
  %v8096 = vld [vmem:[%s61 + $0x18] sm:$0xff]
  %v8097 = vld [vmem:[%s61 + $0x20] sm:$0xff]
  %v8098 = vld [vmem:[%s61 + $0x28] sm:$0xff]
  %v8099 = vld [vmem:[%s61 + $0x30] sm:$0xff]
  %v8100 = vld [vmem:[%s61 + $0x38] sm:$0xff]
  %v8101 = vld [vmem:[%s61 + $0x40] sm:$0xff]
  %v8102 = vld [vmem:[%s61 + $0x48] sm:$0xff]
  %v8103 = vld [vmem:[%s61 + $0x50] sm:$0xff]
  %v8104 = vld [vmem:[%s61 + $0x58] sm:$0xff]
  %v8105 = vld [vmem:[%s61 + $0x60] sm:$0xff]
  %v8106 = vld [vmem:[%s61 + $0x68] sm:$0xff]
  %v8107 = vld [vmem:[%s61 + $0x70] sm:$0xff]
  %v8108 = vld [vmem:[%s61 + $0x78] sm:$0xff]
  %v8109 = vld [vmem:[%s61 + $0x80] sm:$0xff]
  %v8110 = vld [vmem:[%s61 + $0x88] sm:$0xff]
  %v8111 = vld [vmem:[%s61 + $0x90] sm:$0xff]
  %v8112 = vld [vmem:[%s61 + $0x98] sm:$0xff]
  %v8113 = vld [vmem:[%s61 + $0xa0] sm:$0xff]
  %v8114 = vld [vmem:[%s61 + $0xa8] sm:$0xff]
  %v8115 = vld [vmem:[%s61 + $0xb0] sm:$0xff]
  %v8116 = vld [vmem:[%s61 + $0xb8] sm:$0xff]
  %v8117 = vld [vmem:[%s59] sm:$0xf]
  %v8119 = vsel %vm3996, %v7975, 0
  %v8122 = vsel %vm3996, %v7980, 0
  %v8125 = vsel %vm3996, %v7985, 0
  %v8128 = vsel %vm3996, %v7990, 0
  %v8131 = vsel %vm3996, %v7995, 0
  %v8134 = vsel %vm3996, %v8000, 0
  %v8137 = vsel %vm3996, %v8005, 0
  %v8140 = vsel %vm3996, %v8010, 0
  %v8143 = vsel %vm4729, %v8117, 0
  %8145 = vmatprep.subr.mxu0 0.0
  %8146 = vmatpush1.msra.mxu0 0.0
  %8147 = vmatprep.subr.mxu0 0.0
  %8148 = vmatpush1.msra.mxu0 0.0
  %8149 = vmatprep.subr.mxu0 0.0
  %8150 = vmatpush1.msra.mxu0 0.0
  %8151 = vmatprep.subr.mxu0 0.0
  %8152 = vmatpush1.msra.mxu0 0.0
  %8153 = vmatprep.subr.mxu0 0.0
  %8154 = vmatpush1.msra.mxu0 0.0
  %8155 = vmatprep.subr.mxu0 0.0
  %8156 = vmatpush1.msra.mxu0 0.0
  %8157 = vmatprep.subr.mxu0 0.0
  %8158 = vmatpush1.msra.mxu0 0.0
  %8159 = vmatprep.subr.mxu0 0.0
  %8160 = vmatpush1.msra.mxu0 0.0
  %8161 = vmatprep.subr.mxu0 0.0
  %8162 = vmatpush1.msra.mxu0 0.0
  %8163 = vmatprep.subr.mxu0 0.0
  %8164 = vmatpush1.msra.mxu0 0.0
  %8165 = vmatprep.subr.mxu0 0.0
  %8166 = vmatpush1.msra.mxu0 0.0
  %8167 = vmatprep.subr.mxu0 0.0
  %8168 = vmatpush1.msra.mxu0 0.0
  %8169 = vmatprep.subr.mxu0 0.0
  %8170 = vmatpush1.msra.mxu0 0.0
  %8171 = vmatprep.subr.mxu0 0.0
  %8172 = vmatpush1.msra.mxu0 0.0
  %8173 = vmatprep.subr.mxu0 0.0
  %8174 = vmatpush1.msra.mxu0 0.0
  %8175 = vmatprep.subr.mxu0 0.0
  %8176 = vmatpush1.msra.mxu0 %v8143
  %8177 = vmatprep.subr.mxu0 0.0
  %8178 = vmatpush2.msra.mxu0 0.0
  %8179 = vmatprep.subr.mxu0 0.0
  %8180 = vmatpush2.msra.mxu0 0.0
  %8181 = vmatprep.subr.mxu0 0.0
  %8182 = vmatpush2.msra.mxu0 0.0
  %8183 = vmatprep.subr.mxu0 0.0
  %8184 = vmatpush2.msra.mxu0 0.0
  %8185 = vmatprep.subr.mxu0 0.0
  %8186 = vmatpush2.msra.mxu0 0.0
  %8187 = vmatprep.subr.mxu0 0.0
  %8188 = vmatpush2.msra.mxu0 0.0
  %8189 = vmatprep.subr.mxu0 0.0
  %8190 = vmatpush2.msra.mxu0 0.0
  %8191 = vmatprep.subr.mxu0 0.0
  %8192 = vmatpush2.msra.mxu0 0.0
  %8193 = vmatprep.subr.mxu0 0.0
  %8194 = vmatpush2.msra.mxu0 0.0
  %8195 = vmatprep.subr.mxu0 0.0
  %8196 = vmatpush2.msra.mxu0 0.0
  %8197 = vmatprep.subr.mxu0 0.0
  %8198 = vmatpush2.msra.mxu0 0.0
  %8199 = vmatprep.subr.mxu0 0.0
  %8200 = vmatpush2.msra.mxu0 0.0
  %8201 = vmatprep.subr.mxu0 0.0
  %8202 = vmatpush2.msra.mxu0 0.0
  %8203 = vmatprep.subr.mxu0 0.0
  %8204 = vmatpush2.msra.mxu0 0.0
  %8205 = vmatprep.subr.mxu0 0.0
  %8206 = vmatpush2.msra.mxu0 0.0
  %8207 = vmatprep.subr.mxu0 0.0
  %8208 = vmatpush2.msra.mxu0 0.0
  %8209 = vmatprep.mubr.f32.mxu0 0.0
  %8210 = vmatmul.mubr.f32.gmra.mxu0 %v8119
  %v8211 = vpop.f32.mrf.mxu0
  %v8212 = vadd.f32 0.0, %v8211
  %v8213 = vpop.f32.mrf.mxu0
  %8214 = vmatprep.mubr.f32.mxu0 0.0
  %8215 = vmatmul.mubr.f32.gmra.mxu0 %v8122
  %v8216 = vpop.f32.mrf.mxu0
  %v8217 = vadd.f32 0.0, %v8216
  %v8218 = vpop.f32.mrf.mxu0
  %8219 = vmatprep.mubr.f32.mxu0 0.0
  %8220 = vmatmul.mubr.f32.gmra.mxu0 %v8125
  %v8221 = vpop.f32.mrf.mxu0
  %v8222 = vadd.f32 0.0, %v8221
  %v8223 = vpop.f32.mrf.mxu0
  %8224 = vmatprep.mubr.f32.mxu0 0.0
  %8225 = vmatmul.mubr.f32.gmra.mxu0 %v8128
  %v8226 = vpop.f32.mrf.mxu0
  %v8227 = vadd.f32 0.0, %v8226
  %v8228 = vpop.f32.mrf.mxu0
  %8229 = vmatprep.mubr.f32.mxu0 0.0
  %8230 = vmatmul.mubr.f32.gmra.mxu0 %v8131
  %v8231 = vpop.f32.mrf.mxu0
  %v8232 = vadd.f32 0.0, %v8231
  %v8233 = vpop.f32.mrf.mxu0
  %8234 = vmatprep.mubr.f32.mxu0 0.0
  %8235 = vmatmul.mubr.f32.gmra.mxu0 %v8134
  %v8236 = vpop.f32.mrf.mxu0
  %v8237 = vadd.f32 0.0, %v8236
  %v8238 = vpop.f32.mrf.mxu0
  %8239 = vmatprep.mubr.f32.mxu0 0.0
  %8240 = vmatmul.mubr.f32.gmra.mxu0 %v8137
  %v8241 = vpop.f32.mrf.mxu0
  %v8242 = vadd.f32 0.0, %v8241
  %v8243 = vpop.f32.mrf.mxu0
  %8244 = vmatprep.mubr.f32.mxu0 0.0
  %8245 = vmatmul.mubr.f32.gmra.mxu0 %v8140
  %v8246 = vpop.f32.mrf.mxu0
  %v8247 = vadd.f32 0.0, %v8246
  %v8248 = vpop.f32.mrf.mxu0
  %8249 = vdwg.mxu0
  %8251 = vset.pattern.permute.xlu0 0
  %8252 = vperm.xlu0 %8251, %v8093
  %v8253 = vpop.permute.xlu0 %8252
  %8256 = vset.pattern.permute.xlu0 0
  %8257 = vperm.xlu0 %8256, %v8094
  %v8258 = vpop.permute.xlu0 %8257
  %8261 = vset.pattern.permute.xlu0 0
  %8262 = vperm.xlu0 %8261, %v8095
  %v8263 = vpop.permute.xlu0 %8262
  %8266 = vset.pattern.permute.xlu0 0
  %8267 = vperm.xlu0 %8266, %v8096
  %v8268 = vpop.permute.xlu0 %8267
  %8271 = vset.pattern.permute.xlu0 0
  %8272 = vperm.xlu0 %8271, %v8097
  %v8273 = vpop.permute.xlu0 %8272
  %8276 = vset.pattern.permute.xlu0 0
  %8277 = vperm.xlu0 %8276, %v8098
  %v8278 = vpop.permute.xlu0 %8277
  %8281 = vset.pattern.permute.xlu0 0
  %8282 = vperm.xlu0 %8281, %v8099
  %v8283 = vpop.permute.xlu0 %8282
  %8286 = vset.pattern.permute.xlu0 0
  %8287 = vperm.xlu0 %8286, %v8100
  %v8288 = vpop.permute.xlu0 %8287
  %v8290 = vadd.f32 %v8253, %v8212
  %v8291 = vadd.f32 %v8258, %v8217
  %v8292 = vadd.f32 %v8263, %v8222
  %v8293 = vadd.f32 %v8268, %v8227
  %v8294 = vadd.f32 %v8273, %v8232
  %v8295 = vadd.f32 %v8278, %v8237
  %v8296 = vadd.f32 %v8283, %v8242
  %v8297 = vadd.f32 %v8288, %v8247
  %s8298 = scalar_lea.vmem %s59, 4
  %v8299 = vld [vmem:[%s8298] sm:$0xf]
  %v8301 = vsel %vm3996, %v8015, 0
  %v8304 = vsel %vm3996, %v8020, 0
  %v8307 = vsel %vm3996, %v8025, 0
  %v8310 = vsel %vm3996, %v8030, 0
  %v8313 = vsel %vm3996, %v8035, 0
  %v8316 = vsel %vm3996, %v8040, 0
  %v8319 = vsel %vm3996, %v8045, 0
  %v8322 = vsel %vm3996, %v8050, 0
  %v8325 = vsel %vm4729, %v8299, 0
  %8327 = vmatprep.subr.mxu0 0.0
  %8328 = vmatpush1.msra.mxu0 0.0
  %8329 = vmatprep.subr.mxu0 0.0
  %8330 = vmatpush1.msra.mxu0 0.0
  %8331 = vmatprep.subr.mxu0 0.0
  %8332 = vmatpush1.msra.mxu0 0.0
  %8333 = vmatprep.subr.mxu0 0.0
  %8334 = vmatpush1.msra.mxu0 0.0
  %8335 = vmatprep.subr.mxu0 0.0
  %8336 = vmatpush1.msra.mxu0 0.0
  %8337 = vmatprep.subr.mxu0 0.0
  %8338 = vmatpush1.msra.mxu0 0.0
  %8339 = vmatprep.subr.mxu0 0.0
  %8340 = vmatpush1.msra.mxu0 0.0
  %8341 = vmatprep.subr.mxu0 0.0
  %8342 = vmatpush1.msra.mxu0 0.0
  %8343 = vmatprep.subr.mxu0 0.0
  %8344 = vmatpush1.msra.mxu0 0.0
  %8345 = vmatprep.subr.mxu0 0.0
  %8346 = vmatpush1.msra.mxu0 0.0
  %8347 = vmatprep.subr.mxu0 0.0
  %8348 = vmatpush1.msra.mxu0 0.0
  %8349 = vmatprep.subr.mxu0 0.0
  %8350 = vmatpush1.msra.mxu0 0.0
  %8351 = vmatprep.subr.mxu0 0.0
  %8352 = vmatpush1.msra.mxu0 0.0
  %8353 = vmatprep.subr.mxu0 0.0
  %8354 = vmatpush1.msra.mxu0 0.0
  %8355 = vmatprep.subr.mxu0 0.0
  %8356 = vmatpush1.msra.mxu0 0.0
  %8357 = vmatprep.subr.mxu0 0.0
  %8358 = vmatpush1.msra.mxu0 %v8325
  %8359 = vmatprep.subr.mxu0 0.0
  %8360 = vmatpush2.msra.mxu0 0.0
  %8361 = vmatprep.subr.mxu0 0.0
  %8362 = vmatpush2.msra.mxu0 0.0
  %8363 = vmatprep.subr.mxu0 0.0
  %8364 = vmatpush2.msra.mxu0 0.0
  %8365 = vmatprep.subr.mxu0 0.0
  %8366 = vmatpush2.msra.mxu0 0.0
  %8367 = vmatprep.subr.mxu0 0.0
  %8368 = vmatpush2.msra.mxu0 0.0
  %8369 = vmatprep.subr.mxu0 0.0
  %8370 = vmatpush2.msra.mxu0 0.0
  %8371 = vmatprep.subr.mxu0 0.0
  %8372 = vmatpush2.msra.mxu0 0.0
  %8373 = vmatprep.subr.mxu0 0.0
  %8374 = vmatpush2.msra.mxu0 0.0
  %8375 = vmatprep.subr.mxu0 0.0
  %8376 = vmatpush2.msra.mxu0 0.0
  %8377 = vmatprep.subr.mxu0 0.0
  %8378 = vmatpush2.msra.mxu0 0.0
  %8379 = vmatprep.subr.mxu0 0.0
  %8380 = vmatpush2.msra.mxu0 0.0
  %8381 = vmatprep.subr.mxu0 0.0
  %8382 = vmatpush2.msra.mxu0 0.0
  %8383 = vmatprep.subr.mxu0 0.0
  %8384 = vmatpush2.msra.mxu0 0.0
  %8385 = vmatprep.subr.mxu0 0.0
  %8386 = vmatpush2.msra.mxu0 0.0
  %8387 = vmatprep.subr.mxu0 0.0
  %8388 = vmatpush2.msra.mxu0 0.0
  %8389 = vmatprep.subr.mxu0 0.0
  %8390 = vmatpush2.msra.mxu0 0.0
  %8391 = vmatprep.mubr.f32.mxu0 0.0
  %8392 = vmatmul.mubr.f32.gmra.mxu0 %v8301
  %v8393 = vpop.f32.mrf.mxu0
  %v8394 = vadd.f32 0.0, %v8393
  %v8395 = vpop.f32.mrf.mxu0
  %8396 = vmatprep.mubr.f32.mxu0 0.0
  %8397 = vmatmul.mubr.f32.gmra.mxu0 %v8304
  %v8398 = vpop.f32.mrf.mxu0
  %v8399 = vadd.f32 0.0, %v8398
  %v8400 = vpop.f32.mrf.mxu0
  %8401 = vmatprep.mubr.f32.mxu0 0.0
  %8402 = vmatmul.mubr.f32.gmra.mxu0 %v8307
  %v8403 = vpop.f32.mrf.mxu0
  %v8404 = vadd.f32 0.0, %v8403
  %v8405 = vpop.f32.mrf.mxu0
  %8406 = vmatprep.mubr.f32.mxu0 0.0
  %8407 = vmatmul.mubr.f32.gmra.mxu0 %v8310
  %v8408 = vpop.f32.mrf.mxu0
  %v8409 = vadd.f32 0.0, %v8408
  %v8410 = vpop.f32.mrf.mxu0
  %8411 = vmatprep.mubr.f32.mxu0 0.0
  %8412 = vmatmul.mubr.f32.gmra.mxu0 %v8313
  %v8413 = vpop.f32.mrf.mxu0
  %v8414 = vadd.f32 0.0, %v8413
  %v8415 = vpop.f32.mrf.mxu0
  %8416 = vmatprep.mubr.f32.mxu0 0.0
  %8417 = vmatmul.mubr.f32.gmra.mxu0 %v8316
  %v8418 = vpop.f32.mrf.mxu0
  %v8419 = vadd.f32 0.0, %v8418
  %v8420 = vpop.f32.mrf.mxu0
  %8421 = vmatprep.mubr.f32.mxu0 0.0
  %8422 = vmatmul.mubr.f32.gmra.mxu0 %v8319
  %v8423 = vpop.f32.mrf.mxu0
  %v8424 = vadd.f32 0.0, %v8423
  %v8425 = vpop.f32.mrf.mxu0
  %8426 = vmatprep.mubr.f32.mxu0 0.0
  %8427 = vmatmul.mubr.f32.gmra.mxu0 %v8322
  %v8428 = vpop.f32.mrf.mxu0
  %v8429 = vadd.f32 0.0, %v8428
  %v8430 = vpop.f32.mrf.mxu0
  %8431 = vdwg.mxu0
  %v8432 = vadd.f32 %v8290, %v8394
  %v8433 = vadd.f32 %v8291, %v8399
  %v8434 = vadd.f32 %v8292, %v8404
  %v8435 = vadd.f32 %v8293, %v8409
  %v8436 = vadd.f32 %v8294, %v8414
  %v8437 = vadd.f32 %v8295, %v8419
  %v8438 = vadd.f32 %v8296, %v8424
  %v8439 = vadd.f32 %v8297, %v8429
  %s8440 = scalar_lea.vmem %s59, 8
  %v8441 = vld [vmem:[%s8440] sm:$0xf]
  %v8443 = vsel %vm3996, %v8055, 0
  %v8446 = vsel %vm3996, %v8060, 0
  %v8449 = vsel %vm3996, %v8065, 0
  %v8452 = vsel %vm3996, %v8070, 0
  %v8455 = vsel %vm3996, %v8075, 0
  %v8458 = vsel %vm3996, %v8080, 0
  %v8461 = vsel %vm3996, %v8085, 0
  %v8464 = vsel %vm3996, %v8090, 0
  %v8467 = vsel %vm4729, %v8441, 0
  %8469 = vmatprep.subr.mxu0 0.0
  %8470 = vmatpush1.msra.mxu0 0.0
  %8471 = vmatprep.subr.mxu0 0.0
  %8472 = vmatpush1.msra.mxu0 0.0
  %8473 = vmatprep.subr.mxu0 0.0
  %8474 = vmatpush1.msra.mxu0 0.0
  %8475 = vmatprep.subr.mxu0 0.0
  %8476 = vmatpush1.msra.mxu0 0.0
  %8477 = vmatprep.subr.mxu0 0.0
  %8478 = vmatpush1.msra.mxu0 0.0
  %8479 = vmatprep.subr.mxu0 0.0
  %8480 = vmatpush1.msra.mxu0 0.0
  %8481 = vmatprep.subr.mxu0 0.0
  %8482 = vmatpush1.msra.mxu0 0.0
  %8483 = vmatprep.subr.mxu0 0.0
  %8484 = vmatpush1.msra.mxu0 0.0
  %8485 = vmatprep.subr.mxu0 0.0
  %8486 = vmatpush1.msra.mxu0 0.0
  %8487 = vmatprep.subr.mxu0 0.0
  %8488 = vmatpush1.msra.mxu0 0.0
  %8489 = vmatprep.subr.mxu0 0.0
  %8490 = vmatpush1.msra.mxu0 0.0
  %8491 = vmatprep.subr.mxu0 0.0
  %8492 = vmatpush1.msra.mxu0 0.0
  %8493 = vmatprep.subr.mxu0 0.0
  %8494 = vmatpush1.msra.mxu0 0.0
  %8495 = vmatprep.subr.mxu0 0.0
  %8496 = vmatpush1.msra.mxu0 0.0
  %8497 = vmatprep.subr.mxu0 0.0
  %8498 = vmatpush1.msra.mxu0 0.0
  %8499 = vmatprep.subr.mxu0 0.0
  %8500 = vmatpush1.msra.mxu0 %v8467
  %8501 = vmatprep.subr.mxu0 0.0
  %8502 = vmatpush2.msra.mxu0 0.0
  %8503 = vmatprep.subr.mxu0 0.0
  %8504 = vmatpush2.msra.mxu0 0.0
  %8505 = vmatprep.subr.mxu0 0.0
  %8506 = vmatpush2.msra.mxu0 0.0
  %8507 = vmatprep.subr.mxu0 0.0
  %8508 = vmatpush2.msra.mxu0 0.0
  %8509 = vmatprep.subr.mxu0 0.0
  %8510 = vmatpush2.msra.mxu0 0.0
  %8511 = vmatprep.subr.mxu0 0.0
  %8512 = vmatpush2.msra.mxu0 0.0
  %8513 = vmatprep.subr.mxu0 0.0
  %8514 = vmatpush2.msra.mxu0 0.0
  %8515 = vmatprep.subr.mxu0 0.0
  %8516 = vmatpush2.msra.mxu0 0.0
  %8517 = vmatprep.subr.mxu0 0.0
  %8518 = vmatpush2.msra.mxu0 0.0
  %8519 = vmatprep.subr.mxu0 0.0
  %8520 = vmatpush2.msra.mxu0 0.0
  %8521 = vmatprep.subr.mxu0 0.0
  %8522 = vmatpush2.msra.mxu0 0.0
  %8523 = vmatprep.subr.mxu0 0.0
  %8524 = vmatpush2.msra.mxu0 0.0
  %8525 = vmatprep.subr.mxu0 0.0
  %8526 = vmatpush2.msra.mxu0 0.0
  %8527 = vmatprep.subr.mxu0 0.0
  %8528 = vmatpush2.msra.mxu0 0.0
  %8529 = vmatprep.subr.mxu0 0.0
  %8530 = vmatpush2.msra.mxu0 0.0
  %8531 = vmatprep.subr.mxu0 0.0
  %8532 = vmatpush2.msra.mxu0 0.0
  %8533 = vmatprep.mubr.f32.mxu0 0.0
  %8534 = vmatmul.mubr.f32.gmra.mxu0 %v8443
  %v8535 = vpop.f32.mrf.mxu0
  %v8536 = vadd.f32 0.0, %v8535
  %v8537 = vpop.f32.mrf.mxu0
  %8538 = vmatprep.mubr.f32.mxu0 0.0
  %8539 = vmatmul.mubr.f32.gmra.mxu0 %v8446
  %v8540 = vpop.f32.mrf.mxu0
  %v8541 = vadd.f32 0.0, %v8540
  %v8542 = vpop.f32.mrf.mxu0
  %8543 = vmatprep.mubr.f32.mxu0 0.0
  %8544 = vmatmul.mubr.f32.gmra.mxu0 %v8449
  %v8545 = vpop.f32.mrf.mxu0
  %v8546 = vadd.f32 0.0, %v8545
  %v8547 = vpop.f32.mrf.mxu0
  %8548 = vmatprep.mubr.f32.mxu0 0.0
  %8549 = vmatmul.mubr.f32.gmra.mxu0 %v8452
  %v8550 = vpop.f32.mrf.mxu0
  %v8551 = vadd.f32 0.0, %v8550
  %v8552 = vpop.f32.mrf.mxu0
  %8553 = vmatprep.mubr.f32.mxu0 0.0
  %8554 = vmatmul.mubr.f32.gmra.mxu0 %v8455
  %v8555 = vpop.f32.mrf.mxu0
  %v8556 = vadd.f32 0.0, %v8555
  %v8557 = vpop.f32.mrf.mxu0
  %8558 = vmatprep.mubr.f32.mxu0 0.0
  %8559 = vmatmul.mubr.f32.gmra.mxu0 %v8458
  %v8560 = vpop.f32.mrf.mxu0
  %v8561 = vadd.f32 0.0, %v8560
  %v8562 = vpop.f32.mrf.mxu0
  %8563 = vmatprep.mubr.f32.mxu0 0.0
  %8564 = vmatmul.mubr.f32.gmra.mxu0 %v8461
  %v8565 = vpop.f32.mrf.mxu0
  %v8566 = vadd.f32 0.0, %v8565
  %v8567 = vpop.f32.mrf.mxu0
  %8568 = vmatprep.mubr.f32.mxu0 0.0
  %8569 = vmatmul.mubr.f32.gmra.mxu0 %v8464
  %v8570 = vpop.f32.mrf.mxu0
  %v8571 = vadd.f32 0.0, %v8570
  %v8572 = vpop.f32.mrf.mxu0
  %8573 = vdwg.mxu0
  %v8574 = vadd.f32 %v8432, %v8536
  %v8575 = vadd.f32 %v8433, %v8541
  %v8576 = vadd.f32 %v8434, %v8546
  %v8577 = vadd.f32 %v8435, %v8551
  %v8578 = vadd.f32 %v8436, %v8556
  %v8579 = vadd.f32 %v8437, %v8561
  %v8580 = vadd.f32 %v8438, %v8566
  %v8581 = vadd.f32 %v8439, %v8571
  %v8582 = vld [vmem:[%s63] sm:$0xff]
  %v8583 = vld [vmem:[%s63 + $0x8] sm:$0xff]
  %v8584 = vld [vmem:[%s63 + $0x10] sm:$0xff]
  %v8585 = vld [vmem:[%s63 + $0x18] sm:$0xff]
  %v8586 = vld [vmem:[%s63 + $0x20] sm:$0xff]
  %v8587 = vld [vmem:[%s63 + $0x28] sm:$0xff]
  %v8588 = vld [vmem:[%s63 + $0x30] sm:$0xff]
  %v8589 = vld [vmem:[%s63 + $0x38] sm:$0xff]
  %v8590 = vsel %vm2516, %v8574, 0.0
  %8591 = vadd.xlane.f32.xlu0 %v8590
  %v8592 = vpop.xlane.xlu0 %8591
  %v8593 = vsel %vm2516, %v8575, 0.0
  %8594 = vadd.xlane.f32.xlu0 %v8593
  %v8595 = vpop.xlane.xlu0 %8594
  %v8596 = vsel %vm2516, %v8576, 0.0
  %8597 = vadd.xlane.f32.xlu0 %v8596
  %v8598 = vpop.xlane.xlu0 %8597
  %v8599 = vsel %vm2516, %v8577, 0.0
  %8600 = vadd.xlane.f32.xlu0 %v8599
  %v8601 = vpop.xlane.xlu0 %8600
  %v8602 = vsel %vm2516, %v8578, 0.0
  %8603 = vadd.xlane.f32.xlu0 %v8602
  %v8604 = vpop.xlane.xlu0 %8603
  %v8605 = vsel %vm2516, %v8579, 0.0
  %8606 = vadd.xlane.f32.xlu0 %v8605
  %v8607 = vpop.xlane.xlu0 %8606
  %v8608 = vsel %vm2516, %v8580, 0.0
  %8609 = vadd.xlane.f32.xlu0 %v8608
  %v8610 = vpop.xlane.xlu0 %8609
  %v8611 = vsel %vm2516, %v8581, 0.0
  %8612 = vadd.xlane.f32.xlu0 %v8611
  %v8613 = vpop.xlane.xlu0 %8612
  %v8615 = vsel %vm2541, %v8582, 0
  %v8618 = vsel %vm2541, %v8583, 0
  %v8621 = vsel %vm2541, %v8584, 0
  %v8624 = vsel %vm2541, %v8585, 0
  %v8627 = vsel %vm2541, %v8586, 0
  %v8630 = vsel %vm2541, %v8587, 0
  %v8633 = vsel %vm2541, %v8588, 0
  %v8636 = vsel %vm2541, %v8589, 0
  %8638 = vmatprep.subr.mxu0 0.0
  %8639 = vmatpush1.msra.mxu0 0.0
  %8640 = vmatprep.subr.mxu0 0.0
  %8641 = vmatpush1.msra.mxu0 0.0
  %8642 = vmatprep.subr.mxu0 0.0
  %8643 = vmatpush1.msra.mxu0 0.0
  %8644 = vmatprep.subr.mxu0 0.0
  %8645 = vmatpush1.msra.mxu0 0.0
  %8646 = vmatprep.subr.mxu0 0.0
  %8647 = vmatpush1.msra.mxu0 0.0
  %8648 = vmatprep.subr.mxu0 0.0
  %8649 = vmatpush1.msra.mxu0 0.0
  %8650 = vmatprep.subr.mxu0 0.0
  %8651 = vmatpush1.msra.mxu0 0.0
  %8652 = vmatprep.subr.mxu0 0.0
  %8653 = vmatpush1.msra.mxu0 0.0
  %8654 = vmatprep.subr.mxu0 0.0
  %8655 = vmatpush1.msra.mxu0 %v8613
  %8656 = vmatprep.subr.mxu0 0.0
  %8657 = vmatpush1.msra.mxu0 %v8610
  %8658 = vmatprep.subr.mxu0 0.0
  %8659 = vmatpush1.msra.mxu0 %v8607
  %8660 = vmatprep.subr.mxu0 0.0
  %8661 = vmatpush1.msra.mxu0 %v8604
  %8662 = vmatprep.subr.mxu0 0.0
  %8663 = vmatpush1.msra.mxu0 %v8601
  %8664 = vmatprep.subr.mxu0 0.0
  %8665 = vmatpush1.msra.mxu0 %v8598
  %8666 = vmatprep.subr.mxu0 0.0
  %8667 = vmatpush1.msra.mxu0 %v8595
  %8668 = vmatprep.subr.mxu0 0.0
  %8669 = vmatpush1.msra.mxu0 %v8592
  %8670 = vmatprep.subr.mxu0 0.0
  %8671 = vmatpush2.msra.mxu0 0.0
  %8672 = vmatprep.subr.mxu0 0.0
  %8673 = vmatpush2.msra.mxu0 0.0
  %8674 = vmatprep.subr.mxu0 0.0
  %8675 = vmatpush2.msra.mxu0 0.0
  %8676 = vmatprep.subr.mxu0 0.0
  %8677 = vmatpush2.msra.mxu0 0.0
  %8678 = vmatprep.subr.mxu0 0.0
  %8679 = vmatpush2.msra.mxu0 0.0
  %8680 = vmatprep.subr.mxu0 0.0
  %8681 = vmatpush2.msra.mxu0 0.0
  %8682 = vmatprep.subr.mxu0 0.0
  %8683 = vmatpush2.msra.mxu0 0.0
  %8684 = vmatprep.subr.mxu0 0.0
  %8685 = vmatpush2.msra.mxu0 0.0
  %8686 = vmatprep.subr.mxu0 0.0
  %8687 = vmatpush2.msra.mxu0 0.0
  %8688 = vmatprep.subr.mxu0 0.0
  %8689 = vmatpush2.msra.mxu0 0.0
  %8690 = vmatprep.subr.mxu0 0.0
  %8691 = vmatpush2.msra.mxu0 0.0
  %8692 = vmatprep.subr.mxu0 0.0
  %8693 = vmatpush2.msra.mxu0 0.0
  %8694 = vmatprep.subr.mxu0 0.0
  %8695 = vmatpush2.msra.mxu0 0.0
  %8696 = vmatprep.subr.mxu0 0.0
  %8697 = vmatpush2.msra.mxu0 0.0
  %8698 = vmatprep.subr.mxu0 0.0
  %8699 = vmatpush2.msra.mxu0 0.0
  %8700 = vmatprep.subr.mxu0 0.0
  %8701 = vmatpush2.msra.mxu0 0.0
  %8702 = vmatprep.mubr.f32.mxu0 0.0
  %8703 = vmatmul.mubr.f32.gmra.mxu0 %v8615
  %v8704 = vpop.f32.mrf.mxu0
  %v8705 = vadd.f32 0.0, %v8704
  %v8706 = vpop.f32.mrf.mxu0
  %8707 = vmatprep.mubr.f32.mxu0 0.0
  %8708 = vmatmul.mubr.f32.gmra.mxu0 %v8618
  %v8709 = vpop.f32.mrf.mxu0
  %v8710 = vadd.f32 0.0, %v8709
  %v8711 = vpop.f32.mrf.mxu0
  %8712 = vmatprep.mubr.f32.mxu0 0.0
  %8713 = vmatmul.mubr.f32.gmra.mxu0 %v8621
  %v8714 = vpop.f32.mrf.mxu0
  %v8715 = vadd.f32 0.0, %v8714
  %v8716 = vpop.f32.mrf.mxu0
  %8717 = vmatprep.mubr.f32.mxu0 0.0
  %8718 = vmatmul.mubr.f32.gmra.mxu0 %v8624
  %v8719 = vpop.f32.mrf.mxu0
  %v8720 = vadd.f32 0.0, %v8719
  %v8721 = vpop.f32.mrf.mxu0
  %8722 = vmatprep.mubr.f32.mxu0 0.0
  %8723 = vmatmul.mubr.f32.gmra.mxu0 %v8627
  %v8724 = vpop.f32.mrf.mxu0
  %v8725 = vadd.f32 0.0, %v8724
  %v8726 = vpop.f32.mrf.mxu0
  %8727 = vmatprep.mubr.f32.mxu0 0.0
  %8728 = vmatmul.mubr.f32.gmra.mxu0 %v8630
  %v8729 = vpop.f32.mrf.mxu0
  %v8730 = vadd.f32 0.0, %v8729
  %v8731 = vpop.f32.mrf.mxu0
  %8732 = vmatprep.mubr.f32.mxu0 0.0
  %8733 = vmatmul.mubr.f32.gmra.mxu0 %v8633
  %v8734 = vpop.f32.mrf.mxu0
  %v8735 = vadd.f32 0.0, %v8734
  %v8736 = vpop.f32.mrf.mxu0
  %8737 = vmatprep.mubr.f32.mxu0 0.0
  %8738 = vmatmul.mubr.f32.gmra.mxu0 %v8636
  %v8739 = vpop.f32.mrf.mxu0
  %v8740 = vadd.f32 0.0, %v8739
  %v8741 = vpop.f32.mrf.mxu0
  %8742 = vdwg.mxu0
  %v8743 = vmul.f32 %v8705, 0.0078125
  %v8744 = vmul.f32 %v8710, 0.0078125
  %v8745 = vmul.f32 %v8715, 0.0078125
  %v8746 = vmul.f32 %v8720, 0.0078125
  %v8747 = vmul.f32 %v8725, 0.0078125
  %v8748 = vmul.f32 %v8730, 0.0078125
  %v8749 = vmul.f32 %v8735, 0.0078125
  %v8750 = vmul.f32 %v8740, 0.0078125
  %8752 = vset.pattern.permute.xlu0 0
  %8753 = vperm.xlu0 %8752, %v8743
  %v8754 = vpop.permute.xlu0 %8753
  %8757 = vset.pattern.permute.xlu0 0
  %8758 = vperm.xlu0 %8757, %v8744
  %v8759 = vpop.permute.xlu0 %8758
  %8762 = vset.pattern.permute.xlu0 0
  %8763 = vperm.xlu0 %8762, %v8745
  %v8764 = vpop.permute.xlu0 %8763
  %8767 = vset.pattern.permute.xlu0 0
  %8768 = vperm.xlu0 %8767, %v8746
  %v8769 = vpop.permute.xlu0 %8768
  %8772 = vset.pattern.permute.xlu0 0
  %8773 = vperm.xlu0 %8772, %v8747
  %v8774 = vpop.permute.xlu0 %8773
  %8777 = vset.pattern.permute.xlu0 0
  %8778 = vperm.xlu0 %8777, %v8748
  %v8779 = vpop.permute.xlu0 %8778
  %8782 = vset.pattern.permute.xlu0 0
  %8783 = vperm.xlu0 %8782, %v8749
  %v8784 = vpop.permute.xlu0 %8783
  %8787 = vset.pattern.permute.xlu0 0
  %8788 = vperm.xlu0 %8787, %v8750
  %v8789 = vpop.permute.xlu0 %8788
  %v8791 = vsub.f32 %v8574, %v8754
  %v8792 = vsub.f32 %v8575, %v8759
  %v8793 = vsub.f32 %v8576, %v8764
  %v8794 = vsub.f32 %v8577, %v8769
  %v8795 = vsub.f32 %v8578, %v8774
  %v8796 = vsub.f32 %v8579, %v8779
  %v8797 = vsub.f32 %v8580, %v8784
  %v8798 = vsub.f32 %v8581, %v8789
  %v8799 = vmul.f32 %v8791, %v8791
  %v8800 = vmul.f32 %v8792, %v8792
  %v8801 = vmul.f32 %v8793, %v8793
  %v8802 = vmul.f32 %v8794, %v8794
  %v8803 = vmul.f32 %v8795, %v8795
  %v8804 = vmul.f32 %v8796, %v8796
  %v8805 = vmul.f32 %v8797, %v8797
  %v8806 = vmul.f32 %v8798, %v8798
  %v8807 = vsel %vm2516, %v8799, 0.0
  %8808 = vadd.xlane.f32.xlu0 %v8807
  %v8809 = vpop.xlane.xlu0 %8808
  %v8810 = vsel %vm2516, %v8800, 0.0
  %8811 = vadd.xlane.f32.xlu0 %v8810
  %v8812 = vpop.xlane.xlu0 %8811
  %v8813 = vsel %vm2516, %v8801, 0.0
  %8814 = vadd.xlane.f32.xlu0 %v8813
  %v8815 = vpop.xlane.xlu0 %8814
  %v8816 = vsel %vm2516, %v8802, 0.0
  %8817 = vadd.xlane.f32.xlu0 %v8816
  %v8818 = vpop.xlane.xlu0 %8817
  %v8819 = vsel %vm2516, %v8803, 0.0
  %8820 = vadd.xlane.f32.xlu0 %v8819
  %v8821 = vpop.xlane.xlu0 %8820
  %v8822 = vsel %vm2516, %v8804, 0.0
  %8823 = vadd.xlane.f32.xlu0 %v8822
  %v8824 = vpop.xlane.xlu0 %8823
  %v8825 = vsel %vm2516, %v8805, 0.0
  %8826 = vadd.xlane.f32.xlu0 %v8825
  %v8827 = vpop.xlane.xlu0 %8826
  %v8828 = vsel %vm2516, %v8806, 0.0
  %8829 = vadd.xlane.f32.xlu0 %v8828
  %v8830 = vpop.xlane.xlu0 %8829
  %8831 = vmatprep.subr.mxu0 0.0
  %8832 = vmatpush1.msra.mxu0 0.0
  %8833 = vmatprep.subr.mxu0 0.0
  %8834 = vmatpush1.msra.mxu0 0.0
  %8835 = vmatprep.subr.mxu0 0.0
  %8836 = vmatpush1.msra.mxu0 0.0
  %8837 = vmatprep.subr.mxu0 0.0
  %8838 = vmatpush1.msra.mxu0 0.0
  %8839 = vmatprep.subr.mxu0 0.0
  %8840 = vmatpush1.msra.mxu0 0.0
  %8841 = vmatprep.subr.mxu0 0.0
  %8842 = vmatpush1.msra.mxu0 0.0
  %8843 = vmatprep.subr.mxu0 0.0
  %8844 = vmatpush1.msra.mxu0 0.0
  %8845 = vmatprep.subr.mxu0 0.0
  %8846 = vmatpush1.msra.mxu0 0.0
  %8847 = vmatprep.subr.mxu0 0.0
  %8848 = vmatpush1.msra.mxu0 %v8830
  %8849 = vmatprep.subr.mxu0 0.0
  %8850 = vmatpush1.msra.mxu0 %v8827
  %8851 = vmatprep.subr.mxu0 0.0
  %8852 = vmatpush1.msra.mxu0 %v8824
  %8853 = vmatprep.subr.mxu0 0.0
  %8854 = vmatpush1.msra.mxu0 %v8821
  %8855 = vmatprep.subr.mxu0 0.0
  %8856 = vmatpush1.msra.mxu0 %v8818
  %8857 = vmatprep.subr.mxu0 0.0
  %8858 = vmatpush1.msra.mxu0 %v8815
  %8859 = vmatprep.subr.mxu0 0.0
  %8860 = vmatpush1.msra.mxu0 %v8812
  %8861 = vmatprep.subr.mxu0 0.0
  %8862 = vmatpush1.msra.mxu0 %v8809
  %8863 = vmatprep.subr.mxu0 0.0
  %8864 = vmatpush2.msra.mxu0 0.0
  %8865 = vmatprep.subr.mxu0 0.0
  %8866 = vmatpush2.msra.mxu0 0.0
  %8867 = vmatprep.subr.mxu0 0.0
  %8868 = vmatpush2.msra.mxu0 0.0
  %8869 = vmatprep.subr.mxu0 0.0
  %8870 = vmatpush2.msra.mxu0 0.0
  %8871 = vmatprep.subr.mxu0 0.0
  %8872 = vmatpush2.msra.mxu0 0.0
  %8873 = vmatprep.subr.mxu0 0.0
  %8874 = vmatpush2.msra.mxu0 0.0
  %8875 = vmatprep.subr.mxu0 0.0
  %8876 = vmatpush2.msra.mxu0 0.0
  %8877 = vmatprep.subr.mxu0 0.0
  %8878 = vmatpush2.msra.mxu0 0.0
  %8879 = vmatprep.subr.mxu0 0.0
  %8880 = vmatpush2.msra.mxu0 0.0
  %8881 = vmatprep.subr.mxu0 0.0
  %8882 = vmatpush2.msra.mxu0 0.0
  %8883 = vmatprep.subr.mxu0 0.0
  %8884 = vmatpush2.msra.mxu0 0.0
  %8885 = vmatprep.subr.mxu0 0.0
  %8886 = vmatpush2.msra.mxu0 0.0
  %8887 = vmatprep.subr.mxu0 0.0
  %8888 = vmatpush2.msra.mxu0 0.0
  %8889 = vmatprep.subr.mxu0 0.0
  %8890 = vmatpush2.msra.mxu0 0.0
  %8891 = vmatprep.subr.mxu0 0.0
  %8892 = vmatpush2.msra.mxu0 0.0
  %8893 = vmatprep.subr.mxu0 0.0
  %8894 = vmatpush2.msra.mxu0 0.0
  %8895 = vmatprep.mubr.f32.mxu0 0.0
  %8896 = vmatmul.mubr.f32.gmra.mxu0 %v8615
  %v8897 = vpop.f32.mrf.mxu0
  %v8898 = vadd.f32 0.0, %v8897
  %v8899 = vpop.f32.mrf.mxu0
  %8900 = vmatprep.mubr.f32.mxu0 0.0
  %8901 = vmatmul.mubr.f32.gmra.mxu0 %v8618
  %v8902 = vpop.f32.mrf.mxu0
  %v8903 = vadd.f32 0.0, %v8902
  %v8904 = vpop.f32.mrf.mxu0
  %8905 = vmatprep.mubr.f32.mxu0 0.0
  %8906 = vmatmul.mubr.f32.gmra.mxu0 %v8621
  %v8907 = vpop.f32.mrf.mxu0
  %v8908 = vadd.f32 0.0, %v8907
  %v8909 = vpop.f32.mrf.mxu0
  %8910 = vmatprep.mubr.f32.mxu0 0.0
  %8911 = vmatmul.mubr.f32.gmra.mxu0 %v8624
  %v8912 = vpop.f32.mrf.mxu0
  %v8913 = vadd.f32 0.0, %v8912
  %v8914 = vpop.f32.mrf.mxu0
  %8915 = vmatprep.mubr.f32.mxu0 0.0
  %8916 = vmatmul.mubr.f32.gmra.mxu0 %v8627
  %v8917 = vpop.f32.mrf.mxu0
  %v8918 = vadd.f32 0.0, %v8917
  %v8919 = vpop.f32.mrf.mxu0
  %8920 = vmatprep.mubr.f32.mxu0 0.0
  %8921 = vmatmul.mubr.f32.gmra.mxu0 %v8630
  %v8922 = vpop.f32.mrf.mxu0
  %v8923 = vadd.f32 0.0, %v8922
  %v8924 = vpop.f32.mrf.mxu0
  %8925 = vmatprep.mubr.f32.mxu0 0.0
  %8926 = vmatmul.mubr.f32.gmra.mxu0 %v8633
  %v8927 = vpop.f32.mrf.mxu0
  %v8928 = vadd.f32 0.0, %v8927
  %v8929 = vpop.f32.mrf.mxu0
  %8930 = vmatprep.mubr.f32.mxu0 0.0
  %8931 = vmatmul.mubr.f32.gmra.mxu0 %v8636
  %v8932 = vpop.f32.mrf.mxu0
  %v8933 = vadd.f32 0.0, %v8932
  %v8934 = vpop.f32.mrf.mxu0
  %8935 = vdwg.mxu0
  %v8936 = vmul.f32 %v8898, 0.0078125
  %v8937 = vmul.f32 %v8903, 0.0078125
  %v8938 = vmul.f32 %v8908, 0.0078125
  %v8939 = vmul.f32 %v8913, 0.0078125
  %v8940 = vmul.f32 %v8918, 0.0078125
  %v8941 = vmul.f32 %v8923, 0.0078125
  %v8942 = vmul.f32 %v8928, 0.0078125
  %v8943 = vmul.f32 %v8933, 0.0078125
  %v8944 = vadd.f32 %v8936, 1e-05
  %v8945 = vadd.f32 %v8937, 1e-05
  %v8946 = vadd.f32 %v8938, 1e-05
  %v8947 = vadd.f32 %v8939, 1e-05
  %v8948 = vadd.f32 %v8940, 1e-05
  %v8949 = vadd.f32 %v8941, 1e-05
  %v8950 = vadd.f32 %v8942, 1e-05
  %v8951 = vadd.f32 %v8943, 1e-05
  %v8952 = vrsqrt.pop %v8944
  %v8953 = vrsqrt.pop %v8945
  %v8954 = vrsqrt.pop %v8946
  %v8955 = vrsqrt.pop %v8947
  %v8956 = vrsqrt.pop %v8948
  %v8957 = vrsqrt.pop %v8949
  %v8958 = vrsqrt.pop %v8950
  %v8959 = vrsqrt.pop %v8951
  %v8960 = vmul.f32 %v8952, %v8101
  %v8961 = vmul.f32 %v8953, %v8102
  %v8962 = vmul.f32 %v8954, %v8103
  %v8963 = vmul.f32 %v8955, %v8104
  %v8964 = vmul.f32 %v8956, %v8105
  %v8965 = vmul.f32 %v8957, %v8106
  %v8966 = vmul.f32 %v8958, %v8107
  %v8967 = vmul.f32 %v8959, %v8108
  %8969 = vset.pattern.permute.xlu0 0
  %8970 = vperm.xlu0 %8969, %v8960
  %v8971 = vpop.permute.xlu0 %8970
  %8974 = vset.pattern.permute.xlu0 0
  %8975 = vperm.xlu0 %8974, %v8961
  %v8976 = vpop.permute.xlu0 %8975
  %8979 = vset.pattern.permute.xlu0 0
  %8980 = vperm.xlu0 %8979, %v8962
  %v8981 = vpop.permute.xlu0 %8980
  %8984 = vset.pattern.permute.xlu0 0
  %8985 = vperm.xlu0 %8984, %v8963
  %v8986 = vpop.permute.xlu0 %8985
  %8989 = vset.pattern.permute.xlu0 0
  %8990 = vperm.xlu0 %8989, %v8964
  %v8991 = vpop.permute.xlu0 %8990
  %8994 = vset.pattern.permute.xlu0 0
  %8995 = vperm.xlu0 %8994, %v8965
  %v8996 = vpop.permute.xlu0 %8995
  %8999 = vset.pattern.permute.xlu0 0
  %9000 = vperm.xlu0 %8999, %v8966
  %v9001 = vpop.permute.xlu0 %9000
  %9004 = vset.pattern.permute.xlu0 0
  %9005 = vperm.xlu0 %9004, %v8967
  %v9006 = vpop.permute.xlu0 %9005
  %v9008 = vmul.f32 %v8791, %v8971
  %v9009 = vmul.f32 %v8792, %v8976
  %v9010 = vmul.f32 %v8793, %v8981
  %v9011 = vmul.f32 %v8794, %v8986
  %v9012 = vmul.f32 %v8795, %v8991
  %v9013 = vmul.f32 %v8796, %v8996
  %v9014 = vmul.f32 %v8797, %v9001
  %v9015 = vmul.f32 %v8798, %v9006
  %9017 = vset.pattern.permute.xlu0 0
  %9018 = vperm.xlu0 %9017, %v8109
  %v9019 = vpop.permute.xlu0 %9018
  %9022 = vset.pattern.permute.xlu0 0
  %9023 = vperm.xlu0 %9022, %v8110
  %v9024 = vpop.permute.xlu0 %9023
  %9027 = vset.pattern.permute.xlu0 0
  %9028 = vperm.xlu0 %9027, %v8111
  %v9029 = vpop.permute.xlu0 %9028
  %9032 = vset.pattern.permute.xlu0 0
  %9033 = vperm.xlu0 %9032, %v8112
  %v9034 = vpop.permute.xlu0 %9033
  %9037 = vset.pattern.permute.xlu0 0
  %9038 = vperm.xlu0 %9037, %v8113
  %v9039 = vpop.permute.xlu0 %9038
  %9042 = vset.pattern.permute.xlu0 0
  %9043 = vperm.xlu0 %9042, %v8114
  %v9044 = vpop.permute.xlu0 %9043
  %9047 = vset.pattern.permute.xlu0 0
  %9048 = vperm.xlu0 %9047, %v8115
  %v9049 = vpop.permute.xlu0 %9048
  %9052 = vset.pattern.permute.xlu0 0
  %9053 = vperm.xlu0 %9052, %v8116
  %v9054 = vpop.permute.xlu0 %9053
  %v9056 = vadd.f32 %v9008, %v9019
  %v9057 = vadd.f32 %v9009, %v9024
  %v9058 = vadd.f32 %v9010, %v9029
  %v9059 = vadd.f32 %v9011, %v9034
  %v9060 = vadd.f32 %v9012, %v9039
  %v9061 = vadd.f32 %v9013, %v9044
  %v9062 = vadd.f32 %v9014, %v9049
  %v9063 = vadd.f32 %v9015, %v9054
  %v9064 = vmax.f32 %v9056, 0.0
  %v9065 = vmax.f32 %v9057, 0.0
  %v9066 = vmax.f32 %v9058, 0.0
  %v9067 = vmax.f32 %v9059, 0.0
  %v9068 = vmax.f32 %v9060, 0.0
  %v9069 = vmax.f32 %v9061, 0.0
  %v9070 = vmax.f32 %v9062, 0.0
  %v9071 = vmax.f32 %v9063, 0.0
  %v9072 = vld [vmem:[%s65] sm:$0xff]
  %v9073 = vld [vmem:[%s65 + $0x8] sm:$0xff]
  %v9074 = vld [vmem:[%s65 + $0x10] sm:$0xff]
  %v9075 = vld [vmem:[%s65 + $0x18] sm:$0xff]
  %v9076 = vld [vmem:[%s65 + $0x20] sm:$0xff]
  %v9077 = vld [vmem:[%s65 + $0x28] sm:$0xff]
  %v9078 = vld [vmem:[%s65 + $0x30] sm:$0xff]
  %v9079 = vld [vmem:[%s65 + $0x38] sm:$0xff]
  %v9080 = vld [vmem:[%s65 + $0x40] sm:$0xff]
  %v9081 = vld [vmem:[%s65 + $0x48] sm:$0xff]
  %v9082 = vld [vmem:[%s65 + $0x50] sm:$0xff]
  %v9083 = vld [vmem:[%s65 + $0x58] sm:$0xff]
  %v9084 = vld [vmem:[%s65 + $0x60] sm:$0xff]
  %v9085 = vld [vmem:[%s65 + $0x68] sm:$0xff]
  %v9086 = vld [vmem:[%s65 + $0x70] sm:$0xff]
  %v9087 = vld [vmem:[%s65 + $0x78] sm:$0xff]
  %v9088 = vld [vmem:[%s65 + $0x80] sm:$0xff]
  %v9089 = vld [vmem:[%s65 + $0x88] sm:$0xff]
  %v9090 = vld [vmem:[%s65 + $0x90] sm:$0xff]
  %v9091 = vld [vmem:[%s65 + $0x98] sm:$0xff]
  %v9092 = vld [vmem:[%s65 + $0xa0] sm:$0xff]
  %v9093 = vld [vmem:[%s65 + $0xa8] sm:$0xff]
  %v9094 = vld [vmem:[%s65 + $0xb0] sm:$0xff]
  %v9095 = vld [vmem:[%s65 + $0xb8] sm:$0xff]
  %v9096 = vld [vmem:[%s65 + $0xc0] sm:$0xff]
  %v9097 = vld [vmem:[%s65 + $0xc8] sm:$0xff]
  %v9098 = vld [vmem:[%s65 + $0xd0] sm:$0xff]
  %v9099 = vld [vmem:[%s65 + $0xd8] sm:$0xff]
  %v9100 = vld [vmem:[%s65 + $0xe0] sm:$0xff]
  %v9101 = vld [vmem:[%s65 + $0xe8] sm:$0xff]
  %v9102 = vld [vmem:[%s65 + $0xf0] sm:$0xff]
  %v9103 = vld [vmem:[%s65 + $0xf8] sm:$0xff]
  %v9104 = vld [vmem:[%s65 + $0x100] sm:$0xff]
  %v9105 = vld [vmem:[%s65 + $0x108] sm:$0xff]
  %v9106 = vld [vmem:[%s65 + $0x110] sm:$0xff]
  %v9107 = vld [vmem:[%s65 + $0x118] sm:$0xff]
  %v9108 = vld [vmem:[%s65 + $0x120] sm:$0xff]
  %v9109 = vld [vmem:[%s65 + $0x128] sm:$0xff]
  %v9110 = vld [vmem:[%s65 + $0x130] sm:$0xff]
  %v9111 = vld [vmem:[%s65 + $0x138] sm:$0xff]
  %v9112 = vld [vmem:[%s65 + $0x140] sm:$0xff]
  %v9113 = vld [vmem:[%s65 + $0x148] sm:$0xff]
  %v9114 = vld [vmem:[%s65 + $0x150] sm:$0xff]
  %v9115 = vld [vmem:[%s65 + $0x158] sm:$0xff]
  %v9116 = vld [vmem:[%s65 + $0x160] sm:$0xff]
  %v9117 = vld [vmem:[%s65 + $0x168] sm:$0xff]
  %v9118 = vld [vmem:[%s65 + $0x170] sm:$0xff]
  %v9119 = vld [vmem:[%s65 + $0x178] sm:$0xff]
  %v9121 = vsel %vm2541, %v9072, 0
  %v9124 = vsel %vm2541, %v9073, 0
  %v9127 = vsel %vm2541, %v9074, 0
  %v9130 = vsel %vm2541, %v9075, 0
  %v9133 = vsel %vm2541, %v9076, 0
  %v9136 = vsel %vm2541, %v9077, 0
  %v9139 = vsel %vm2541, %v9078, 0
  %v9142 = vsel %vm2541, %v9079, 0
  %v9145 = vsel %vm2541, %v9080, 0
  %v9148 = vsel %vm2541, %v9081, 0
  %v9151 = vsel %vm2541, %v9082, 0
  %v9154 = vsel %vm2541, %v9083, 0
  %v9157 = vsel %vm2541, %v9084, 0
  %v9160 = vsel %vm2541, %v9085, 0
  %v9163 = vsel %vm2541, %v9086, 0
  %v9166 = vsel %vm2541, %v9087, 0
  %v9169 = vsel %vm2541, %v9088, 0
  %v9172 = vsel %vm2541, %v9089, 0
  %v9175 = vsel %vm2541, %v9090, 0
  %v9178 = vsel %vm2541, %v9091, 0
  %v9181 = vsel %vm2541, %v9092, 0
  %v9184 = vsel %vm2541, %v9093, 0
  %v9187 = vsel %vm2541, %v9094, 0
  %v9190 = vsel %vm2541, %v9095, 0
  %v9193 = vsel %vm2541, %v9096, 0
  %v9196 = vsel %vm2541, %v9097, 0
  %v9199 = vsel %vm2541, %v9098, 0
  %v9202 = vsel %vm2541, %v9099, 0
  %v9205 = vsel %vm2541, %v9100, 0
  %v9208 = vsel %vm2541, %v9101, 0
  %v9211 = vsel %vm2541, %v9102, 0
  %v9214 = vsel %vm2541, %v9103, 0
  %v9217 = vsel %vm2541, %v9104, 0
  %v9220 = vsel %vm2541, %v9105, 0
  %v9223 = vsel %vm2541, %v9106, 0
  %v9226 = vsel %vm2541, %v9107, 0
  %v9229 = vsel %vm2541, %v9108, 0
  %v9232 = vsel %vm2541, %v9109, 0
  %v9235 = vsel %vm2541, %v9110, 0
  %v9238 = vsel %vm2541, %v9111, 0
  %v9241 = vsel %vm2541, %v9112, 0
  %v9244 = vsel %vm2541, %v9113, 0
  %v9247 = vsel %vm2541, %v9114, 0
  %v9250 = vsel %vm2541, %v9115, 0
  %v9253 = vsel %vm2541, %v9116, 0
  %v9256 = vsel %vm2541, %v9117, 0
  %v9259 = vsel %vm2541, %v9118, 0
  %v9262 = vsel %vm2541, %v9119, 0
  %9264 = vmatprep.subr.mxu0 0.0
  %9265 = vmatpush1.msra.mxu0 0.0
  %9266 = vmatprep.subr.mxu0 0.0
  %9267 = vmatpush1.msra.mxu0 0.0
  %9268 = vmatprep.subr.mxu0 0.0
  %9269 = vmatpush1.msra.mxu0 0.0
  %9270 = vmatprep.subr.mxu0 0.0
  %9271 = vmatpush1.msra.mxu0 0.0
  %9272 = vmatprep.subr.mxu0 0.0
  %9273 = vmatpush1.msra.mxu0 0.0
  %9274 = vmatprep.subr.mxu0 0.0
  %9275 = vmatpush1.msra.mxu0 0.0
  %9276 = vmatprep.subr.mxu0 0.0
  %9277 = vmatpush1.msra.mxu0 0.0
  %9278 = vmatprep.subr.mxu0 0.0
  %9279 = vmatpush1.msra.mxu0 0.0
  %9280 = vmatprep.subr.mxu0 0.0
  %9281 = vmatpush1.msra.mxu0 %v9071
  %9282 = vmatprep.subr.mxu0 0.0
  %9283 = vmatpush1.msra.mxu0 %v9070
  %9284 = vmatprep.subr.mxu0 0.0
  %9285 = vmatpush1.msra.mxu0 %v9069
  %9286 = vmatprep.subr.mxu0 0.0
  %9287 = vmatpush1.msra.mxu0 %v9068
  %9288 = vmatprep.subr.mxu0 0.0
  %9289 = vmatpush1.msra.mxu0 %v9067
  %9290 = vmatprep.subr.mxu0 0.0
  %9291 = vmatpush1.msra.mxu0 %v9066
  %9292 = vmatprep.subr.mxu0 0.0
  %9293 = vmatpush1.msra.mxu0 %v9065
  %9294 = vmatprep.subr.mxu0 0.0
  %9295 = vmatpush1.msra.mxu0 %v9064
  %9296 = vmatprep.subr.mxu0 0.0
  %9297 = vmatpush2.msra.mxu0 0.0
  %9298 = vmatprep.subr.mxu0 0.0
  %9299 = vmatpush2.msra.mxu0 0.0
  %9300 = vmatprep.subr.mxu0 0.0
  %9301 = vmatpush2.msra.mxu0 0.0
  %9302 = vmatprep.subr.mxu0 0.0
  %9303 = vmatpush2.msra.mxu0 0.0
  %9304 = vmatprep.subr.mxu0 0.0
  %9305 = vmatpush2.msra.mxu0 0.0
  %9306 = vmatprep.subr.mxu0 0.0
  %9307 = vmatpush2.msra.mxu0 0.0
  %9308 = vmatprep.subr.mxu0 0.0
  %9309 = vmatpush2.msra.mxu0 0.0
  %9310 = vmatprep.subr.mxu0 0.0
  %9311 = vmatpush2.msra.mxu0 0.0
  %9312 = vmatprep.subr.mxu0 0.0
  %9313 = vmatpush2.msra.mxu0 0.0
  %9314 = vmatprep.subr.mxu0 0.0
  %9315 = vmatpush2.msra.mxu0 0.0
  %9316 = vmatprep.subr.mxu0 0.0
  %9317 = vmatpush2.msra.mxu0 0.0
  %9318 = vmatprep.subr.mxu0 0.0
  %9319 = vmatpush2.msra.mxu0 0.0
  %9320 = vmatprep.subr.mxu0 0.0
  %9321 = vmatpush2.msra.mxu0 0.0
  %9322 = vmatprep.subr.mxu0 0.0
  %9323 = vmatpush2.msra.mxu0 0.0
  %9324 = vmatprep.subr.mxu0 0.0
  %9325 = vmatpush2.msra.mxu0 0.0
  %9326 = vmatprep.subr.mxu0 0.0
  %9327 = vmatpush2.msra.mxu0 0.0
  %9328 = vmatprep.mubr.f32.mxu0 0.0
  %9329 = vmatmul.mubr.f32.gmra.mxu0 %v9121
  %v9330 = vpop.f32.mrf.mxu0
  %v9331 = vadd.f32 0.0, %v9330
  %v9332 = vpop.f32.mrf.mxu0
  %9333 = vmatprep.mubr.f32.mxu0 0.0
  %9334 = vmatmul.mubr.f32.gmra.mxu0 %v9124
  %v9335 = vpop.f32.mrf.mxu0
  %v9336 = vadd.f32 0.0, %v9335
  %v9337 = vpop.f32.mrf.mxu0
  %9338 = vmatprep.mubr.f32.mxu0 0.0
  %9339 = vmatmul.mubr.f32.gmra.mxu0 %v9127
  %v9340 = vpop.f32.mrf.mxu0
  %v9341 = vadd.f32 0.0, %v9340
  %v9342 = vpop.f32.mrf.mxu0
  %9343 = vmatprep.mubr.f32.mxu0 0.0
  %9344 = vmatmul.mubr.f32.gmra.mxu0 %v9130
  %v9345 = vpop.f32.mrf.mxu0
  %v9346 = vadd.f32 0.0, %v9345
  %v9347 = vpop.f32.mrf.mxu0
  %9348 = vmatprep.mubr.f32.mxu0 0.0
  %9349 = vmatmul.mubr.f32.gmra.mxu0 %v9133
  %v9350 = vpop.f32.mrf.mxu0
  %v9351 = vadd.f32 0.0, %v9350
  %v9352 = vpop.f32.mrf.mxu0
  %9353 = vmatprep.mubr.f32.mxu0 0.0
  %9354 = vmatmul.mubr.f32.gmra.mxu0 %v9136
  %v9355 = vpop.f32.mrf.mxu0
  %v9356 = vadd.f32 0.0, %v9355
  %v9357 = vpop.f32.mrf.mxu0
  %9358 = vmatprep.mubr.f32.mxu0 0.0
  %9359 = vmatmul.mubr.f32.gmra.mxu0 %v9139
  %v9360 = vpop.f32.mrf.mxu0
  %v9361 = vadd.f32 0.0, %v9360
  %v9362 = vpop.f32.mrf.mxu0
  %9363 = vmatprep.mubr.f32.mxu0 0.0
  %9364 = vmatmul.mubr.f32.gmra.mxu0 %v9142
  %v9365 = vpop.f32.mrf.mxu0
  %v9366 = vadd.f32 0.0, %v9365
  %v9367 = vpop.f32.mrf.mxu0
  %9368 = vmatprep.mubr.f32.mxu0 0.0
  %9369 = vmatmul.mubr.f32.gmra.mxu0 %v9145
  %v9370 = vpop.f32.mrf.mxu0
  %v9371 = vadd.f32 0.0, %v9370
  %v9372 = vpop.f32.mrf.mxu0
  %9373 = vmatprep.mubr.f32.mxu0 0.0
  %9374 = vmatmul.mubr.f32.gmra.mxu0 %v9148
  %v9375 = vpop.f32.mrf.mxu0
  %v9376 = vadd.f32 0.0, %v9375
  %v9377 = vpop.f32.mrf.mxu0
  %9378 = vmatprep.mubr.f32.mxu0 0.0
  %9379 = vmatmul.mubr.f32.gmra.mxu0 %v9151
  %v9380 = vpop.f32.mrf.mxu0
  %v9381 = vadd.f32 0.0, %v9380
  %v9382 = vpop.f32.mrf.mxu0
  %9383 = vmatprep.mubr.f32.mxu0 0.0
  %9384 = vmatmul.mubr.f32.gmra.mxu0 %v9154
  %v9385 = vpop.f32.mrf.mxu0
  %v9386 = vadd.f32 0.0, %v9385
  %v9387 = vpop.f32.mrf.mxu0
  %9388 = vmatprep.mubr.f32.mxu0 0.0
  %9389 = vmatmul.mubr.f32.gmra.mxu0 %v9157
  %v9390 = vpop.f32.mrf.mxu0
  %v9391 = vadd.f32 0.0, %v9390
  %v9392 = vpop.f32.mrf.mxu0
  %9393 = vmatprep.mubr.f32.mxu0 0.0
  %9394 = vmatmul.mubr.f32.gmra.mxu0 %v9160
  %v9395 = vpop.f32.mrf.mxu0
  %v9396 = vadd.f32 0.0, %v9395
  %v9397 = vpop.f32.mrf.mxu0
  %9398 = vmatprep.mubr.f32.mxu0 0.0
  %9399 = vmatmul.mubr.f32.gmra.mxu0 %v9163
  %v9400 = vpop.f32.mrf.mxu0
  %v9401 = vadd.f32 0.0, %v9400
  %v9402 = vpop.f32.mrf.mxu0
  %9403 = vmatprep.mubr.f32.mxu0 0.0
  %9404 = vmatmul.mubr.f32.gmra.mxu0 %v9166
  %v9405 = vpop.f32.mrf.mxu0
  %v9406 = vadd.f32 0.0, %v9405
  %v9407 = vpop.f32.mrf.mxu0
  %9408 = vmatprep.mubr.f32.mxu0 0.0
  %9409 = vmatmul.mubr.f32.gmra.mxu0 %v9169
  %v9410 = vpop.f32.mrf.mxu0
  %v9411 = vadd.f32 0.0, %v9410
  %v9412 = vpop.f32.mrf.mxu0
  %9413 = vmatprep.mubr.f32.mxu0 0.0
  %9414 = vmatmul.mubr.f32.gmra.mxu0 %v9172
  %v9415 = vpop.f32.mrf.mxu0
  %v9416 = vadd.f32 0.0, %v9415
  %v9417 = vpop.f32.mrf.mxu0
  %9418 = vmatprep.mubr.f32.mxu0 0.0
  %9419 = vmatmul.mubr.f32.gmra.mxu0 %v9175
  %v9420 = vpop.f32.mrf.mxu0
  %v9421 = vadd.f32 0.0, %v9420
  %v9422 = vpop.f32.mrf.mxu0
  %9423 = vmatprep.mubr.f32.mxu0 0.0
  %9424 = vmatmul.mubr.f32.gmra.mxu0 %v9178
  %v9425 = vpop.f32.mrf.mxu0
  %v9426 = vadd.f32 0.0, %v9425
  %v9427 = vpop.f32.mrf.mxu0
  %9428 = vmatprep.mubr.f32.mxu0 0.0
  %9429 = vmatmul.mubr.f32.gmra.mxu0 %v9181
  %v9430 = vpop.f32.mrf.mxu0
  %v9431 = vadd.f32 0.0, %v9430
  %v9432 = vpop.f32.mrf.mxu0
  %9433 = vmatprep.mubr.f32.mxu0 0.0
  %9434 = vmatmul.mubr.f32.gmra.mxu0 %v9184
  %v9435 = vpop.f32.mrf.mxu0
  %v9436 = vadd.f32 0.0, %v9435
  %v9437 = vpop.f32.mrf.mxu0
  %9438 = vmatprep.mubr.f32.mxu0 0.0
  %9439 = vmatmul.mubr.f32.gmra.mxu0 %v9187
  %v9440 = vpop.f32.mrf.mxu0
  %v9441 = vadd.f32 0.0, %v9440
  %v9442 = vpop.f32.mrf.mxu0
  %9443 = vmatprep.mubr.f32.mxu0 0.0
  %9444 = vmatmul.mubr.f32.gmra.mxu0 %v9190
  %v9445 = vpop.f32.mrf.mxu0
  %v9446 = vadd.f32 0.0, %v9445
  %v9447 = vpop.f32.mrf.mxu0
  %9448 = vmatprep.mubr.f32.mxu0 0.0
  %9449 = vmatmul.mubr.f32.gmra.mxu0 %v9193
  %v9450 = vpop.f32.mrf.mxu0
  %v9451 = vadd.f32 0.0, %v9450
  %v9452 = vpop.f32.mrf.mxu0
  %9453 = vmatprep.mubr.f32.mxu0 0.0
  %9454 = vmatmul.mubr.f32.gmra.mxu0 %v9196
  %v9455 = vpop.f32.mrf.mxu0
  %v9456 = vadd.f32 0.0, %v9455
  %v9457 = vpop.f32.mrf.mxu0
  %9458 = vmatprep.mubr.f32.mxu0 0.0
  %9459 = vmatmul.mubr.f32.gmra.mxu0 %v9199
  %v9460 = vpop.f32.mrf.mxu0
  %v9461 = vadd.f32 0.0, %v9460
  %v9462 = vpop.f32.mrf.mxu0
  %9463 = vmatprep.mubr.f32.mxu0 0.0
  %9464 = vmatmul.mubr.f32.gmra.mxu0 %v9202
  %v9465 = vpop.f32.mrf.mxu0
  %v9466 = vadd.f32 0.0, %v9465
  %v9467 = vpop.f32.mrf.mxu0
  %9468 = vmatprep.mubr.f32.mxu0 0.0
  %9469 = vmatmul.mubr.f32.gmra.mxu0 %v9205
  %v9470 = vpop.f32.mrf.mxu0
  %v9471 = vadd.f32 0.0, %v9470
  %v9472 = vpop.f32.mrf.mxu0
  %9473 = vmatprep.mubr.f32.mxu0 0.0
  %9474 = vmatmul.mubr.f32.gmra.mxu0 %v9208
  %v9475 = vpop.f32.mrf.mxu0
  %v9476 = vadd.f32 0.0, %v9475
  %v9477 = vpop.f32.mrf.mxu0
  %9478 = vmatprep.mubr.f32.mxu0 0.0
  %9479 = vmatmul.mubr.f32.gmra.mxu0 %v9211
  %v9480 = vpop.f32.mrf.mxu0
  %v9481 = vadd.f32 0.0, %v9480
  %v9482 = vpop.f32.mrf.mxu0
  %9483 = vmatprep.mubr.f32.mxu0 0.0
  %9484 = vmatmul.mubr.f32.gmra.mxu0 %v9214
  %v9485 = vpop.f32.mrf.mxu0
  %v9486 = vadd.f32 0.0, %v9485
  %v9487 = vpop.f32.mrf.mxu0
  %9488 = vmatprep.mubr.f32.mxu0 0.0
  %9489 = vmatmul.mubr.f32.gmra.mxu0 %v9217
  %v9490 = vpop.f32.mrf.mxu0
  %v9491 = vadd.f32 0.0, %v9490
  %v9492 = vpop.f32.mrf.mxu0
  %9493 = vmatprep.mubr.f32.mxu0 0.0
  %9494 = vmatmul.mubr.f32.gmra.mxu0 %v9220
  %v9495 = vpop.f32.mrf.mxu0
  %v9496 = vadd.f32 0.0, %v9495
  %v9497 = vpop.f32.mrf.mxu0
  %9498 = vmatprep.mubr.f32.mxu0 0.0
  %9499 = vmatmul.mubr.f32.gmra.mxu0 %v9223
  %v9500 = vpop.f32.mrf.mxu0
  %v9501 = vadd.f32 0.0, %v9500
  %v9502 = vpop.f32.mrf.mxu0
  %9503 = vmatprep.mubr.f32.mxu0 0.0
  %9504 = vmatmul.mubr.f32.gmra.mxu0 %v9226
  %v9505 = vpop.f32.mrf.mxu0
  %v9506 = vadd.f32 0.0, %v9505
  %v9507 = vpop.f32.mrf.mxu0
  %9508 = vmatprep.mubr.f32.mxu0 0.0
  %9509 = vmatmul.mubr.f32.gmra.mxu0 %v9229
  %v9510 = vpop.f32.mrf.mxu0
  %v9511 = vadd.f32 0.0, %v9510
  %v9512 = vpop.f32.mrf.mxu0
  %9513 = vmatprep.mubr.f32.mxu0 0.0
  %9514 = vmatmul.mubr.f32.gmra.mxu0 %v9232
  %v9515 = vpop.f32.mrf.mxu0
  %v9516 = vadd.f32 0.0, %v9515
  %v9517 = vpop.f32.mrf.mxu0
  %9518 = vmatprep.mubr.f32.mxu0 0.0
  %9519 = vmatmul.mubr.f32.gmra.mxu0 %v9235
  %v9520 = vpop.f32.mrf.mxu0
  %v9521 = vadd.f32 0.0, %v9520
  %v9522 = vpop.f32.mrf.mxu0
  %9523 = vmatprep.mubr.f32.mxu0 0.0
  %9524 = vmatmul.mubr.f32.gmra.mxu0 %v9238
  %v9525 = vpop.f32.mrf.mxu0
  %v9526 = vadd.f32 0.0, %v9525
  %v9527 = vpop.f32.mrf.mxu0
  %9528 = vmatprep.mubr.f32.mxu0 0.0
  %9529 = vmatmul.mubr.f32.gmra.mxu0 %v9241
  %v9530 = vpop.f32.mrf.mxu0
  %v9531 = vadd.f32 0.0, %v9530
  %v9532 = vpop.f32.mrf.mxu0
  %9533 = vmatprep.mubr.f32.mxu0 0.0
  %9534 = vmatmul.mubr.f32.gmra.mxu0 %v9244
  %v9535 = vpop.f32.mrf.mxu0
  %v9536 = vadd.f32 0.0, %v9535
  %v9537 = vpop.f32.mrf.mxu0
  %9538 = vmatprep.mubr.f32.mxu0 0.0
  %9539 = vmatmul.mubr.f32.gmra.mxu0 %v9247
  %v9540 = vpop.f32.mrf.mxu0
  %v9541 = vadd.f32 0.0, %v9540
  %v9542 = vpop.f32.mrf.mxu0
  %9543 = vmatprep.mubr.f32.mxu0 0.0
  %9544 = vmatmul.mubr.f32.gmra.mxu0 %v9250
  %v9545 = vpop.f32.mrf.mxu0
  %v9546 = vadd.f32 0.0, %v9545
  %v9547 = vpop.f32.mrf.mxu0
  %9548 = vmatprep.mubr.f32.mxu0 0.0
  %9549 = vmatmul.mubr.f32.gmra.mxu0 %v9253
  %v9550 = vpop.f32.mrf.mxu0
  %v9551 = vadd.f32 0.0, %v9550
  %v9552 = vpop.f32.mrf.mxu0
  %9553 = vmatprep.mubr.f32.mxu0 0.0
  %9554 = vmatmul.mubr.f32.gmra.mxu0 %v9256
  %v9555 = vpop.f32.mrf.mxu0
  %v9556 = vadd.f32 0.0, %v9555
  %v9557 = vpop.f32.mrf.mxu0
  %9558 = vmatprep.mubr.f32.mxu0 0.0
  %9559 = vmatmul.mubr.f32.gmra.mxu0 %v9259
  %v9560 = vpop.f32.mrf.mxu0
  %v9561 = vadd.f32 0.0, %v9560
  %v9562 = vpop.f32.mrf.mxu0
  %9563 = vmatprep.mubr.f32.mxu0 0.0
  %9564 = vmatmul.mubr.f32.gmra.mxu0 %v9262
  %v9565 = vpop.f32.mrf.mxu0
  %v9566 = vadd.f32 0.0, %v9565
  %v9567 = vpop.f32.mrf.mxu0
  %9568 = vdwg.mxu0
  %v9569 = vld [vmem:[%s69] sm:$0xff]
  %v9570 = vld [vmem:[%s69 + $0x8] sm:$0xff]
  %v9571 = vld [vmem:[%s69 + $0x10] sm:$0xff]
  %v9572 = vld [vmem:[%s69 + $0x18] sm:$0xff]
  %v9573 = vld [vmem:[%s69 + $0x20] sm:$0xff]
  %v9574 = vld [vmem:[%s69 + $0x28] sm:$0xff]
  %v9575 = vld [vmem:[%s69 + $0x30] sm:$0xff]
  %v9576 = vld [vmem:[%s69 + $0x38] sm:$0xff]
  %v9577 = vld [vmem:[%s69 + $0x40] sm:$0xff]
  %v9578 = vld [vmem:[%s69 + $0x48] sm:$0xff]
  %v9579 = vld [vmem:[%s69 + $0x50] sm:$0xff]
  %v9580 = vld [vmem:[%s69 + $0x58] sm:$0xff]
  %v9581 = vld [vmem:[%s69 + $0x60] sm:$0xff]
  %v9582 = vld [vmem:[%s69 + $0x68] sm:$0xff]
  %v9583 = vld [vmem:[%s69 + $0x70] sm:$0xff]
  %v9584 = vld [vmem:[%s69 + $0x78] sm:$0xff]
  %v9585 = vld [vmem:[%s69 + $0x80] sm:$0xff]
  %v9586 = vld [vmem:[%s69 + $0x88] sm:$0xff]
  %v9587 = vld [vmem:[%s69 + $0x90] sm:$0xff]
  %v9588 = vld [vmem:[%s69 + $0x98] sm:$0xff]
  %v9589 = vld [vmem:[%s69 + $0xa0] sm:$0xff]
  %v9590 = vld [vmem:[%s69 + $0xa8] sm:$0xff]
  %v9591 = vld [vmem:[%s69 + $0xb0] sm:$0xff]
  %v9592 = vld [vmem:[%s69 + $0xb8] sm:$0xff]
  %v9593 = vld [vmem:[%s69 + $0xc0] sm:$0xff]
  %v9594 = vld [vmem:[%s69 + $0xc8] sm:$0xff]
  %v9595 = vld [vmem:[%s69 + $0xd0] sm:$0xff]
  %v9596 = vld [vmem:[%s69 + $0xd8] sm:$0xff]
  %v9597 = vld [vmem:[%s69 + $0xe0] sm:$0xff]
  %v9598 = vld [vmem:[%s69 + $0xe8] sm:$0xff]
  %v9599 = vld [vmem:[%s69 + $0xf0] sm:$0xff]
  %v9600 = vld [vmem:[%s69 + $0xf8] sm:$0xff]
  %v9601 = vld [vmem:[%s69 + $0x100] sm:$0xff]
  %v9602 = vld [vmem:[%s69 + $0x108] sm:$0xff]
  %v9603 = vld [vmem:[%s69 + $0x110] sm:$0xff]
  %v9604 = vld [vmem:[%s69 + $0x118] sm:$0xff]
  %v9605 = vld [vmem:[%s69 + $0x120] sm:$0xff]
  %v9606 = vld [vmem:[%s69 + $0x128] sm:$0xff]
  %v9607 = vld [vmem:[%s69 + $0x130] sm:$0xff]
  %v9608 = vld [vmem:[%s69 + $0x138] sm:$0xff]
  %v9609 = vld [vmem:[%s69 + $0x140] sm:$0xff]
  %v9610 = vld [vmem:[%s69 + $0x148] sm:$0xff]
  %v9611 = vld [vmem:[%s69 + $0x150] sm:$0xff]
  %v9612 = vld [vmem:[%s69 + $0x158] sm:$0xff]
  %v9613 = vld [vmem:[%s69 + $0x160] sm:$0xff]
  %v9614 = vld [vmem:[%s69 + $0x168] sm:$0xff]
  %v9615 = vld [vmem:[%s69 + $0x170] sm:$0xff]
  %v9616 = vld [vmem:[%s69 + $0x178] sm:$0xff]
  %v9617 = vld [vmem:[%s67] sm:$0xff]
  %v9619 = vsel %vm2516, %v9331, 0
  %v9622 = vsel %vm2516, %v9336, 0
  %v9625 = vsel %vm2516, %v9341, 0
  %v9628 = vsel %vm2516, %v9346, 0
  %v9631 = vsel %vm2516, %v9351, 0
  %v9634 = vsel %vm2516, %v9356, 0
  %v9637 = vsel %vm2516, %v9361, 0
  %v9640 = vsel %vm2516, %v9366, 0
  %v9643 = vsel %vm2516, %v9371, 0
  %v9646 = vsel %vm2516, %v9376, 0
  %v9649 = vsel %vm2516, %v9381, 0
  %v9652 = vsel %vm2516, %v9386, 0
  %v9655 = vsel %vm2516, %v9391, 0
  %v9658 = vsel %vm2516, %v9396, 0
  %v9661 = vsel %vm2516, %v9401, 0
  %v9664 = vsel %vm2516, %v9406, 0
  %9666 = vmatprep.subr.mxu0 0.0
  %9667 = vmatpush1.msra.mxu0 0.0
  %9668 = vmatprep.subr.mxu0 0.0
  %9669 = vmatpush1.msra.mxu0 0.0
  %9670 = vmatprep.subr.mxu0 0.0
  %9671 = vmatpush1.msra.mxu0 0.0
  %9672 = vmatprep.subr.mxu0 0.0
  %9673 = vmatpush1.msra.mxu0 0.0
  %9674 = vmatprep.subr.mxu0 0.0
  %9675 = vmatpush1.msra.mxu0 0.0
  %9676 = vmatprep.subr.mxu0 0.0
  %9677 = vmatpush1.msra.mxu0 0.0
  %9678 = vmatprep.subr.mxu0 0.0
  %9679 = vmatpush1.msra.mxu0 0.0
  %9680 = vmatprep.subr.mxu0 0.0
  %9681 = vmatpush1.msra.mxu0 0.0
  %9682 = vmatprep.subr.mxu0 0.0
  %9683 = vmatpush1.msra.mxu0 0.0
  %9684 = vmatprep.subr.mxu0 0.0
  %9685 = vmatpush1.msra.mxu0 0.0
  %9686 = vmatprep.subr.mxu0 0.0
  %9687 = vmatpush1.msra.mxu0 0.0
  %9688 = vmatprep.subr.mxu0 0.0
  %9689 = vmatpush1.msra.mxu0 0.0
  %9690 = vmatprep.subr.mxu0 0.0
  %9691 = vmatpush1.msra.mxu0 0.0
  %9692 = vmatprep.subr.mxu0 0.0
  %9693 = vmatpush1.msra.mxu0 0.0
  %9694 = vmatprep.subr.mxu0 0.0
  %9695 = vmatpush1.msra.mxu0 0.0
  %9696 = vmatprep.subr.mxu0 0.0
  %9697 = vmatpush1.msra.mxu0 %v9617
  %9698 = vmatprep.subr.mxu0 0.0
  %9699 = vmatpush2.msra.mxu0 0.0
  %9700 = vmatprep.subr.mxu0 0.0
  %9701 = vmatpush2.msra.mxu0 0.0
  %9702 = vmatprep.subr.mxu0 0.0
  %9703 = vmatpush2.msra.mxu0 0.0
  %9704 = vmatprep.subr.mxu0 0.0
  %9705 = vmatpush2.msra.mxu0 0.0
  %9706 = vmatprep.subr.mxu0 0.0
  %9707 = vmatpush2.msra.mxu0 0.0
  %9708 = vmatprep.subr.mxu0 0.0
  %9709 = vmatpush2.msra.mxu0 0.0
  %9710 = vmatprep.subr.mxu0 0.0
  %9711 = vmatpush2.msra.mxu0 0.0
  %9712 = vmatprep.subr.mxu0 0.0
  %9713 = vmatpush2.msra.mxu0 0.0
  %9714 = vmatprep.subr.mxu0 0.0
  %9715 = vmatpush2.msra.mxu0 0.0
  %9716 = vmatprep.subr.mxu0 0.0
  %9717 = vmatpush2.msra.mxu0 0.0
  %9718 = vmatprep.subr.mxu0 0.0
  %9719 = vmatpush2.msra.mxu0 0.0
  %9720 = vmatprep.subr.mxu0 0.0
  %9721 = vmatpush2.msra.mxu0 0.0
  %9722 = vmatprep.subr.mxu0 0.0
  %9723 = vmatpush2.msra.mxu0 0.0
  %9724 = vmatprep.subr.mxu0 0.0
  %9725 = vmatpush2.msra.mxu0 0.0
  %9726 = vmatprep.subr.mxu0 0.0
  %9727 = vmatpush2.msra.mxu0 0.0
  %9728 = vmatprep.subr.mxu0 0.0
  %9729 = vmatpush2.msra.mxu0 0.0
  %9730 = vmatprep.mubr.f32.mxu0 0.0
  %9731 = vmatmul.mubr.f32.gmra.mxu0 %v9619
  %v9732 = vpop.f32.mrf.mxu0
  %v9733 = vadd.f32 0.0, %v9732
  %v9734 = vpop.f32.mrf.mxu0
  %9735 = vmatprep.mubr.f32.mxu0 0.0
  %9736 = vmatmul.mubr.f32.gmra.mxu0 %v9622
  %v9737 = vpop.f32.mrf.mxu0
  %v9738 = vadd.f32 0.0, %v9737
  %v9739 = vpop.f32.mrf.mxu0
  %9740 = vmatprep.mubr.f32.mxu0 0.0
  %9741 = vmatmul.mubr.f32.gmra.mxu0 %v9625
  %v9742 = vpop.f32.mrf.mxu0
  %v9743 = vadd.f32 0.0, %v9742
  %v9744 = vpop.f32.mrf.mxu0
  %9745 = vmatprep.mubr.f32.mxu0 0.0
  %9746 = vmatmul.mubr.f32.gmra.mxu0 %v9628
  %v9747 = vpop.f32.mrf.mxu0
  %v9748 = vadd.f32 0.0, %v9747
  %v9749 = vpop.f32.mrf.mxu0
  %9750 = vmatprep.mubr.f32.mxu0 0.0
  %9751 = vmatmul.mubr.f32.gmra.mxu0 %v9631
  %v9752 = vpop.f32.mrf.mxu0
  %v9753 = vadd.f32 0.0, %v9752
  %v9754 = vpop.f32.mrf.mxu0
  %9755 = vmatprep.mubr.f32.mxu0 0.0
  %9756 = vmatmul.mubr.f32.gmra.mxu0 %v9634
  %v9757 = vpop.f32.mrf.mxu0
  %v9758 = vadd.f32 0.0, %v9757
  %v9759 = vpop.f32.mrf.mxu0
  %9760 = vmatprep.mubr.f32.mxu0 0.0
  %9761 = vmatmul.mubr.f32.gmra.mxu0 %v9637
  %v9762 = vpop.f32.mrf.mxu0
  %v9763 = vadd.f32 0.0, %v9762
  %v9764 = vpop.f32.mrf.mxu0
  %9765 = vmatprep.mubr.f32.mxu0 0.0
  %9766 = vmatmul.mubr.f32.gmra.mxu0 %v9640
  %v9767 = vpop.f32.mrf.mxu0
  %v9768 = vadd.f32 0.0, %v9767
  %v9769 = vpop.f32.mrf.mxu0
  %9770 = vmatprep.mubr.f32.mxu0 0.0
  %9771 = vmatmul.mubr.f32.gmra.mxu0 %v9643
  %v9772 = vpop.f32.mrf.mxu0
  %v9773 = vadd.f32 0.0, %v9772
  %v9774 = vpop.f32.mrf.mxu0
  %9775 = vmatprep.mubr.f32.mxu0 0.0
  %9776 = vmatmul.mubr.f32.gmra.mxu0 %v9646
  %v9777 = vpop.f32.mrf.mxu0
  %v9778 = vadd.f32 0.0, %v9777
  %v9779 = vpop.f32.mrf.mxu0
  %9780 = vmatprep.mubr.f32.mxu0 0.0
  %9781 = vmatmul.mubr.f32.gmra.mxu0 %v9649
  %v9782 = vpop.f32.mrf.mxu0
  %v9783 = vadd.f32 0.0, %v9782
  %v9784 = vpop.f32.mrf.mxu0
  %9785 = vmatprep.mubr.f32.mxu0 0.0
  %9786 = vmatmul.mubr.f32.gmra.mxu0 %v9652
  %v9787 = vpop.f32.mrf.mxu0
  %v9788 = vadd.f32 0.0, %v9787
  %v9789 = vpop.f32.mrf.mxu0
  %9790 = vmatprep.mubr.f32.mxu0 0.0
  %9791 = vmatmul.mubr.f32.gmra.mxu0 %v9655
  %v9792 = vpop.f32.mrf.mxu0
  %v9793 = vadd.f32 0.0, %v9792
  %v9794 = vpop.f32.mrf.mxu0
  %9795 = vmatprep.mubr.f32.mxu0 0.0
  %9796 = vmatmul.mubr.f32.gmra.mxu0 %v9658
  %v9797 = vpop.f32.mrf.mxu0
  %v9798 = vadd.f32 0.0, %v9797
  %v9799 = vpop.f32.mrf.mxu0
  %9800 = vmatprep.mubr.f32.mxu0 0.0
  %9801 = vmatmul.mubr.f32.gmra.mxu0 %v9661
  %v9802 = vpop.f32.mrf.mxu0
  %v9803 = vadd.f32 0.0, %v9802
  %v9804 = vpop.f32.mrf.mxu0
  %9805 = vmatprep.mubr.f32.mxu0 0.0
  %9806 = vmatmul.mubr.f32.gmra.mxu0 %v9664
  %v9807 = vpop.f32.mrf.mxu0
  %v9808 = vadd.f32 0.0, %v9807
  %v9809 = vpop.f32.mrf.mxu0
  %9810 = vdwg.mxu0
  %9812 = vset.pattern.permute.xlu0 0
  %9813 = vperm.xlu0 %9812, %v9569
  %v9814 = vpop.permute.xlu0 %9813
  %9817 = vset.pattern.permute.xlu0 0
  %9818 = vperm.xlu0 %9817, %v9570
  %v9819 = vpop.permute.xlu0 %9818
  %9822 = vset.pattern.permute.xlu0 0
  %9823 = vperm.xlu0 %9822, %v9571
  %v9824 = vpop.permute.xlu0 %9823
  %9827 = vset.pattern.permute.xlu0 0
  %9828 = vperm.xlu0 %9827, %v9572
  %v9829 = vpop.permute.xlu0 %9828
  %9832 = vset.pattern.permute.xlu0 0
  %9833 = vperm.xlu0 %9832, %v9573
  %v9834 = vpop.permute.xlu0 %9833
  %9837 = vset.pattern.permute.xlu0 0
  %9838 = vperm.xlu0 %9837, %v9574
  %v9839 = vpop.permute.xlu0 %9838
  %9842 = vset.pattern.permute.xlu0 0
  %9843 = vperm.xlu0 %9842, %v9575
  %v9844 = vpop.permute.xlu0 %9843
  %9847 = vset.pattern.permute.xlu0 0
  %9848 = vperm.xlu0 %9847, %v9576
  %v9849 = vpop.permute.xlu0 %9848
  %9852 = vset.pattern.permute.xlu0 0
  %9853 = vperm.xlu0 %9852, %v9577
  %v9854 = vpop.permute.xlu0 %9853
  %9857 = vset.pattern.permute.xlu0 0
  %9858 = vperm.xlu0 %9857, %v9578
  %v9859 = vpop.permute.xlu0 %9858
  %9862 = vset.pattern.permute.xlu0 0
  %9863 = vperm.xlu0 %9862, %v9579
  %v9864 = vpop.permute.xlu0 %9863
  %9867 = vset.pattern.permute.xlu0 0
  %9868 = vperm.xlu0 %9867, %v9580
  %v9869 = vpop.permute.xlu0 %9868
  %9872 = vset.pattern.permute.xlu0 0
  %9873 = vperm.xlu0 %9872, %v9581
  %v9874 = vpop.permute.xlu0 %9873
  %9877 = vset.pattern.permute.xlu0 0
  %9878 = vperm.xlu0 %9877, %v9582
  %v9879 = vpop.permute.xlu0 %9878
  %9882 = vset.pattern.permute.xlu0 0
  %9883 = vperm.xlu0 %9882, %v9583
  %v9884 = vpop.permute.xlu0 %9883
  %9887 = vset.pattern.permute.xlu0 0
  %9888 = vperm.xlu0 %9887, %v9584
  %v9889 = vpop.permute.xlu0 %9888
  %v9891 = vadd.f32 %v9814, %v9733
  %v9892 = vadd.f32 %v9819, %v9738
  %v9893 = vadd.f32 %v9824, %v9743
  %v9894 = vadd.f32 %v9829, %v9748
  %v9895 = vadd.f32 %v9834, %v9753
  %v9896 = vadd.f32 %v9839, %v9758
  %v9897 = vadd.f32 %v9844, %v9763
  %v9898 = vadd.f32 %v9849, %v9768
  %v9899 = vadd.f32 %v9854, %v9773
  %v9900 = vadd.f32 %v9859, %v9778
  %v9901 = vadd.f32 %v9864, %v9783
  %v9902 = vadd.f32 %v9869, %v9788
  %v9903 = vadd.f32 %v9874, %v9793
  %v9904 = vadd.f32 %v9879, %v9798
  %v9905 = vadd.f32 %v9884, %v9803
  %v9906 = vadd.f32 %v9889, %v9808
  %s9907 = scalar_lea.vmem %s67, 8
  %v9908 = vld [vmem:[%s9907] sm:$0xff]
  %v9910 = vsel %vm2516, %v9411, 0
  %v9913 = vsel %vm2516, %v9416, 0
  %v9916 = vsel %vm2516, %v9421, 0
  %v9919 = vsel %vm2516, %v9426, 0
  %v9922 = vsel %vm2516, %v9431, 0
  %v9925 = vsel %vm2516, %v9436, 0
  %v9928 = vsel %vm2516, %v9441, 0
  %v9931 = vsel %vm2516, %v9446, 0
  %v9934 = vsel %vm2516, %v9451, 0
  %v9937 = vsel %vm2516, %v9456, 0
  %v9940 = vsel %vm2516, %v9461, 0
  %v9943 = vsel %vm2516, %v9466, 0
  %v9946 = vsel %vm2516, %v9471, 0
  %v9949 = vsel %vm2516, %v9476, 0
  %v9952 = vsel %vm2516, %v9481, 0
  %v9955 = vsel %vm2516, %v9486, 0
  %9957 = vmatprep.subr.mxu0 0.0
  %9958 = vmatpush1.msra.mxu0 0.0
  %9959 = vmatprep.subr.mxu0 0.0
  %9960 = vmatpush1.msra.mxu0 0.0
  %9961 = vmatprep.subr.mxu0 0.0
  %9962 = vmatpush1.msra.mxu0 0.0
  %9963 = vmatprep.subr.mxu0 0.0
  %9964 = vmatpush1.msra.mxu0 0.0
  %9965 = vmatprep.subr.mxu0 0.0
  %9966 = vmatpush1.msra.mxu0 0.0
  %9967 = vmatprep.subr.mxu0 0.0
  %9968 = vmatpush1.msra.mxu0 0.0
  %9969 = vmatprep.subr.mxu0 0.0
  %9970 = vmatpush1.msra.mxu0 0.0
  %9971 = vmatprep.subr.mxu0 0.0
  %9972 = vmatpush1.msra.mxu0 0.0
  %9973 = vmatprep.subr.mxu0 0.0
  %9974 = vmatpush1.msra.mxu0 0.0
  %9975 = vmatprep.subr.mxu0 0.0
  %9976 = vmatpush1.msra.mxu0 0.0
  %9977 = vmatprep.subr.mxu0 0.0
  %9978 = vmatpush1.msra.mxu0 0.0
  %9979 = vmatprep.subr.mxu0 0.0
  %9980 = vmatpush1.msra.mxu0 0.0
  %9981 = vmatprep.subr.mxu0 0.0
  %9982 = vmatpush1.msra.mxu0 0.0
  %9983 = vmatprep.subr.mxu0 0.0
  %9984 = vmatpush1.msra.mxu0 0.0
  %9985 = vmatprep.subr.mxu0 0.0
  %9986 = vmatpush1.msra.mxu0 0.0
  %9987 = vmatprep.subr.mxu0 0.0
  %9988 = vmatpush1.msra.mxu0 %v9908
  %9989 = vmatprep.subr.mxu0 0.0
  %9990 = vmatpush2.msra.mxu0 0.0
  %9991 = vmatprep.subr.mxu0 0.0
  %9992 = vmatpush2.msra.mxu0 0.0
  %9993 = vmatprep.subr.mxu0 0.0
  %9994 = vmatpush2.msra.mxu0 0.0
  %9995 = vmatprep.subr.mxu0 0.0
  %9996 = vmatpush2.msra.mxu0 0.0
  %9997 = vmatprep.subr.mxu0 0.0
  %9998 = vmatpush2.msra.mxu0 0.0
  %9999 = vmatprep.subr.mxu0 0.0
  %10000 = vmatpush2.msra.mxu0 0.0
  %10001 = vmatprep.subr.mxu0 0.0
  %10002 = vmatpush2.msra.mxu0 0.0
  %10003 = vmatprep.subr.mxu0 0.0
  %10004 = vmatpush2.msra.mxu0 0.0
  %10005 = vmatprep.subr.mxu0 0.0
  %10006 = vmatpush2.msra.mxu0 0.0
  %10007 = vmatprep.subr.mxu0 0.0
  %10008 = vmatpush2.msra.mxu0 0.0
  %10009 = vmatprep.subr.mxu0 0.0
  %10010 = vmatpush2.msra.mxu0 0.0
  %10011 = vmatprep.subr.mxu0 0.0
  %10012 = vmatpush2.msra.mxu0 0.0
  %10013 = vmatprep.subr.mxu0 0.0
  %10014 = vmatpush2.msra.mxu0 0.0
  %10015 = vmatprep.subr.mxu0 0.0
  %10016 = vmatpush2.msra.mxu0 0.0
  %10017 = vmatprep.subr.mxu0 0.0
  %10018 = vmatpush2.msra.mxu0 0.0
  %10019 = vmatprep.subr.mxu0 0.0
  %10020 = vmatpush2.msra.mxu0 0.0
  %10021 = vmatprep.mubr.f32.mxu0 0.0
  %10022 = vmatmul.mubr.f32.gmra.mxu0 %v9910
  %v10023 = vpop.f32.mrf.mxu0
  %v10024 = vadd.f32 0.0, %v10023
  %v10025 = vpop.f32.mrf.mxu0
  %10026 = vmatprep.mubr.f32.mxu0 0.0
  %10027 = vmatmul.mubr.f32.gmra.mxu0 %v9913
  %v10028 = vpop.f32.mrf.mxu0
  %v10029 = vadd.f32 0.0, %v10028
  %v10030 = vpop.f32.mrf.mxu0
  %10031 = vmatprep.mubr.f32.mxu0 0.0
  %10032 = vmatmul.mubr.f32.gmra.mxu0 %v9916
  %v10033 = vpop.f32.mrf.mxu0
  %v10034 = vadd.f32 0.0, %v10033
  %v10035 = vpop.f32.mrf.mxu0
  %10036 = vmatprep.mubr.f32.mxu0 0.0
  %10037 = vmatmul.mubr.f32.gmra.mxu0 %v9919
  %v10038 = vpop.f32.mrf.mxu0
  %v10039 = vadd.f32 0.0, %v10038
  %v10040 = vpop.f32.mrf.mxu0
  %10041 = vmatprep.mubr.f32.mxu0 0.0
  %10042 = vmatmul.mubr.f32.gmra.mxu0 %v9922
  %v10043 = vpop.f32.mrf.mxu0
  %v10044 = vadd.f32 0.0, %v10043
  %v10045 = vpop.f32.mrf.mxu0
  %10046 = vmatprep.mubr.f32.mxu0 0.0
  %10047 = vmatmul.mubr.f32.gmra.mxu0 %v9925
  %v10048 = vpop.f32.mrf.mxu0
  %v10049 = vadd.f32 0.0, %v10048
  %v10050 = vpop.f32.mrf.mxu0
  %10051 = vmatprep.mubr.f32.mxu0 0.0
  %10052 = vmatmul.mubr.f32.gmra.mxu0 %v9928
  %v10053 = vpop.f32.mrf.mxu0
  %v10054 = vadd.f32 0.0, %v10053
  %v10055 = vpop.f32.mrf.mxu0
  %10056 = vmatprep.mubr.f32.mxu0 0.0
  %10057 = vmatmul.mubr.f32.gmra.mxu0 %v9931
  %v10058 = vpop.f32.mrf.mxu0
  %v10059 = vadd.f32 0.0, %v10058
  %v10060 = vpop.f32.mrf.mxu0
  %10061 = vmatprep.mubr.f32.mxu0 0.0
  %10062 = vmatmul.mubr.f32.gmra.mxu0 %v9934
  %v10063 = vpop.f32.mrf.mxu0
  %v10064 = vadd.f32 0.0, %v10063
  %v10065 = vpop.f32.mrf.mxu0
  %10066 = vmatprep.mubr.f32.mxu0 0.0
  %10067 = vmatmul.mubr.f32.gmra.mxu0 %v9937
  %v10068 = vpop.f32.mrf.mxu0
  %v10069 = vadd.f32 0.0, %v10068
  %v10070 = vpop.f32.mrf.mxu0
  %10071 = vmatprep.mubr.f32.mxu0 0.0
  %10072 = vmatmul.mubr.f32.gmra.mxu0 %v9940
  %v10073 = vpop.f32.mrf.mxu0
  %v10074 = vadd.f32 0.0, %v10073
  %v10075 = vpop.f32.mrf.mxu0
  %10076 = vmatprep.mubr.f32.mxu0 0.0
  %10077 = vmatmul.mubr.f32.gmra.mxu0 %v9943
  %v10078 = vpop.f32.mrf.mxu0
  %v10079 = vadd.f32 0.0, %v10078
  %v10080 = vpop.f32.mrf.mxu0
  %10081 = vmatprep.mubr.f32.mxu0 0.0
  %10082 = vmatmul.mubr.f32.gmra.mxu0 %v9946
  %v10083 = vpop.f32.mrf.mxu0
  %v10084 = vadd.f32 0.0, %v10083
  %v10085 = vpop.f32.mrf.mxu0
  %10086 = vmatprep.mubr.f32.mxu0 0.0
  %10087 = vmatmul.mubr.f32.gmra.mxu0 %v9949
  %v10088 = vpop.f32.mrf.mxu0
  %v10089 = vadd.f32 0.0, %v10088
  %v10090 = vpop.f32.mrf.mxu0
  %10091 = vmatprep.mubr.f32.mxu0 0.0
  %10092 = vmatmul.mubr.f32.gmra.mxu0 %v9952
  %v10093 = vpop.f32.mrf.mxu0
  %v10094 = vadd.f32 0.0, %v10093
  %v10095 = vpop.f32.mrf.mxu0
  %10096 = vmatprep.mubr.f32.mxu0 0.0
  %10097 = vmatmul.mubr.f32.gmra.mxu0 %v9955
  %v10098 = vpop.f32.mrf.mxu0
  %v10099 = vadd.f32 0.0, %v10098
  %v10100 = vpop.f32.mrf.mxu0
  %10101 = vdwg.mxu0
  %v10102 = vadd.f32 %v9891, %v10024
  %v10103 = vadd.f32 %v9892, %v10029
  %v10104 = vadd.f32 %v9893, %v10034
  %v10105 = vadd.f32 %v9894, %v10039
  %v10106 = vadd.f32 %v9895, %v10044
  %v10107 = vadd.f32 %v9896, %v10049
  %v10108 = vadd.f32 %v9897, %v10054
  %v10109 = vadd.f32 %v9898, %v10059
  %v10110 = vadd.f32 %v9899, %v10064
  %v10111 = vadd.f32 %v9900, %v10069
  %v10112 = vadd.f32 %v9901, %v10074
  %v10113 = vadd.f32 %v9902, %v10079
  %v10114 = vadd.f32 %v9903, %v10084
  %v10115 = vadd.f32 %v9904, %v10089
  %v10116 = vadd.f32 %v9905, %v10094
  %v10117 = vadd.f32 %v9906, %v10099
  %s10118 = scalar_lea.vmem %s67, 16
  %v10119 = vld [vmem:[%s10118] sm:$0xff]
  %v10121 = vsel %vm2516, %v9491, 0
  %v10124 = vsel %vm2516, %v9496, 0
  %v10127 = vsel %vm2516, %v9501, 0
  %v10130 = vsel %vm2516, %v9506, 0
  %v10133 = vsel %vm2516, %v9511, 0
  %v10136 = vsel %vm2516, %v9516, 0
  %v10139 = vsel %vm2516, %v9521, 0
  %v10142 = vsel %vm2516, %v9526, 0
  %v10145 = vsel %vm2516, %v9531, 0
  %v10148 = vsel %vm2516, %v9536, 0
  %v10151 = vsel %vm2516, %v9541, 0
  %v10154 = vsel %vm2516, %v9546, 0
  %v10157 = vsel %vm2516, %v9551, 0
  %v10160 = vsel %vm2516, %v9556, 0
  %v10163 = vsel %vm2516, %v9561, 0
  %v10166 = vsel %vm2516, %v9566, 0
  %10168 = vmatprep.subr.mxu0 0.0
  %10169 = vmatpush1.msra.mxu0 0.0
  %10170 = vmatprep.subr.mxu0 0.0
  %10171 = vmatpush1.msra.mxu0 0.0
  %10172 = vmatprep.subr.mxu0 0.0
  %10173 = vmatpush1.msra.mxu0 0.0
  %10174 = vmatprep.subr.mxu0 0.0
  %10175 = vmatpush1.msra.mxu0 0.0
  %10176 = vmatprep.subr.mxu0 0.0
  %10177 = vmatpush1.msra.mxu0 0.0
  %10178 = vmatprep.subr.mxu0 0.0
  %10179 = vmatpush1.msra.mxu0 0.0
  %10180 = vmatprep.subr.mxu0 0.0
  %10181 = vmatpush1.msra.mxu0 0.0
  %10182 = vmatprep.subr.mxu0 0.0
  %10183 = vmatpush1.msra.mxu0 0.0
  %10184 = vmatprep.subr.mxu0 0.0
  %10185 = vmatpush1.msra.mxu0 0.0
  %10186 = vmatprep.subr.mxu0 0.0
  %10187 = vmatpush1.msra.mxu0 0.0
  %10188 = vmatprep.subr.mxu0 0.0
  %10189 = vmatpush1.msra.mxu0 0.0
  %10190 = vmatprep.subr.mxu0 0.0
  %10191 = vmatpush1.msra.mxu0 0.0
  %10192 = vmatprep.subr.mxu0 0.0
  %10193 = vmatpush1.msra.mxu0 0.0
  %10194 = vmatprep.subr.mxu0 0.0
  %10195 = vmatpush1.msra.mxu0 0.0
  %10196 = vmatprep.subr.mxu0 0.0
  %10197 = vmatpush1.msra.mxu0 0.0
  %10198 = vmatprep.subr.mxu0 0.0
  %10199 = vmatpush1.msra.mxu0 %v10119
  %10200 = vmatprep.subr.mxu0 0.0
  %10201 = vmatpush2.msra.mxu0 0.0
  %10202 = vmatprep.subr.mxu0 0.0
  %10203 = vmatpush2.msra.mxu0 0.0
  %10204 = vmatprep.subr.mxu0 0.0
  %10205 = vmatpush2.msra.mxu0 0.0
  %10206 = vmatprep.subr.mxu0 0.0
  %10207 = vmatpush2.msra.mxu0 0.0
  %10208 = vmatprep.subr.mxu0 0.0
  %10209 = vmatpush2.msra.mxu0 0.0
  %10210 = vmatprep.subr.mxu0 0.0
  %10211 = vmatpush2.msra.mxu0 0.0
  %10212 = vmatprep.subr.mxu0 0.0
  %10213 = vmatpush2.msra.mxu0 0.0
  %10214 = vmatprep.subr.mxu0 0.0
  %10215 = vmatpush2.msra.mxu0 0.0
  %10216 = vmatprep.subr.mxu0 0.0
  %10217 = vmatpush2.msra.mxu0 0.0
  %10218 = vmatprep.subr.mxu0 0.0
  %10219 = vmatpush2.msra.mxu0 0.0
  %10220 = vmatprep.subr.mxu0 0.0
  %10221 = vmatpush2.msra.mxu0 0.0
  %10222 = vmatprep.subr.mxu0 0.0
  %10223 = vmatpush2.msra.mxu0 0.0
  %10224 = vmatprep.subr.mxu0 0.0
  %10225 = vmatpush2.msra.mxu0 0.0
  %10226 = vmatprep.subr.mxu0 0.0
  %10227 = vmatpush2.msra.mxu0 0.0
  %10228 = vmatprep.subr.mxu0 0.0
  %10229 = vmatpush2.msra.mxu0 0.0
  %10230 = vmatprep.subr.mxu0 0.0
  %10231 = vmatpush2.msra.mxu0 0.0
  %10232 = vmatprep.mubr.f32.mxu0 0.0
  %10233 = vmatmul.mubr.f32.gmra.mxu0 %v10121
  %v10234 = vpop.f32.mrf.mxu0
  %v10235 = vadd.f32 0.0, %v10234
  %v10236 = vpop.f32.mrf.mxu0
  %10237 = vmatprep.mubr.f32.mxu0 0.0
  %10238 = vmatmul.mubr.f32.gmra.mxu0 %v10124
  %v10239 = vpop.f32.mrf.mxu0
  %v10240 = vadd.f32 0.0, %v10239
  %v10241 = vpop.f32.mrf.mxu0
  %10242 = vmatprep.mubr.f32.mxu0 0.0
  %10243 = vmatmul.mubr.f32.gmra.mxu0 %v10127
  %v10244 = vpop.f32.mrf.mxu0
  %v10245 = vadd.f32 0.0, %v10244
  %v10246 = vpop.f32.mrf.mxu0
  %10247 = vmatprep.mubr.f32.mxu0 0.0
  %10248 = vmatmul.mubr.f32.gmra.mxu0 %v10130
  %v10249 = vpop.f32.mrf.mxu0
  %v10250 = vadd.f32 0.0, %v10249
  %v10251 = vpop.f32.mrf.mxu0
  %10252 = vmatprep.mubr.f32.mxu0 0.0
  %10253 = vmatmul.mubr.f32.gmra.mxu0 %v10133
  %v10254 = vpop.f32.mrf.mxu0
  %v10255 = vadd.f32 0.0, %v10254
  %v10256 = vpop.f32.mrf.mxu0
  %10257 = vmatprep.mubr.f32.mxu0 0.0
  %10258 = vmatmul.mubr.f32.gmra.mxu0 %v10136
  %v10259 = vpop.f32.mrf.mxu0
  %v10260 = vadd.f32 0.0, %v10259
  %v10261 = vpop.f32.mrf.mxu0
  %10262 = vmatprep.mubr.f32.mxu0 0.0
  %10263 = vmatmul.mubr.f32.gmra.mxu0 %v10139
  %v10264 = vpop.f32.mrf.mxu0
  %v10265 = vadd.f32 0.0, %v10264
  %v10266 = vpop.f32.mrf.mxu0
  %10267 = vmatprep.mubr.f32.mxu0 0.0
  %10268 = vmatmul.mubr.f32.gmra.mxu0 %v10142
  %v10269 = vpop.f32.mrf.mxu0
  %v10270 = vadd.f32 0.0, %v10269
  %v10271 = vpop.f32.mrf.mxu0
  %10272 = vmatprep.mubr.f32.mxu0 0.0
  %10273 = vmatmul.mubr.f32.gmra.mxu0 %v10145
  %v10274 = vpop.f32.mrf.mxu0
  %v10275 = vadd.f32 0.0, %v10274
  %v10276 = vpop.f32.mrf.mxu0
  %10277 = vmatprep.mubr.f32.mxu0 0.0
  %10278 = vmatmul.mubr.f32.gmra.mxu0 %v10148
  %v10279 = vpop.f32.mrf.mxu0
  %v10280 = vadd.f32 0.0, %v10279
  %v10281 = vpop.f32.mrf.mxu0
  %10282 = vmatprep.mubr.f32.mxu0 0.0
  %10283 = vmatmul.mubr.f32.gmra.mxu0 %v10151
  %v10284 = vpop.f32.mrf.mxu0
  %v10285 = vadd.f32 0.0, %v10284
  %v10286 = vpop.f32.mrf.mxu0
  %10287 = vmatprep.mubr.f32.mxu0 0.0
  %10288 = vmatmul.mubr.f32.gmra.mxu0 %v10154
  %v10289 = vpop.f32.mrf.mxu0
  %v10290 = vadd.f32 0.0, %v10289
  %v10291 = vpop.f32.mrf.mxu0
  %10292 = vmatprep.mubr.f32.mxu0 0.0
  %10293 = vmatmul.mubr.f32.gmra.mxu0 %v10157
  %v10294 = vpop.f32.mrf.mxu0
  %v10295 = vadd.f32 0.0, %v10294
  %v10296 = vpop.f32.mrf.mxu0
  %10297 = vmatprep.mubr.f32.mxu0 0.0
  %10298 = vmatmul.mubr.f32.gmra.mxu0 %v10160
  %v10299 = vpop.f32.mrf.mxu0
  %v10300 = vadd.f32 0.0, %v10299
  %v10301 = vpop.f32.mrf.mxu0
  %10302 = vmatprep.mubr.f32.mxu0 0.0
  %10303 = vmatmul.mubr.f32.gmra.mxu0 %v10163
  %v10304 = vpop.f32.mrf.mxu0
  %v10305 = vadd.f32 0.0, %v10304
  %v10306 = vpop.f32.mrf.mxu0
  %10307 = vmatprep.mubr.f32.mxu0 0.0
  %10308 = vmatmul.mubr.f32.gmra.mxu0 %v10166
  %v10309 = vpop.f32.mrf.mxu0
  %v10310 = vadd.f32 0.0, %v10309
  %v10311 = vpop.f32.mrf.mxu0
  %10312 = vdwg.mxu0
  %v10313 = vadd.f32 %v10102, %v10235
  %v10314 = vadd.f32 %v10103, %v10240
  %v10315 = vadd.f32 %v10104, %v10245
  %v10316 = vadd.f32 %v10105, %v10250
  %v10317 = vadd.f32 %v10106, %v10255
  %v10318 = vadd.f32 %v10107, %v10260
  %v10319 = vadd.f32 %v10108, %v10265
  %v10320 = vadd.f32 %v10109, %v10270
  %v10321 = vadd.f32 %v10110, %v10275
  %v10322 = vadd.f32 %v10111, %v10280
  %v10323 = vadd.f32 %v10112, %v10285
  %v10324 = vadd.f32 %v10113, %v10290
  %v10325 = vadd.f32 %v10114, %v10295
  %v10326 = vadd.f32 %v10115, %v10300
  %v10327 = vadd.f32 %v10116, %v10305
  %v10328 = vadd.f32 %v10117, %v10310
  %v10329 = vld [vmem:[%s71] sm:$0xff]
  %v10330 = vld [vmem:[%s71 + $0x8] sm:$0xff]
  %v10331 = vld [vmem:[%s71 + $0x10] sm:$0xff]
  %v10332 = vld [vmem:[%s71 + $0x18] sm:$0xff]
  %v10333 = vld [vmem:[%s71 + $0x20] sm:$0xff]
  %v10334 = vld [vmem:[%s71 + $0x28] sm:$0xff]
  %v10335 = vld [vmem:[%s71 + $0x30] sm:$0xff]
  %v10336 = vld [vmem:[%s71 + $0x38] sm:$0xff]
  %v10337 = vld [vmem:[%s71 + $0x40] sm:$0xff]
  %v10338 = vld [vmem:[%s71 + $0x48] sm:$0xff]
  %v10339 = vld [vmem:[%s71 + $0x50] sm:$0xff]
  %v10340 = vld [vmem:[%s71 + $0x58] sm:$0xff]
  %v10341 = vld [vmem:[%s71 + $0x60] sm:$0xff]
  %v10342 = vld [vmem:[%s71 + $0x68] sm:$0xff]
  %v10343 = vld [vmem:[%s71 + $0x70] sm:$0xff]
  %v10344 = vld [vmem:[%s71 + $0x78] sm:$0xff]
  %v10345 = vsel %vm1910, %v10313, 0.0
  %10346 = vadd.xlane.f32.xlu0 %v10345
  %v10347 = vpop.xlane.xlu0 %10346
  %v10348 = vsel %vm1910, %v10314, 0.0
  %10349 = vadd.xlane.f32.xlu0 %v10348
  %v10350 = vpop.xlane.xlu0 %10349
  %v10351 = vsel %vm1910, %v10315, 0.0
  %10352 = vadd.xlane.f32.xlu0 %v10351
  %v10353 = vpop.xlane.xlu0 %10352
  %v10354 = vsel %vm1910, %v10316, 0.0
  %10355 = vadd.xlane.f32.xlu0 %v10354
  %v10356 = vpop.xlane.xlu0 %10355
  %v10357 = vsel %vm1910, %v10317, 0.0
  %10358 = vadd.xlane.f32.xlu0 %v10357
  %v10359 = vpop.xlane.xlu0 %10358
  %v10360 = vsel %vm1910, %v10318, 0.0
  %10361 = vadd.xlane.f32.xlu0 %v10360
  %v10362 = vpop.xlane.xlu0 %10361
  %v10363 = vsel %vm1910, %v10319, 0.0
  %10364 = vadd.xlane.f32.xlu0 %v10363
  %v10365 = vpop.xlane.xlu0 %10364
  %v10366 = vsel %vm1910, %v10320, 0.0
  %10367 = vadd.xlane.f32.xlu0 %v10366
  %v10368 = vpop.xlane.xlu0 %10367
  %v10369 = vsel %vm1910, %v10321, 0.0
  %10370 = vadd.xlane.f32.xlu0 %v10369
  %v10371 = vpop.xlane.xlu0 %10370
  %v10372 = vsel %vm1910, %v10322, 0.0
  %10373 = vadd.xlane.f32.xlu0 %v10372
  %v10374 = vpop.xlane.xlu0 %10373
  %v10375 = vsel %vm1910, %v10323, 0.0
  %10376 = vadd.xlane.f32.xlu0 %v10375
  %v10377 = vpop.xlane.xlu0 %10376
  %v10378 = vsel %vm1910, %v10324, 0.0
  %10379 = vadd.xlane.f32.xlu0 %v10378
  %v10380 = vpop.xlane.xlu0 %10379
  %v10381 = vsel %vm1910, %v10325, 0.0
  %10382 = vadd.xlane.f32.xlu0 %v10381
  %v10383 = vpop.xlane.xlu0 %10382
  %v10384 = vsel %vm1910, %v10326, 0.0
  %10385 = vadd.xlane.f32.xlu0 %v10384
  %v10386 = vpop.xlane.xlu0 %10385
  %v10387 = vsel %vm1910, %v10327, 0.0
  %10388 = vadd.xlane.f32.xlu0 %v10387
  %v10389 = vpop.xlane.xlu0 %10388
  %v10390 = vsel %vm1910, %v10328, 0.0
  %10391 = vadd.xlane.f32.xlu0 %v10390
  %v10392 = vpop.xlane.xlu0 %10391
  %10393 = vmatprep.subr.mxu0 0.0
  %10394 = vmatpush1.msra.mxu0 %v10392
  %10395 = vmatprep.subr.mxu0 0.0
  %10396 = vmatpush1.msra.mxu0 %v10389
  %10397 = vmatprep.subr.mxu0 0.0
  %10398 = vmatpush1.msra.mxu0 %v10386
  %10399 = vmatprep.subr.mxu0 0.0
  %10400 = vmatpush1.msra.mxu0 %v10383
  %10401 = vmatprep.subr.mxu0 0.0
  %10402 = vmatpush1.msra.mxu0 %v10380
  %10403 = vmatprep.subr.mxu0 0.0
  %10404 = vmatpush1.msra.mxu0 %v10377
  %10405 = vmatprep.subr.mxu0 0.0
  %10406 = vmatpush1.msra.mxu0 %v10374
  %10407 = vmatprep.subr.mxu0 0.0
  %10408 = vmatpush1.msra.mxu0 %v10371
  %10409 = vmatprep.subr.mxu0 0.0
  %10410 = vmatpush1.msra.mxu0 %v10368
  %10411 = vmatprep.subr.mxu0 0.0
  %10412 = vmatpush1.msra.mxu0 %v10365
  %10413 = vmatprep.subr.mxu0 0.0
  %10414 = vmatpush1.msra.mxu0 %v10362
  %10415 = vmatprep.subr.mxu0 0.0
  %10416 = vmatpush1.msra.mxu0 %v10359
  %10417 = vmatprep.subr.mxu0 0.0
  %10418 = vmatpush1.msra.mxu0 %v10356
  %10419 = vmatprep.subr.mxu0 0.0
  %10420 = vmatpush1.msra.mxu0 %v10353
  %10421 = vmatprep.subr.mxu0 0.0
  %10422 = vmatpush1.msra.mxu0 %v10350
  %10423 = vmatprep.subr.mxu0 0.0
  %10424 = vmatpush1.msra.mxu0 %v10347
  %10425 = vmatprep.subr.mxu0 0.0
  %10426 = vmatpush2.msra.mxu0 0.0
  %10427 = vmatprep.subr.mxu0 0.0
  %10428 = vmatpush2.msra.mxu0 0.0
  %10429 = vmatprep.subr.mxu0 0.0
  %10430 = vmatpush2.msra.mxu0 0.0
  %10431 = vmatprep.subr.mxu0 0.0
  %10432 = vmatpush2.msra.mxu0 0.0
  %10433 = vmatprep.subr.mxu0 0.0
  %10434 = vmatpush2.msra.mxu0 0.0
  %10435 = vmatprep.subr.mxu0 0.0
  %10436 = vmatpush2.msra.mxu0 0.0
  %10437 = vmatprep.subr.mxu0 0.0
  %10438 = vmatpush2.msra.mxu0 0.0
  %10439 = vmatprep.subr.mxu0 0.0
  %10440 = vmatpush2.msra.mxu0 0.0
  %10441 = vmatprep.subr.mxu0 0.0
  %10442 = vmatpush2.msra.mxu0 0.0
  %10443 = vmatprep.subr.mxu0 0.0
  %10444 = vmatpush2.msra.mxu0 0.0
  %10445 = vmatprep.subr.mxu0 0.0
  %10446 = vmatpush2.msra.mxu0 0.0
  %10447 = vmatprep.subr.mxu0 0.0
  %10448 = vmatpush2.msra.mxu0 0.0
  %10449 = vmatprep.subr.mxu0 0.0
  %10450 = vmatpush2.msra.mxu0 0.0
  %10451 = vmatprep.subr.mxu0 0.0
  %10452 = vmatpush2.msra.mxu0 0.0
  %10453 = vmatprep.subr.mxu0 0.0
  %10454 = vmatpush2.msra.mxu0 0.0
  %10455 = vmatprep.subr.mxu0 0.0
  %10456 = vmatpush2.msra.mxu0 0.0
  %10457 = vmatprep.mubr.f32.mxu0 0.0
  %10458 = vmatmul.mubr.f32.gmra.mxu0 %v10329
  %v10459 = vpop.f32.mrf.mxu0
  %v10460 = vadd.f32 0.0, %v10459
  %v10461 = vpop.f32.mrf.mxu0
  %10462 = vmatprep.mubr.f32.mxu0 0.0
  %10463 = vmatmul.mubr.f32.gmra.mxu0 %v10330
  %v10464 = vpop.f32.mrf.mxu0
  %v10465 = vadd.f32 0.0, %v10464
  %v10466 = vpop.f32.mrf.mxu0
  %10467 = vmatprep.mubr.f32.mxu0 0.0
  %10468 = vmatmul.mubr.f32.gmra.mxu0 %v10331
  %v10469 = vpop.f32.mrf.mxu0
  %v10470 = vadd.f32 0.0, %v10469
  %v10471 = vpop.f32.mrf.mxu0
  %10472 = vmatprep.mubr.f32.mxu0 0.0
  %10473 = vmatmul.mubr.f32.gmra.mxu0 %v10332
  %v10474 = vpop.f32.mrf.mxu0
  %v10475 = vadd.f32 0.0, %v10474
  %v10476 = vpop.f32.mrf.mxu0
  %10477 = vmatprep.mubr.f32.mxu0 0.0
  %10478 = vmatmul.mubr.f32.gmra.mxu0 %v10333
  %v10479 = vpop.f32.mrf.mxu0
  %v10480 = vadd.f32 0.0, %v10479
  %v10481 = vpop.f32.mrf.mxu0
  %10482 = vmatprep.mubr.f32.mxu0 0.0
  %10483 = vmatmul.mubr.f32.gmra.mxu0 %v10334
  %v10484 = vpop.f32.mrf.mxu0
  %v10485 = vadd.f32 0.0, %v10484
  %v10486 = vpop.f32.mrf.mxu0
  %10487 = vmatprep.mubr.f32.mxu0 0.0
  %10488 = vmatmul.mubr.f32.gmra.mxu0 %v10335
  %v10489 = vpop.f32.mrf.mxu0
  %v10490 = vadd.f32 0.0, %v10489
  %v10491 = vpop.f32.mrf.mxu0
  %10492 = vmatprep.mubr.f32.mxu0 0.0
  %10493 = vmatmul.mubr.f32.gmra.mxu0 %v10336
  %v10494 = vpop.f32.mrf.mxu0
  %v10495 = vadd.f32 0.0, %v10494
  %v10496 = vpop.f32.mrf.mxu0
  %10497 = vmatprep.mubr.f32.mxu0 0.0
  %10498 = vmatmul.mubr.f32.gmra.mxu0 %v10337
  %v10499 = vpop.f32.mrf.mxu0
  %v10500 = vadd.f32 0.0, %v10499
  %v10501 = vpop.f32.mrf.mxu0
  %10502 = vmatprep.mubr.f32.mxu0 0.0
  %10503 = vmatmul.mubr.f32.gmra.mxu0 %v10338
  %v10504 = vpop.f32.mrf.mxu0
  %v10505 = vadd.f32 0.0, %v10504
  %v10506 = vpop.f32.mrf.mxu0
  %10507 = vmatprep.mubr.f32.mxu0 0.0
  %10508 = vmatmul.mubr.f32.gmra.mxu0 %v10339
  %v10509 = vpop.f32.mrf.mxu0
  %v10510 = vadd.f32 0.0, %v10509
  %v10511 = vpop.f32.mrf.mxu0
  %10512 = vmatprep.mubr.f32.mxu0 0.0
  %10513 = vmatmul.mubr.f32.gmra.mxu0 %v10340
  %v10514 = vpop.f32.mrf.mxu0
  %v10515 = vadd.f32 0.0, %v10514
  %v10516 = vpop.f32.mrf.mxu0
  %10517 = vmatprep.mubr.f32.mxu0 0.0
  %10518 = vmatmul.mubr.f32.gmra.mxu0 %v10341
  %v10519 = vpop.f32.mrf.mxu0
  %v10520 = vadd.f32 0.0, %v10519
  %v10521 = vpop.f32.mrf.mxu0
  %10522 = vmatprep.mubr.f32.mxu0 0.0
  %10523 = vmatmul.mubr.f32.gmra.mxu0 %v10342
  %v10524 = vpop.f32.mrf.mxu0
  %v10525 = vadd.f32 0.0, %v10524
  %v10526 = vpop.f32.mrf.mxu0
  %10527 = vmatprep.mubr.f32.mxu0 0.0
  %10528 = vmatmul.mubr.f32.gmra.mxu0 %v10343
  %v10529 = vpop.f32.mrf.mxu0
  %v10530 = vadd.f32 0.0, %v10529
  %v10531 = vpop.f32.mrf.mxu0
  %10532 = vmatprep.mubr.f32.mxu0 0.0
  %10533 = vmatmul.mubr.f32.gmra.mxu0 %v10344
  %v10534 = vpop.f32.mrf.mxu0
  %v10535 = vadd.f32 0.0, %v10534
  %v10536 = vpop.f32.mrf.mxu0
  %10537 = vdwg.mxu0
  %v10538 = vmul.f32 %v10460, 0.001953125
  %v10539 = vmul.f32 %v10465, 0.001953125
  %v10540 = vmul.f32 %v10470, 0.001953125
  %v10541 = vmul.f32 %v10475, 0.001953125
  %v10542 = vmul.f32 %v10480, 0.001953125
  %v10543 = vmul.f32 %v10485, 0.001953125
  %v10544 = vmul.f32 %v10490, 0.001953125
  %v10545 = vmul.f32 %v10495, 0.001953125
  %v10546 = vmul.f32 %v10500, 0.001953125
  %v10547 = vmul.f32 %v10505, 0.001953125
  %v10548 = vmul.f32 %v10510, 0.001953125
  %v10549 = vmul.f32 %v10515, 0.001953125
  %v10550 = vmul.f32 %v10520, 0.001953125
  %v10551 = vmul.f32 %v10525, 0.001953125
  %v10552 = vmul.f32 %v10530, 0.001953125
  %v10553 = vmul.f32 %v10535, 0.001953125
  %10555 = vset.pattern.permute.xlu0 0
  %10556 = vperm.xlu0 %10555, %v10538
  %v10557 = vpop.permute.xlu0 %10556
  %10560 = vset.pattern.permute.xlu0 0
  %10561 = vperm.xlu0 %10560, %v10539
  %v10562 = vpop.permute.xlu0 %10561
  %10565 = vset.pattern.permute.xlu0 0
  %10566 = vperm.xlu0 %10565, %v10540
  %v10567 = vpop.permute.xlu0 %10566
  %10570 = vset.pattern.permute.xlu0 0
  %10571 = vperm.xlu0 %10570, %v10541
  %v10572 = vpop.permute.xlu0 %10571
  %10575 = vset.pattern.permute.xlu0 0
  %10576 = vperm.xlu0 %10575, %v10542
  %v10577 = vpop.permute.xlu0 %10576
  %10580 = vset.pattern.permute.xlu0 0
  %10581 = vperm.xlu0 %10580, %v10543
  %v10582 = vpop.permute.xlu0 %10581
  %10585 = vset.pattern.permute.xlu0 0
  %10586 = vperm.xlu0 %10585, %v10544
  %v10587 = vpop.permute.xlu0 %10586
  %10590 = vset.pattern.permute.xlu0 0
  %10591 = vperm.xlu0 %10590, %v10545
  %v10592 = vpop.permute.xlu0 %10591
  %10595 = vset.pattern.permute.xlu0 0
  %10596 = vperm.xlu0 %10595, %v10546
  %v10597 = vpop.permute.xlu0 %10596
  %10600 = vset.pattern.permute.xlu0 0
  %10601 = vperm.xlu0 %10600, %v10547
  %v10602 = vpop.permute.xlu0 %10601
  %10605 = vset.pattern.permute.xlu0 0
  %10606 = vperm.xlu0 %10605, %v10548
  %v10607 = vpop.permute.xlu0 %10606
  %10610 = vset.pattern.permute.xlu0 0
  %10611 = vperm.xlu0 %10610, %v10549
  %v10612 = vpop.permute.xlu0 %10611
  %10615 = vset.pattern.permute.xlu0 0
  %10616 = vperm.xlu0 %10615, %v10550
  %v10617 = vpop.permute.xlu0 %10616
  %10620 = vset.pattern.permute.xlu0 0
  %10621 = vperm.xlu0 %10620, %v10551
  %v10622 = vpop.permute.xlu0 %10621
  %10625 = vset.pattern.permute.xlu0 0
  %10626 = vperm.xlu0 %10625, %v10552
  %v10627 = vpop.permute.xlu0 %10626
  %10630 = vset.pattern.permute.xlu0 0
  %10631 = vperm.xlu0 %10630, %v10553
  %v10632 = vpop.permute.xlu0 %10631
  %v10634 = vsub.f32 %v10313, %v10557
  %v10635 = vsub.f32 %v10314, %v10562
  %v10636 = vsub.f32 %v10315, %v10567
  %v10637 = vsub.f32 %v10316, %v10572
  %v10638 = vsub.f32 %v10317, %v10577
  %v10639 = vsub.f32 %v10318, %v10582
  %v10640 = vsub.f32 %v10319, %v10587
  %v10641 = vsub.f32 %v10320, %v10592
  %v10642 = vsub.f32 %v10321, %v10597
  %v10643 = vsub.f32 %v10322, %v10602
  %v10644 = vsub.f32 %v10323, %v10607
  %v10645 = vsub.f32 %v10324, %v10612
  %v10646 = vsub.f32 %v10325, %v10617
  %v10647 = vsub.f32 %v10326, %v10622
  %v10648 = vsub.f32 %v10327, %v10627
  %v10649 = vsub.f32 %v10328, %v10632
  %v10650 = vmul.f32 %v10634, %v10634
  %v10651 = vmul.f32 %v10635, %v10635
  %v10652 = vmul.f32 %v10636, %v10636
  %v10653 = vmul.f32 %v10637, %v10637
  %v10654 = vmul.f32 %v10638, %v10638
  %v10655 = vmul.f32 %v10639, %v10639
  %v10656 = vmul.f32 %v10640, %v10640
  %v10657 = vmul.f32 %v10641, %v10641
  %v10658 = vmul.f32 %v10642, %v10642
  %v10659 = vmul.f32 %v10643, %v10643
  %v10660 = vmul.f32 %v10644, %v10644
  %v10661 = vmul.f32 %v10645, %v10645
  %v10662 = vmul.f32 %v10646, %v10646
  %v10663 = vmul.f32 %v10647, %v10647
  %v10664 = vmul.f32 %v10648, %v10648
  %v10665 = vmul.f32 %v10649, %v10649
  %v10666 = vsel %vm1910, %v10650, 0.0
  %10667 = vadd.xlane.f32.xlu0 %v10666
  %v10668 = vpop.xlane.xlu0 %10667
  %v10669 = vsel %vm1910, %v10651, 0.0
  %10670 = vadd.xlane.f32.xlu0 %v10669
  %v10671 = vpop.xlane.xlu0 %10670
  %v10672 = vsel %vm1910, %v10652, 0.0
  %10673 = vadd.xlane.f32.xlu0 %v10672
  %v10674 = vpop.xlane.xlu0 %10673
  %v10675 = vsel %vm1910, %v10653, 0.0
  %10676 = vadd.xlane.f32.xlu0 %v10675
  %v10677 = vpop.xlane.xlu0 %10676
  %v10678 = vsel %vm1910, %v10654, 0.0
  %10679 = vadd.xlane.f32.xlu0 %v10678
  %v10680 = vpop.xlane.xlu0 %10679
  %v10681 = vsel %vm1910, %v10655, 0.0
  %10682 = vadd.xlane.f32.xlu0 %v10681
  %v10683 = vpop.xlane.xlu0 %10682
  %v10684 = vsel %vm1910, %v10656, 0.0
  %10685 = vadd.xlane.f32.xlu0 %v10684
  %v10686 = vpop.xlane.xlu0 %10685
  %v10687 = vsel %vm1910, %v10657, 0.0
  %10688 = vadd.xlane.f32.xlu0 %v10687
  %v10689 = vpop.xlane.xlu0 %10688
  %v10690 = vsel %vm1910, %v10658, 0.0
  %10691 = vadd.xlane.f32.xlu0 %v10690
  %v10692 = vpop.xlane.xlu0 %10691
  %v10693 = vsel %vm1910, %v10659, 0.0
  %10694 = vadd.xlane.f32.xlu0 %v10693
  %v10695 = vpop.xlane.xlu0 %10694
  %v10696 = vsel %vm1910, %v10660, 0.0
  %10697 = vadd.xlane.f32.xlu0 %v10696
  %v10698 = vpop.xlane.xlu0 %10697
  %v10699 = vsel %vm1910, %v10661, 0.0
  %10700 = vadd.xlane.f32.xlu0 %v10699
  %v10701 = vpop.xlane.xlu0 %10700
  %v10702 = vsel %vm1910, %v10662, 0.0
  %10703 = vadd.xlane.f32.xlu0 %v10702
  %v10704 = vpop.xlane.xlu0 %10703
  %v10705 = vsel %vm1910, %v10663, 0.0
  %10706 = vadd.xlane.f32.xlu0 %v10705
  %v10707 = vpop.xlane.xlu0 %10706
  %v10708 = vsel %vm1910, %v10664, 0.0
  %10709 = vadd.xlane.f32.xlu0 %v10708
  %v10710 = vpop.xlane.xlu0 %10709
  %v10711 = vsel %vm1910, %v10665, 0.0
  %10712 = vadd.xlane.f32.xlu0 %v10711
  %v10713 = vpop.xlane.xlu0 %10712
  %10714 = vmatprep.subr.mxu0 0.0
  %10715 = vmatpush1.msra.mxu0 %v10713
  %10716 = vmatprep.subr.mxu0 0.0
  %10717 = vmatpush1.msra.mxu0 %v10710
  %10718 = vmatprep.subr.mxu0 0.0
  %10719 = vmatpush1.msra.mxu0 %v10707
  %10720 = vmatprep.subr.mxu0 0.0
  %10721 = vmatpush1.msra.mxu0 %v10704
  %10722 = vmatprep.subr.mxu0 0.0
  %10723 = vmatpush1.msra.mxu0 %v10701
  %10724 = vmatprep.subr.mxu0 0.0
  %10725 = vmatpush1.msra.mxu0 %v10698
  %10726 = vmatprep.subr.mxu0 0.0
  %10727 = vmatpush1.msra.mxu0 %v10695
  %10728 = vmatprep.subr.mxu0 0.0
  %10729 = vmatpush1.msra.mxu0 %v10692
  %10730 = vmatprep.subr.mxu0 0.0
  %10731 = vmatpush1.msra.mxu0 %v10689
  %10732 = vmatprep.subr.mxu0 0.0
  %10733 = vmatpush1.msra.mxu0 %v10686
  %10734 = vmatprep.subr.mxu0 0.0
  %10735 = vmatpush1.msra.mxu0 %v10683
  %10736 = vmatprep.subr.mxu0 0.0
  %10737 = vmatpush1.msra.mxu0 %v10680
  %10738 = vmatprep.subr.mxu0 0.0
  %10739 = vmatpush1.msra.mxu0 %v10677
  %10740 = vmatprep.subr.mxu0 0.0
  %10741 = vmatpush1.msra.mxu0 %v10674
  %10742 = vmatprep.subr.mxu0 0.0
  %10743 = vmatpush1.msra.mxu0 %v10671
  %10744 = vmatprep.subr.mxu0 0.0
  %10745 = vmatpush1.msra.mxu0 %v10668
  %10746 = vmatprep.subr.mxu0 0.0
  %10747 = vmatpush2.msra.mxu0 0.0
  %10748 = vmatprep.subr.mxu0 0.0
  %10749 = vmatpush2.msra.mxu0 0.0
  %10750 = vmatprep.subr.mxu0 0.0
  %10751 = vmatpush2.msra.mxu0 0.0
  %10752 = vmatprep.subr.mxu0 0.0
  %10753 = vmatpush2.msra.mxu0 0.0
  %10754 = vmatprep.subr.mxu0 0.0
  %10755 = vmatpush2.msra.mxu0 0.0
  %10756 = vmatprep.subr.mxu0 0.0
  %10757 = vmatpush2.msra.mxu0 0.0
  %10758 = vmatprep.subr.mxu0 0.0
  %10759 = vmatpush2.msra.mxu0 0.0
  %10760 = vmatprep.subr.mxu0 0.0
  %10761 = vmatpush2.msra.mxu0 0.0
  %10762 = vmatprep.subr.mxu0 0.0
  %10763 = vmatpush2.msra.mxu0 0.0
  %10764 = vmatprep.subr.mxu0 0.0
  %10765 = vmatpush2.msra.mxu0 0.0
  %10766 = vmatprep.subr.mxu0 0.0
  %10767 = vmatpush2.msra.mxu0 0.0
  %10768 = vmatprep.subr.mxu0 0.0
  %10769 = vmatpush2.msra.mxu0 0.0
  %10770 = vmatprep.subr.mxu0 0.0
  %10771 = vmatpush2.msra.mxu0 0.0
  %10772 = vmatprep.subr.mxu0 0.0
  %10773 = vmatpush2.msra.mxu0 0.0
  %10774 = vmatprep.subr.mxu0 0.0
  %10775 = vmatpush2.msra.mxu0 0.0
  %10776 = vmatprep.subr.mxu0 0.0
  %10777 = vmatpush2.msra.mxu0 0.0
  %10778 = vmatprep.mubr.f32.mxu0 0.0
  %10779 = vmatmul.mubr.f32.gmra.mxu0 %v10329
  %v10780 = vpop.f32.mrf.mxu0
  %v10781 = vadd.f32 0.0, %v10780
  %v10782 = vpop.f32.mrf.mxu0
  %10783 = vmatprep.mubr.f32.mxu0 0.0
  %10784 = vmatmul.mubr.f32.gmra.mxu0 %v10330
  %v10785 = vpop.f32.mrf.mxu0
  %v10786 = vadd.f32 0.0, %v10785
  %v10787 = vpop.f32.mrf.mxu0
  %10788 = vmatprep.mubr.f32.mxu0 0.0
  %10789 = vmatmul.mubr.f32.gmra.mxu0 %v10331
  %v10790 = vpop.f32.mrf.mxu0
  %v10791 = vadd.f32 0.0, %v10790
  %v10792 = vpop.f32.mrf.mxu0
  %10793 = vmatprep.mubr.f32.mxu0 0.0
  %10794 = vmatmul.mubr.f32.gmra.mxu0 %v10332
  %v10795 = vpop.f32.mrf.mxu0
  %v10796 = vadd.f32 0.0, %v10795
  %v10797 = vpop.f32.mrf.mxu0
  %10798 = vmatprep.mubr.f32.mxu0 0.0
  %10799 = vmatmul.mubr.f32.gmra.mxu0 %v10333
  %v10800 = vpop.f32.mrf.mxu0
  %v10801 = vadd.f32 0.0, %v10800
  %v10802 = vpop.f32.mrf.mxu0
  %10803 = vmatprep.mubr.f32.mxu0 0.0
  %10804 = vmatmul.mubr.f32.gmra.mxu0 %v10334
  %v10805 = vpop.f32.mrf.mxu0
  %v10806 = vadd.f32 0.0, %v10805
  %v10807 = vpop.f32.mrf.mxu0
  %10808 = vmatprep.mubr.f32.mxu0 0.0
  %10809 = vmatmul.mubr.f32.gmra.mxu0 %v10335
  %v10810 = vpop.f32.mrf.mxu0
  %v10811 = vadd.f32 0.0, %v10810
  %v10812 = vpop.f32.mrf.mxu0
  %10813 = vmatprep.mubr.f32.mxu0 0.0
  %10814 = vmatmul.mubr.f32.gmra.mxu0 %v10336
  %v10815 = vpop.f32.mrf.mxu0
  %v10816 = vadd.f32 0.0, %v10815
  %v10817 = vpop.f32.mrf.mxu0
  %10818 = vmatprep.mubr.f32.mxu0 0.0
  %10819 = vmatmul.mubr.f32.gmra.mxu0 %v10337
  %v10820 = vpop.f32.mrf.mxu0
  %v10821 = vadd.f32 0.0, %v10820
  %v10822 = vpop.f32.mrf.mxu0
  %10823 = vmatprep.mubr.f32.mxu0 0.0
  %10824 = vmatmul.mubr.f32.gmra.mxu0 %v10338
  %v10825 = vpop.f32.mrf.mxu0
  %v10826 = vadd.f32 0.0, %v10825
  %v10827 = vpop.f32.mrf.mxu0
  %10828 = vmatprep.mubr.f32.mxu0 0.0
  %10829 = vmatmul.mubr.f32.gmra.mxu0 %v10339
  %v10830 = vpop.f32.mrf.mxu0
  %v10831 = vadd.f32 0.0, %v10830
  %v10832 = vpop.f32.mrf.mxu0
  %10833 = vmatprep.mubr.f32.mxu0 0.0
  %10834 = vmatmul.mubr.f32.gmra.mxu0 %v10340
  %v10835 = vpop.f32.mrf.mxu0
  %v10836 = vadd.f32 0.0, %v10835
  %v10837 = vpop.f32.mrf.mxu0
  %10838 = vmatprep.mubr.f32.mxu0 0.0
  %10839 = vmatmul.mubr.f32.gmra.mxu0 %v10341
  %v10840 = vpop.f32.mrf.mxu0
  %v10841 = vadd.f32 0.0, %v10840
  %v10842 = vpop.f32.mrf.mxu0
  %10843 = vmatprep.mubr.f32.mxu0 0.0
  %10844 = vmatmul.mubr.f32.gmra.mxu0 %v10342
  %v10845 = vpop.f32.mrf.mxu0
  %v10846 = vadd.f32 0.0, %v10845
  %v10847 = vpop.f32.mrf.mxu0
  %10848 = vmatprep.mubr.f32.mxu0 0.0
  %10849 = vmatmul.mubr.f32.gmra.mxu0 %v10343
  %v10850 = vpop.f32.mrf.mxu0
  %v10851 = vadd.f32 0.0, %v10850
  %v10852 = vpop.f32.mrf.mxu0
  %10853 = vmatprep.mubr.f32.mxu0 0.0
  %10854 = vmatmul.mubr.f32.gmra.mxu0 %v10344
  %v10855 = vpop.f32.mrf.mxu0
  %v10856 = vadd.f32 0.0, %v10855
  %v10857 = vpop.f32.mrf.mxu0
  %10858 = vdwg.mxu0
  %v10859 = vmul.f32 %v10781, 0.001953125
  %v10860 = vmul.f32 %v10786, 0.001953125
  %v10861 = vmul.f32 %v10791, 0.001953125
  %v10862 = vmul.f32 %v10796, 0.001953125
  %v10863 = vmul.f32 %v10801, 0.001953125
  %v10864 = vmul.f32 %v10806, 0.001953125
  %v10865 = vmul.f32 %v10811, 0.001953125
  %v10866 = vmul.f32 %v10816, 0.001953125
  %v10867 = vmul.f32 %v10821, 0.001953125
  %v10868 = vmul.f32 %v10826, 0.001953125
  %v10869 = vmul.f32 %v10831, 0.001953125
  %v10870 = vmul.f32 %v10836, 0.001953125
  %v10871 = vmul.f32 %v10841, 0.001953125
  %v10872 = vmul.f32 %v10846, 0.001953125
  %v10873 = vmul.f32 %v10851, 0.001953125
  %v10874 = vmul.f32 %v10856, 0.001953125
  %v10875 = vadd.f32 %v10859, 1e-05
  %v10876 = vadd.f32 %v10860, 1e-05
  %v10877 = vadd.f32 %v10861, 1e-05
  %v10878 = vadd.f32 %v10862, 1e-05
  %v10879 = vadd.f32 %v10863, 1e-05
  %v10880 = vadd.f32 %v10864, 1e-05
  %v10881 = vadd.f32 %v10865, 1e-05
  %v10882 = vadd.f32 %v10866, 1e-05
  %v10883 = vadd.f32 %v10867, 1e-05
  %v10884 = vadd.f32 %v10868, 1e-05
  %v10885 = vadd.f32 %v10869, 1e-05
  %v10886 = vadd.f32 %v10870, 1e-05
  %v10887 = vadd.f32 %v10871, 1e-05
  %v10888 = vadd.f32 %v10872, 1e-05
  %v10889 = vadd.f32 %v10873, 1e-05
  %v10890 = vadd.f32 %v10874, 1e-05
  %v10891 = vrsqrt.pop %v10875
  %v10892 = vrsqrt.pop %v10876
  %v10893 = vrsqrt.pop %v10877
  %v10894 = vrsqrt.pop %v10878
  %v10895 = vrsqrt.pop %v10879
  %v10896 = vrsqrt.pop %v10880
  %v10897 = vrsqrt.pop %v10881
  %v10898 = vrsqrt.pop %v10882
  %v10899 = vrsqrt.pop %v10883
  %v10900 = vrsqrt.pop %v10884
  %v10901 = vrsqrt.pop %v10885
  %v10902 = vrsqrt.pop %v10886
  %v10903 = vrsqrt.pop %v10887
  %v10904 = vrsqrt.pop %v10888
  %v10905 = vrsqrt.pop %v10889
  %v10906 = vrsqrt.pop %v10890
  %v10907 = vmul.f32 %v10891, %v9585
  %v10908 = vmul.f32 %v10892, %v9586
  %v10909 = vmul.f32 %v10893, %v9587
  %v10910 = vmul.f32 %v10894, %v9588
  %v10911 = vmul.f32 %v10895, %v9589
  %v10912 = vmul.f32 %v10896, %v9590
  %v10913 = vmul.f32 %v10897, %v9591
  %v10914 = vmul.f32 %v10898, %v9592
  %v10915 = vmul.f32 %v10899, %v9593
  %v10916 = vmul.f32 %v10900, %v9594
  %v10917 = vmul.f32 %v10901, %v9595
  %v10918 = vmul.f32 %v10902, %v9596
  %v10919 = vmul.f32 %v10903, %v9597
  %v10920 = vmul.f32 %v10904, %v9598
  %v10921 = vmul.f32 %v10905, %v9599
  %v10922 = vmul.f32 %v10906, %v9600
  %10924 = vset.pattern.permute.xlu0 0
  %10925 = vperm.xlu0 %10924, %v10907
  %v10926 = vpop.permute.xlu0 %10925
  %10929 = vset.pattern.permute.xlu0 0
  %10930 = vperm.xlu0 %10929, %v10908
  %v10931 = vpop.permute.xlu0 %10930
  %10934 = vset.pattern.permute.xlu0 0
  %10935 = vperm.xlu0 %10934, %v10909
  %v10936 = vpop.permute.xlu0 %10935
  %10939 = vset.pattern.permute.xlu0 0
  %10940 = vperm.xlu0 %10939, %v10910
  %v10941 = vpop.permute.xlu0 %10940
  %10944 = vset.pattern.permute.xlu0 0
  %10945 = vperm.xlu0 %10944, %v10911
  %v10946 = vpop.permute.xlu0 %10945
  %10949 = vset.pattern.permute.xlu0 0
  %10950 = vperm.xlu0 %10949, %v10912
  %v10951 = vpop.permute.xlu0 %10950
  %10954 = vset.pattern.permute.xlu0 0
  %10955 = vperm.xlu0 %10954, %v10913
  %v10956 = vpop.permute.xlu0 %10955
  %10959 = vset.pattern.permute.xlu0 0
  %10960 = vperm.xlu0 %10959, %v10914
  %v10961 = vpop.permute.xlu0 %10960
  %10964 = vset.pattern.permute.xlu0 0
  %10965 = vperm.xlu0 %10964, %v10915
  %v10966 = vpop.permute.xlu0 %10965
  %10969 = vset.pattern.permute.xlu0 0
  %10970 = vperm.xlu0 %10969, %v10916
  %v10971 = vpop.permute.xlu0 %10970
  %10974 = vset.pattern.permute.xlu0 0
  %10975 = vperm.xlu0 %10974, %v10917
  %v10976 = vpop.permute.xlu0 %10975
  %10979 = vset.pattern.permute.xlu0 0
  %10980 = vperm.xlu0 %10979, %v10918
  %v10981 = vpop.permute.xlu0 %10980
  %10984 = vset.pattern.permute.xlu0 0
  %10985 = vperm.xlu0 %10984, %v10919
  %v10986 = vpop.permute.xlu0 %10985
  %10989 = vset.pattern.permute.xlu0 0
  %10990 = vperm.xlu0 %10989, %v10920
  %v10991 = vpop.permute.xlu0 %10990
  %10994 = vset.pattern.permute.xlu0 0
  %10995 = vperm.xlu0 %10994, %v10921
  %v10996 = vpop.permute.xlu0 %10995
  %10999 = vset.pattern.permute.xlu0 0
  %11000 = vperm.xlu0 %10999, %v10922
  %v11001 = vpop.permute.xlu0 %11000
  %v11003 = vmul.f32 %v10634, %v10926
  %v11004 = vmul.f32 %v10635, %v10931
  %v11005 = vmul.f32 %v10636, %v10936
  %v11006 = vmul.f32 %v10637, %v10941
  %v11007 = vmul.f32 %v10638, %v10946
  %v11008 = vmul.f32 %v10639, %v10951
  %v11009 = vmul.f32 %v10640, %v10956
  %v11010 = vmul.f32 %v10641, %v10961
  %v11011 = vmul.f32 %v10642, %v10966
  %v11012 = vmul.f32 %v10643, %v10971
  %v11013 = vmul.f32 %v10644, %v10976
  %v11014 = vmul.f32 %v10645, %v10981
  %v11015 = vmul.f32 %v10646, %v10986
  %v11016 = vmul.f32 %v10647, %v10991
  %v11017 = vmul.f32 %v10648, %v10996
  %v11018 = vmul.f32 %v10649, %v11001
  %11020 = vset.pattern.permute.xlu0 0
  %11021 = vperm.xlu0 %11020, %v9601
  %v11022 = vpop.permute.xlu0 %11021
  %11025 = vset.pattern.permute.xlu0 0
  %11026 = vperm.xlu0 %11025, %v9602
  %v11027 = vpop.permute.xlu0 %11026
  %11030 = vset.pattern.permute.xlu0 0
  %11031 = vperm.xlu0 %11030, %v9603
  %v11032 = vpop.permute.xlu0 %11031
  %11035 = vset.pattern.permute.xlu0 0
  %11036 = vperm.xlu0 %11035, %v9604
  %v11037 = vpop.permute.xlu0 %11036
  %11040 = vset.pattern.permute.xlu0 0
  %11041 = vperm.xlu0 %11040, %v9605
  %v11042 = vpop.permute.xlu0 %11041
  %11045 = vset.pattern.permute.xlu0 0
  %11046 = vperm.xlu0 %11045, %v9606
  %v11047 = vpop.permute.xlu0 %11046
  %11050 = vset.pattern.permute.xlu0 0
  %11051 = vperm.xlu0 %11050, %v9607
  %v11052 = vpop.permute.xlu0 %11051
  %11055 = vset.pattern.permute.xlu0 0
  %11056 = vperm.xlu0 %11055, %v9608
  %v11057 = vpop.permute.xlu0 %11056
  %11060 = vset.pattern.permute.xlu0 0
  %11061 = vperm.xlu0 %11060, %v9609
  %v11062 = vpop.permute.xlu0 %11061
  %11065 = vset.pattern.permute.xlu0 0
  %11066 = vperm.xlu0 %11065, %v9610
  %v11067 = vpop.permute.xlu0 %11066
  %11070 = vset.pattern.permute.xlu0 0
  %11071 = vperm.xlu0 %11070, %v9611
  %v11072 = vpop.permute.xlu0 %11071
  %11075 = vset.pattern.permute.xlu0 0
  %11076 = vperm.xlu0 %11075, %v9612
  %v11077 = vpop.permute.xlu0 %11076
  %11080 = vset.pattern.permute.xlu0 0
  %11081 = vperm.xlu0 %11080, %v9613
  %v11082 = vpop.permute.xlu0 %11081
  %11085 = vset.pattern.permute.xlu0 0
  %11086 = vperm.xlu0 %11085, %v9614
  %v11087 = vpop.permute.xlu0 %11086
  %11090 = vset.pattern.permute.xlu0 0
  %11091 = vperm.xlu0 %11090, %v9615
  %v11092 = vpop.permute.xlu0 %11091
  %11095 = vset.pattern.permute.xlu0 0
  %11096 = vperm.xlu0 %11095, %v9616
  %v11097 = vpop.permute.xlu0 %11096
  %v11099 = vadd.f32 %v11003, %v11022
  %v11100 = vadd.f32 %v11004, %v11027
  %v11101 = vadd.f32 %v11005, %v11032
  %v11102 = vadd.f32 %v11006, %v11037
  %v11103 = vadd.f32 %v11007, %v11042
  %v11104 = vadd.f32 %v11008, %v11047
  %v11105 = vadd.f32 %v11009, %v11052
  %v11106 = vadd.f32 %v11010, %v11057
  %v11107 = vadd.f32 %v11011, %v11062
  %v11108 = vadd.f32 %v11012, %v11067
  %v11109 = vadd.f32 %v11013, %v11072
  %v11110 = vadd.f32 %v11014, %v11077
  %v11111 = vadd.f32 %v11015, %v11082
  %v11112 = vadd.f32 %v11016, %v11087
  %v11113 = vadd.f32 %v11017, %v11092
  %v11114 = vadd.f32 %v11018, %v11097
  %v11115 = vmax.f32 %v11099, 0.0
  %v11116 = vmax.f32 %v11100, 0.0
  %v11117 = vmax.f32 %v11101, 0.0
  %v11118 = vmax.f32 %v11102, 0.0
  %v11119 = vmax.f32 %v11103, 0.0
  %v11120 = vmax.f32 %v11104, 0.0
  %v11121 = vmax.f32 %v11105, 0.0
  %v11122 = vmax.f32 %v11106, 0.0
  %v11123 = vmax.f32 %v11107, 0.0
  %v11124 = vmax.f32 %v11108, 0.0
  %v11125 = vmax.f32 %v11109, 0.0
  %v11126 = vmax.f32 %v11110, 0.0
  %v11127 = vmax.f32 %v11111, 0.0
  %v11128 = vmax.f32 %v11112, 0.0
  %v11129 = vmax.f32 %v11113, 0.0
  %v11130 = vmax.f32 %v11114, 0.0
  %v11131 = vld [vmem:[%s73] sm:$0xff]
  %v11132 = vld [vmem:[%s73 + $0x8] sm:$0xff]
  %v11133 = vld [vmem:[%s73 + $0x10] sm:$0xff]
  %v11134 = vld [vmem:[%s73 + $0x18] sm:$0xff]
  %v11135 = vld [vmem:[%s73 + $0x20] sm:$0xff]
  %v11136 = vld [vmem:[%s73 + $0x28] sm:$0xff]
  %v11137 = vld [vmem:[%s73 + $0x30] sm:$0xff]
  %v11138 = vld [vmem:[%s73 + $0x38] sm:$0xff]
  %v11139 = vld [vmem:[%s73 + $0x40] sm:$0xff]
  %v11140 = vld [vmem:[%s73 + $0x48] sm:$0xff]
  %v11141 = vld [vmem:[%s73 + $0x50] sm:$0xff]
  %v11142 = vld [vmem:[%s73 + $0x58] sm:$0xff]
  %v11143 = vld [vmem:[%s73 + $0x60] sm:$0xff]
  %v11144 = vld [vmem:[%s73 + $0x68] sm:$0xff]
  %v11145 = vld [vmem:[%s73 + $0x70] sm:$0xff]
  %v11146 = vld [vmem:[%s73 + $0x78] sm:$0xff]
  %v11147 = vld [vmem:[%s73 + $0x80] sm:$0xff]
  %v11148 = vld [vmem:[%s73 + $0x88] sm:$0xff]
  %v11149 = vld [vmem:[%s73 + $0x90] sm:$0xff]
  %v11150 = vld [vmem:[%s73 + $0x98] sm:$0xff]
  %v11151 = vld [vmem:[%s73 + $0xa0] sm:$0xff]
  %v11152 = vld [vmem:[%s73 + $0xa8] sm:$0xff]
  %v11153 = vld [vmem:[%s73 + $0xb0] sm:$0xff]
  %v11154 = vld [vmem:[%s73 + $0xb8] sm:$0xff]
  %v11155 = vld [vmem:[%s73 + $0xc0] sm:$0xff]
  %v11156 = vld [vmem:[%s73 + $0xc8] sm:$0xff]
  %v11157 = vld [vmem:[%s73 + $0xd0] sm:$0xff]
  %v11158 = vld [vmem:[%s73 + $0xd8] sm:$0xff]
  %v11159 = vld [vmem:[%s73 + $0xe0] sm:$0xff]
  %v11160 = vld [vmem:[%s73 + $0xe8] sm:$0xff]
  %v11161 = vld [vmem:[%s73 + $0xf0] sm:$0xff]
  %v11162 = vld [vmem:[%s73 + $0xf8] sm:$0xff]
  %v11163 = vld [vmem:[%s73 + $0x100] sm:$0xff]
  %v11164 = vld [vmem:[%s73 + $0x108] sm:$0xff]
  %v11165 = vld [vmem:[%s73 + $0x110] sm:$0xff]
  %v11166 = vld [vmem:[%s73 + $0x118] sm:$0xff]
  %v11167 = vld [vmem:[%s73 + $0x120] sm:$0xff]
  %v11168 = vld [vmem:[%s73 + $0x128] sm:$0xff]
  %v11169 = vld [vmem:[%s73 + $0x130] sm:$0xff]
  %v11170 = vld [vmem:[%s73 + $0x138] sm:$0xff]
  %v11171 = vld [vmem:[%s73 + $0x140] sm:$0xff]
  %v11172 = vld [vmem:[%s73 + $0x148] sm:$0xff]
  %v11173 = vld [vmem:[%s73 + $0x150] sm:$0xff]
  %v11174 = vld [vmem:[%s73 + $0x158] sm:$0xff]
  %v11175 = vld [vmem:[%s73 + $0x160] sm:$0xff]
  %v11176 = vld [vmem:[%s73 + $0x168] sm:$0xff]
  %v11177 = vld [vmem:[%s73 + $0x170] sm:$0xff]
  %v11178 = vld [vmem:[%s73 + $0x178] sm:$0xff]
  %v11179 = vld [vmem:[%s73 + $0x180] sm:$0xff]
  %v11180 = vld [vmem:[%s73 + $0x188] sm:$0xff]
  %v11181 = vld [vmem:[%s73 + $0x190] sm:$0xff]
  %v11182 = vld [vmem:[%s73 + $0x198] sm:$0xff]
  %v11183 = vld [vmem:[%s73 + $0x1a0] sm:$0xff]
  %v11184 = vld [vmem:[%s73 + $0x1a8] sm:$0xff]
  %v11185 = vld [vmem:[%s73 + $0x1b0] sm:$0xff]
  %v11186 = vld [vmem:[%s73 + $0x1b8] sm:$0xff]
  %v11187 = vld [vmem:[%s73 + $0x1c0] sm:$0xff]
  %v11188 = vld [vmem:[%s73 + $0x1c8] sm:$0xff]
  %v11189 = vld [vmem:[%s73 + $0x1d0] sm:$0xff]
  %v11190 = vld [vmem:[%s73 + $0x1d8] sm:$0xff]
  %v11191 = vld [vmem:[%s73 + $0x1e0] sm:$0xff]
  %v11192 = vld [vmem:[%s73 + $0x1e8] sm:$0xff]
  %v11193 = vld [vmem:[%s73 + $0x1f0] sm:$0xff]
  %v11194 = vld [vmem:[%s73 + $0x1f8] sm:$0xff]
  %11195 = vmatprep.subr.mxu0 0.0
  %11196 = vmatpush1.msra.mxu0 %v11130
  %11197 = vmatprep.subr.mxu0 0.0
  %11198 = vmatpush1.msra.mxu0 %v11129
  %11199 = vmatprep.subr.mxu0 0.0
  %11200 = vmatpush1.msra.mxu0 %v11128
  %11201 = vmatprep.subr.mxu0 0.0
  %11202 = vmatpush1.msra.mxu0 %v11127
  %11203 = vmatprep.subr.mxu0 0.0
  %11204 = vmatpush1.msra.mxu0 %v11126
  %11205 = vmatprep.subr.mxu0 0.0
  %11206 = vmatpush1.msra.mxu0 %v11125
  %11207 = vmatprep.subr.mxu0 0.0
  %11208 = vmatpush1.msra.mxu0 %v11124
  %11209 = vmatprep.subr.mxu0 0.0
  %11210 = vmatpush1.msra.mxu0 %v11123
  %11211 = vmatprep.subr.mxu0 0.0
  %11212 = vmatpush1.msra.mxu0 %v11122
  %11213 = vmatprep.subr.mxu0 0.0
  %11214 = vmatpush1.msra.mxu0 %v11121
  %11215 = vmatprep.subr.mxu0 0.0
  %11216 = vmatpush1.msra.mxu0 %v11120
  %11217 = vmatprep.subr.mxu0 0.0
  %11218 = vmatpush1.msra.mxu0 %v11119
  %11219 = vmatprep.subr.mxu0 0.0
  %11220 = vmatpush1.msra.mxu0 %v11118
  %11221 = vmatprep.subr.mxu0 0.0
  %11222 = vmatpush1.msra.mxu0 %v11117
  %11223 = vmatprep.subr.mxu0 0.0
  %11224 = vmatpush1.msra.mxu0 %v11116
  %11225 = vmatprep.subr.mxu0 0.0
  %11226 = vmatpush1.msra.mxu0 %v11115
  %11227 = vmatprep.subr.mxu0 0.0
  %11228 = vmatpush2.msra.mxu0 0.0
  %11229 = vmatprep.subr.mxu0 0.0
  %11230 = vmatpush2.msra.mxu0 0.0
  %11231 = vmatprep.subr.mxu0 0.0
  %11232 = vmatpush2.msra.mxu0 0.0
  %11233 = vmatprep.subr.mxu0 0.0
  %11234 = vmatpush2.msra.mxu0 0.0
  %11235 = vmatprep.subr.mxu0 0.0
  %11236 = vmatpush2.msra.mxu0 0.0
  %11237 = vmatprep.subr.mxu0 0.0
  %11238 = vmatpush2.msra.mxu0 0.0
  %11239 = vmatprep.subr.mxu0 0.0
  %11240 = vmatpush2.msra.mxu0 0.0
  %11241 = vmatprep.subr.mxu0 0.0
  %11242 = vmatpush2.msra.mxu0 0.0
  %11243 = vmatprep.subr.mxu0 0.0
  %11244 = vmatpush2.msra.mxu0 0.0
  %11245 = vmatprep.subr.mxu0 0.0
  %11246 = vmatpush2.msra.mxu0 0.0
  %11247 = vmatprep.subr.mxu0 0.0
  %11248 = vmatpush2.msra.mxu0 0.0
  %11249 = vmatprep.subr.mxu0 0.0
  %11250 = vmatpush2.msra.mxu0 0.0
  %11251 = vmatprep.subr.mxu0 0.0
  %11252 = vmatpush2.msra.mxu0 0.0
  %11253 = vmatprep.subr.mxu0 0.0
  %11254 = vmatpush2.msra.mxu0 0.0
  %11255 = vmatprep.subr.mxu0 0.0
  %11256 = vmatpush2.msra.mxu0 0.0
  %11257 = vmatprep.subr.mxu0 0.0
  %11258 = vmatpush2.msra.mxu0 0.0
  %11259 = vmatprep.mubr.f32.mxu0 0.0
  %11260 = vmatmul.mubr.f32.gmra.mxu0 %v11131
  %v11261 = vpop.f32.mrf.mxu0
  %v11262 = vadd.f32 0.0, %v11261
  %v11263 = vpop.f32.mrf.mxu0
  %11264 = vmatprep.mubr.f32.mxu0 0.0
  %11265 = vmatmul.mubr.f32.gmra.mxu0 %v11132
  %v11266 = vpop.f32.mrf.mxu0
  %v11267 = vadd.f32 0.0, %v11266
  %v11268 = vpop.f32.mrf.mxu0
  %11269 = vmatprep.mubr.f32.mxu0 0.0
  %11270 = vmatmul.mubr.f32.gmra.mxu0 %v11133
  %v11271 = vpop.f32.mrf.mxu0
  %v11272 = vadd.f32 0.0, %v11271
  %v11273 = vpop.f32.mrf.mxu0
  %11274 = vmatprep.mubr.f32.mxu0 0.0
  %11275 = vmatmul.mubr.f32.gmra.mxu0 %v11134
  %v11276 = vpop.f32.mrf.mxu0
  %v11277 = vadd.f32 0.0, %v11276
  %v11278 = vpop.f32.mrf.mxu0
  %11279 = vmatprep.mubr.f32.mxu0 0.0
  %11280 = vmatmul.mubr.f32.gmra.mxu0 %v11135
  %v11281 = vpop.f32.mrf.mxu0
  %v11282 = vadd.f32 0.0, %v11281
  %v11283 = vpop.f32.mrf.mxu0
  %11284 = vmatprep.mubr.f32.mxu0 0.0
  %11285 = vmatmul.mubr.f32.gmra.mxu0 %v11136
  %v11286 = vpop.f32.mrf.mxu0
  %v11287 = vadd.f32 0.0, %v11286
  %v11288 = vpop.f32.mrf.mxu0
  %11289 = vmatprep.mubr.f32.mxu0 0.0
  %11290 = vmatmul.mubr.f32.gmra.mxu0 %v11137
  %v11291 = vpop.f32.mrf.mxu0
  %v11292 = vadd.f32 0.0, %v11291
  %v11293 = vpop.f32.mrf.mxu0
  %11294 = vmatprep.mubr.f32.mxu0 0.0
  %11295 = vmatmul.mubr.f32.gmra.mxu0 %v11138
  %v11296 = vpop.f32.mrf.mxu0
  %v11297 = vadd.f32 0.0, %v11296
  %v11298 = vpop.f32.mrf.mxu0
  %11299 = vmatprep.mubr.f32.mxu0 0.0
  %11300 = vmatmul.mubr.f32.gmra.mxu0 %v11139
  %v11301 = vpop.f32.mrf.mxu0
  %v11302 = vadd.f32 0.0, %v11301
  %v11303 = vpop.f32.mrf.mxu0
  %11304 = vmatprep.mubr.f32.mxu0 0.0
  %11305 = vmatmul.mubr.f32.gmra.mxu0 %v11140
  %v11306 = vpop.f32.mrf.mxu0
  %v11307 = vadd.f32 0.0, %v11306
  %v11308 = vpop.f32.mrf.mxu0
  %11309 = vmatprep.mubr.f32.mxu0 0.0
  %11310 = vmatmul.mubr.f32.gmra.mxu0 %v11141
  %v11311 = vpop.f32.mrf.mxu0
  %v11312 = vadd.f32 0.0, %v11311
  %v11313 = vpop.f32.mrf.mxu0
  %11314 = vmatprep.mubr.f32.mxu0 0.0
  %11315 = vmatmul.mubr.f32.gmra.mxu0 %v11142
  %v11316 = vpop.f32.mrf.mxu0
  %v11317 = vadd.f32 0.0, %v11316
  %v11318 = vpop.f32.mrf.mxu0
  %11319 = vmatprep.mubr.f32.mxu0 0.0
  %11320 = vmatmul.mubr.f32.gmra.mxu0 %v11143
  %v11321 = vpop.f32.mrf.mxu0
  %v11322 = vadd.f32 0.0, %v11321
  %v11323 = vpop.f32.mrf.mxu0
  %11324 = vmatprep.mubr.f32.mxu0 0.0
  %11325 = vmatmul.mubr.f32.gmra.mxu0 %v11144
  %v11326 = vpop.f32.mrf.mxu0
  %v11327 = vadd.f32 0.0, %v11326
  %v11328 = vpop.f32.mrf.mxu0
  %11329 = vmatprep.mubr.f32.mxu0 0.0
  %11330 = vmatmul.mubr.f32.gmra.mxu0 %v11145
  %v11331 = vpop.f32.mrf.mxu0
  %v11332 = vadd.f32 0.0, %v11331
  %v11333 = vpop.f32.mrf.mxu0
  %11334 = vmatprep.mubr.f32.mxu0 0.0
  %11335 = vmatmul.mubr.f32.gmra.mxu0 %v11146
  %v11336 = vpop.f32.mrf.mxu0
  %v11337 = vadd.f32 0.0, %v11336
  %v11338 = vpop.f32.mrf.mxu0
  %11339 = vmatprep.mubr.f32.mxu0 0.0
  %11340 = vmatmul.mubr.f32.gmra.mxu0 %v11147
  %v11341 = vpop.f32.mrf.mxu0
  %v11342 = vadd.f32 0.0, %v11341
  %v11343 = vpop.f32.mrf.mxu0
  %11344 = vmatprep.mubr.f32.mxu0 0.0
  %11345 = vmatmul.mubr.f32.gmra.mxu0 %v11148
  %v11346 = vpop.f32.mrf.mxu0
  %v11347 = vadd.f32 0.0, %v11346
  %v11348 = vpop.f32.mrf.mxu0
  %11349 = vmatprep.mubr.f32.mxu0 0.0
  %11350 = vmatmul.mubr.f32.gmra.mxu0 %v11149
  %v11351 = vpop.f32.mrf.mxu0
  %v11352 = vadd.f32 0.0, %v11351
  %v11353 = vpop.f32.mrf.mxu0
  %11354 = vmatprep.mubr.f32.mxu0 0.0
  %11355 = vmatmul.mubr.f32.gmra.mxu0 %v11150
  %v11356 = vpop.f32.mrf.mxu0
  %v11357 = vadd.f32 0.0, %v11356
  %v11358 = vpop.f32.mrf.mxu0
  %11359 = vmatprep.mubr.f32.mxu0 0.0
  %11360 = vmatmul.mubr.f32.gmra.mxu0 %v11151
  %v11361 = vpop.f32.mrf.mxu0
  %v11362 = vadd.f32 0.0, %v11361
  %v11363 = vpop.f32.mrf.mxu0
  %11364 = vmatprep.mubr.f32.mxu0 0.0
  %11365 = vmatmul.mubr.f32.gmra.mxu0 %v11152
  %v11366 = vpop.f32.mrf.mxu0
  %v11367 = vadd.f32 0.0, %v11366
  %v11368 = vpop.f32.mrf.mxu0
  %11369 = vmatprep.mubr.f32.mxu0 0.0
  %11370 = vmatmul.mubr.f32.gmra.mxu0 %v11153
  %v11371 = vpop.f32.mrf.mxu0
  %v11372 = vadd.f32 0.0, %v11371
  %v11373 = vpop.f32.mrf.mxu0
  %11374 = vmatprep.mubr.f32.mxu0 0.0
  %11375 = vmatmul.mubr.f32.gmra.mxu0 %v11154
  %v11376 = vpop.f32.mrf.mxu0
  %v11377 = vadd.f32 0.0, %v11376
  %v11378 = vpop.f32.mrf.mxu0
  %11379 = vmatprep.mubr.f32.mxu0 0.0
  %11380 = vmatmul.mubr.f32.gmra.mxu0 %v11155
  %v11381 = vpop.f32.mrf.mxu0
  %v11382 = vadd.f32 0.0, %v11381
  %v11383 = vpop.f32.mrf.mxu0
  %11384 = vmatprep.mubr.f32.mxu0 0.0
  %11385 = vmatmul.mubr.f32.gmra.mxu0 %v11156
  %v11386 = vpop.f32.mrf.mxu0
  %v11387 = vadd.f32 0.0, %v11386
  %v11388 = vpop.f32.mrf.mxu0
  %11389 = vmatprep.mubr.f32.mxu0 0.0
  %11390 = vmatmul.mubr.f32.gmra.mxu0 %v11157
  %v11391 = vpop.f32.mrf.mxu0
  %v11392 = vadd.f32 0.0, %v11391
  %v11393 = vpop.f32.mrf.mxu0
  %11394 = vmatprep.mubr.f32.mxu0 0.0
  %11395 = vmatmul.mubr.f32.gmra.mxu0 %v11158
  %v11396 = vpop.f32.mrf.mxu0
  %v11397 = vadd.f32 0.0, %v11396
  %v11398 = vpop.f32.mrf.mxu0
  %11399 = vmatprep.mubr.f32.mxu0 0.0
  %11400 = vmatmul.mubr.f32.gmra.mxu0 %v11159
  %v11401 = vpop.f32.mrf.mxu0
  %v11402 = vadd.f32 0.0, %v11401
  %v11403 = vpop.f32.mrf.mxu0
  %11404 = vmatprep.mubr.f32.mxu0 0.0
  %11405 = vmatmul.mubr.f32.gmra.mxu0 %v11160
  %v11406 = vpop.f32.mrf.mxu0
  %v11407 = vadd.f32 0.0, %v11406
  %v11408 = vpop.f32.mrf.mxu0
  %11409 = vmatprep.mubr.f32.mxu0 0.0
  %11410 = vmatmul.mubr.f32.gmra.mxu0 %v11161
  %v11411 = vpop.f32.mrf.mxu0
  %v11412 = vadd.f32 0.0, %v11411
  %v11413 = vpop.f32.mrf.mxu0
  %11414 = vmatprep.mubr.f32.mxu0 0.0
  %11415 = vmatmul.mubr.f32.gmra.mxu0 %v11162
  %v11416 = vpop.f32.mrf.mxu0
  %v11417 = vadd.f32 0.0, %v11416
  %v11418 = vpop.f32.mrf.mxu0
  %11419 = vmatprep.mubr.f32.mxu0 0.0
  %11420 = vmatmul.mubr.f32.gmra.mxu0 %v11163
  %v11421 = vpop.f32.mrf.mxu0
  %v11422 = vadd.f32 0.0, %v11421
  %v11423 = vpop.f32.mrf.mxu0
  %11424 = vmatprep.mubr.f32.mxu0 0.0
  %11425 = vmatmul.mubr.f32.gmra.mxu0 %v11164
  %v11426 = vpop.f32.mrf.mxu0
  %v11427 = vadd.f32 0.0, %v11426
  %v11428 = vpop.f32.mrf.mxu0
  %11429 = vmatprep.mubr.f32.mxu0 0.0
  %11430 = vmatmul.mubr.f32.gmra.mxu0 %v11165
  %v11431 = vpop.f32.mrf.mxu0
  %v11432 = vadd.f32 0.0, %v11431
  %v11433 = vpop.f32.mrf.mxu0
  %11434 = vmatprep.mubr.f32.mxu0 0.0
  %11435 = vmatmul.mubr.f32.gmra.mxu0 %v11166
  %v11436 = vpop.f32.mrf.mxu0
  %v11437 = vadd.f32 0.0, %v11436
  %v11438 = vpop.f32.mrf.mxu0
  %11439 = vmatprep.mubr.f32.mxu0 0.0
  %11440 = vmatmul.mubr.f32.gmra.mxu0 %v11167
  %v11441 = vpop.f32.mrf.mxu0
  %v11442 = vadd.f32 0.0, %v11441
  %v11443 = vpop.f32.mrf.mxu0
  %11444 = vmatprep.mubr.f32.mxu0 0.0
  %11445 = vmatmul.mubr.f32.gmra.mxu0 %v11168
  %v11446 = vpop.f32.mrf.mxu0
  %v11447 = vadd.f32 0.0, %v11446
  %v11448 = vpop.f32.mrf.mxu0
  %11449 = vmatprep.mubr.f32.mxu0 0.0
  %11450 = vmatmul.mubr.f32.gmra.mxu0 %v11169
  %v11451 = vpop.f32.mrf.mxu0
  %v11452 = vadd.f32 0.0, %v11451
  %v11453 = vpop.f32.mrf.mxu0
  %11454 = vmatprep.mubr.f32.mxu0 0.0
  %11455 = vmatmul.mubr.f32.gmra.mxu0 %v11170
  %v11456 = vpop.f32.mrf.mxu0
  %v11457 = vadd.f32 0.0, %v11456
  %v11458 = vpop.f32.mrf.mxu0
  %11459 = vmatprep.mubr.f32.mxu0 0.0
  %11460 = vmatmul.mubr.f32.gmra.mxu0 %v11171
  %v11461 = vpop.f32.mrf.mxu0
  %v11462 = vadd.f32 0.0, %v11461
  %v11463 = vpop.f32.mrf.mxu0
  %11464 = vmatprep.mubr.f32.mxu0 0.0
  %11465 = vmatmul.mubr.f32.gmra.mxu0 %v11172
  %v11466 = vpop.f32.mrf.mxu0
  %v11467 = vadd.f32 0.0, %v11466
  %v11468 = vpop.f32.mrf.mxu0
  %11469 = vmatprep.mubr.f32.mxu0 0.0
  %11470 = vmatmul.mubr.f32.gmra.mxu0 %v11173
  %v11471 = vpop.f32.mrf.mxu0
  %v11472 = vadd.f32 0.0, %v11471
  %v11473 = vpop.f32.mrf.mxu0
  %11474 = vmatprep.mubr.f32.mxu0 0.0
  %11475 = vmatmul.mubr.f32.gmra.mxu0 %v11174
  %v11476 = vpop.f32.mrf.mxu0
  %v11477 = vadd.f32 0.0, %v11476
  %v11478 = vpop.f32.mrf.mxu0
  %11479 = vmatprep.mubr.f32.mxu0 0.0
  %11480 = vmatmul.mubr.f32.gmra.mxu0 %v11175
  %v11481 = vpop.f32.mrf.mxu0
  %v11482 = vadd.f32 0.0, %v11481
  %v11483 = vpop.f32.mrf.mxu0
  %11484 = vmatprep.mubr.f32.mxu0 0.0
  %11485 = vmatmul.mubr.f32.gmra.mxu0 %v11176
  %v11486 = vpop.f32.mrf.mxu0
  %v11487 = vadd.f32 0.0, %v11486
  %v11488 = vpop.f32.mrf.mxu0
  %11489 = vmatprep.mubr.f32.mxu0 0.0
  %11490 = vmatmul.mubr.f32.gmra.mxu0 %v11177
  %v11491 = vpop.f32.mrf.mxu0
  %v11492 = vadd.f32 0.0, %v11491
  %v11493 = vpop.f32.mrf.mxu0
  %11494 = vmatprep.mubr.f32.mxu0 0.0
  %11495 = vmatmul.mubr.f32.gmra.mxu0 %v11178
  %v11496 = vpop.f32.mrf.mxu0
  %v11497 = vadd.f32 0.0, %v11496
  %v11498 = vpop.f32.mrf.mxu0
  %11499 = vmatprep.mubr.f32.mxu0 0.0
  %11500 = vmatmul.mubr.f32.gmra.mxu0 %v11179
  %v11501 = vpop.f32.mrf.mxu0
  %v11502 = vadd.f32 0.0, %v11501
  %v11503 = vpop.f32.mrf.mxu0
  %11504 = vmatprep.mubr.f32.mxu0 0.0
  %11505 = vmatmul.mubr.f32.gmra.mxu0 %v11180
  %v11506 = vpop.f32.mrf.mxu0
  %v11507 = vadd.f32 0.0, %v11506
  %v11508 = vpop.f32.mrf.mxu0
  %11509 = vmatprep.mubr.f32.mxu0 0.0
  %11510 = vmatmul.mubr.f32.gmra.mxu0 %v11181
  %v11511 = vpop.f32.mrf.mxu0
  %v11512 = vadd.f32 0.0, %v11511
  %v11513 = vpop.f32.mrf.mxu0
  %11514 = vmatprep.mubr.f32.mxu0 0.0
  %11515 = vmatmul.mubr.f32.gmra.mxu0 %v11182
  %v11516 = vpop.f32.mrf.mxu0
  %v11517 = vadd.f32 0.0, %v11516
  %v11518 = vpop.f32.mrf.mxu0
  %11519 = vmatprep.mubr.f32.mxu0 0.0
  %11520 = vmatmul.mubr.f32.gmra.mxu0 %v11183
  %v11521 = vpop.f32.mrf.mxu0
  %v11522 = vadd.f32 0.0, %v11521
  %v11523 = vpop.f32.mrf.mxu0
  %11524 = vmatprep.mubr.f32.mxu0 0.0
  %11525 = vmatmul.mubr.f32.gmra.mxu0 %v11184
  %v11526 = vpop.f32.mrf.mxu0
  %v11527 = vadd.f32 0.0, %v11526
  %v11528 = vpop.f32.mrf.mxu0
  %11529 = vmatprep.mubr.f32.mxu0 0.0
  %11530 = vmatmul.mubr.f32.gmra.mxu0 %v11185
  %v11531 = vpop.f32.mrf.mxu0
  %v11532 = vadd.f32 0.0, %v11531
  %v11533 = vpop.f32.mrf.mxu0
  %11534 = vmatprep.mubr.f32.mxu0 0.0
  %11535 = vmatmul.mubr.f32.gmra.mxu0 %v11186
  %v11536 = vpop.f32.mrf.mxu0
  %v11537 = vadd.f32 0.0, %v11536
  %v11538 = vpop.f32.mrf.mxu0
  %11539 = vmatprep.mubr.f32.mxu0 0.0
  %11540 = vmatmul.mubr.f32.gmra.mxu0 %v11187
  %v11541 = vpop.f32.mrf.mxu0
  %v11542 = vadd.f32 0.0, %v11541
  %v11543 = vpop.f32.mrf.mxu0
  %11544 = vmatprep.mubr.f32.mxu0 0.0
  %11545 = vmatmul.mubr.f32.gmra.mxu0 %v11188
  %v11546 = vpop.f32.mrf.mxu0
  %v11547 = vadd.f32 0.0, %v11546
  %v11548 = vpop.f32.mrf.mxu0
  %11549 = vmatprep.mubr.f32.mxu0 0.0
  %11550 = vmatmul.mubr.f32.gmra.mxu0 %v11189
  %v11551 = vpop.f32.mrf.mxu0
  %v11552 = vadd.f32 0.0, %v11551
  %v11553 = vpop.f32.mrf.mxu0
  %11554 = vmatprep.mubr.f32.mxu0 0.0
  %11555 = vmatmul.mubr.f32.gmra.mxu0 %v11190
  %v11556 = vpop.f32.mrf.mxu0
  %v11557 = vadd.f32 0.0, %v11556
  %v11558 = vpop.f32.mrf.mxu0
  %11559 = vmatprep.mubr.f32.mxu0 0.0
  %11560 = vmatmul.mubr.f32.gmra.mxu0 %v11191
  %v11561 = vpop.f32.mrf.mxu0
  %v11562 = vadd.f32 0.0, %v11561
  %v11563 = vpop.f32.mrf.mxu0
  %11564 = vmatprep.mubr.f32.mxu0 0.0
  %11565 = vmatmul.mubr.f32.gmra.mxu0 %v11192
  %v11566 = vpop.f32.mrf.mxu0
  %v11567 = vadd.f32 0.0, %v11566
  %v11568 = vpop.f32.mrf.mxu0
  %11569 = vmatprep.mubr.f32.mxu0 0.0
  %11570 = vmatmul.mubr.f32.gmra.mxu0 %v11193
  %v11571 = vpop.f32.mrf.mxu0
  %v11572 = vadd.f32 0.0, %v11571
  %v11573 = vpop.f32.mrf.mxu0
  %11574 = vmatprep.mubr.f32.mxu0 0.0
  %11575 = vmatmul.mubr.f32.gmra.mxu0 %v11194
  %v11576 = vpop.f32.mrf.mxu0
  %v11577 = vadd.f32 0.0, %v11576
  %v11578 = vpop.f32.mrf.mxu0
  %11579 = vdwg.mxu0
  %v11580 = vld [vmem:[%s77] sm:$0xff]
  %v11581 = vld [vmem:[%s77 + $0x8] sm:$0xff]
  %v11582 = vld [vmem:[%s77 + $0x10] sm:$0xff]
  %v11583 = vld [vmem:[%s77 + $0x18] sm:$0xff]
  %v11584 = vld [vmem:[%s77 + $0x20] sm:$0xff]
  %v11585 = vld [vmem:[%s77 + $0x28] sm:$0xff]
  %v11586 = vld [vmem:[%s77 + $0x30] sm:$0xff]
  %v11587 = vld [vmem:[%s77 + $0x38] sm:$0xff]
  %v11588 = vld [vmem:[%s77 + $0x40] sm:$0xff]
  %v11589 = vld [vmem:[%s77 + $0x48] sm:$0xff]
  %v11590 = vld [vmem:[%s77 + $0x50] sm:$0xff]
  %v11591 = vld [vmem:[%s77 + $0x58] sm:$0xff]
  %v11592 = vld [vmem:[%s77 + $0x60] sm:$0xff]
  %v11593 = vld [vmem:[%s77 + $0x68] sm:$0xff]
  %v11594 = vld [vmem:[%s77 + $0x70] sm:$0xff]
  %v11595 = vld [vmem:[%s77 + $0x78] sm:$0xff]
  %v11596 = vld [vmem:[%s75] sm:$0xff]
  %v11597 = vld [vmem:[%s75 + $0x8] sm:$0xff]
  %v11599 = vsel %vm1910, %v11262, 0
  %v11602 = vsel %vm1910, %v11267, 0
  %v11605 = vsel %vm1910, %v11272, 0
  %v11608 = vsel %vm1910, %v11277, 0
  %v11611 = vsel %vm1910, %v11282, 0
  %v11614 = vsel %vm1910, %v11287, 0
  %v11617 = vsel %vm1910, %v11292, 0
  %v11620 = vsel %vm1910, %v11297, 0
  %v11623 = vsel %vm1910, %v11302, 0
  %v11626 = vsel %vm1910, %v11307, 0
  %v11629 = vsel %vm1910, %v11312, 0
  %v11632 = vsel %vm1910, %v11317, 0
  %v11635 = vsel %vm1910, %v11322, 0
  %v11638 = vsel %vm1910, %v11327, 0
  %v11641 = vsel %vm1910, %v11332, 0
  %v11644 = vsel %vm1910, %v11337, 0
  %11646 = vmatprep.subr.mxu0 0.0
  %11647 = vmatpush1.msra.mxu0 0.0
  %11648 = vmatprep.subr.mxu0 0.0
  %11649 = vmatpush1.msra.mxu0 0.0
  %11650 = vmatprep.subr.mxu0 0.0
  %11651 = vmatpush1.msra.mxu0 0.0
  %11652 = vmatprep.subr.mxu0 0.0
  %11653 = vmatpush1.msra.mxu0 0.0
  %11654 = vmatprep.subr.mxu0 0.0
  %11655 = vmatpush1.msra.mxu0 0.0
  %11656 = vmatprep.subr.mxu0 0.0
  %11657 = vmatpush1.msra.mxu0 0.0
  %11658 = vmatprep.subr.mxu0 0.0
  %11659 = vmatpush1.msra.mxu0 0.0
  %11660 = vmatprep.subr.mxu0 0.0
  %11661 = vmatpush1.msra.mxu0 0.0
  %11662 = vmatprep.subr.mxu0 0.0
  %11663 = vmatpush1.msra.mxu0 0.0
  %11664 = vmatprep.subr.mxu0 0.0
  %11665 = vmatpush1.msra.mxu0 0.0
  %11666 = vmatprep.subr.mxu0 0.0
  %11667 = vmatpush1.msra.mxu0 0.0
  %11668 = vmatprep.subr.mxu0 0.0
  %11669 = vmatpush1.msra.mxu0 0.0
  %11670 = vmatprep.subr.mxu0 0.0
  %11671 = vmatpush1.msra.mxu0 0.0
  %11672 = vmatprep.subr.mxu0 0.0
  %11673 = vmatpush1.msra.mxu0 0.0
  %11674 = vmatprep.subr.mxu0 0.0
  %11675 = vmatpush1.msra.mxu0 %v11597
  %11676 = vmatprep.subr.mxu0 0.0
  %11677 = vmatpush1.msra.mxu0 %v11596
  %11678 = vmatprep.subr.mxu0 0.0
  %11679 = vmatpush2.msra.mxu0 0.0
  %11680 = vmatprep.subr.mxu0 0.0
  %11681 = vmatpush2.msra.mxu0 0.0
  %11682 = vmatprep.subr.mxu0 0.0
  %11683 = vmatpush2.msra.mxu0 0.0
  %11684 = vmatprep.subr.mxu0 0.0
  %11685 = vmatpush2.msra.mxu0 0.0
  %11686 = vmatprep.subr.mxu0 0.0
  %11687 = vmatpush2.msra.mxu0 0.0
  %11688 = vmatprep.subr.mxu0 0.0
  %11689 = vmatpush2.msra.mxu0 0.0
  %11690 = vmatprep.subr.mxu0 0.0
  %11691 = vmatpush2.msra.mxu0 0.0
  %11692 = vmatprep.subr.mxu0 0.0
  %11693 = vmatpush2.msra.mxu0 0.0
  %11694 = vmatprep.subr.mxu0 0.0
  %11695 = vmatpush2.msra.mxu0 0.0
  %11696 = vmatprep.subr.mxu0 0.0
  %11697 = vmatpush2.msra.mxu0 0.0
  %11698 = vmatprep.subr.mxu0 0.0
  %11699 = vmatpush2.msra.mxu0 0.0
  %11700 = vmatprep.subr.mxu0 0.0
  %11701 = vmatpush2.msra.mxu0 0.0
  %11702 = vmatprep.subr.mxu0 0.0
  %11703 = vmatpush2.msra.mxu0 0.0
  %11704 = vmatprep.subr.mxu0 0.0
  %11705 = vmatpush2.msra.mxu0 0.0
  %11706 = vmatprep.subr.mxu0 0.0
  %11707 = vmatpush2.msra.mxu0 0.0
  %11708 = vmatprep.subr.mxu0 0.0
  %11709 = vmatpush2.msra.mxu0 0.0
  %11710 = vmatprep.mubr.f32.mxu0 0.0
  %11711 = vmatmul.mubr.f32.gmra.mxu0 %v11599
  %v11712 = vpop.f32.mrf.mxu0
  %v11713 = vadd.f32 0.0, %v11712
  %v11714 = vpop.f32.mrf.mxu0
  %11715 = vmatprep.mubr.f32.mxu0 0.0
  %11716 = vmatmul.mubr.f32.gmra.mxu0 %v11602
  %v11717 = vpop.f32.mrf.mxu0
  %v11718 = vadd.f32 0.0, %v11717
  %v11719 = vpop.f32.mrf.mxu0
  %11720 = vmatprep.mubr.f32.mxu0 0.0
  %11721 = vmatmul.mubr.f32.gmra.mxu0 %v11605
  %v11722 = vpop.f32.mrf.mxu0
  %v11723 = vadd.f32 0.0, %v11722
  %v11724 = vpop.f32.mrf.mxu0
  %11725 = vmatprep.mubr.f32.mxu0 0.0
  %11726 = vmatmul.mubr.f32.gmra.mxu0 %v11608
  %v11727 = vpop.f32.mrf.mxu0
  %v11728 = vadd.f32 0.0, %v11727
  %v11729 = vpop.f32.mrf.mxu0
  %11730 = vmatprep.mubr.f32.mxu0 0.0
  %11731 = vmatmul.mubr.f32.gmra.mxu0 %v11611
  %v11732 = vpop.f32.mrf.mxu0
  %v11733 = vadd.f32 0.0, %v11732
  %v11734 = vpop.f32.mrf.mxu0
  %11735 = vmatprep.mubr.f32.mxu0 0.0
  %11736 = vmatmul.mubr.f32.gmra.mxu0 %v11614
  %v11737 = vpop.f32.mrf.mxu0
  %v11738 = vadd.f32 0.0, %v11737
  %v11739 = vpop.f32.mrf.mxu0
  %11740 = vmatprep.mubr.f32.mxu0 0.0
  %11741 = vmatmul.mubr.f32.gmra.mxu0 %v11617
  %v11742 = vpop.f32.mrf.mxu0
  %v11743 = vadd.f32 0.0, %v11742
  %v11744 = vpop.f32.mrf.mxu0
  %11745 = vmatprep.mubr.f32.mxu0 0.0
  %11746 = vmatmul.mubr.f32.gmra.mxu0 %v11620
  %v11747 = vpop.f32.mrf.mxu0
  %v11748 = vadd.f32 0.0, %v11747
  %v11749 = vpop.f32.mrf.mxu0
  %11750 = vmatprep.mubr.f32.mxu0 0.0
  %11751 = vmatmul.mubr.f32.gmra.mxu0 %v11623
  %v11752 = vpop.f32.mrf.mxu0
  %v11753 = vadd.f32 0.0, %v11752
  %v11754 = vpop.f32.mrf.mxu0
  %11755 = vmatprep.mubr.f32.mxu0 0.0
  %11756 = vmatmul.mubr.f32.gmra.mxu0 %v11626
  %v11757 = vpop.f32.mrf.mxu0
  %v11758 = vadd.f32 0.0, %v11757
  %v11759 = vpop.f32.mrf.mxu0
  %11760 = vmatprep.mubr.f32.mxu0 0.0
  %11761 = vmatmul.mubr.f32.gmra.mxu0 %v11629
  %v11762 = vpop.f32.mrf.mxu0
  %v11763 = vadd.f32 0.0, %v11762
  %v11764 = vpop.f32.mrf.mxu0
  %11765 = vmatprep.mubr.f32.mxu0 0.0
  %11766 = vmatmul.mubr.f32.gmra.mxu0 %v11632
  %v11767 = vpop.f32.mrf.mxu0
  %v11768 = vadd.f32 0.0, %v11767
  %v11769 = vpop.f32.mrf.mxu0
  %11770 = vmatprep.mubr.f32.mxu0 0.0
  %11771 = vmatmul.mubr.f32.gmra.mxu0 %v11635
  %v11772 = vpop.f32.mrf.mxu0
  %v11773 = vadd.f32 0.0, %v11772
  %v11774 = vpop.f32.mrf.mxu0
  %11775 = vmatprep.mubr.f32.mxu0 0.0
  %11776 = vmatmul.mubr.f32.gmra.mxu0 %v11638
  %v11777 = vpop.f32.mrf.mxu0
  %v11778 = vadd.f32 0.0, %v11777
  %v11779 = vpop.f32.mrf.mxu0
  %11780 = vmatprep.mubr.f32.mxu0 0.0
  %11781 = vmatmul.mubr.f32.gmra.mxu0 %v11641
  %v11782 = vpop.f32.mrf.mxu0
  %v11783 = vadd.f32 0.0, %v11782
  %v11784 = vpop.f32.mrf.mxu0
  %11785 = vmatprep.mubr.f32.mxu0 0.0
  %11786 = vmatmul.mubr.f32.gmra.mxu0 %v11644
  %v11787 = vpop.f32.mrf.mxu0
  %v11788 = vadd.f32 0.0, %v11787
  %v11789 = vpop.f32.mrf.mxu0
  %11790 = vdwg.mxu0
  %11792 = vset.pattern.permute.xlu0 0
  %11793 = vperm.xlu0 %11792, %v11580
  %v11794 = vpop.permute.xlu0 %11793
  %11797 = vset.pattern.permute.xlu0 0
  %11798 = vperm.xlu0 %11797, %v11581
  %v11799 = vpop.permute.xlu0 %11798
  %11802 = vset.pattern.permute.xlu0 0
  %11803 = vperm.xlu0 %11802, %v11582
  %v11804 = vpop.permute.xlu0 %11803
  %11807 = vset.pattern.permute.xlu0 0
  %11808 = vperm.xlu0 %11807, %v11583
  %v11809 = vpop.permute.xlu0 %11808
  %11812 = vset.pattern.permute.xlu0 0
  %11813 = vperm.xlu0 %11812, %v11584
  %v11814 = vpop.permute.xlu0 %11813
  %11817 = vset.pattern.permute.xlu0 0
  %11818 = vperm.xlu0 %11817, %v11585
  %v11819 = vpop.permute.xlu0 %11818
  %11822 = vset.pattern.permute.xlu0 0
  %11823 = vperm.xlu0 %11822, %v11586
  %v11824 = vpop.permute.xlu0 %11823
  %11827 = vset.pattern.permute.xlu0 0
  %11828 = vperm.xlu0 %11827, %v11587
  %v11829 = vpop.permute.xlu0 %11828
  %11832 = vset.pattern.permute.xlu0 0
  %11833 = vperm.xlu0 %11832, %v11588
  %v11834 = vpop.permute.xlu0 %11833
  %11837 = vset.pattern.permute.xlu0 0
  %11838 = vperm.xlu0 %11837, %v11589
  %v11839 = vpop.permute.xlu0 %11838
  %11842 = vset.pattern.permute.xlu0 0
  %11843 = vperm.xlu0 %11842, %v11590
  %v11844 = vpop.permute.xlu0 %11843
  %11847 = vset.pattern.permute.xlu0 0
  %11848 = vperm.xlu0 %11847, %v11591
  %v11849 = vpop.permute.xlu0 %11848
  %11852 = vset.pattern.permute.xlu0 0
  %11853 = vperm.xlu0 %11852, %v11592
  %v11854 = vpop.permute.xlu0 %11853
  %11857 = vset.pattern.permute.xlu0 0
  %11858 = vperm.xlu0 %11857, %v11593
  %v11859 = vpop.permute.xlu0 %11858
  %11862 = vset.pattern.permute.xlu0 0
  %11863 = vperm.xlu0 %11862, %v11594
  %v11864 = vpop.permute.xlu0 %11863
  %11867 = vset.pattern.permute.xlu0 0
  %11868 = vperm.xlu0 %11867, %v11595
  %v11869 = vpop.permute.xlu0 %11868
  %v11871 = vadd.f32 %v11794, %v11713
  %v11872 = vadd.f32 %v11799, %v11718
  %v11873 = vadd.f32 %v11804, %v11723
  %v11874 = vadd.f32 %v11809, %v11728
  %v11875 = vadd.f32 %v11814, %v11733
  %v11876 = vadd.f32 %v11819, %v11738
  %v11877 = vadd.f32 %v11824, %v11743
  %v11878 = vadd.f32 %v11829, %v11748
  %v11879 = vadd.f32 %v11834, %v11753
  %v11880 = vadd.f32 %v11839, %v11758
  %v11881 = vadd.f32 %v11844, %v11763
  %v11882 = vadd.f32 %v11849, %v11768
  %v11883 = vadd.f32 %v11854, %v11773
  %v11884 = vadd.f32 %v11859, %v11778
  %v11885 = vadd.f32 %v11864, %v11783
  %v11886 = vadd.f32 %v11869, %v11788
  %s11887 = scalar_lea.vmem %s75, 16
  %v11888 = vld [vmem:[%s11887] sm:$0xff]
  %v11889 = vld [vmem:[%s11887 + $0x8] sm:$0xff]
  %v11891 = vsel %vm1910, %v11342, 0
  %v11894 = vsel %vm1910, %v11347, 0
  %v11897 = vsel %vm1910, %v11352, 0
  %v11900 = vsel %vm1910, %v11357, 0
  %v11903 = vsel %vm1910, %v11362, 0
  %v11906 = vsel %vm1910, %v11367, 0
  %v11909 = vsel %vm1910, %v11372, 0
  %v11912 = vsel %vm1910, %v11377, 0
  %v11915 = vsel %vm1910, %v11382, 0
  %v11918 = vsel %vm1910, %v11387, 0
  %v11921 = vsel %vm1910, %v11392, 0
  %v11924 = vsel %vm1910, %v11397, 0
  %v11927 = vsel %vm1910, %v11402, 0
  %v11930 = vsel %vm1910, %v11407, 0
  %v11933 = vsel %vm1910, %v11412, 0
  %v11936 = vsel %vm1910, %v11417, 0
  %11938 = vmatprep.subr.mxu0 0.0
  %11939 = vmatpush1.msra.mxu0 0.0
  %11940 = vmatprep.subr.mxu0 0.0
  %11941 = vmatpush1.msra.mxu0 0.0
  %11942 = vmatprep.subr.mxu0 0.0
  %11943 = vmatpush1.msra.mxu0 0.0
  %11944 = vmatprep.subr.mxu0 0.0
  %11945 = vmatpush1.msra.mxu0 0.0
  %11946 = vmatprep.subr.mxu0 0.0
  %11947 = vmatpush1.msra.mxu0 0.0
  %11948 = vmatprep.subr.mxu0 0.0
  %11949 = vmatpush1.msra.mxu0 0.0
  %11950 = vmatprep.subr.mxu0 0.0
  %11951 = vmatpush1.msra.mxu0 0.0
  %11952 = vmatprep.subr.mxu0 0.0
  %11953 = vmatpush1.msra.mxu0 0.0
  %11954 = vmatprep.subr.mxu0 0.0
  %11955 = vmatpush1.msra.mxu0 0.0
  %11956 = vmatprep.subr.mxu0 0.0
  %11957 = vmatpush1.msra.mxu0 0.0
  %11958 = vmatprep.subr.mxu0 0.0
  %11959 = vmatpush1.msra.mxu0 0.0
  %11960 = vmatprep.subr.mxu0 0.0
  %11961 = vmatpush1.msra.mxu0 0.0
  %11962 = vmatprep.subr.mxu0 0.0
  %11963 = vmatpush1.msra.mxu0 0.0
  %11964 = vmatprep.subr.mxu0 0.0
  %11965 = vmatpush1.msra.mxu0 0.0
  %11966 = vmatprep.subr.mxu0 0.0
  %11967 = vmatpush1.msra.mxu0 %v11889
  %11968 = vmatprep.subr.mxu0 0.0
  %11969 = vmatpush1.msra.mxu0 %v11888
  %11970 = vmatprep.subr.mxu0 0.0
  %11971 = vmatpush2.msra.mxu0 0.0
  %11972 = vmatprep.subr.mxu0 0.0
  %11973 = vmatpush2.msra.mxu0 0.0
  %11974 = vmatprep.subr.mxu0 0.0
  %11975 = vmatpush2.msra.mxu0 0.0
  %11976 = vmatprep.subr.mxu0 0.0
  %11977 = vmatpush2.msra.mxu0 0.0
  %11978 = vmatprep.subr.mxu0 0.0
  %11979 = vmatpush2.msra.mxu0 0.0
  %11980 = vmatprep.subr.mxu0 0.0
  %11981 = vmatpush2.msra.mxu0 0.0
  %11982 = vmatprep.subr.mxu0 0.0
  %11983 = vmatpush2.msra.mxu0 0.0
  %11984 = vmatprep.subr.mxu0 0.0
  %11985 = vmatpush2.msra.mxu0 0.0
  %11986 = vmatprep.subr.mxu0 0.0
  %11987 = vmatpush2.msra.mxu0 0.0
  %11988 = vmatprep.subr.mxu0 0.0
  %11989 = vmatpush2.msra.mxu0 0.0
  %11990 = vmatprep.subr.mxu0 0.0
  %11991 = vmatpush2.msra.mxu0 0.0
  %11992 = vmatprep.subr.mxu0 0.0
  %11993 = vmatpush2.msra.mxu0 0.0
  %11994 = vmatprep.subr.mxu0 0.0
  %11995 = vmatpush2.msra.mxu0 0.0
  %11996 = vmatprep.subr.mxu0 0.0
  %11997 = vmatpush2.msra.mxu0 0.0
  %11998 = vmatprep.subr.mxu0 0.0
  %11999 = vmatpush2.msra.mxu0 0.0
  %12000 = vmatprep.subr.mxu0 0.0
  %12001 = vmatpush2.msra.mxu0 0.0
  %12002 = vmatprep.mubr.f32.mxu0 0.0
  %12003 = vmatmul.mubr.f32.gmra.mxu0 %v11891
  %v12004 = vpop.f32.mrf.mxu0
  %v12005 = vadd.f32 0.0, %v12004
  %v12006 = vpop.f32.mrf.mxu0
  %12007 = vmatprep.mubr.f32.mxu0 0.0
  %12008 = vmatmul.mubr.f32.gmra.mxu0 %v11894
  %v12009 = vpop.f32.mrf.mxu0
  %v12010 = vadd.f32 0.0, %v12009
  %v12011 = vpop.f32.mrf.mxu0
  %12012 = vmatprep.mubr.f32.mxu0 0.0
  %12013 = vmatmul.mubr.f32.gmra.mxu0 %v11897
  %v12014 = vpop.f32.mrf.mxu0
  %v12015 = vadd.f32 0.0, %v12014
  %v12016 = vpop.f32.mrf.mxu0
  %12017 = vmatprep.mubr.f32.mxu0 0.0
  %12018 = vmatmul.mubr.f32.gmra.mxu0 %v11900
  %v12019 = vpop.f32.mrf.mxu0
  %v12020 = vadd.f32 0.0, %v12019
  %v12021 = vpop.f32.mrf.mxu0
  %12022 = vmatprep.mubr.f32.mxu0 0.0
  %12023 = vmatmul.mubr.f32.gmra.mxu0 %v11903
  %v12024 = vpop.f32.mrf.mxu0
  %v12025 = vadd.f32 0.0, %v12024
  %v12026 = vpop.f32.mrf.mxu0
  %12027 = vmatprep.mubr.f32.mxu0 0.0
  %12028 = vmatmul.mubr.f32.gmra.mxu0 %v11906
  %v12029 = vpop.f32.mrf.mxu0
  %v12030 = vadd.f32 0.0, %v12029
  %v12031 = vpop.f32.mrf.mxu0
  %12032 = vmatprep.mubr.f32.mxu0 0.0
  %12033 = vmatmul.mubr.f32.gmra.mxu0 %v11909
  %v12034 = vpop.f32.mrf.mxu0
  %v12035 = vadd.f32 0.0, %v12034
  %v12036 = vpop.f32.mrf.mxu0
  %12037 = vmatprep.mubr.f32.mxu0 0.0
  %12038 = vmatmul.mubr.f32.gmra.mxu0 %v11912
  %v12039 = vpop.f32.mrf.mxu0
  %v12040 = vadd.f32 0.0, %v12039
  %v12041 = vpop.f32.mrf.mxu0
  %12042 = vmatprep.mubr.f32.mxu0 0.0
  %12043 = vmatmul.mubr.f32.gmra.mxu0 %v11915
  %v12044 = vpop.f32.mrf.mxu0
  %v12045 = vadd.f32 0.0, %v12044
  %v12046 = vpop.f32.mrf.mxu0
  %12047 = vmatprep.mubr.f32.mxu0 0.0
  %12048 = vmatmul.mubr.f32.gmra.mxu0 %v11918
  %v12049 = vpop.f32.mrf.mxu0
  %v12050 = vadd.f32 0.0, %v12049
  %v12051 = vpop.f32.mrf.mxu0
  %12052 = vmatprep.mubr.f32.mxu0 0.0
  %12053 = vmatmul.mubr.f32.gmra.mxu0 %v11921
  %v12054 = vpop.f32.mrf.mxu0
  %v12055 = vadd.f32 0.0, %v12054
  %v12056 = vpop.f32.mrf.mxu0
  %12057 = vmatprep.mubr.f32.mxu0 0.0
  %12058 = vmatmul.mubr.f32.gmra.mxu0 %v11924
  %v12059 = vpop.f32.mrf.mxu0
  %v12060 = vadd.f32 0.0, %v12059
  %v12061 = vpop.f32.mrf.mxu0
  %12062 = vmatprep.mubr.f32.mxu0 0.0
  %12063 = vmatmul.mubr.f32.gmra.mxu0 %v11927
  %v12064 = vpop.f32.mrf.mxu0
  %v12065 = vadd.f32 0.0, %v12064
  %v12066 = vpop.f32.mrf.mxu0
  %12067 = vmatprep.mubr.f32.mxu0 0.0
  %12068 = vmatmul.mubr.f32.gmra.mxu0 %v11930
  %v12069 = vpop.f32.mrf.mxu0
  %v12070 = vadd.f32 0.0, %v12069
  %v12071 = vpop.f32.mrf.mxu0
  %12072 = vmatprep.mubr.f32.mxu0 0.0
  %12073 = vmatmul.mubr.f32.gmra.mxu0 %v11933
  %v12074 = vpop.f32.mrf.mxu0
  %v12075 = vadd.f32 0.0, %v12074
  %v12076 = vpop.f32.mrf.mxu0
  %12077 = vmatprep.mubr.f32.mxu0 0.0
  %12078 = vmatmul.mubr.f32.gmra.mxu0 %v11936
  %v12079 = vpop.f32.mrf.mxu0
  %v12080 = vadd.f32 0.0, %v12079
  %v12081 = vpop.f32.mrf.mxu0
  %12082 = vdwg.mxu0
  %v12083 = vadd.f32 %v11871, %v12005
  %v12084 = vadd.f32 %v11872, %v12010
  %v12085 = vadd.f32 %v11873, %v12015
  %v12086 = vadd.f32 %v11874, %v12020
  %v12087 = vadd.f32 %v11875, %v12025
  %v12088 = vadd.f32 %v11876, %v12030
  %v12089 = vadd.f32 %v11877, %v12035
  %v12090 = vadd.f32 %v11878, %v12040
  %v12091 = vadd.f32 %v11879, %v12045
  %v12092 = vadd.f32 %v11880, %v12050
  %v12093 = vadd.f32 %v11881, %v12055
  %v12094 = vadd.f32 %v11882, %v12060
  %v12095 = vadd.f32 %v11883, %v12065
  %v12096 = vadd.f32 %v11884, %v12070
  %v12097 = vadd.f32 %v11885, %v12075
  %v12098 = vadd.f32 %v11886, %v12080
  %s12099 = scalar_lea.vmem %s75, 32
  %v12100 = vld [vmem:[%s12099] sm:$0xff]
  %v12101 = vld [vmem:[%s12099 + $0x8] sm:$0xff]
  %v12103 = vsel %vm1910, %v11422, 0
  %v12106 = vsel %vm1910, %v11427, 0
  %v12109 = vsel %vm1910, %v11432, 0
  %v12112 = vsel %vm1910, %v11437, 0
  %v12115 = vsel %vm1910, %v11442, 0
  %v12118 = vsel %vm1910, %v11447, 0
  %v12121 = vsel %vm1910, %v11452, 0
  %v12124 = vsel %vm1910, %v11457, 0
  %v12127 = vsel %vm1910, %v11462, 0
  %v12130 = vsel %vm1910, %v11467, 0
  %v12133 = vsel %vm1910, %v11472, 0
  %v12136 = vsel %vm1910, %v11477, 0
  %v12139 = vsel %vm1910, %v11482, 0
  %v12142 = vsel %vm1910, %v11487, 0
  %v12145 = vsel %vm1910, %v11492, 0
  %v12148 = vsel %vm1910, %v11497, 0
  %12150 = vmatprep.subr.mxu0 0.0
  %12151 = vmatpush1.msra.mxu0 0.0
  %12152 = vmatprep.subr.mxu0 0.0
  %12153 = vmatpush1.msra.mxu0 0.0
  %12154 = vmatprep.subr.mxu0 0.0
  %12155 = vmatpush1.msra.mxu0 0.0
  %12156 = vmatprep.subr.mxu0 0.0
  %12157 = vmatpush1.msra.mxu0 0.0
  %12158 = vmatprep.subr.mxu0 0.0
  %12159 = vmatpush1.msra.mxu0 0.0
  %12160 = vmatprep.subr.mxu0 0.0
  %12161 = vmatpush1.msra.mxu0 0.0
  %12162 = vmatprep.subr.mxu0 0.0
  %12163 = vmatpush1.msra.mxu0 0.0
  %12164 = vmatprep.subr.mxu0 0.0
  %12165 = vmatpush1.msra.mxu0 0.0
  %12166 = vmatprep.subr.mxu0 0.0
  %12167 = vmatpush1.msra.mxu0 0.0
  %12168 = vmatprep.subr.mxu0 0.0
  %12169 = vmatpush1.msra.mxu0 0.0
  %12170 = vmatprep.subr.mxu0 0.0
  %12171 = vmatpush1.msra.mxu0 0.0
  %12172 = vmatprep.subr.mxu0 0.0
  %12173 = vmatpush1.msra.mxu0 0.0
  %12174 = vmatprep.subr.mxu0 0.0
  %12175 = vmatpush1.msra.mxu0 0.0
  %12176 = vmatprep.subr.mxu0 0.0
  %12177 = vmatpush1.msra.mxu0 0.0
  %12178 = vmatprep.subr.mxu0 0.0
  %12179 = vmatpush1.msra.mxu0 %v12101
  %12180 = vmatprep.subr.mxu0 0.0
  %12181 = vmatpush1.msra.mxu0 %v12100
  %12182 = vmatprep.subr.mxu0 0.0
  %12183 = vmatpush2.msra.mxu0 0.0
  %12184 = vmatprep.subr.mxu0 0.0
  %12185 = vmatpush2.msra.mxu0 0.0
  %12186 = vmatprep.subr.mxu0 0.0
  %12187 = vmatpush2.msra.mxu0 0.0
  %12188 = vmatprep.subr.mxu0 0.0
  %12189 = vmatpush2.msra.mxu0 0.0
  %12190 = vmatprep.subr.mxu0 0.0
  %12191 = vmatpush2.msra.mxu0 0.0
  %12192 = vmatprep.subr.mxu0 0.0
  %12193 = vmatpush2.msra.mxu0 0.0
  %12194 = vmatprep.subr.mxu0 0.0
  %12195 = vmatpush2.msra.mxu0 0.0
  %12196 = vmatprep.subr.mxu0 0.0
  %12197 = vmatpush2.msra.mxu0 0.0
  %12198 = vmatprep.subr.mxu0 0.0
  %12199 = vmatpush2.msra.mxu0 0.0
  %12200 = vmatprep.subr.mxu0 0.0
  %12201 = vmatpush2.msra.mxu0 0.0
  %12202 = vmatprep.subr.mxu0 0.0
  %12203 = vmatpush2.msra.mxu0 0.0
  %12204 = vmatprep.subr.mxu0 0.0
  %12205 = vmatpush2.msra.mxu0 0.0
  %12206 = vmatprep.subr.mxu0 0.0
  %12207 = vmatpush2.msra.mxu0 0.0
  %12208 = vmatprep.subr.mxu0 0.0
  %12209 = vmatpush2.msra.mxu0 0.0
  %12210 = vmatprep.subr.mxu0 0.0
  %12211 = vmatpush2.msra.mxu0 0.0
  %12212 = vmatprep.subr.mxu0 0.0
  %12213 = vmatpush2.msra.mxu0 0.0
  %12214 = vmatprep.mubr.f32.mxu0 0.0
  %12215 = vmatmul.mubr.f32.gmra.mxu0 %v12103
  %v12216 = vpop.f32.mrf.mxu0
  %v12217 = vadd.f32 0.0, %v12216
  %v12218 = vpop.f32.mrf.mxu0
  %12219 = vmatprep.mubr.f32.mxu0 0.0
  %12220 = vmatmul.mubr.f32.gmra.mxu0 %v12106
  %v12221 = vpop.f32.mrf.mxu0
  %v12222 = vadd.f32 0.0, %v12221
  %v12223 = vpop.f32.mrf.mxu0
  %12224 = vmatprep.mubr.f32.mxu0 0.0
  %12225 = vmatmul.mubr.f32.gmra.mxu0 %v12109
  %v12226 = vpop.f32.mrf.mxu0
  %v12227 = vadd.f32 0.0, %v12226
  %v12228 = vpop.f32.mrf.mxu0
  %12229 = vmatprep.mubr.f32.mxu0 0.0
  %12230 = vmatmul.mubr.f32.gmra.mxu0 %v12112
  %v12231 = vpop.f32.mrf.mxu0
  %v12232 = vadd.f32 0.0, %v12231
  %v12233 = vpop.f32.mrf.mxu0
  %12234 = vmatprep.mubr.f32.mxu0 0.0
  %12235 = vmatmul.mubr.f32.gmra.mxu0 %v12115
  %v12236 = vpop.f32.mrf.mxu0
  %v12237 = vadd.f32 0.0, %v12236
  %v12238 = vpop.f32.mrf.mxu0
  %12239 = vmatprep.mubr.f32.mxu0 0.0
  %12240 = vmatmul.mubr.f32.gmra.mxu0 %v12118
  %v12241 = vpop.f32.mrf.mxu0
  %v12242 = vadd.f32 0.0, %v12241
  %v12243 = vpop.f32.mrf.mxu0
  %12244 = vmatprep.mubr.f32.mxu0 0.0
  %12245 = vmatmul.mubr.f32.gmra.mxu0 %v12121
  %v12246 = vpop.f32.mrf.mxu0
  %v12247 = vadd.f32 0.0, %v12246
  %v12248 = vpop.f32.mrf.mxu0
  %12249 = vmatprep.mubr.f32.mxu0 0.0
  %12250 = vmatmul.mubr.f32.gmra.mxu0 %v12124
  %v12251 = vpop.f32.mrf.mxu0
  %v12252 = vadd.f32 0.0, %v12251
  %v12253 = vpop.f32.mrf.mxu0
  %12254 = vmatprep.mubr.f32.mxu0 0.0
  %12255 = vmatmul.mubr.f32.gmra.mxu0 %v12127
  %v12256 = vpop.f32.mrf.mxu0
  %v12257 = vadd.f32 0.0, %v12256
  %v12258 = vpop.f32.mrf.mxu0
  %12259 = vmatprep.mubr.f32.mxu0 0.0
  %12260 = vmatmul.mubr.f32.gmra.mxu0 %v12130
  %v12261 = vpop.f32.mrf.mxu0
  %v12262 = vadd.f32 0.0, %v12261
  %v12263 = vpop.f32.mrf.mxu0
  %12264 = vmatprep.mubr.f32.mxu0 0.0
  %12265 = vmatmul.mubr.f32.gmra.mxu0 %v12133
  %v12266 = vpop.f32.mrf.mxu0
  %v12267 = vadd.f32 0.0, %v12266
  %v12268 = vpop.f32.mrf.mxu0
  %12269 = vmatprep.mubr.f32.mxu0 0.0
  %12270 = vmatmul.mubr.f32.gmra.mxu0 %v12136
  %v12271 = vpop.f32.mrf.mxu0
  %v12272 = vadd.f32 0.0, %v12271
  %v12273 = vpop.f32.mrf.mxu0
  %12274 = vmatprep.mubr.f32.mxu0 0.0
  %12275 = vmatmul.mubr.f32.gmra.mxu0 %v12139
  %v12276 = vpop.f32.mrf.mxu0
  %v12277 = vadd.f32 0.0, %v12276
  %v12278 = vpop.f32.mrf.mxu0
  %12279 = vmatprep.mubr.f32.mxu0 0.0
  %12280 = vmatmul.mubr.f32.gmra.mxu0 %v12142
  %v12281 = vpop.f32.mrf.mxu0
  %v12282 = vadd.f32 0.0, %v12281
  %v12283 = vpop.f32.mrf.mxu0
  %12284 = vmatprep.mubr.f32.mxu0 0.0
  %12285 = vmatmul.mubr.f32.gmra.mxu0 %v12145
  %v12286 = vpop.f32.mrf.mxu0
  %v12287 = vadd.f32 0.0, %v12286
  %v12288 = vpop.f32.mrf.mxu0
  %12289 = vmatprep.mubr.f32.mxu0 0.0
  %12290 = vmatmul.mubr.f32.gmra.mxu0 %v12148
  %v12291 = vpop.f32.mrf.mxu0
  %v12292 = vadd.f32 0.0, %v12291
  %v12293 = vpop.f32.mrf.mxu0
  %12294 = vdwg.mxu0
  %v12295 = vadd.f32 %v12083, %v12217
  %v12296 = vadd.f32 %v12084, %v12222
  %v12297 = vadd.f32 %v12085, %v12227
  %v12298 = vadd.f32 %v12086, %v12232
  %v12299 = vadd.f32 %v12087, %v12237
  %v12300 = vadd.f32 %v12088, %v12242
  %v12301 = vadd.f32 %v12089, %v12247
  %v12302 = vadd.f32 %v12090, %v12252
  %v12303 = vadd.f32 %v12091, %v12257
  %v12304 = vadd.f32 %v12092, %v12262
  %v12305 = vadd.f32 %v12093, %v12267
  %v12306 = vadd.f32 %v12094, %v12272
  %v12307 = vadd.f32 %v12095, %v12277
  %v12308 = vadd.f32 %v12096, %v12282
  %v12309 = vadd.f32 %v12097, %v12287
  %v12310 = vadd.f32 %v12098, %v12292
  %s12311 = scalar_lea.vmem %s75, 48
  %v12312 = vld [vmem:[%s12311] sm:$0xff]
  %v12313 = vld [vmem:[%s12311 + $0x8] sm:$0xff]
  %v12315 = vsel %vm1910, %v11502, 0
  %v12318 = vsel %vm1910, %v11507, 0
  %v12321 = vsel %vm1910, %v11512, 0
  %v12324 = vsel %vm1910, %v11517, 0
  %v12327 = vsel %vm1910, %v11522, 0
  %v12330 = vsel %vm1910, %v11527, 0
  %v12333 = vsel %vm1910, %v11532, 0
  %v12336 = vsel %vm1910, %v11537, 0
  %v12339 = vsel %vm1910, %v11542, 0
  %v12342 = vsel %vm1910, %v11547, 0
  %v12345 = vsel %vm1910, %v11552, 0
  %v12348 = vsel %vm1910, %v11557, 0
  %v12351 = vsel %vm1910, %v11562, 0
  %v12354 = vsel %vm1910, %v11567, 0
  %v12357 = vsel %vm1910, %v11572, 0
  %v12360 = vsel %vm1910, %v11577, 0
  %12362 = vmatprep.subr.mxu0 0.0
  %12363 = vmatpush1.msra.mxu0 0.0
  %12364 = vmatprep.subr.mxu0 0.0
  %12365 = vmatpush1.msra.mxu0 0.0
  %12366 = vmatprep.subr.mxu0 0.0
  %12367 = vmatpush1.msra.mxu0 0.0
  %12368 = vmatprep.subr.mxu0 0.0
  %12369 = vmatpush1.msra.mxu0 0.0
  %12370 = vmatprep.subr.mxu0 0.0
  %12371 = vmatpush1.msra.mxu0 0.0
  %12372 = vmatprep.subr.mxu0 0.0
  %12373 = vmatpush1.msra.mxu0 0.0
  %12374 = vmatprep.subr.mxu0 0.0
  %12375 = vmatpush1.msra.mxu0 0.0
  %12376 = vmatprep.subr.mxu0 0.0
  %12377 = vmatpush1.msra.mxu0 0.0
  %12378 = vmatprep.subr.mxu0 0.0
  %12379 = vmatpush1.msra.mxu0 0.0
  %12380 = vmatprep.subr.mxu0 0.0
  %12381 = vmatpush1.msra.mxu0 0.0
  %12382 = vmatprep.subr.mxu0 0.0
  %12383 = vmatpush1.msra.mxu0 0.0
  %12384 = vmatprep.subr.mxu0 0.0
  %12385 = vmatpush1.msra.mxu0 0.0
  %12386 = vmatprep.subr.mxu0 0.0
  %12387 = vmatpush1.msra.mxu0 0.0
  %12388 = vmatprep.subr.mxu0 0.0
  %12389 = vmatpush1.msra.mxu0 0.0
  %12390 = vmatprep.subr.mxu0 0.0
  %12391 = vmatpush1.msra.mxu0 %v12313
  %12392 = vmatprep.subr.mxu0 0.0
  %12393 = vmatpush1.msra.mxu0 %v12312
  %12394 = vmatprep.subr.mxu0 0.0
  %12395 = vmatpush2.msra.mxu0 0.0
  %12396 = vmatprep.subr.mxu0 0.0
  %12397 = vmatpush2.msra.mxu0 0.0
  %12398 = vmatprep.subr.mxu0 0.0
  %12399 = vmatpush2.msra.mxu0 0.0
  %12400 = vmatprep.subr.mxu0 0.0
  %12401 = vmatpush2.msra.mxu0 0.0
  %12402 = vmatprep.subr.mxu0 0.0
  %12403 = vmatpush2.msra.mxu0 0.0
  %12404 = vmatprep.subr.mxu0 0.0
  %12405 = vmatpush2.msra.mxu0 0.0
  %12406 = vmatprep.subr.mxu0 0.0
  %12407 = vmatpush2.msra.mxu0 0.0
  %12408 = vmatprep.subr.mxu0 0.0
  %12409 = vmatpush2.msra.mxu0 0.0
  %12410 = vmatprep.subr.mxu0 0.0
  %12411 = vmatpush2.msra.mxu0 0.0
  %12412 = vmatprep.subr.mxu0 0.0
  %12413 = vmatpush2.msra.mxu0 0.0
  %12414 = vmatprep.subr.mxu0 0.0
  %12415 = vmatpush2.msra.mxu0 0.0
  %12416 = vmatprep.subr.mxu0 0.0
  %12417 = vmatpush2.msra.mxu0 0.0
  %12418 = vmatprep.subr.mxu0 0.0
  %12419 = vmatpush2.msra.mxu0 0.0
  %12420 = vmatprep.subr.mxu0 0.0
  %12421 = vmatpush2.msra.mxu0 0.0
  %12422 = vmatprep.subr.mxu0 0.0
  %12423 = vmatpush2.msra.mxu0 0.0
  %12424 = vmatprep.subr.mxu0 0.0
  %12425 = vmatpush2.msra.mxu0 0.0
  %12426 = vmatprep.mubr.f32.mxu0 0.0
  %12427 = vmatmul.mubr.f32.gmra.mxu0 %v12315
  %v12428 = vpop.f32.mrf.mxu0
  %v12429 = vadd.f32 0.0, %v12428
  %v12430 = vpop.f32.mrf.mxu0
  %12431 = vmatprep.mubr.f32.mxu0 0.0
  %12432 = vmatmul.mubr.f32.gmra.mxu0 %v12318
  %v12433 = vpop.f32.mrf.mxu0
  %v12434 = vadd.f32 0.0, %v12433
  %v12435 = vpop.f32.mrf.mxu0
  %12436 = vmatprep.mubr.f32.mxu0 0.0
  %12437 = vmatmul.mubr.f32.gmra.mxu0 %v12321
  %v12438 = vpop.f32.mrf.mxu0
  %v12439 = vadd.f32 0.0, %v12438
  %v12440 = vpop.f32.mrf.mxu0
  %12441 = vmatprep.mubr.f32.mxu0 0.0
  %12442 = vmatmul.mubr.f32.gmra.mxu0 %v12324
  %v12443 = vpop.f32.mrf.mxu0
  %v12444 = vadd.f32 0.0, %v12443
  %v12445 = vpop.f32.mrf.mxu0
  %12446 = vmatprep.mubr.f32.mxu0 0.0
  %12447 = vmatmul.mubr.f32.gmra.mxu0 %v12327
  %v12448 = vpop.f32.mrf.mxu0
  %v12449 = vadd.f32 0.0, %v12448
  %v12450 = vpop.f32.mrf.mxu0
  %12451 = vmatprep.mubr.f32.mxu0 0.0
  %12452 = vmatmul.mubr.f32.gmra.mxu0 %v12330
  %v12453 = vpop.f32.mrf.mxu0
  %v12454 = vadd.f32 0.0, %v12453
  %v12455 = vpop.f32.mrf.mxu0
  %12456 = vmatprep.mubr.f32.mxu0 0.0
  %12457 = vmatmul.mubr.f32.gmra.mxu0 %v12333
  %v12458 = vpop.f32.mrf.mxu0
  %v12459 = vadd.f32 0.0, %v12458
  %v12460 = vpop.f32.mrf.mxu0
  %12461 = vmatprep.mubr.f32.mxu0 0.0
  %12462 = vmatmul.mubr.f32.gmra.mxu0 %v12336
  %v12463 = vpop.f32.mrf.mxu0
  %v12464 = vadd.f32 0.0, %v12463
  %v12465 = vpop.f32.mrf.mxu0
  %12466 = vmatprep.mubr.f32.mxu0 0.0
  %12467 = vmatmul.mubr.f32.gmra.mxu0 %v12339
  %v12468 = vpop.f32.mrf.mxu0
  %v12469 = vadd.f32 0.0, %v12468
  %v12470 = vpop.f32.mrf.mxu0
  %12471 = vmatprep.mubr.f32.mxu0 0.0
  %12472 = vmatmul.mubr.f32.gmra.mxu0 %v12342
  %v12473 = vpop.f32.mrf.mxu0
  %v12474 = vadd.f32 0.0, %v12473
  %v12475 = vpop.f32.mrf.mxu0
  %12476 = vmatprep.mubr.f32.mxu0 0.0
  %12477 = vmatmul.mubr.f32.gmra.mxu0 %v12345
  %v12478 = vpop.f32.mrf.mxu0
  %v12479 = vadd.f32 0.0, %v12478
  %v12480 = vpop.f32.mrf.mxu0
  %12481 = vmatprep.mubr.f32.mxu0 0.0
  %12482 = vmatmul.mubr.f32.gmra.mxu0 %v12348
  %v12483 = vpop.f32.mrf.mxu0
  %v12484 = vadd.f32 0.0, %v12483
  %v12485 = vpop.f32.mrf.mxu0
  %12486 = vmatprep.mubr.f32.mxu0 0.0
  %12487 = vmatmul.mubr.f32.gmra.mxu0 %v12351
  %v12488 = vpop.f32.mrf.mxu0
  %v12489 = vadd.f32 0.0, %v12488
  %v12490 = vpop.f32.mrf.mxu0
  %12491 = vmatprep.mubr.f32.mxu0 0.0
  %12492 = vmatmul.mubr.f32.gmra.mxu0 %v12354
  %v12493 = vpop.f32.mrf.mxu0
  %v12494 = vadd.f32 0.0, %v12493
  %v12495 = vpop.f32.mrf.mxu0
  %12496 = vmatprep.mubr.f32.mxu0 0.0
  %12497 = vmatmul.mubr.f32.gmra.mxu0 %v12357
  %v12498 = vpop.f32.mrf.mxu0
  %v12499 = vadd.f32 0.0, %v12498
  %v12500 = vpop.f32.mrf.mxu0
  %12501 = vmatprep.mubr.f32.mxu0 0.0
  %12502 = vmatmul.mubr.f32.gmra.mxu0 %v12360
  %v12503 = vpop.f32.mrf.mxu0
  %v12504 = vadd.f32 0.0, %v12503
  %v12505 = vpop.f32.mrf.mxu0
  %12506 = vdwg.mxu0
  %v12507 = vadd.f32 %v12295, %v12429
  %v12508 = vadd.f32 %v12296, %v12434
  %v12509 = vadd.f32 %v12297, %v12439
  %v12510 = vadd.f32 %v12298, %v12444
  %v12511 = vadd.f32 %v12299, %v12449
  %v12512 = vadd.f32 %v12300, %v12454
  %v12513 = vadd.f32 %v12301, %v12459
  %v12514 = vadd.f32 %v12302, %v12464
  %v12515 = vadd.f32 %v12303, %v12469
  %v12516 = vadd.f32 %v12304, %v12474
  %v12517 = vadd.f32 %v12305, %v12479
  %v12518 = vadd.f32 %v12306, %v12484
  %v12519 = vadd.f32 %v12307, %v12489
  %v12520 = vadd.f32 %v12308, %v12494
  %v12521 = vadd.f32 %v12309, %v12499
  %v12522 = vadd.f32 %v12310, %v12504
  %12523 = vst.msk [vmem:[%s79] sm:$0xff] %vm647, %v12507
  %12524 = vst.msk [vmem:[%s79 + $0x8] sm:$0xff] %vm647, %v12508
  %12525 = vst.msk [vmem:[%s79 + $0x10] sm:$0xff] %vm647, %v12509
  %12526 = vst.msk [vmem:[%s79 + $0x18] sm:$0xff] %vm647, %v12510
  %12527 = vst.msk [vmem:[%s79 + $0x20] sm:$0xff] %vm647, %v12511
  %12528 = vst.msk [vmem:[%s79 + $0x28] sm:$0xff] %vm647, %v12512
  %12529 = vst.msk [vmem:[%s79 + $0x30] sm:$0xff] %vm647, %v12513
  %12530 = vst.msk [vmem:[%s79 + $0x38] sm:$0xff] %vm647, %v12514
  %12531 = vst.msk [vmem:[%s79 + $0x40] sm:$0xff] %vm647, %v12515
  %12532 = vst.msk [vmem:[%s79 + $0x48] sm:$0xff] %vm647, %v12516
  %12533 = vst.msk [vmem:[%s79 + $0x50] sm:$0xff] %vm647, %v12517
  %12534 = vst.msk [vmem:[%s79 + $0x58] sm:$0xff] %vm647, %v12518
  %12535 = vst.msk [vmem:[%s79 + $0x60] sm:$0xff] %vm647, %v12519
  %12536 = vst.msk [vmem:[%s79 + $0x68] sm:$0xff] %vm647, %v12520
  %12537 = vst.msk [vmem:[%s79 + $0x70] sm:$0xff] %vm647, %v12521
  %12538 = vst.msk [vmem:[%s79 + $0x78] sm:$0xff] %vm647, %v12522
  // Predicated region
  $region158: #{forward.1} parent=0 // pred_check
    _
  $region159: #{forward.1} parent=0 // pred_check_branch
    %12540 = sbr.rel (0) target = $region161
  $region160: #{forward.1} parent=0 // pred_region
    _
  $region161: #{forward.1} parent=0 // pred_fallthru
    _
  // Predicated region
  $region162: #{forward.1} parent=0 // pred_check
    _
  $region163: #{forward.1} parent=0 // pred_check_branch
    %12542 = sbr.rel (0) target = $region165
  $region164: #{forward.1} parent=0 // pred_region
    _
  $region165: #{forward.1} parent=0 // pred_fallthru
    _

</llo_original>
